<compile_context>
chip_gen: v7x
topology: tpu7x:2x2x1
jax: 0.10.0
libtpu: 0.0.40
codegen_flags: <defaults>
</compile_context>

<pallas_src>
import functools
import math

import jax
import jax.numpy as jnp
from jax.experimental import pallas as pl
from jax.experimental.pallas import tpu as pltpu

_BN_EPS = 1e-5
_ACC_MAX_ELEMS = 32 * 1024          # f32 accumulator cap (~half the 64x4KiB vreg file)


# ----------------------------------------------------------------------------
# Per-generation VMEM budget
# ----------------------------------------------------------------------------
@functools.lru_cache(maxsize=1)
def _vmem_limit_bytes():
    cap = 64 << 20                                   # conservative fallback (v7x per-TC)
    try:
        cap = int(pltpu.get_tpu_info().vmem_capacity_bytes)
    except Exception:
        pass
    # Leave headroom for Mosaic internal scratch / semaphores.
    return max(32 << 20, min(int(cap * 3 // 4), 100 << 20))


# ----------------------------------------------------------------------------
# Generic tiled conv kernel: n_dx shifted VMEM views -> bf16 MXU matmuls with
# f32 accumulation -> f32 per-channel affine + LeakyReLU -> bf16 store
# ----------------------------------------------------------------------------
def _conv_kernel(x_ref, w_ref, scale_ref, shift_ref, o_ref, *, n_dx, w_out, leaky):
    # x_ref:     (TH, Wc, Kc)     bf16  row-aligned phase-gathered input tile
    # w_ref:     (n_dx, Kc, Cp)   bf16  one (Kc, Cp) matrix per W-shift
    # scale_ref: (1, Cp)          f32   BN scale (or 1)
    # shift_ref: (1, Cp)          f32   folded conv-bias / BN shift
    # o_ref:     (TH*Wout, Cp)    bf16  flattened-rows output tile (lanes = Cp)
    x = x_ref[...]
    th, _, kc = x.shape
    cp = o_ref.shape[-1]
    acc = jnp.zeros((th * w_out, cp), jnp.float32)
    for dx in range(n_dx):                                    # static, unrolled
        a = x[:, dx:dx + w_out, :].reshape(th * w_out, kc)    # VMEM view/copy, no HBM traffic
        acc = acc + jnp.dot(a, w_ref[dx], preferred_element_type=jnp.float32)
    y = acc * scale_ref[...] + shift_ref[...]                 # f32 epilogue (v5e: no bf16 VPU)
    if leaky:
        y = jnp.maximum(y, 0.2 * y)                           # LeakyReLU(0.2)
    o_ref[...] = y.astype(o_ref.dtype)                        # cast to bf16 only at the store


def _pick_tile_rows(ho, wo, wc, kc, cout, n_dx, vmem_limit, batch):
    """Largest output-row tile th (divisor of ho) such that
       * the flattened store block (th*wo, cout) is sublane-legal,
       * double-buffered in/out blocks + weights + f32 accumulator fit the budget,
       * the f32 accumulator stays under ~half the vreg file,
       preferring an even total grid-step count (v7x megacore)."""
    budget = int(vmem_limit * 0.6)
    w_bytes = 2 * (n_dx * kc * cout * 2) + 2 * (2 * cout * 4)   # weights (x2 buf) + scale/shift

    def shape_ok(t):
        return ho % t == 0 and ((t * wo) % 8 == 0 or t == ho)

    def fits(t):
        in_b = 2 * (t * wc * kc * 2)           # bf16 input block, double buffered
        out_b = 2 * (t * wo * cout * 2)        # bf16 output block, double buffered
        acc_b = t * wo * cout * 4              # f32 accumulator (vregs / spill)
        sl_b = t * wc * kc * 2                 # one materialized shifted-slice copy
        return ((in_b + out_b + acc_b + sl_b + w_bytes) <= budget
                and (t * wo * cout) <= _ACC_MAX_ELEMS)

    candidates = [t for t in range(1, ho + 1) if shape_ok(t)]
    feas = [t for t in candidates if fits(t)]
    pool = feas if feas else candidates[:1]    # smallest shape-legal tile as last resort
    best = max(pool)
    if batch % 2 == 1 and (batch * (ho // best)) % 2 == 1:
        even = [t for t in pool if (ho // t) % 2 == 0 and 2 * t >= best]
        if even:
            best = max(even)                   # even split across the 2 TCs
    return best


def conv4x4_layer(xcat, wstack, scale, shift, *, ho, wo, cout, leaky):
    b, _, wc, kc = xcat.shape
    n_dx = wstack.shape[0]
    vmem_limit = _vmem_limit_bytes()
    th = _pick_tile_rows(ho, wo, wc, kc, cout, n_dx, vmem_limit, b)
    grid = (b, ho // th)
    kernel = functools.partial(_conv_kernel, n_dx=n_dx, w_out=wo, leaky=leaky)
    y = pl.pallas_call(
        kernel,
        out_shape=jax.ShapeDtypeStruct((b, ho * wo, cout), jnp.bfloat16),
        grid=grid,
        in_specs=[
            pl.BlockSpec((None, th, wc, kc), lambda bi, ri: (bi, ri, 0, 0)),
            pl.BlockSpec((n_dx, kc, cout), lambda bi, ri: (0, 0, 0)),
            pl.BlockSpec((1, cout), lambda bi, ri: (0, 0)),
            pl.BlockSpec((1, cout), lambda bi, ri: (0, 0)),
        ],
        out_specs=pl.BlockSpec((None, th * wo, cout), lambda bi, ri: (bi, ri, 0)),
        compiler_params=pltpu.CompilerParams(
            dimension_semantics=("parallel", "parallel"),
            vmem_limit_bytes=vmem_limit,
        ),
    )(xcat, wstack, scale, shift)
    return y.reshape(b, ho, wo, cout)          # free: contiguous row-major


# ----------------------------------------------------------------------------
# Host-side phase gather (cheap layout ops in bf16 — not 16x im2col)
# ----------------------------------------------------------------------------
def _prep_stride2(x):
    # k=4, s=2, p=1: out[oy,ox] = sum_{ky,px,dx} xp[2oy+ky, 2(ox+dx)+px] w[ky, 2dx+px]
    b, h, w, c = x.shape
    ho, wo = h // 2, w // 2
    xp = jnp.pad(x, ((0, 0), (1, 1), (1, 1), (0, 0)))
    slabs = [xp[:, ky:ky + 2 * ho - 1:2, px:px + 2 * wo + 1:2, :]
             for ky in range(4) for px in range(2)]
    return jnp.concatenate(slabs, axis=-1), ho, wo            # (B, Ho, Wo+1, 8*C) bf16


def _prep_stride1(x):
    # k=4, s=1, p=1: out[oy,ox] = sum_{ky,kx} xp[oy+ky, ox+kx] w[ky,kx]
    b, h, w, c = x.shape
    ho, wo = h - 1, w - 1
    xp = jnp.pad(x, ((0, 0), (1, 1), (1, 1), (0, 0)))
    slabs = [xp[:, ky:ky + ho, :, :] for ky in range(4)]
    return jnp.concatenate(slabs, axis=-1), ho, wo            # (B, Ho, W+2, 4*C) bf16


def _prep_w_stride2(w):                                       # w: (Cout, Cin, 4, 4) torch layout
    mats = []
    for dx in range(2):
        blocks = [w[:, :, ky, 2 * dx + px].T for ky in range(4) for px in range(2)]
        mats.append(jnp.concatenate(blocks, axis=0))          # (8*Cin, Cout)
    return jnp.stack(mats, axis=0).astype(jnp.bfloat16)       # (2, 8*Cin, Cout)


def _prep_w_stride1(w):
    mats = []
    for kx in range(4):
        blocks = [w[:, :, ky, kx].T for ky in range(4)]
        mats.append(jnp.concatenate(blocks, axis=0))          # (4*Cin, Cout)
    return jnp.stack(mats, axis=0).astype(jnp.bfloat16)       # (4, 4*Cin, Cout)


# ----------------------------------------------------------------------------
# Parameters (kaiming_normal a=0.2 fan_in leaky_relu, zero bias) + forward
# ----------------------------------------------------------------------------
def make_params(key, in_channels=3, num_features=64, num_layers=3):
    cfg = [(in_channels, num_features, 2, False, True)]       # (cin, cout, stride, bn, leaky)
    c = num_features
    for _ in range(1, num_layers):
        cfg.append((c, 2 * c, 2, True, True))
        c *= 2
    cfg.append((c, 1, 1, False, False))
    cfg = tuple(cfg)
    keys = jax.random.split(key, len(cfg))
    a = 0.2
    gain = math.sqrt(2.0 / (1.0 + a * a))
    params = []
    for (ci, co, _s, _bn, _act), k in zip(cfg, keys):
        std = gain / math.sqrt(ci * 16)                        # fan_in = Cin * 4 * 4
        params.append({
            'w': std * jax.random.normal(k, (co, ci, 4, 4), jnp.float32),
            'b': jnp.zeros((co,), jnp.float32),
        })
    return cfg, params


def patch_discriminator(x_nchw, params, *, cfg):
    x = jnp.transpose(x_nchw, (0, 2, 3, 1)).astype(jnp.bfloat16)    # NCHW -> NHWC, bf16
    # Zero-pad input channels to a multiple of 16 so layer-1 Kc = 8*Cin is a
    # multiple of 128 (lane-dense slab / A operand, full MXU K-depth).
    cin0 = x.shape[-1]
    cin_p = ((cin0 + 15) // 16) * 16
    if cin_p != cin0:
        x = jnp.pad(x, ((0, 0), (0, 0), (0, 0), (0, cin_p - cin0)))
    for (_cin, cout, stride, has_bn, has_act), p in zip(cfg, params):
        w = p['w']
        if w.shape[1] != x.shape[-1]:          # first layer: match padded Cin with zero weights
            w = jnp.pad(w, ((0, 0), (0, x.shape[-1] - w.shape[1]), (0, 0), (0, 0)))
        if stride == 2:
            xcat, ho, wo = _prep_stride2(x)
            wstack = _prep_w_stride2(w)
        else:
            xcat, ho, wo = _prep_stride1(x)
            wstack = _prep_w_stride1(w)
        if has_bn:
            scale = jnp.full((cout,), 1.0 / math.sqrt(1.0 + _BN_EPS), jnp.float32)
        else:
            scale = jnp.ones((cout,), jnp.float32)
        shift = p['b'] * scale
        cp = cout
        if cout < 8:                           # lane-dense store for the 1-channel head
            cp = 128
            wstack = jnp.pad(wstack, ((0, 0), (0, 0), (0, cp - cout)))
            scale = jnp.pad(scale, (0, cp - cout))
            shift = jnp.pad(shift, (0, cp - cout))
        y = conv4x4_layer(xcat, wstack, scale.reshape(1, cp), shift.reshape(1, cp),
                          ho=ho, wo=wo, cout=cp, leaky=has_act)
        x = y[..., :cout] if cp != cout else y
    return jnp.transpose(x, (0, 3, 1, 2)).astype(jnp.float32)       # NHWC -> NCHW


if __name__ == "__main__":
    key = jax.random.PRNGKey(0)
    kx, kp = jax.random.split(key)
    B, CIN, H, W = 2, 3, 32, 32
    x = jax.random.normal(kx, (B, CIN, H, W), jnp.float32)
    cfg, params = make_params(kp, in_channels=CIN, num_features=64, num_layers=3)

    fwd = jax.jit(functools.partial(patch_discriminator, cfg=cfg))
    out = jax.block_until_ready(fwd(x, params))

    # 32 -> 16 -> 8 -> 4 (stride-2 x3), then k4/s1/p1 -> 3
    assert out.shape == (B, 1, 3, 3), out.shape
    assert bool(jnp.all(jnp.isfinite(out)))
    print("KERNEL_OK")
</pallas_src>

<mosaic_0001>
module attributes {stable_mosaic.version = 11 : i64} {
  func.func @_conv_kernel(%arg0: i32, %arg1: i32, %arg2: memref<1x16x17x128xbf16, #tpu.memory_space<vmem>>, %arg3: memref<2x128x64xbf16, #tpu.memory_space<vmem>>, %arg4: memref<1x64xf32, #tpu.memory_space<vmem>>, %arg5: memref<1x64xf32, #tpu.memory_space<vmem>>, %arg6: memref<1x256x64xbf16, #tpu.memory_space<vmem>>) attributes {dimension_semantics = [#tpu.dimension_semantics<parallel>, #tpu.dimension_semantics<parallel>], iteration_bounds = array<i64: 2, 1>, scalar_prefetch = 0 : i64, scratch_operands = 0 : i64, tpu.core_type = #tpu.core_type<tc>, window_params = [{transform_indices = @transform_0, window_bounds = array<i64: 1, 16, 17, 128>}, {pipeline_mode = #tpu.pipeline_mode<synchronous>, transform_indices = @transform_1, window_bounds = array<i64: 2, 128, 64>}, {pipeline_mode = #tpu.pipeline_mode<synchronous>, transform_indices = @transform_2, window_bounds = array<i64: 1, 64>}, {pipeline_mode = #tpu.pipeline_mode<synchronous>, transform_indices = @transform_3, window_bounds = array<i64: 1, 64>}, {transform_indices = @transform_4, window_bounds = array<i64: 1, 256, 64>}]} {
    %c0 = arith.constant 0 : index
    %c0_0 = arith.constant 0 : index
    %c0_1 = arith.constant 0 : index
    %c0_2 = arith.constant 0 : index
    %0 = vector.load %arg2[%c0, %c0_0, %c0_1, %c0_2] : memref<1x16x17x128xbf16, #tpu.memory_space<vmem>>, vector<1x16x17x128xbf16>
    %1 = vector.shape_cast %0 : vector<1x16x17x128xbf16> to vector<16x17x128xbf16>
    %cst = arith.constant 0.000000e+00 : f32
    %2 = vector.broadcast %cst : f32 to vector<256x64xf32>
    %3 = vector.extract_strided_slice %1 {offsets = [0, 0, 0], sizes = [16, 16, 128], strides = [1, 1, 1]} : vector<16x17x128xbf16> to vector<16x16x128xbf16>
    %4 = vector.shape_cast %3 : vector<16x16x128xbf16> to vector<256x128xbf16>
    %c0_3 = arith.constant 0 : index
    %c0_4 = arith.constant 0 : index
    %c0_5 = arith.constant 0 : index
    %5 = vector.load %arg3[%c0_3, %c0_4, %c0_5] : memref<2x128x64xbf16, #tpu.memory_space<vmem>>, vector<1x128x64xbf16>
    %6 = vector.shape_cast %5 : vector<1x128x64xbf16> to vector<128x64xbf16>
    %cst_6 = arith.constant dense<0.000000e+00> : vector<256x64xf32>
    %7 = tpu.matmul %4, %6, %cst_6 {dimension_numbers = #tpu.dot_dimension_numbers<[1], [0], [0], [1], [0, 0, 1, 1], [], []>} : vector<256x128xbf16>, vector<128x64xbf16>, vector<256x64xf32> -> vector<256x64xf32>
    %8 = arith.addf %2, %7 : vector<256x64xf32>
    %9 = vector.extract_strided_slice %1 {offsets = [0, 1, 0], sizes = [16, 16, 128], strides = [1, 1, 1]} : vector<16x17x128xbf16> to vector<16x16x128xbf16>
    %10 = vector.shape_cast %9 : vector<16x16x128xbf16> to vector<256x128xbf16>
    %c1 = arith.constant 1 : index
    %c0_7 = arith.constant 0 : index
    %c0_8 = arith.constant 0 : index
    %11 = vector.load %arg3[%c1, %c0_7, %c0_8] : memref<2x128x64xbf16, #tpu.memory_space<vmem>>, vector<1x128x64xbf16>
    %12 = vector.shape_cast %11 : vector<1x128x64xbf16> to vector<128x64xbf16>
    %cst_9 = arith.constant dense<0.000000e+00> : vector<256x64xf32>
    %13 = tpu.matmul %10, %12, %cst_9 {dimension_numbers = #tpu.dot_dimension_numbers<[1], [0], [0], [1], [0, 0, 1, 1], [], []>} : vector<256x128xbf16>, vector<128x64xbf16>, vector<256x64xf32> -> vector<256x64xf32>
    %14 = arith.addf %8, %13 : vector<256x64xf32>
    %c0_10 = arith.constant 0 : index
    %c0_11 = arith.constant 0 : index
    %15 = vector.load %arg4[%c0_10, %c0_11] : memref<1x64xf32, #tpu.memory_space<vmem>>, vector<1x64xf32>
    %16 = vector.broadcast %15 : vector<1x64xf32> to vector<256x64xf32>
    %17 = arith.mulf %14, %16 : vector<256x64xf32>
    %c0_12 = arith.constant 0 : index
    %c0_13 = arith.constant 0 : index
    %18 = vector.load %arg5[%c0_12, %c0_13] : memref<1x64xf32, #tpu.memory_space<vmem>>, vector<1x64xf32>
    %19 = vector.broadcast %18 : vector<1x64xf32> to vector<256x64xf32>
    %20 = arith.addf %17, %19 : vector<256x64xf32>
    %cst_14 = arith.constant 2.000000e-01 : f32
    %21 = vector.broadcast %cst_14 : f32 to vector<256x64xf32>
    %22 = arith.mulf %21, %20 : vector<256x64xf32>
    %23 = arith.maximumf %20, %22 : vector<256x64xf32>
    %24 = arith.truncf %23 : vector<256x64xf32> to vector<256x64xbf16>
    %c0_15 = arith.constant 0 : index
    %c0_16 = arith.constant 0 : index
    %c0_17 = arith.constant 0 : index
    %25 = vector.load %arg6[%c0_15, %c0_16, %c0_17] : memref<1x256x64xbf16, #tpu.memory_space<vmem>>, vector<1x256x64xbf16>
    %26 = vector.shape_cast %25 : vector<1x256x64xbf16> to vector<256x64xbf16>
    %27 = vector.shape_cast %24 : vector<256x64xbf16> to vector<1x256x64xbf16>
    tpu.vector_store %arg6[%c0_15, %c0_16, %c0_17], %27 {strides = array<i32>} : memref<1x256x64xbf16, #tpu.memory_space<vmem>>, vector<1x256x64xbf16>,
    return
  }
  func.func @transform_0(%arg0: i32, %arg1: i32) -> (i32, i32, i32, i32) {
    %c0_i32 = arith.constant 0 : i32
    %c0_i32_0 = arith.constant 0 : i32
    %c0_i32_1 = arith.constant 0 : i32
    return %arg0, %arg1, %c0_i32, %c0_i32_0 : i32, i32, i32, i32
  }
  func.func @transform_1(%arg0: i32, %arg1: i32) -> (i32, i32, i32) {
    %c0_i32 = arith.constant 0 : i32
    %c0_i32_0 = arith.constant 0 : i32
    %c0_i32_1 = arith.constant 0 : i32
    %c0_i32_2 = arith.constant 0 : i32
    return %c0_i32, %c0_i32_0, %c0_i32_1 : i32, i32, i32
  }
  func.func @transform_2(%arg0: i32, %arg1: i32) -> (i32, i32) {
    %c0_i32 = arith.constant 0 : i32
    %c0_i32_0 = arith.constant 0 : i32
    %c0_i32_1 = arith.constant 0 : i32
    return %c0_i32, %c0_i32_0 : i32, i32
  }
  func.func @transform_3(%arg0: i32, %arg1: i32) -> (i32, i32) {
    %c0_i32 = arith.constant 0 : i32
    %c0_i32_0 = arith.constant 0 : i32
    %c0_i32_1 = arith.constant 0 : i32
    return %c0_i32, %c0_i32_0 : i32, i32
  }
  func.func @transform_4(%arg0: i32, %arg1: i32) -> (i32, i32, i32) {
    %c0_i32 = arith.constant 0 : i32
    %c0_i32_0 = arith.constant 0 : i32
    return %arg0, %arg1, %c0_i32 : i32, i32, i32
  }
}

module attributes {stable_mosaic.version = 11 : i64} {
  func.func @_conv_kernel(%arg0: i32, %arg1: i32, %arg2: memref<1x8x9x512xbf16, #tpu.memory_space<vmem>>, %arg3: memref<2x512x128xbf16, #tpu.memory_space<vmem>>, %arg4: memref<1x128xf32, #tpu.memory_space<vmem>>, %arg5: memref<1x128xf32, #tpu.memory_space<vmem>>, %arg6: memref<1x64x128xbf16, #tpu.memory_space<vmem>>) attributes {dimension_semantics = [#tpu.dimension_semantics<parallel>, #tpu.dimension_semantics<parallel>], iteration_bounds = array<i64: 2, 1>, scalar_prefetch = 0 : i64, scratch_operands = 0 : i64, tpu.core_type = #tpu.core_type<tc>, window_params = [{transform_indices = @transform_0, window_bounds = array<i64: 1, 8, 9, 512>}, {pipeline_mode = #tpu.pipeline_mode<synchronous>, transform_indices = @transform_1, window_bounds = array<i64: 2, 512, 128>}, {pipeline_mode = #tpu.pipeline_mode<synchronous>, transform_indices = @transform_2, window_bounds = array<i64: 1, 128>}, {pipeline_mode = #tpu.pipeline_mode<synchronous>, transform_indices = @transform_3, window_bounds = array<i64: 1, 128>}, {transform_indices = @transform_4, window_bounds = array<i64: 1, 64, 128>}]} {
    %c0 = arith.constant 0 : index
    %c0_0 = arith.constant 0 : index
    %c0_1 = arith.constant 0 : index
    %c0_2 = arith.constant 0 : index
    %0 = vector.load %arg2[%c0, %c0_0, %c0_1, %c0_2] : memref<1x8x9x512xbf16, #tpu.memory_space<vmem>>, vector<1x8x9x512xbf16>
    %1 = vector.shape_cast %0 : vector<1x8x9x512xbf16> to vector<8x9x512xbf16>
    %cst = arith.constant 0.000000e+00 : f32
    %2 = vector.broadcast %cst : f32 to vector<64x128xf32>
    %3 = vector.extract_strided_slice %1 {offsets = [0, 0, 0], sizes = [8, 8, 512], strides = [1, 1, 1]} : vector<8x9x512xbf16> to vector<8x8x512xbf16>
    %4 = vector.shape_cast %3 : vector<8x8x512xbf16> to vector<64x512xbf16>
    %c0_3 = arith.constant 0 : index
    %c0_4 = arith.constant 0 : index
    %c0_5 = arith.constant 0 : index
    %5 = vector.load %arg3[%c0_3, %c0_4, %c0_5] : memref<2x512x128xbf16, #tpu.memory_space<vmem>>, vector<1x512x128xbf16>
    %6 = vector.shape_cast %5 : vector<1x512x128xbf16> to vector<512x128xbf16>
    %cst_6 = arith.constant dense<0.000000e+00> : vector<64x128xf32>
    %7 = tpu.matmul %4, %6, %cst_6 {dimension_numbers = #tpu.dot_dimension_numbers<[1], [0], [0], [1], [0, 0, 1, 1], [], []>} : vector<64x512xbf16>, vector<512x128xbf16>, vector<64x128xf32> -> vector<64x128xf32>
    %8 = arith.addf %2, %7 : vector<64x128xf32>
    %9 = vector.extract_strided_slice %1 {offsets = [0, 1, 0], sizes = [8, 8, 512], strides = [1, 1, 1]} : vector<8x9x512xbf16> to vector<8x8x512xbf16>
    %10 = vector.shape_cast %9 : vector<8x8x512xbf16> to vector<64x512xbf16>
    %c1 = arith.constant 1 : index
    %c0_7 = arith.constant 0 : index
    %c0_8 = arith.constant 0 : index
    %11 = vector.load %arg3[%c1, %c0_7, %c0_8] : memref<2x512x128xbf16, #tpu.memory_space<vmem>>, vector<1x512x128xbf16>
    %12 = vector.shape_cast %11 : vector<1x512x128xbf16> to vector<512x128xbf16>
    %cst_9 = arith.constant dense<0.000000e+00> : vector<64x128xf32>
    %13 = tpu.matmul %10, %12, %cst_9 {dimension_numbers = #tpu.dot_dimension_numbers<[1], [0], [0], [1], [0, 0, 1, 1], [], []>} : vector<64x512xbf16>, vector<512x128xbf16>, vector<64x128xf32> -> vector<64x128xf32>
    %14 = arith.addf %8, %13 : vector<64x128xf32>
    %c0_10 = arith.constant 0 : index
    %c0_11 = arith.constant 0 : index
    %15 = vector.load %arg4[%c0_10, %c0_11] : memref<1x128xf32, #tpu.memory_space<vmem>>, vector<1x128xf32>
    %16 = vector.broadcast %15 : vector<1x128xf32> to vector<64x128xf32>
    %17 = arith.mulf %14, %16 : vector<64x128xf32>
    %c0_12 = arith.constant 0 : index
    %c0_13 = arith.constant 0 : index
    %18 = vector.load %arg5[%c0_12, %c0_13] : memref<1x128xf32, #tpu.memory_space<vmem>>, vector<1x128xf32>
    %19 = vector.broadcast %18 : vector<1x128xf32> to vector<64x128xf32>
    %20 = arith.addf %17, %19 : vector<64x128xf32>
    %cst_14 = arith.constant 2.000000e-01 : f32
    %21 = vector.broadcast %cst_14 : f32 to vector<64x128xf32>
    %22 = arith.mulf %21, %20 : vector<64x128xf32>
    %23 = arith.maximumf %20, %22 : vector<64x128xf32>
    %24 = arith.truncf %23 : vector<64x128xf32> to vector<64x128xbf16>
    %c0_15 = arith.constant 0 : index
    %c0_16 = arith.constant 0 : index
    %c0_17 = arith.constant 0 : index
    %25 = vector.load %arg6[%c0_15, %c0_16, %c0_17] : memref<1x64x128xbf16, #tpu.memory_space<vmem>>, vector<1x64x128xbf16>
    %26 = vector.shape_cast %25 : vector<1x64x128xbf16> to vector<64x128xbf16>
    %27 = vector.shape_cast %24 : vector<64x128xbf16> to vector<1x64x128xbf16>
    tpu.vector_store %arg6[%c0_15, %c0_16, %c0_17], %27 {strides = array<i32>} : memref<1x64x128xbf16, #tpu.memory_space<vmem>>, vector<1x64x128xbf16>,
    return
  }
  func.func @transform_0(%arg0: i32, %arg1: i32) -> (i32, i32, i32, i32) {
    %c0_i32 = arith.constant 0 : i32
    %c0_i32_0 = arith.constant 0 : i32
    %c0_i32_1 = arith.constant 0 : i32
    return %arg0, %arg1, %c0_i32, %c0_i32_0 : i32, i32, i32, i32
  }
  func.func @transform_1(%arg0: i32, %arg1: i32) -> (i32, i32, i32) {
    %c0_i32 = arith.constant 0 : i32
    %c0_i32_0 = arith.constant 0 : i32
    %c0_i32_1 = arith.constant 0 : i32
    %c0_i32_2 = arith.constant 0 : i32
    return %c0_i32, %c0_i32_0, %c0_i32_1 : i32, i32, i32
  }
  func.func @transform_2(%arg0: i32, %arg1: i32) -> (i32, i32) {
    %c0_i32 = arith.constant 0 : i32
    %c0_i32_0 = arith.constant 0 : i32
    %c0_i32_1 = arith.constant 0 : i32
    return %c0_i32, %c0_i32_0 : i32, i32
  }
  func.func @transform_3(%arg0: i32, %arg1: i32) -> (i32, i32) {
    %c0_i32 = arith.constant 0 : i32
    %c0_i32_0 = arith.constant 0 : i32
    %c0_i32_1 = arith.constant 0 : i32
    return %c0_i32, %c0_i32_0 : i32, i32
  }
  func.func @transform_4(%arg0: i32, %arg1: i32) -> (i32, i32, i32) {
    %c0_i32 = arith.constant 0 : i32
    %c0_i32_0 = arith.constant 0 : i32
    return %arg0, %arg1, %c0_i32 : i32, i32, i32
  }
}

module attributes {stable_mosaic.version = 11 : i64} {
  func.func @_conv_kernel(%arg0: i32, %arg1: i32, %arg2: memref<1x4x5x1024xbf16, #tpu.memory_space<vmem>>, %arg3: memref<2x1024x256xbf16, #tpu.memory_space<vmem>>, %arg4: memref<1x256xf32, #tpu.memory_space<vmem>>, %arg5: memref<1x256xf32, #tpu.memory_space<vmem>>, %arg6: memref<1x16x256xbf16, #tpu.memory_space<vmem>>) attributes {dimension_semantics = [#tpu.dimension_semantics<parallel>, #tpu.dimension_semantics<parallel>], iteration_bounds = array<i64: 2, 1>, scalar_prefetch = 0 : i64, scratch_operands = 0 : i64, tpu.core_type = #tpu.core_type<tc>, window_params = [{transform_indices = @transform_0, window_bounds = array<i64: 1, 4, 5, 1024>}, {pipeline_mode = #tpu.pipeline_mode<synchronous>, transform_indices = @transform_1, window_bounds = array<i64: 2, 1024, 256>}, {pipeline_mode = #tpu.pipeline_mode<synchronous>, transform_indices = @transform_2, window_bounds = array<i64: 1, 256>}, {pipeline_mode = #tpu.pipeline_mode<synchronous>, transform_indices = @transform_3, window_bounds = array<i64: 1, 256>}, {transform_indices = @transform_4, window_bounds = array<i64: 1, 16, 256>}]} {
    %c0 = arith.constant 0 : index
    %c0_0 = arith.constant 0 : index
    %c0_1 = arith.constant 0 : index
    %c0_2 = arith.constant 0 : index
    %0 = vector.load %arg2[%c0, %c0_0, %c0_1, %c0_2] : memref<1x4x5x1024xbf16, #tpu.memory_space<vmem>>, vector<1x4x5x1024xbf16>
    %1 = vector.shape_cast %0 : vector<1x4x5x1024xbf16> to vector<4x5x1024xbf16>
    %cst = arith.constant 0.000000e+00 : f32
    %2 = vector.broadcast %cst : f32 to vector<16x256xf32>
    %3 = vector.extract_strided_slice %1 {offsets = [0, 0, 0], sizes = [4, 4, 1024], strides = [1, 1, 1]} : vector<4x5x1024xbf16> to vector<4x4x1024xbf16>
    %4 = vector.shape_cast %3 : vector<4x4x1024xbf16> to vector<16x1024xbf16>
    %c0_3 = arith.constant 0 : index
    %c0_4 = arith.constant 0 : index
    %c0_5 = arith.constant 0 : index
    %5 = vector.load %arg3[%c0_3, %c0_4, %c0_5] : memref<2x1024x256xbf16, #tpu.memory_space<vmem>>, vector<1x1024x256xbf16>
    %6 = vector.shape_cast %5 : vector<1x1024x256xbf16> to vector<1024x256xbf16>
    %cst_6 = arith.constant dense<0.000000e+00> : vector<16x256xf32>
    %7 = tpu.matmul %4, %6, %cst_6 {dimension_numbers = #tpu.dot_dimension_numbers<[1], [0], [0], [1], [0, 0, 1, 1], [], []>} : vector<16x1024xbf16>, vector<1024x256xbf16>, vector<16x256xf32> -> vector<16x256xf32>
    %8 = arith.addf %2, %7 : vector<16x256xf32>
    %9 = vector.extract_strided_slice %1 {offsets = [0, 1, 0], sizes = [4, 4, 1024], strides = [1, 1, 1]} : vector<4x5x1024xbf16> to vector<4x4x1024xbf16>
    %10 = vector.shape_cast %9 : vector<4x4x1024xbf16> to vector<16x1024xbf16>
    %c1 = arith.constant 1 : index
    %c0_7 = arith.constant 0 : index
    %c0_8 = arith.constant 0 : index
    %11 = vector.load %arg3[%c1, %c0_7, %c0_8] : memref<2x1024x256xbf16, #tpu.memory_space<vmem>>, vector<1x1024x256xbf16>
    %12 = vector.shape_cast %11 : vector<1x1024x256xbf16> to vector<1024x256xbf16>
    %cst_9 = arith.constant dense<0.000000e+00> : vector<16x256xf32>
    %13 = tpu.matmul %10, %12, %cst_9 {dimension_numbers = #tpu.dot_dimension_numbers<[1], [0], [0], [1], [0, 0, 1, 1], [], []>} : vector<16x1024xbf16>, vector<1024x256xbf16>, vector<16x256xf32> -> vector<16x256xf32>
    %14 = arith.addf %8, %13 : vector<16x256xf32>
    %c0_10 = arith.constant 0 : index
    %c0_11 = arith.constant 0 : index
    %15 = vector.load %arg4[%c0_10, %c0_11] : memref<1x256xf32, #tpu.memory_space<vmem>>, vector<1x256xf32>
    %16 = vector.broadcast %15 : vector<1x256xf32> to vector<16x256xf32>
    %17 = arith.mulf %14, %16 : vector<16x256xf32>
    %c0_12 = arith.constant 0 : index
    %c0_13 = arith.constant 0 : index
    %18 = vector.load %arg5[%c0_12, %c0_13] : memref<1x256xf32, #tpu.memory_space<vmem>>, vector<1x256xf32>
    %19 = vector.broadcast %18 : vector<1x256xf32> to vector<16x256xf32>
    %20 = arith.addf %17, %19 : vector<16x256xf32>
    %cst_14 = arith.constant 2.000000e-01 : f32
    %21 = vector.broadcast %cst_14 : f32 to vector<16x256xf32>
    %22 = arith.mulf %21, %20 : vector<16x256xf32>
    %23 = arith.maximumf %20, %22 : vector<16x256xf32>
    %24 = arith.truncf %23 : vector<16x256xf32> to vector<16x256xbf16>
    %c0_15 = arith.constant 0 : index
    %c0_16 = arith.constant 0 : index
    %c0_17 = arith.constant 0 : index
    %25 = vector.load %arg6[%c0_15, %c0_16, %c0_17] : memref<1x16x256xbf16, #tpu.memory_space<vmem>>, vector<1x16x256xbf16>
    %26 = vector.shape_cast %25 : vector<1x16x256xbf16> to vector<16x256xbf16>
    %27 = vector.shape_cast %24 : vector<16x256xbf16> to vector<1x16x256xbf16>
    tpu.vector_store %arg6[%c0_15, %c0_16, %c0_17], %27 {strides = array<i32>} : memref<1x16x256xbf16, #tpu.memory_space<vmem>>, vector<1x16x256xbf16>,
    return
  }
  func.func @transform_0(%arg0: i32, %arg1: i32) -> (i32, i32, i32, i32) {
    %c0_i32 = arith.constant 0 : i32
    %c0_i32_0 = arith.constant 0 : i32
    %c0_i32_1 = arith.constant 0 : i32
    return %arg0, %arg1, %c0_i32, %c0_i32_0 : i32, i32, i32, i32
  }
  func.func @transform_1(%arg0: i32, %arg1: i32) -> (i32, i32, i32) {
    %c0_i32 = arith.constant 0 : i32
    %c0_i32_0 = arith.constant 0 : i32
    %c0_i32_1 = arith.constant 0 : i32
    %c0_i32_2 = arith.constant 0 : i32
    return %c0_i32, %c0_i32_0, %c0_i32_1 : i32, i32, i32
  }
  func.func @transform_2(%arg0: i32, %arg1: i32) -> (i32, i32) {
    %c0_i32 = arith.constant 0 : i32
    %c0_i32_0 = arith.constant 0 : i32
    %c0_i32_1 = arith.constant 0 : i32
    return %c0_i32, %c0_i32_0 : i32, i32
  }
  func.func @transform_3(%arg0: i32, %arg1: i32) -> (i32, i32) {
    %c0_i32 = arith.constant 0 : i32
    %c0_i32_0 = arith.constant 0 : i32
    %c0_i32_1 = arith.constant 0 : i32
    return %c0_i32, %c0_i32_0 : i32, i32
  }
  func.func @transform_4(%arg0: i32, %arg1: i32) -> (i32, i32, i32) {
    %c0_i32 = arith.constant 0 : i32
    %c0_i32_0 = arith.constant 0 : i32
    return %arg0, %arg1, %c0_i32 : i32, i32, i32
  }
}

module attributes {stable_mosaic.version = 11 : i64} {
  func.func @_conv_kernel(%arg0: i32, %arg1: i32, %arg2: memref<1x3x6x1024xbf16, #tpu.memory_space<vmem>>, %arg3: memref<4x1024x128xbf16, #tpu.memory_space<vmem>>, %arg4: memref<1x128xf32, #tpu.memory_space<vmem>>, %arg5: memref<1x128xf32, #tpu.memory_space<vmem>>, %arg6: memref<1x9x128xbf16, #tpu.memory_space<vmem>>) attributes {dimension_semantics = [#tpu.dimension_semantics<parallel>, #tpu.dimension_semantics<parallel>], iteration_bounds = array<i64: 2, 1>, scalar_prefetch = 0 : i64, scratch_operands = 0 : i64, tpu.core_type = #tpu.core_type<tc>, window_params = [{transform_indices = @transform_0, window_bounds = array<i64: 1, 3, 6, 1024>}, {pipeline_mode = #tpu.pipeline_mode<synchronous>, transform_indices = @transform_1, window_bounds = array<i64: 4, 1024, 128>}, {pipeline_mode = #tpu.pipeline_mode<synchronous>, transform_indices = @transform_2, window_bounds = array<i64: 1, 128>}, {pipeline_mode = #tpu.pipeline_mode<synchronous>, transform_indices = @transform_3, window_bounds = array<i64: 1, 128>}, {transform_indices = @transform_4, window_bounds = array<i64: 1, 9, 128>}]} {
    %c0 = arith.constant 0 : index
    %c0_0 = arith.constant 0 : index
    %c0_1 = arith.constant 0 : index
    %c0_2 = arith.constant 0 : index
    %0 = vector.load %arg2[%c0, %c0_0, %c0_1, %c0_2] : memref<1x3x6x1024xbf16, #tpu.memory_space<vmem>>, vector<1x3x6x1024xbf16>
    %1 = vector.shape_cast %0 : vector<1x3x6x1024xbf16> to vector<3x6x1024xbf16>
    %cst = arith.constant 0.000000e+00 : f32
    %2 = vector.broadcast %cst : f32 to vector<9x128xf32>
    %3 = vector.extract_strided_slice %1 {offsets = [0, 0, 0], sizes = [3, 3, 1024], strides = [1, 1, 1]} : vector<3x6x1024xbf16> to vector<3x3x1024xbf16>
    %4 = vector.shape_cast %3 : vector<3x3x1024xbf16> to vector<9x1024xbf16>
    %c0_3 = arith.constant 0 : index
    %c0_4 = arith.constant 0 : index
    %c0_5 = arith.constant 0 : index
    %5 = vector.load %arg3[%c0_3, %c0_4, %c0_5] : memref<4x1024x128xbf16, #tpu.memory_space<vmem>>, vector<1x1024x128xbf16>
    %6 = vector.shape_cast %5 : vector<1x1024x128xbf16> to vector<1024x128xbf16>
    %cst_6 = arith.constant dense<0.000000e+00> : vector<9x128xf32>
    %7 = tpu.matmul %4, %6, %cst_6 {dimension_numbers = #tpu.dot_dimension_numbers<[1], [0], [0], [1], [0, 0, 1, 1], [], []>} : vector<9x1024xbf16>, vector<1024x128xbf16>, vector<9x128xf32> -> vector<9x128xf32>
    %8 = arith.addf %2, %7 : vector<9x128xf32>
    %9 = vector.extract_strided_slice %1 {offsets = [0, 1, 0], sizes = [3, 3, 1024], strides = [1, 1, 1]} : vector<3x6x1024xbf16> to vector<3x3x1024xbf16>
    %10 = vector.shape_cast %9 : vector<3x3x1024xbf16> to vector<9x1024xbf16>
    %c1 = arith.constant 1 : index
    %c0_7 = arith.constant 0 : index
    %c0_8 = arith.constant 0 : index
    %11 = vector.load %arg3[%c1, %c0_7, %c0_8] : memref<4x1024x128xbf16, #tpu.memory_space<vmem>>, vector<1x1024x128xbf16>
    %12 = vector.shape_cast %11 : vector<1x1024x128xbf16> to vector<1024x128xbf16>
    %cst_9 = arith.constant dense<0.000000e+00> : vector<9x128xf32>
    %13 = tpu.matmul %10, %12, %cst_9 {dimension_numbers = #tpu.dot_dimension_numbers<[1], [0], [0], [1], [0, 0, 1, 1], [], []>} : vector<9x1024xbf16>, vector<1024x128xbf16>, vector<9x128xf32> -> vector<9x128xf32>
    %14 = arith.addf %8, %13 : vector<9x128xf32>
    %15 = vector.extract_strided_slice %1 {offsets = [0, 2, 0], sizes = [3, 3, 1024], strides = [1, 1, 1]} : vector<3x6x1024xbf16> to vector<3x3x1024xbf16>
    %16 = vector.shape_cast %15 : vector<3x3x1024xbf16> to vector<9x1024xbf16>
    %c2 = arith.constant 2 : index
    %c0_10 = arith.constant 0 : index
    %c0_11 = arith.constant 0 : index
    %17 = vector.load %arg3[%c2, %c0_10, %c0_11] : memref<4x1024x128xbf16, #tpu.memory_space<vmem>>, vector<1x1024x128xbf16>
    %18 = vector.shape_cast %17 : vector<1x1024x128xbf16> to vector<1024x128xbf16>
    %cst_12 = arith.constant dense<0.000000e+00> : vector<9x128xf32>
    %19 = tpu.matmul %16, %18, %cst_12 {dimension_numbers = #tpu.dot_dimension_numbers<[1], [0], [0], [1], [0, 0, 1, 1], [], []>} : vector<9x1024xbf16>, vector<1024x128xbf16>, vector<9x128xf32> -> vector<9x128xf32>
    %20 = arith.addf %14, %19 : vector<9x128xf32>
    %21 = vector.extract_strided_slice %1 {offsets = [0, 3, 0], sizes = [3, 3, 1024], strides = [1, 1, 1]} : vector<3x6x1024xbf16> to vector<3x3x1024xbf16>
    %22 = vector.shape_cast %21 : vector<3x3x1024xbf16> to vector<9x1024xbf16>
    %c3 = arith.constant 3 : index
    %c0_13 = arith.constant 0 : index
    %c0_14 = arith.constant 0 : index
    %23 = vector.load %arg3[%c3, %c0_13, %c0_14] : memref<4x1024x128xbf16, #tpu.memory_space<vmem>>, vector<1x1024x128xbf16>
    %24 = vector.shape_cast %23 : vector<1x1024x128xbf16> to vector<1024x128xbf16>
    %cst_15 = arith.constant dense<0.000000e+00> : vector<9x128xf32>
    %25 = tpu.matmul %22, %24, %cst_15 {dimension_numbers = #tpu.dot_dimension_numbers<[1], [0], [0], [1], [0, 0, 1, 1], [], []>} : vector<9x1024xbf16>, vector<1024x128xbf16>, vector<9x128xf32> -> vector<9x128xf32>
    %26 = arith.addf %20, %25 : vector<9x128xf32>
    %c0_16 = arith.constant 0 : index
    %c0_17 = arith.constant 0 : index
    %27 = vector.load %arg4[%c0_16, %c0_17] : memref<1x128xf32, #tpu.memory_space<vmem>>, vector<1x128xf32>
    %28 = vector.broadcast %27 : vector<1x128xf32> to vector<9x128xf32>
    %29 = arith.mulf %26, %28 : vector<9x128xf32>
    %c0_18 = arith.constant 0 : index
    %c0_19 = arith.constant 0 : index
    %30 = vector.load %arg5[%c0_18, %c0_19] : memref<1x128xf32, #tpu.memory_space<vmem>>, vector<1x128xf32>
    %31 = vector.broadcast %30 : vector<1x128xf32> to vector<9x128xf32>
    %32 = arith.addf %29, %31 : vector<9x128xf32>
    %33 = arith.truncf %32 : vector<9x128xf32> to vector<9x128xbf16>
    %c0_20 = arith.constant 0 : index
    %c0_21 = arith.constant 0 : index
    %c0_22 = arith.constant 0 : index
    %34 = vector.load %arg6[%c0_20, %c0_21, %c0_22] : memref<1x9x128xbf16, #tpu.memory_space<vmem>>, vector<1x9x128xbf16>
    %35 = vector.shape_cast %34 : vector<1x9x128xbf16> to vector<9x128xbf16>
    %36 = vector.shape_cast %33 : vector<9x128xbf16> to vector<1x9x128xbf16>
    tpu.vector_store %arg6[%c0_20, %c0_21, %c0_22], %36 {strides = array<i32>} : memref<1x9x128xbf16, #tpu.memory_space<vmem>>, vector<1x9x128xbf16>,
    return
  }
  func.func @transform_0(%arg0: i32, %arg1: i32) -> (i32, i32, i32, i32) {
    %c0_i32 = arith.constant 0 : i32
    %c0_i32_0 = arith.constant 0 : i32
    %c0_i32_1 = arith.constant 0 : i32
    return %arg0, %arg1, %c0_i32, %c0_i32_0 : i32, i32, i32, i32
  }
  func.func @transform_1(%arg0: i32, %arg1: i32) -> (i32, i32, i32) {
    %c0_i32 = arith.constant 0 : i32
    %c0_i32_0 = arith.constant 0 : i32
    %c0_i32_1 = arith.constant 0 : i32
    %c0_i32_2 = arith.constant 0 : i32
    return %c0_i32, %c0_i32_0, %c0_i32_1 : i32, i32, i32
  }
  func.func @transform_2(%arg0: i32, %arg1: i32) -> (i32, i32) {
    %c0_i32 = arith.constant 0 : i32
    %c0_i32_0 = arith.constant 0 : i32
    %c0_i32_1 = arith.constant 0 : i32
    return %c0_i32, %c0_i32_0 : i32, i32
  }
  func.func @transform_3(%arg0: i32, %arg1: i32) -> (i32, i32) {
    %c0_i32 = arith.constant 0 : i32
    %c0_i32_0 = arith.constant 0 : i32
    %c0_i32_1 = arith.constant 0 : i32
    return %c0_i32, %c0_i32_0 : i32, i32
  }
  func.func @transform_4(%arg0: i32, %arg1: i32) -> (i32, i32, i32) {
    %c0_i32 = arith.constant 0 : i32
    %c0_i32_0 = arith.constant 0 : i32
    return %arg0, %arg1, %c0_i32 : i32, i32, i32
  }
}

</mosaic_0001>

<llo_original>
// kernel: patch_discriminator.4
$region0: #{patch_discriminator.4}
  #allocation0 [shape = 'u32[]', space=smem, size = 0x4, offset = 0x4, fixed_abs, tag = 'smem constant byte address 0x4 - core index']
  #allocation1 [shape = 'u32[144,128]{1,0:T(1,128)}', space=vmem, size = 0x12000, scoped, tag = 'internal scratch']
  %s0 = inlined_call_operand.vmem [shape: bf16[2,16,17,128], index: 0, kind: input, shape index: {}]
  %s1 = inlined_call_operand.vmem [shape: bf16[2,128,64], index: 1, kind: input, shape index: {}]
  %s2 = inlined_call_operand.vmem [shape: f32[1,64], index: 2, kind: input, shape index: {}]
  %s3 = inlined_call_operand.vmem [shape: f32[1,64], index: 3, kind: input, shape index: {}]
  %s4 = inlined_call_operand.vmem [shape: bf16[2,256,64], index: 4, kind: output, shape index: {}]
  %s5 = sld [smem:[#allocation0]]
  $region49: #{patch_discriminator.4} parent=0
    _
  %s7 = ssub.s32 1, %s5
  %s8 = scalar_select 0, %s7, %s5
  loop: start=0, step=1, limit=4
  $region2: #{patch_discriminator.4} parent=0 // loop_pre_header
    _
  $region3: #{patch_discriminator.4} parent=0 // loop_header
    %s10 = sphi 0, %s14
    %p11 = scmp.ge.s32.totalorder %s10, 4
    %s17 = sphi 0, %s29
    %s18 = sphi 0, %s25
    %s19 = sphi 0, %s17
    %s20 = sphi 0, %s18
    %s21 = sphi 0, %s19
    %s22 = sphi 0, %s20
    %s34 = sphi 0, %s36
    %s37 = sphi 0, %s34
    %s38 = sphi 0, %s37
    %s54 = sphi 0, %s38
    %s58 = sphi 0, %s58
    %s60 = sphi 0, %s58
    %s61 = sphi 0, %s60
    %s75 = sphi 0, %s61
    %s79 = sphi 0, %s79
    %s81 = sphi 0, %s79
    %s82 = sphi 0, %s81
    %s96 = sphi 0, %s82
    %s100 = sphi 0, %s100
    %s102 = sphi 0, %s100
    %s103 = sphi 0, %s102
    %s117 = sphi 0, %s103
    %s125 = sphi 0, %s127
    %s128 = sphi 0, %s125
    %s129 = sphi 0, %s128
    %s145 = sphi 0, %s129
  $region4: #{patch_discriminator.4} parent=0 // loop_header_branch
    %13 = sbr.rel (%p11) target = $region8
  $region5: #{patch_discriminator.4} parent=0 // loop_body
    %s15 = ssub.s32 %s10, 1
    %s16 = ssub.s32 %s10, 2
    %s23 = sadd.s32 1, %s18
    %p24 = scmp.ge.s32.totalorder %s23, 1
    %s25 = scalar_select %p24, 0, %s23
    %s26 = sadd.s32 1, %s17
    %s27 = scalar_select %p24, %s26, %s17
    %p28 = scmp.ge.s32.totalorder %s27, 2
    %s29 = scalar_select %p28, 0, %s27
    %s30 = ssub.s32 %s17, %s29
    %s31 = ssub.s32 %s18, %s25
    %s32 = sor.u32 %s30, %s31
    %p33 = scmp.eq.s32.totalorder %s32, 0
    %s35 = sadd.s32 %s34, 1
    %s36 = scalar_select %p33, %s34, %s35
    %p39 = pneg %p33
    %p40 = scmp.eq.s32.totalorder %s10, 1
    %p41 = por %p39, %p40
    %p42 = scmp.ne.s32.totalorder %s34, %s37
    %p43 = scmp.eq.s32.totalorder %s10, 0
    %p44 = por %p42, %p43
    %p45 = scmp.ne.s32.totalorder %s34, %s37
    %p46 = scmp.eq.s32.totalorder %s15, 1
    %p47 = por %p45, %p46
    %p48 = scmp.ne.s32.totalorder %s37, %s38
    %p49 = scmp.eq.s32.totalorder %s15, 0
    %p50 = por %p48, %p49
    %p51 = scmp.ne.s32.totalorder %s37, %s38
    %p52 = scmp.eq.s32.totalorder %s16, 1
    %p53 = por %p51, %p52
    %p55 = scmp.ne.s32.totalorder %s38, %s54
    %p56 = scmp.eq.s32.totalorder %s16, 0
    %p57 = por %p55, %p56
    %s59 = sadd.s32 %s58, 1
    %p62 = scmp.eq.s32.totalorder %s10, 1
    %p63 = scmp.ne.s32.totalorder %s58, %s60
    %p64 = scmp.eq.s32.totalorder %s10, 0
    %p65 = por %p63, %p64
    %p66 = scmp.ne.s32.totalorder %s58, %s60
    %p67 = scmp.eq.s32.totalorder %s15, 1
    %p68 = por %p66, %p67
    %p69 = scmp.ne.s32.totalorder %s60, %s61
    %p70 = scmp.eq.s32.totalorder %s15, 0
    %p71 = por %p69, %p70
    %p72 = scmp.ne.s32.totalorder %s60, %s61
    %p73 = scmp.eq.s32.totalorder %s16, 1
    %p74 = por %p72, %p73
    %p76 = scmp.ne.s32.totalorder %s61, %s75
    %p77 = scmp.eq.s32.totalorder %s16, 0
    %p78 = por %p76, %p77
    %s80 = sadd.s32 %s79, 1
    %p83 = scmp.eq.s32.totalorder %s10, 1
    %p84 = scmp.ne.s32.totalorder %s79, %s81
    %p85 = scmp.eq.s32.totalorder %s10, 0
    %p86 = por %p84, %p85
    %p87 = scmp.ne.s32.totalorder %s79, %s81
    %p88 = scmp.eq.s32.totalorder %s15, 1
    %p89 = por %p87, %p88
    %p90 = scmp.ne.s32.totalorder %s81, %s82
    %p91 = scmp.eq.s32.totalorder %s15, 0
    %p92 = por %p90, %p91
    %p93 = scmp.ne.s32.totalorder %s81, %s82
    %p94 = scmp.eq.s32.totalorder %s16, 1
    %p95 = por %p93, %p94
    %p97 = scmp.ne.s32.totalorder %s82, %s96
    %p98 = scmp.eq.s32.totalorder %s16, 0
    %p99 = por %p97, %p98
    %s101 = sadd.s32 %s100, 1
    %p104 = scmp.eq.s32.totalorder %s10, 1
    %p105 = scmp.ne.s32.totalorder %s100, %s102
    %p106 = scmp.eq.s32.totalorder %s10, 0
    %p107 = por %p105, %p106
    %p108 = scmp.ne.s32.totalorder %s100, %s102
    %p109 = scmp.eq.s32.totalorder %s15, 1
    %p110 = por %p108, %p109
    %p111 = scmp.ne.s32.totalorder %s102, %s103
    %p112 = scmp.eq.s32.totalorder %s15, 0
    %p113 = por %p111, %p112
    %p114 = scmp.ne.s32.totalorder %s102, %s103
    %p115 = scmp.eq.s32.totalorder %s16, 1
    %p116 = por %p114, %p115
    %p118 = scmp.ne.s32.totalorder %s103, %s117
    %p119 = scmp.eq.s32.totalorder %s16, 0
    %p120 = por %p118, %p119
    %s121 = ssub.s32 %s17, %s29
    %s122 = ssub.s32 %s18, %s25
    %s123 = sor.u32 %s121, %s122
    %p124 = scmp.eq.s32.totalorder %s123, 0
    %s126 = sadd.s32 %s125, 1
    %s127 = scalar_select %p124, %s125, %s126
    %p130 = pneg %p124
    %p131 = scmp.eq.s32.totalorder %s10, 1
    %p132 = por %p130, %p131
    %p133 = scmp.ne.s32.totalorder %s125, %s128
    %p134 = scmp.eq.s32.totalorder %s10, 0
    %p135 = por %p133, %p134
    %p136 = scmp.ne.s32.totalorder %s125, %s128
    %p137 = scmp.eq.s32.totalorder %s15, 1
    %p138 = por %p136, %p137
    %p139 = scmp.ne.s32.totalorder %s128, %s129
    %p140 = scmp.eq.s32.totalorder %s15, 0
    %p141 = por %p139, %p140
    %p142 = scmp.ne.s32.totalorder %s128, %s129
    %p143 = scmp.eq.s32.totalorder %s16, 1
    %p144 = por %p142, %p143
    %p146 = scmp.ne.s32.totalorder %s129, %s145
    %p147 = scmp.eq.s32.totalorder %s16, 0
    %p148 = por %p146, %p147
    %p149 = scmp.le.s32.totalorder 1, %s10
    %p150 = scmp.lt.s32.totalorder %s10, 3
    %p151 = pnand %p149, %p150
    %p152 = pneg %p151
    // Predicated region
    $region9: #{patch_discriminator.4} parent=5 // pred_check
      _
    $region10: #{patch_discriminator.4} parent=5 // pred_check_branch
      %154 = sbr.rel (%p151) target = $region12
    $region11: #{patch_discriminator.4} parent=5 // pred_region
      %s155 = ssub.s32 %s10, 1
      // Predicated region
      $region13: #{patch_discriminator.4} parent=11 // pred_check
        %p156 = pneg %p71
      $region14: #{patch_discriminator.4} parent=11 // pred_check_branch
        %158 = sbr.rel (%p156) target = $region16
      $region15: #{patch_discriminator.4} parent=11 // pred_region
        _
      $region16: #{patch_discriminator.4} parent=11 // pred_fallthru
        _
      // Predicated region
      $region17: #{patch_discriminator.4} parent=11 // pred_check
        %p159 = pneg %p92
      $region18: #{patch_discriminator.4} parent=11 // pred_check_branch
        %161 = sbr.rel (%p159) target = $region20
      $region19: #{patch_discriminator.4} parent=11 // pred_region
        _
      $region20: #{patch_discriminator.4} parent=11 // pred_fallthru
        _
      // Predicated region
      $region21: #{patch_discriminator.4} parent=11 // pred_check
        %p162 = pneg %p113
      $region22: #{patch_discriminator.4} parent=11 // pred_check_branch
        %164 = sbr.rel (%p162) target = $region24
      $region23: #{patch_discriminator.4} parent=11 // pred_region
        _
      $region24: #{patch_discriminator.4} parent=11 // pred_fallthru
        _
    $region12: #{patch_discriminator.4} parent=5 // pred_fallthru
      _
    %p165 = scmp.lt.s32.totalorder %s10, 2
    // Predicated region
    $region25: #{patch_discriminator.4} parent=5 // pred_check
      %p166 = pneg %p165
    $region26: #{patch_discriminator.4} parent=5 // pred_check_branch
      %168 = sbr.rel (%p166) target = $region28
    $region27: #{patch_discriminator.4} parent=5 // pred_region
      // Predicated region
      $region29: #{patch_discriminator.4} parent=27 // pred_check
        %p169 = pneg %p44
      $region30: #{patch_discriminator.4} parent=27 // pred_check_branch
        %171 = sbr.rel (%p169) target = $region32
      $region31: #{patch_discriminator.4} parent=27 // pred_region
        %s172 = smul.u32 16, %s18
        %p173 = scmp.lt.s32.totalorder %s17, 1
        %s174 = scalar_select %p173, %s17, 1
        %p175 = scmp.lt.s32.totalorder %s172, 15
        %s176 = scalar_select %p175, %s172, 15
        %s177 = smul.addr %s176, 3
        %s178 = smul.addr %s174, 48
        %s179 = sadd.s32 %s177, %s178
        %s180 = smul.addr %s179, 4
        %s181 = scalar_lea.vmem %s0, %s180
        %s182 = smul.u32 16, %s18
      $region32: #{patch_discriminator.4} parent=27 // pred_fallthru
        _
    $region28: #{patch_discriminator.4} parent=5 // pred_fallthru
      _
    %p183 = scmp.le.s32.totalorder 1, %s10
    %p184 = scmp.lt.s32.totalorder %s10, 3
    %p185 = pnand %p183, %p184
    %p186 = pneg %p185
    // Predicated region
    $region33: #{patch_discriminator.4} parent=5 // pred_check
      _
    $region34: #{patch_discriminator.4} parent=5 // pred_check_branch
      %188 = sbr.rel (%p185) target = $region36
    $region35: #{patch_discriminator.4} parent=5 // pred_region
      %s189 = ssub.s32 %s10, 1
      %s190 = smul.u32 16, %s20
      %p191 = scmp.lt.s32.totalorder %s19, 1
      %s192 = scalar_select %p191, %s19, 1
      %p193 = scmp.lt.s32.totalorder %s190, 15
      %s194 = scalar_select %p193, %s190, 15
      %s195 = smul.addr %s194, 3
      %s196 = smul.addr %s192, 48
      %s197 = sadd.s32 %s195, %s196
      %s198 = smul.addr %s197, 4
      %s199 = scalar_lea.vmem %s0, %s198
      %p200 = pneg %p50
      %p201 = pneg %p47
      %p202 = pneg %p71
      %p203 = pneg %p68
      %p204 = pneg %p92
      %p205 = pneg %p89
      %p206 = pneg %p113
      %p207 = pneg %p110
      %p208 = pneg %p141
      %p209 = pneg %p138
      %s210 = smul.u32 32, %s20
      %p211 = scmp.lt.s32.totalorder %s19, 1
      %s212 = scalar_select %p211, %s19, 1
      %p213 = scmp.lt.s32.totalorder %s210, 31
      %s214 = scalar_select %p213, %s210, 31
      %s215 = smul.addr %s212, 32
      %s216 = sadd.s32 %s214, %s215
      %s217 = smul.addr %s216, 4
      %s218 = scalar_lea.vmem %s4, %s217
      %s219 = smul.u32 16, %s20
      %p220 = scmp.lt.s32.totalorder %s19, 1
      %s221 = scalar_select %p220, %s19, 1
      %p222 = scmp.lt.s32.totalorder %s219, 15
      %s223 = scalar_select %p222, %s219, 15
      %s224 = smul.addr %s223, 3
      %s225 = smul.addr %s221, 48
      %s226 = sadd.s32 %s224, %s225
      %s227 = smul.addr %s226, 4
      %s228 = scalar_lea.vmem %s0, %s227
      %s229 = smul.u32 16, %s20
      %s230 = smul.u32 32, %s20
      %p231 = scmp.lt.s32.totalorder %s19, 1
      %s232 = scalar_select %p231, %s19, 1
      %p233 = scmp.lt.s32.totalorder %s230, 31
      %s234 = scalar_select %p233, %s230, 31
      %s235 = smul.addr %s232, 32
      %s236 = sadd.s32 %s234, %s235
      %s237 = smul.addr %s236, 4
      %s238 = scalar_lea.vmem %s4, %s237
      %s239 = smul.u32 32, %s20
      %v241 = vld [vmem:[%s228] sm:$0xf]
      %v242 = vld [vmem:[%s228 + $0x4] sm:$0xf]
      %v243 = vld [vmem:[%s228 + $0x8] sm:$0x1]
      %v244 = vld [vmem:[%s228 + $0xc] sm:$0xf]
      %v245 = vld [vmem:[%s228 + $0x10] sm:$0xf]
      %v246 = vld [vmem:[%s228 + $0x14] sm:$0x1]
      %v247 = vld [vmem:[%s228 + $0x18] sm:$0xf]
      %v248 = vld [vmem:[%s228 + $0x1c] sm:$0xf]
      %v249 = vld [vmem:[%s228 + $0x20] sm:$0x1]
      %v250 = vld [vmem:[%s228 + $0x24] sm:$0xf]
      %v251 = vld [vmem:[%s228 + $0x28] sm:$0xf]
      %v252 = vld [vmem:[%s228 + $0x2c] sm:$0x1]
      %v253 = vld [vmem:[%s228 + $0x30] sm:$0xf]
      %v254 = vld [vmem:[%s228 + $0x34] sm:$0xf]
      %v255 = vld [vmem:[%s228 + $0x38] sm:$0x1]
      %v256 = vld [vmem:[%s228 + $0x3c] sm:$0xf]
      %v257 = vld [vmem:[%s228 + $0x40] sm:$0xf]
      %v258 = vld [vmem:[%s228 + $0x44] sm:$0x1]
      %v259 = vld [vmem:[%s228 + $0x48] sm:$0xf]
      %v260 = vld [vmem:[%s228 + $0x4c] sm:$0xf]
      %v261 = vld [vmem:[%s228 + $0x50] sm:$0x1]
      %v262 = vld [vmem:[%s228 + $0x54] sm:$0xf]
      %v263 = vld [vmem:[%s228 + $0x58] sm:$0xf]
      %v264 = vld [vmem:[%s228 + $0x5c] sm:$0x1]
      %v265 = vld [vmem:[%s228 + $0x60] sm:$0xf]
      %v266 = vld [vmem:[%s228 + $0x64] sm:$0xf]
      %v267 = vld [vmem:[%s228 + $0x68] sm:$0x1]
      %v268 = vld [vmem:[%s228 + $0x6c] sm:$0xf]
      %v269 = vld [vmem:[%s228 + $0x70] sm:$0xf]
      %v270 = vld [vmem:[%s228 + $0x74] sm:$0x1]
      %v271 = vld [vmem:[%s228 + $0x78] sm:$0xf]
      %v272 = vld [vmem:[%s228 + $0x7c] sm:$0xf]
      %v273 = vld [vmem:[%s228 + $0x80] sm:$0x1]
      %v274 = vld [vmem:[%s228 + $0x84] sm:$0xf]
      %v275 = vld [vmem:[%s228 + $0x88] sm:$0xf]
      %v276 = vld [vmem:[%s228 + $0x8c] sm:$0x1]
      %v277 = vld [vmem:[%s228 + $0x90] sm:$0xf]
      %v278 = vld [vmem:[%s228 + $0x94] sm:$0xf]
      %v279 = vld [vmem:[%s228 + $0x98] sm:$0x1]
      %v280 = vld [vmem:[%s228 + $0x9c] sm:$0xf]
      %v281 = vld [vmem:[%s228 + $0xa0] sm:$0xf]
      %v282 = vld [vmem:[%s228 + $0xa4] sm:$0x1]
      %v283 = vld [vmem:[%s228 + $0xa8] sm:$0xf]
      %v284 = vld [vmem:[%s228 + $0xac] sm:$0xf]
      %v285 = vld [vmem:[%s228 + $0xb0] sm:$0x1]
      %v286 = vld [vmem:[%s228 + $0xb4] sm:$0xf]
      %v287 = vld [vmem:[%s228 + $0xb8] sm:$0xf]
      %v288 = vld [vmem:[%s228 + $0xbc] sm:$0x1]
      %v289 = vld [vmem:[%s1] sm:$0xf]
      %v290 = vld [vmem:[%s1 + $0x4] sm:$0xf]
      %v291 = vld [vmem:[%s1 + $0x8] sm:$0xf]
      %v292 = vld [vmem:[%s1 + $0xc] sm:$0xf]
      %v293 = vld [vmem:[%s1 + $0x10] sm:$0xf]
      %v294 = vld [vmem:[%s1 + $0x14] sm:$0xf]
      %v295 = vld [vmem:[%s1 + $0x18] sm:$0xf]
      %v296 = vld [vmem:[%s1 + $0x1c] sm:$0xf]
      %v297 = vld [vmem:[%s1 + $0x20] sm:$0xf]
      %v298 = vld [vmem:[%s1 + $0x24] sm:$0xf]
      %v299 = vld [vmem:[%s1 + $0x28] sm:$0xf]
      %v300 = vld [vmem:[%s1 + $0x2c] sm:$0xf]
      %v301 = vld [vmem:[%s1 + $0x30] sm:$0xf]
      %v302 = vld [vmem:[%s1 + $0x34] sm:$0xf]
      %v303 = vld [vmem:[%s1 + $0x38] sm:$0xf]
      %v304 = vld [vmem:[%s1 + $0x3c] sm:$0xf]
      %vm305 = vsmask.f32 3328
      %vm306 = vsmask.f32 7440
      %vm307 = vmor %vm305, %vm306
      %v309 = vshrl.u32 %v241, 16
      %v311 = vrot.slane %v309, 4
      %v312 = vshll.u32 %v241, 16
      %v314 = vrot.slane %v312, 5
      %v315 = vor.u32 %v311, %v314
      %v316 = vrot.slane %v315, 4
      %v318 = vshll.u32 %v242, 16
      %v320 = vrot.slane %v318, 5
      %v321 = vsel %vm307, %v316, %v320
      %v322 = vshrl.u32 %v242, 16
      %v324 = vrot.slane %v322, 4
      %v325 = vor.u32 %v324, %v320
      %v326 = vrot.slane %v325, 4
      %v328 = vshll.u32 %v243, 16
      %v330 = vrot.slane %v328, 5
      %v331 = vsel %vm307, %v326, %v330
      %v333 = vshrl.u32 %v244, 16
      %v335 = vrot.slane %v333, 4
      %v336 = vshll.u32 %v244, 16
      %v338 = vrot.slane %v336, 5
      %v339 = vor.u32 %v335, %v338
      %v340 = vrot.slane %v339, 4
      %v342 = vshll.u32 %v245, 16
      %v344 = vrot.slane %v342, 5
      %v345 = vsel %vm307, %v340, %v344
      %v346 = vshrl.u32 %v245, 16
      %v348 = vrot.slane %v346, 4
      %v349 = vor.u32 %v348, %v344
      %v350 = vrot.slane %v349, 4
      %v352 = vshll.u32 %v246, 16
      %v354 = vrot.slane %v352, 5
      %v355 = vsel %vm307, %v350, %v354
      %v357 = vshrl.u32 %v247, 16
      %v359 = vrot.slane %v357, 4
      %v360 = vshll.u32 %v247, 16
      %v362 = vrot.slane %v360, 5
      %v363 = vor.u32 %v359, %v362
      %v364 = vrot.slane %v363, 4
      %v366 = vshll.u32 %v248, 16
      %v368 = vrot.slane %v366, 5
      %v369 = vsel %vm307, %v364, %v368
      %v370 = vshrl.u32 %v248, 16
      %v372 = vrot.slane %v370, 4
      %v373 = vor.u32 %v372, %v368
      %v374 = vrot.slane %v373, 4
      %v376 = vshll.u32 %v249, 16
      %v378 = vrot.slane %v376, 5
      %v379 = vsel %vm307, %v374, %v378
      %v381 = vshrl.u32 %v250, 16
      %v383 = vrot.slane %v381, 4
      %v384 = vshll.u32 %v250, 16
      %v386 = vrot.slane %v384, 5
      %v387 = vor.u32 %v383, %v386
      %v388 = vrot.slane %v387, 4
      %v390 = vshll.u32 %v251, 16
      %v392 = vrot.slane %v390, 5
      %v393 = vsel %vm307, %v388, %v392
      %v394 = vshrl.u32 %v251, 16
      %v396 = vrot.slane %v394, 4
      %v397 = vor.u32 %v396, %v392
      %v398 = vrot.slane %v397, 4
      %v400 = vshll.u32 %v252, 16
      %v402 = vrot.slane %v400, 5
      %v403 = vsel %vm307, %v398, %v402
      %v405 = vshrl.u32 %v253, 16
      %v407 = vrot.slane %v405, 4
      %v408 = vshll.u32 %v253, 16
      %v410 = vrot.slane %v408, 5
      %v411 = vor.u32 %v407, %v410
      %v412 = vrot.slane %v411, 4
      %v414 = vshll.u32 %v254, 16
      %v416 = vrot.slane %v414, 5
      %v417 = vsel %vm307, %v412, %v416
      %v418 = vshrl.u32 %v254, 16
      %v420 = vrot.slane %v418, 4
      %v421 = vor.u32 %v420, %v416
      %v422 = vrot.slane %v421, 4
      %v424 = vshll.u32 %v255, 16
      %v426 = vrot.slane %v424, 5
      %v427 = vsel %vm307, %v422, %v426
      %v429 = vshrl.u32 %v256, 16
      %v431 = vrot.slane %v429, 4
      %v432 = vshll.u32 %v256, 16
      %v434 = vrot.slane %v432, 5
      %v435 = vor.u32 %v431, %v434
      %v436 = vrot.slane %v435, 4
      %v438 = vshll.u32 %v257, 16
      %v440 = vrot.slane %v438, 5
      %v441 = vsel %vm307, %v436, %v440
      %v442 = vshrl.u32 %v257, 16
      %v444 = vrot.slane %v442, 4
      %v445 = vor.u32 %v444, %v440
      %v446 = vrot.slane %v445, 4
      %v448 = vshll.u32 %v258, 16
      %v450 = vrot.slane %v448, 5
      %v451 = vsel %vm307, %v446, %v450
      %v453 = vshrl.u32 %v259, 16
      %v455 = vrot.slane %v453, 4
      %v456 = vshll.u32 %v259, 16
      %v458 = vrot.slane %v456, 5
      %v459 = vor.u32 %v455, %v458
      %v460 = vrot.slane %v459, 4
      %v462 = vshll.u32 %v260, 16
      %v464 = vrot.slane %v462, 5
      %v465 = vsel %vm307, %v460, %v464
      %v466 = vshrl.u32 %v260, 16
      %v468 = vrot.slane %v466, 4
      %v469 = vor.u32 %v468, %v464
      %v470 = vrot.slane %v469, 4
      %v472 = vshll.u32 %v261, 16
      %v474 = vrot.slane %v472, 5
      %v475 = vsel %vm307, %v470, %v474
      %v477 = vshrl.u32 %v262, 16
      %v479 = vrot.slane %v477, 4
      %v480 = vshll.u32 %v262, 16
      %v482 = vrot.slane %v480, 5
      %v483 = vor.u32 %v479, %v482
      %v484 = vrot.slane %v483, 4
      %v486 = vshll.u32 %v263, 16
      %v488 = vrot.slane %v486, 5
      %v489 = vsel %vm307, %v484, %v488
      %v490 = vshrl.u32 %v263, 16
      %v492 = vrot.slane %v490, 4
      %v493 = vor.u32 %v492, %v488
      %v494 = vrot.slane %v493, 4
      %v496 = vshll.u32 %v264, 16
      %v498 = vrot.slane %v496, 5
      %v499 = vsel %vm307, %v494, %v498
      %v501 = vshrl.u32 %v265, 16
      %v503 = vrot.slane %v501, 4
      %v504 = vshll.u32 %v265, 16
      %v506 = vrot.slane %v504, 5
      %v507 = vor.u32 %v503, %v506
      %v508 = vrot.slane %v507, 4
      %v510 = vshll.u32 %v266, 16
      %v512 = vrot.slane %v510, 5
      %v513 = vsel %vm307, %v508, %v512
      %v514 = vshrl.u32 %v266, 16
      %v516 = vrot.slane %v514, 4
      %v517 = vor.u32 %v516, %v512
      %v518 = vrot.slane %v517, 4
      %v520 = vshll.u32 %v267, 16
      %v522 = vrot.slane %v520, 5
      %v523 = vsel %vm307, %v518, %v522
      %v525 = vshrl.u32 %v268, 16
      %v527 = vrot.slane %v525, 4
      %v528 = vshll.u32 %v268, 16
      %v530 = vrot.slane %v528, 5
      %v531 = vor.u32 %v527, %v530
      %v532 = vrot.slane %v531, 4
      %v534 = vshll.u32 %v269, 16
      %v536 = vrot.slane %v534, 5
      %v537 = vsel %vm307, %v532, %v536
      %v538 = vshrl.u32 %v269, 16
      %v540 = vrot.slane %v538, 4
      %v541 = vor.u32 %v540, %v536
      %v542 = vrot.slane %v541, 4
      %v544 = vshll.u32 %v270, 16
      %v546 = vrot.slane %v544, 5
      %v547 = vsel %vm307, %v542, %v546
      %v549 = vshrl.u32 %v271, 16
      %v551 = vrot.slane %v549, 4
      %v552 = vshll.u32 %v271, 16
      %v554 = vrot.slane %v552, 5
      %v555 = vor.u32 %v551, %v554
      %v556 = vrot.slane %v555, 4
      %v558 = vshll.u32 %v272, 16
      %v560 = vrot.slane %v558, 5
      %v561 = vsel %vm307, %v556, %v560
      %v562 = vshrl.u32 %v272, 16
      %v564 = vrot.slane %v562, 4
      %v565 = vor.u32 %v564, %v560
      %v566 = vrot.slane %v565, 4
      %v568 = vshll.u32 %v273, 16
      %v570 = vrot.slane %v568, 5
      %v571 = vsel %vm307, %v566, %v570
      %v573 = vshrl.u32 %v274, 16
      %v575 = vrot.slane %v573, 4
      %v576 = vshll.u32 %v274, 16
      %v578 = vrot.slane %v576, 5
      %v579 = vor.u32 %v575, %v578
      %v580 = vrot.slane %v579, 4
      %v582 = vshll.u32 %v275, 16
      %v584 = vrot.slane %v582, 5
      %v585 = vsel %vm307, %v580, %v584
      %v586 = vshrl.u32 %v275, 16
      %v588 = vrot.slane %v586, 4
      %v589 = vor.u32 %v588, %v584
      %v590 = vrot.slane %v589, 4
      %v592 = vshll.u32 %v276, 16
      %v594 = vrot.slane %v592, 5
      %v595 = vsel %vm307, %v590, %v594
      %v597 = vshrl.u32 %v277, 16
      %v599 = vrot.slane %v597, 4
      %v600 = vshll.u32 %v277, 16
      %v602 = vrot.slane %v600, 5
      %v603 = vor.u32 %v599, %v602
      %v604 = vrot.slane %v603, 4
      %v606 = vshll.u32 %v278, 16
      %v608 = vrot.slane %v606, 5
      %v609 = vsel %vm307, %v604, %v608
      %v610 = vshrl.u32 %v278, 16
      %v612 = vrot.slane %v610, 4
      %v613 = vor.u32 %v612, %v608
      %v614 = vrot.slane %v613, 4
      %v616 = vshll.u32 %v279, 16
      %v618 = vrot.slane %v616, 5
      %v619 = vsel %vm307, %v614, %v618
      %v621 = vshrl.u32 %v280, 16
      %v623 = vrot.slane %v621, 4
      %v624 = vshll.u32 %v280, 16
      %v626 = vrot.slane %v624, 5
      %v627 = vor.u32 %v623, %v626
      %v628 = vrot.slane %v627, 4
      %v630 = vshll.u32 %v281, 16
      %v632 = vrot.slane %v630, 5
      %v633 = vsel %vm307, %v628, %v632
      %v634 = vshrl.u32 %v281, 16
      %v636 = vrot.slane %v634, 4
      %v637 = vor.u32 %v636, %v632
      %v638 = vrot.slane %v637, 4
      %v640 = vshll.u32 %v282, 16
      %v642 = vrot.slane %v640, 5
      %v643 = vsel %vm307, %v638, %v642
      %v645 = vshrl.u32 %v283, 16
      %v647 = vrot.slane %v645, 4
      %v648 = vshll.u32 %v283, 16
      %v650 = vrot.slane %v648, 5
      %v651 = vor.u32 %v647, %v650
      %v652 = vrot.slane %v651, 4
      %v654 = vshll.u32 %v284, 16
      %v656 = vrot.slane %v654, 5
      %v657 = vsel %vm307, %v652, %v656
      %v658 = vshrl.u32 %v284, 16
      %v660 = vrot.slane %v658, 4
      %v661 = vor.u32 %v660, %v656
      %v662 = vrot.slane %v661, 4
      %v664 = vshll.u32 %v285, 16
      %v666 = vrot.slane %v664, 5
      %v667 = vsel %vm307, %v662, %v666
      %v669 = vshrl.u32 %v286, 16
      %v671 = vrot.slane %v669, 4
      %v672 = vshll.u32 %v286, 16
      %v674 = vrot.slane %v672, 5
      %v675 = vor.u32 %v671, %v674
      %v676 = vrot.slane %v675, 4
      %v678 = vshll.u32 %v287, 16
      %v680 = vrot.slane %v678, 5
      %v681 = vsel %vm307, %v676, %v680
      %v682 = vshrl.u32 %v287, 16
      %v684 = vrot.slane %v682, 4
      %v685 = vor.u32 %v684, %v680
      %v686 = vrot.slane %v685, 4
      %v688 = vshll.u32 %v288, 16
      %v690 = vrot.slane %v688, 5
      %v691 = vsel %vm307, %v686, %v690
      %s692 = scalar_lea.vmem %s1, 64
      %v693 = vld [vmem:[%s692] sm:$0xf]
      %v694 = vld [vmem:[%s692 + $0x4] sm:$0xf]
      %v695 = vld [vmem:[%s692 + $0x8] sm:$0xf]
      %v696 = vld [vmem:[%s692 + $0xc] sm:$0xf]
      %v697 = vld [vmem:[%s692 + $0x10] sm:$0xf]
      %v698 = vld [vmem:[%s692 + $0x14] sm:$0xf]
      %v699 = vld [vmem:[%s692 + $0x18] sm:$0xf]
      %v700 = vld [vmem:[%s692 + $0x1c] sm:$0xf]
      %v701 = vld [vmem:[%s692 + $0x20] sm:$0xf]
      %v702 = vld [vmem:[%s692 + $0x24] sm:$0xf]
      %v703 = vld [vmem:[%s692 + $0x28] sm:$0xf]
      %v704 = vld [vmem:[%s692 + $0x2c] sm:$0xf]
      %v705 = vld [vmem:[%s692 + $0x30] sm:$0xf]
      %v706 = vld [vmem:[%s692 + $0x34] sm:$0xf]
      %v707 = vld [vmem:[%s692 + $0x38] sm:$0xf]
      %v708 = vld [vmem:[%s692 + $0x3c] sm:$0xf]
      %v709 = vunpack.c.l.b16 %v321
      %v710 = vunpack.c.l.b16 %v331
      %v711 = vunpack.c.l.b16 %v345
      %v712 = vunpack.c.l.b16 %v355
      %v713 = vunpack.c.l.b16 %v369
      %v714 = vunpack.c.l.b16 %v379
      %v715 = vunpack.c.l.b16 %v393
      %v716 = vunpack.c.l.b16 %v403
      %v717 = vunpack.c.l.b16 %v417
      %v718 = vunpack.c.l.b16 %v427
      %v719 = vunpack.c.l.b16 %v441
      %v720 = vunpack.c.l.b16 %v451
      %v721 = vunpack.c.l.b16 %v465
      %v722 = vunpack.c.l.b16 %v475
      %v723 = vunpack.c.l.b16 %v489
      %v724 = vunpack.c.l.b16 %v499
      %v725 = vunpack.c.l.b16 %v513
      %v726 = vunpack.c.l.b16 %v523
      %v727 = vunpack.c.l.b16 %v537
      %v728 = vunpack.c.l.b16 %v547
      %v729 = vunpack.c.l.b16 %v561
      %v730 = vunpack.c.l.b16 %v571
      %v731 = vunpack.c.l.b16 %v585
      %v732 = vunpack.c.l.b16 %v595
      %v733 = vunpack.c.l.b16 %v609
      %v734 = vunpack.c.l.b16 %v619
      %v735 = vunpack.c.l.b16 %v633
      %v736 = vunpack.c.l.b16 %v643
      %v737 = vunpack.c.l.b16 %v657
      %v738 = vunpack.c.l.b16 %v667
      %v739 = vunpack.c.l.b16 %v681
      %v740 = vunpack.c.l.b16 %v691
      %v741 = vpack.c.b16 %v710, %v709
      %v742 = vpack.c.b16 %v712, %v711
      %v743 = vpack.c.b16 %v714, %v713
      %v744 = vpack.c.b16 %v716, %v715
      %v745 = vpack.c.b16 %v718, %v717
      %v746 = vpack.c.b16 %v720, %v719
      %v747 = vpack.c.b16 %v722, %v721
      %v748 = vpack.c.b16 %v724, %v723
      %v749 = vpack.c.b16 %v726, %v725
      %v750 = vpack.c.b16 %v728, %v727
      %v751 = vpack.c.b16 %v730, %v729
      %v752 = vpack.c.b16 %v732, %v731
      %v753 = vpack.c.b16 %v734, %v733
      %v754 = vpack.c.b16 %v736, %v735
      %v755 = vpack.c.b16 %v738, %v737
      %v756 = vpack.c.b16 %v740, %v739
      %v789 = vunpack.c.l.b16 %v693
      %v790 = vunpack.c.l.b16 %v694
      %v791 = vunpack.c.l.b16 %v695
      %v792 = vunpack.c.l.b16 %v696
      %v793 = vunpack.c.l.b16 %v697
      %v794 = vunpack.c.l.b16 %v698
      %v795 = vunpack.c.l.b16 %v699
      %v796 = vunpack.c.l.b16 %v700
      %v797 = vunpack.c.l.b16 %v701
      %v798 = vunpack.c.l.b16 %v702
      %v799 = vunpack.c.l.b16 %v703
      %v800 = vunpack.c.l.b16 %v704
      %v801 = vunpack.c.l.b16 %v705
      %v802 = vunpack.c.l.b16 %v706
      %v803 = vunpack.c.l.b16 %v707
      %v804 = vunpack.c.l.b16 %v708
      %v805 = vpack.c.b16 %v790, %v789
      %v806 = vpack.c.b16 %v792, %v791
      %v807 = vpack.c.b16 %v794, %v793
      %v808 = vpack.c.b16 %v796, %v795
      %v809 = vpack.c.b16 %v798, %v797
      %v810 = vpack.c.b16 %v800, %v799
      %v811 = vpack.c.b16 %v802, %v801
      %v812 = vpack.c.b16 %v804, %v803
      %821 = vmatprep.subr.bf16.mxu0 0
      %822 = vmatpush1.bf16.msra.mxu0 %v805
      %823 = vmatprep.subr.bf16.mxu0 0
      %824 = vmatpush1.bf16.msra.mxu0 %v806
      %825 = vmatprep.subr.bf16.mxu0 0
      %826 = vmatpush1.bf16.msra.mxu0 %v807
      %827 = vmatprep.subr.bf16.mxu0 0
      %828 = vmatpush1.bf16.msra.mxu0 %v808
      %829 = vmatprep.subr.bf16.mxu0 0
      %830 = vmatpush1.bf16.msra.mxu0 %v809
      %831 = vmatprep.subr.bf16.mxu0 0
      %832 = vmatpush1.bf16.msra.mxu0 %v810
      %833 = vmatprep.subr.bf16.mxu0 0
      %834 = vmatpush1.bf16.msra.mxu0 %v811
      %835 = vmatprep.subr.bf16.mxu0 0
      %836 = vmatpush1.bf16.msra.mxu0 %v812
      %837 = vmatprep.subr.bf16.mxu0 0
      %838 = vmatpush1.bf16.msra.mxu0 0
      %839 = vmatprep.subr.bf16.mxu0 0
      %840 = vmatpush1.bf16.msra.mxu0 0
      %841 = vmatprep.subr.bf16.mxu0 0
      %842 = vmatpush1.bf16.msra.mxu0 0
      %843 = vmatprep.subr.bf16.mxu0 0
      %844 = vmatpush1.bf16.msra.mxu0 0
      %845 = vmatprep.subr.bf16.mxu0 0
      %846 = vmatpush1.bf16.msra.mxu0 0
      %847 = vmatprep.subr.bf16.mxu0 0
      %848 = vmatpush1.bf16.msra.mxu0 0
      %849 = vmatprep.subr.bf16.mxu0 0
      %850 = vmatpush1.bf16.msra.mxu0 0
      %851 = vmatprep.subr.bf16.mxu0 0
      %852 = vmatpush1.bf16.msra.mxu0 0
      %853 = vmatprep.mubr.bf16.mxu0 0
      %854 = vmatmul.mubr.bf16.gmra.mrb[0].mxu0 %v741
      %v855 = vpop.f32.mrb[0].mxu0
      %v856 = vadd.f32 0.0, %v855
      %v857 = vpop.f32.mrb[0].mxu0
      %v858 = vpop.f32.mrb[0].mxu0
      %v859 = vadd.f32 0.0, %v858
      %v860 = vpop.f32.mrb[0].mxu0
      %861 = vmatprep.mubr.bf16.mxu0 0
      %862 = vmatmul.mubr.bf16.gmra.mrb[0].mxu0 %v742
      %v863 = vpop.f32.mrb[0].mxu0
      %v864 = vadd.f32 0.0, %v863
      %v865 = vpop.f32.mrb[0].mxu0
      %v866 = vpop.f32.mrb[0].mxu0
      %v867 = vadd.f32 0.0, %v866
      %v868 = vpop.f32.mrb[0].mxu0
      %869 = vmatprep.mubr.bf16.mxu0 0
      %870 = vmatmul.mubr.bf16.gmra.mrb[0].mxu0 %v743
      %v871 = vpop.f32.mrb[0].mxu0
      %v872 = vadd.f32 0.0, %v871
      %v873 = vpop.f32.mrb[0].mxu0
      %v874 = vpop.f32.mrb[0].mxu0
      %v875 = vadd.f32 0.0, %v874
      %v876 = vpop.f32.mrb[0].mxu0
      %877 = vmatprep.mubr.bf16.mxu0 0
      %878 = vmatmul.mubr.bf16.gmra.mrb[0].mxu0 %v744
      %v879 = vpop.f32.mrb[0].mxu0
      %v880 = vadd.f32 0.0, %v879
      %v881 = vpop.f32.mrb[0].mxu0
      %v882 = vpop.f32.mrb[0].mxu0
      %v883 = vadd.f32 0.0, %v882
      %v884 = vpop.f32.mrb[0].mxu0
      %885 = vmatprep.mubr.bf16.mxu0 0
      %886 = vmatmul.mubr.bf16.gmra.mrb[0].mxu0 %v745
      %v887 = vpop.f32.mrb[0].mxu0
      %v888 = vadd.f32 0.0, %v887
      %v889 = vpop.f32.mrb[0].mxu0
      %v890 = vpop.f32.mrb[0].mxu0
      %v891 = vadd.f32 0.0, %v890
      %v892 = vpop.f32.mrb[0].mxu0
      %893 = vmatprep.mubr.bf16.mxu0 0
      %894 = vmatmul.mubr.bf16.gmra.mrb[0].mxu0 %v746
      %v895 = vpop.f32.mrb[0].mxu0
      %v896 = vadd.f32 0.0, %v895
      %v897 = vpop.f32.mrb[0].mxu0
      %v898 = vpop.f32.mrb[0].mxu0
      %v899 = vadd.f32 0.0, %v898
      %v900 = vpop.f32.mrb[0].mxu0
      %901 = vmatprep.mubr.bf16.mxu0 0
      %902 = vmatmul.mubr.bf16.gmra.mrb[0].mxu0 %v747
      %v903 = vpop.f32.mrb[0].mxu0
      %v904 = vadd.f32 0.0, %v903
      %v905 = vpop.f32.mrb[0].mxu0
      %v906 = vpop.f32.mrb[0].mxu0
      %v907 = vadd.f32 0.0, %v906
      %v908 = vpop.f32.mrb[0].mxu0
      %909 = vmatprep.mubr.bf16.mxu0 0
      %910 = vmatmul.mubr.bf16.gmra.mrb[0].mxu0 %v748
      %v911 = vpop.f32.mrb[0].mxu0
      %v912 = vadd.f32 0.0, %v911
      %v913 = vpop.f32.mrb[0].mxu0
      %v914 = vpop.f32.mrb[0].mxu0
      %v915 = vadd.f32 0.0, %v914
      %v916 = vpop.f32.mrb[0].mxu0
      %917 = vmatprep.mubr.bf16.mxu0 0
      %918 = vmatmul.mubr.bf16.gmra.mrb[0].mxu0 %v749
      %v919 = vpop.f32.mrb[0].mxu0
      %v920 = vadd.f32 0.0, %v919
      %v921 = vpop.f32.mrb[0].mxu0
      %v922 = vpop.f32.mrb[0].mxu0
      %v923 = vadd.f32 0.0, %v922
      %v924 = vpop.f32.mrb[0].mxu0
      %925 = vmatprep.mubr.bf16.mxu0 0
      %926 = vmatmul.mubr.bf16.gmra.mrb[0].mxu0 %v750
      %v927 = vpop.f32.mrb[0].mxu0
      %v928 = vadd.f32 0.0, %v927
      %v929 = vpop.f32.mrb[0].mxu0
      %v930 = vpop.f32.mrb[0].mxu0
      %v931 = vadd.f32 0.0, %v930
      %v932 = vpop.f32.mrb[0].mxu0
      %933 = vmatprep.mubr.bf16.mxu0 0
      %934 = vmatmul.mubr.bf16.gmra.mrb[0].mxu0 %v751
      %v935 = vpop.f32.mrb[0].mxu0
      %v936 = vadd.f32 0.0, %v935
      %v937 = vpop.f32.mrb[0].mxu0
      %v938 = vpop.f32.mrb[0].mxu0
      %v939 = vadd.f32 0.0, %v938
      %v940 = vpop.f32.mrb[0].mxu0
      %941 = vmatprep.mubr.bf16.mxu0 0
      %942 = vmatmul.mubr.bf16.gmra.mrb[0].mxu0 %v752
      %v943 = vpop.f32.mrb[0].mxu0
      %v944 = vadd.f32 0.0, %v943
      %v945 = vpop.f32.mrb[0].mxu0
      %v946 = vpop.f32.mrb[0].mxu0
      %v947 = vadd.f32 0.0, %v946
      %v948 = vpop.f32.mrb[0].mxu0
      %949 = vmatprep.mubr.bf16.mxu0 0
      %950 = vmatmul.mubr.bf16.gmra.mrb[0].mxu0 %v753
      %v951 = vpop.f32.mrb[0].mxu0
      %v952 = vadd.f32 0.0, %v951
      %v953 = vpop.f32.mrb[0].mxu0
      %v954 = vpop.f32.mrb[0].mxu0
      %v955 = vadd.f32 0.0, %v954
      %v956 = vpop.f32.mrb[0].mxu0
      %957 = vmatprep.mubr.bf16.mxu0 0
      %958 = vmatmul.mubr.bf16.gmra.mrb[0].mxu0 %v754
      %v959 = vpop.f32.mrb[0].mxu0
      %v960 = vadd.f32 0.0, %v959
      %v961 = vpop.f32.mrb[0].mxu0
      %v962 = vpop.f32.mrb[0].mxu0
      %v963 = vadd.f32 0.0, %v962
      %v964 = vpop.f32.mrb[0].mxu0
      %965 = vmatprep.mubr.bf16.mxu0 0
      %966 = vmatmul.mubr.bf16.gmra.mrb[0].mxu0 %v755
      %v967 = vpop.f32.mrb[0].mxu0
      %v968 = vadd.f32 0.0, %v967
      %v969 = vpop.f32.mrb[0].mxu0
      %v970 = vpop.f32.mrb[0].mxu0
      %v971 = vadd.f32 0.0, %v970
      %v972 = vpop.f32.mrb[0].mxu0
      %973 = vmatprep.mubr.bf16.mxu0 0
      %974 = vmatmul.mubr.bf16.gmra.mrb[0].mxu0 %v756
      %v975 = vpop.f32.mrb[0].mxu0
      %v976 = vadd.f32 0.0, %v975
      %v977 = vpop.f32.mrb[0].mxu0
      %v978 = vpop.f32.mrb[0].mxu0
      %v979 = vadd.f32 0.0, %v978
      %v980 = vpop.f32.mrb[0].mxu0
      %981 = vdwg.mxu0
      %v1014 = vunpack.c.l.b16 %v241
      %v1015 = vunpack.c.l.b16 %v242
      %v1016 = vunpack.c.l.b16 %v244
      %v1017 = vunpack.c.l.b16 %v245
      %v1018 = vunpack.c.l.b16 %v247
      %v1019 = vunpack.c.l.b16 %v248
      %v1020 = vunpack.c.l.b16 %v250
      %v1021 = vunpack.c.l.b16 %v251
      %v1022 = vunpack.c.l.b16 %v253
      %v1023 = vunpack.c.l.b16 %v254
      %v1024 = vunpack.c.l.b16 %v256
      %v1025 = vunpack.c.l.b16 %v257
      %v1026 = vunpack.c.l.b16 %v259
      %v1027 = vunpack.c.l.b16 %v260
      %v1028 = vunpack.c.l.b16 %v262
      %v1029 = vunpack.c.l.b16 %v263
      %v1030 = vunpack.c.l.b16 %v265
      %v1031 = vunpack.c.l.b16 %v266
      %v1032 = vunpack.c.l.b16 %v268
      %v1033 = vunpack.c.l.b16 %v269
      %v1034 = vunpack.c.l.b16 %v271
      %v1035 = vunpack.c.l.b16 %v272
      %v1036 = vunpack.c.l.b16 %v274
      %v1037 = vunpack.c.l.b16 %v275
      %v1038 = vunpack.c.l.b16 %v277
      %v1039 = vunpack.c.l.b16 %v278
      %v1040 = vunpack.c.l.b16 %v280
      %v1041 = vunpack.c.l.b16 %v281
      %v1042 = vunpack.c.l.b16 %v283
      %v1043 = vunpack.c.l.b16 %v284
      %v1044 = vunpack.c.l.b16 %v286
      %v1045 = vunpack.c.l.b16 %v287
      %v1046 = vpack.c.b16 %v1015, %v1014
      %v1047 = vpack.c.b16 %v1017, %v1016
      %v1048 = vpack.c.b16 %v1019, %v1018
      %v1049 = vpack.c.b16 %v1021, %v1020
      %v1050 = vpack.c.b16 %v1023, %v1022
      %v1051 = vpack.c.b16 %v1025, %v1024
      %v1052 = vpack.c.b16 %v1027, %v1026
      %v1053 = vpack.c.b16 %v1029, %v1028
      %v1054 = vpack.c.b16 %v1031, %v1030
      %v1055 = vpack.c.b16 %v1033, %v1032
      %v1056 = vpack.c.b16 %v1035, %v1034
      %v1057 = vpack.c.b16 %v1037, %v1036
      %v1058 = vpack.c.b16 %v1039, %v1038
      %v1059 = vpack.c.b16 %v1041, %v1040
      %v1060 = vpack.c.b16 %v1043, %v1042
      %v1061 = vpack.c.b16 %v1045, %v1044
      %v1094 = vunpack.c.l.b16 %v289
      %v1095 = vunpack.c.l.b16 %v290
      %v1096 = vunpack.c.l.b16 %v291
      %v1097 = vunpack.c.l.b16 %v292
      %v1098 = vunpack.c.l.b16 %v293
      %v1099 = vunpack.c.l.b16 %v294
      %v1100 = vunpack.c.l.b16 %v295
      %v1101 = vunpack.c.l.b16 %v296
      %v1102 = vunpack.c.l.b16 %v297
      %v1103 = vunpack.c.l.b16 %v298
      %v1104 = vunpack.c.l.b16 %v299
      %v1105 = vunpack.c.l.b16 %v300
      %v1106 = vunpack.c.l.b16 %v301
      %v1107 = vunpack.c.l.b16 %v302
      %v1108 = vunpack.c.l.b16 %v303
      %v1109 = vunpack.c.l.b16 %v304
      %v1110 = vpack.c.b16 %v1095, %v1094
      %v1111 = vpack.c.b16 %v1097, %v1096
      %v1112 = vpack.c.b16 %v1099, %v1098
      %v1113 = vpack.c.b16 %v1101, %v1100
      %v1114 = vpack.c.b16 %v1103, %v1102
      %v1115 = vpack.c.b16 %v1105, %v1104
      %v1116 = vpack.c.b16 %v1107, %v1106
      %v1117 = vpack.c.b16 %v1109, %v1108
      %1126 = vmatprep.subr.bf16.mxu0 0
      %1127 = vmatpush1.bf16.msra.mxu0 %v1110
      %1128 = vmatprep.subr.bf16.mxu0 0
      %1129 = vmatpush1.bf16.msra.mxu0 %v1111
      %1130 = vmatprep.subr.bf16.mxu0 0
      %1131 = vmatpush1.bf16.msra.mxu0 %v1112
      %1132 = vmatprep.subr.bf16.mxu0 0
      %1133 = vmatpush1.bf16.msra.mxu0 %v1113
      %1134 = vmatprep.subr.bf16.mxu0 0
      %1135 = vmatpush1.bf16.msra.mxu0 %v1114
      %1136 = vmatprep.subr.bf16.mxu0 0
      %1137 = vmatpush1.bf16.msra.mxu0 %v1115
      %1138 = vmatprep.subr.bf16.mxu0 0
      %1139 = vmatpush1.bf16.msra.mxu0 %v1116
      %1140 = vmatprep.subr.bf16.mxu0 0
      %1141 = vmatpush1.bf16.msra.mxu0 %v1117
      %1142 = vmatprep.subr.bf16.mxu0 0
      %1143 = vmatpush1.bf16.msra.mxu0 0
      %1144 = vmatprep.subr.bf16.mxu0 0
      %1145 = vmatpush1.bf16.msra.mxu0 0
      %1146 = vmatprep.subr.bf16.mxu0 0
      %1147 = vmatpush1.bf16.msra.mxu0 0
      %1148 = vmatprep.subr.bf16.mxu0 0
      %1149 = vmatpush1.bf16.msra.mxu0 0
      %1150 = vmatprep.subr.bf16.mxu0 0
      %1151 = vmatpush1.bf16.msra.mxu0 0
      %1152 = vmatprep.subr.bf16.mxu0 0
      %1153 = vmatpush1.bf16.msra.mxu0 0
      %1154 = vmatprep.subr.bf16.mxu0 0
      %1155 = vmatpush1.bf16.msra.mxu0 0
      %1156 = vmatprep.subr.bf16.mxu0 0
      %1157 = vmatpush1.bf16.msra.mxu0 0
      %1158 = vmatprep.mubr.bf16.mxu0 0
      %1159 = vmatmul.mubr.bf16.gmra.mrb[0].mxu0 %v1046
      %v1160 = vpop.f32.mrb[0].mxu0
      %v1161 = vadd.f32 %v856, %v1160
      %v1162 = vpop.f32.mrb[0].mxu0
      %v1163 = vpop.f32.mrb[0].mxu0
      %v1164 = vadd.f32 %v859, %v1163
      %v1165 = vpop.f32.mrb[0].mxu0
      %1166 = vmatprep.mubr.bf16.mxu0 0
      %1167 = vmatmul.mubr.bf16.gmra.mrb[0].mxu0 %v1047
      %v1168 = vpop.f32.mrb[0].mxu0
      %v1169 = vadd.f32 %v864, %v1168
      %v1170 = vpop.f32.mrb[0].mxu0
      %v1171 = vpop.f32.mrb[0].mxu0
      %v1172 = vadd.f32 %v867, %v1171
      %v1173 = vpop.f32.mrb[0].mxu0
      %1174 = vmatprep.mubr.bf16.mxu0 0
      %1175 = vmatmul.mubr.bf16.gmra.mrb[0].mxu0 %v1048
      %v1176 = vpop.f32.mrb[0].mxu0
      %v1177 = vadd.f32 %v872, %v1176
      %v1178 = vpop.f32.mrb[0].mxu0
      %v1179 = vpop.f32.mrb[0].mxu0
      %v1180 = vadd.f32 %v875, %v1179
      %v1181 = vpop.f32.mrb[0].mxu0
      %1182 = vmatprep.mubr.bf16.mxu0 0
      %1183 = vmatmul.mubr.bf16.gmra.mrb[0].mxu0 %v1049
      %v1184 = vpop.f32.mrb[0].mxu0
      %v1185 = vadd.f32 %v880, %v1184
      %v1186 = vpop.f32.mrb[0].mxu0
      %v1187 = vpop.f32.mrb[0].mxu0
      %v1188 = vadd.f32 %v883, %v1187
      %v1189 = vpop.f32.mrb[0].mxu0
      %1190 = vmatprep.mubr.bf16.mxu0 0
      %1191 = vmatmul.mubr.bf16.gmra.mrb[0].mxu0 %v1050
      %v1192 = vpop.f32.mrb[0].mxu0
      %v1193 = vadd.f32 %v888, %v1192
      %v1194 = vpop.f32.mrb[0].mxu0
      %v1195 = vpop.f32.mrb[0].mxu0
      %v1196 = vadd.f32 %v891, %v1195
      %v1197 = vpop.f32.mrb[0].mxu0
      %1198 = vmatprep.mubr.bf16.mxu0 0
      %1199 = vmatmul.mubr.bf16.gmra.mrb[0].mxu0 %v1051
      %v1200 = vpop.f32.mrb[0].mxu0
      %v1201 = vadd.f32 %v896, %v1200
      %v1202 = vpop.f32.mrb[0].mxu0
      %v1203 = vpop.f32.mrb[0].mxu0
      %v1204 = vadd.f32 %v899, %v1203
      %v1205 = vpop.f32.mrb[0].mxu0
      %1206 = vmatprep.mubr.bf16.mxu0 0
      %1207 = vmatmul.mubr.bf16.gmra.mrb[0].mxu0 %v1052
      %v1208 = vpop.f32.mrb[0].mxu0
      %v1209 = vadd.f32 %v904, %v1208
      %v1210 = vpop.f32.mrb[0].mxu0
      %v1211 = vpop.f32.mrb[0].mxu0
      %v1212 = vadd.f32 %v907, %v1211
      %v1213 = vpop.f32.mrb[0].mxu0
      %1214 = vmatprep.mubr.bf16.mxu0 0
      %1215 = vmatmul.mubr.bf16.gmra.mrb[0].mxu0 %v1053
      %v1216 = vpop.f32.mrb[0].mxu0
      %v1217 = vadd.f32 %v912, %v1216
      %v1218 = vpop.f32.mrb[0].mxu0
      %v1219 = vpop.f32.mrb[0].mxu0
      %v1220 = vadd.f32 %v915, %v1219
      %v1221 = vpop.f32.mrb[0].mxu0
      %1222 = vmatprep.mubr.bf16.mxu0 0
      %1223 = vmatmul.mubr.bf16.gmra.mrb[0].mxu0 %v1054
      %v1224 = vpop.f32.mrb[0].mxu0
      %v1225 = vadd.f32 %v920, %v1224
      %v1226 = vpop.f32.mrb[0].mxu0
      %v1227 = vpop.f32.mrb[0].mxu0
      %v1228 = vadd.f32 %v923, %v1227
      %v1229 = vpop.f32.mrb[0].mxu0
      %1230 = vmatprep.mubr.bf16.mxu0 0
      %1231 = vmatmul.mubr.bf16.gmra.mrb[0].mxu0 %v1055
      %v1232 = vpop.f32.mrb[0].mxu0
      %v1233 = vadd.f32 %v928, %v1232
      %v1234 = vpop.f32.mrb[0].mxu0
      %v1235 = vpop.f32.mrb[0].mxu0
      %v1236 = vadd.f32 %v931, %v1235
      %v1237 = vpop.f32.mrb[0].mxu0
      %1238 = vmatprep.mubr.bf16.mxu0 0
      %1239 = vmatmul.mubr.bf16.gmra.mrb[0].mxu0 %v1056
      %v1240 = vpop.f32.mrb[0].mxu0
      %v1241 = vadd.f32 %v936, %v1240
      %v1242 = vpop.f32.mrb[0].mxu0
      %v1243 = vpop.f32.mrb[0].mxu0
      %v1244 = vadd.f32 %v939, %v1243
      %v1245 = vpop.f32.mrb[0].mxu0
      %1246 = vmatprep.mubr.bf16.mxu0 0
      %1247 = vmatmul.mubr.bf16.gmra.mrb[0].mxu0 %v1057
      %v1248 = vpop.f32.mrb[0].mxu0
      %v1249 = vadd.f32 %v944, %v1248
      %v1250 = vpop.f32.mrb[0].mxu0
      %v1251 = vpop.f32.mrb[0].mxu0
      %v1252 = vadd.f32 %v947, %v1251
      %v1253 = vpop.f32.mrb[0].mxu0
      %1254 = vmatprep.mubr.bf16.mxu0 0
      %1255 = vmatmul.mubr.bf16.gmra.mrb[0].mxu0 %v1058
      %v1256 = vpop.f32.mrb[0].mxu0
      %v1257 = vadd.f32 %v952, %v1256
      %v1258 = vpop.f32.mrb[0].mxu0
      %v1259 = vpop.f32.mrb[0].mxu0
      %v1260 = vadd.f32 %v955, %v1259
      %v1261 = vpop.f32.mrb[0].mxu0
      %1262 = vmatprep.mubr.bf16.mxu0 0
      %1263 = vmatmul.mubr.bf16.gmra.mrb[0].mxu0 %v1059
      %v1264 = vpop.f32.mrb[0].mxu0
      %v1265 = vadd.f32 %v960, %v1264
      %v1266 = vpop.f32.mrb[0].mxu0
      %v1267 = vpop.f32.mrb[0].mxu0
      %v1268 = vadd.f32 %v963, %v1267
      %v1269 = vpop.f32.mrb[0].mxu0
      %1270 = vmatprep.mubr.bf16.mxu0 0
      %1271 = vmatmul.mubr.bf16.gmra.mrb[0].mxu0 %v1060
      %v1272 = vpop.f32.mrb[0].mxu0
      %v1273 = vadd.f32 %v968, %v1272
      %v1274 = vpop.f32.mrb[0].mxu0
      %v1275 = vpop.f32.mrb[0].mxu0
      %v1276 = vadd.f32 %v971, %v1275
      %v1277 = vpop.f32.mrb[0].mxu0
      %1278 = vmatprep.mubr.bf16.mxu0 0
      %1279 = vmatmul.mubr.bf16.gmra.mrb[0].mxu0 %v1061
      %v1280 = vpop.f32.mrb[0].mxu0
      %v1281 = vadd.f32 %v976, %v1280
      %v1282 = vpop.f32.mrb[0].mxu0
      %v1283 = vpop.f32.mrb[0].mxu0
      %v1284 = vadd.f32 %v979, %v1283
      %v1285 = vpop.f32.mrb[0].mxu0
      %1286 = vdwg.mxu0
      %v1287 = vld [vmem:[%s2] sm:$0x1]
      %v1289 = vlaneseq
      %v1290 = vshrl.u32 %v1289, 7
      %v1291 = vsub.s32 0, %v1290
      %v1292 = vrot.slane %v1287, %v1291
      %v1294 = vmul.f32 %v1161, %v1292
      %v1295 = vmul.f32 %v1164, %v1292
      %v1296 = vmul.f32 %v1169, %v1292
      %v1297 = vmul.f32 %v1172, %v1292
      %v1298 = vmul.f32 %v1177, %v1292
      %v1299 = vmul.f32 %v1180, %v1292
      %v1300 = vmul.f32 %v1185, %v1292
      %v1301 = vmul.f32 %v1188, %v1292
      %v1302 = vmul.f32 %v1193, %v1292
      %v1303 = vmul.f32 %v1196, %v1292
      %v1304 = vmul.f32 %v1201, %v1292
      %v1305 = vmul.f32 %v1204, %v1292
      %v1306 = vmul.f32 %v1209, %v1292
      %v1307 = vmul.f32 %v1212, %v1292
      %v1308 = vmul.f32 %v1217, %v1292
      %v1309 = vmul.f32 %v1220, %v1292
      %v1310 = vmul.f32 %v1225, %v1292
      %v1311 = vmul.f32 %v1228, %v1292
      %v1312 = vmul.f32 %v1233, %v1292
      %v1313 = vmul.f32 %v1236, %v1292
      %v1314 = vmul.f32 %v1241, %v1292
      %v1315 = vmul.f32 %v1244, %v1292
      %v1316 = vmul.f32 %v1249, %v1292
      %v1317 = vmul.f32 %v1252, %v1292
      %v1318 = vmul.f32 %v1257, %v1292
      %v1319 = vmul.f32 %v1260, %v1292
      %v1320 = vmul.f32 %v1265, %v1292
      %v1321 = vmul.f32 %v1268, %v1292
      %v1322 = vmul.f32 %v1273, %v1292
      %v1323 = vmul.f32 %v1276, %v1292
      %v1324 = vmul.f32 %v1281, %v1292
      %v1325 = vmul.f32 %v1284, %v1292
      %v1326 = vld [vmem:[%s3] sm:$0x1]
      %v1328 = vlaneseq
      %v1329 = vshrl.u32 %v1328, 7
      %v1330 = vsub.s32 0, %v1329
      %v1331 = vrot.slane %v1326, %v1330
      %v1333 = vadd.f32 %v1294, %v1331
      %v1334 = vadd.f32 %v1295, %v1331
      %v1335 = vadd.f32 %v1296, %v1331
      %v1336 = vadd.f32 %v1297, %v1331
      %v1337 = vadd.f32 %v1298, %v1331
      %v1338 = vadd.f32 %v1299, %v1331
      %v1339 = vadd.f32 %v1300, %v1331
      %v1340 = vadd.f32 %v1301, %v1331
      %v1341 = vadd.f32 %v1302, %v1331
      %v1342 = vadd.f32 %v1303, %v1331
      %v1343 = vadd.f32 %v1304, %v1331
      %v1344 = vadd.f32 %v1305, %v1331
      %v1345 = vadd.f32 %v1306, %v1331
      %v1346 = vadd.f32 %v1307, %v1331
      %v1347 = vadd.f32 %v1308, %v1331
      %v1348 = vadd.f32 %v1309, %v1331
      %v1349 = vadd.f32 %v1310, %v1331
      %v1350 = vadd.f32 %v1311, %v1331
      %v1351 = vadd.f32 %v1312, %v1331
      %v1352 = vadd.f32 %v1313, %v1331
      %v1353 = vadd.f32 %v1314, %v1331
      %v1354 = vadd.f32 %v1315, %v1331
      %v1355 = vadd.f32 %v1316, %v1331
      %v1356 = vadd.f32 %v1317, %v1331
      %v1357 = vadd.f32 %v1318, %v1331
      %v1358 = vadd.f32 %v1319, %v1331
      %v1359 = vadd.f32 %v1320, %v1331
      %v1360 = vadd.f32 %v1321, %v1331
      %v1361 = vadd.f32 %v1322, %v1331
      %v1362 = vadd.f32 %v1323, %v1331
      %v1363 = vadd.f32 %v1324, %v1331
      %v1364 = vadd.f32 %v1325, %v1331
      %v1365 = vmul.f32 %v1333, 0.2
      %v1366 = vmul.f32 %v1334, 0.2
      %v1367 = vmul.f32 %v1335, 0.2
      %v1368 = vmul.f32 %v1336, 0.2
      %v1369 = vmul.f32 %v1337, 0.2
      %v1370 = vmul.f32 %v1338, 0.2
      %v1371 = vmul.f32 %v1339, 0.2
      %v1372 = vmul.f32 %v1340, 0.2
      %v1373 = vmul.f32 %v1341, 0.2
      %v1374 = vmul.f32 %v1342, 0.2
      %v1375 = vmul.f32 %v1343, 0.2
      %v1376 = vmul.f32 %v1344, 0.2
      %v1377 = vmul.f32 %v1345, 0.2
      %v1378 = vmul.f32 %v1346, 0.2
      %v1379 = vmul.f32 %v1347, 0.2
      %v1380 = vmul.f32 %v1348, 0.2
      %v1381 = vmul.f32 %v1349, 0.2
      %v1382 = vmul.f32 %v1350, 0.2
      %v1383 = vmul.f32 %v1351, 0.2
      %v1384 = vmul.f32 %v1352, 0.2
      %v1385 = vmul.f32 %v1353, 0.2
      %v1386 = vmul.f32 %v1354, 0.2
      %v1387 = vmul.f32 %v1355, 0.2
      %v1388 = vmul.f32 %v1356, 0.2
      %v1389 = vmul.f32 %v1357, 0.2
      %v1390 = vmul.f32 %v1358, 0.2
      %v1391 = vmul.f32 %v1359, 0.2
      %v1392 = vmul.f32 %v1360, 0.2
      %v1393 = vmul.f32 %v1361, 0.2
      %v1394 = vmul.f32 %v1362, 0.2
      %v1395 = vmul.f32 %v1363, 0.2
      %v1396 = vmul.f32 %v1364, 0.2
      %v1397 = vmax.f32 %v1333, %v1365
      %v1398 = vmax.f32 %v1334, %v1366
      %v1399 = vmax.f32 %v1335, %v1367
      %v1400 = vmax.f32 %v1336, %v1368
      %v1401 = vmax.f32 %v1337, %v1369
      %v1402 = vmax.f32 %v1338, %v1370
      %v1403 = vmax.f32 %v1339, %v1371
      %v1404 = vmax.f32 %v1340, %v1372
      %v1405 = vmax.f32 %v1341, %v1373
      %v1406 = vmax.f32 %v1342, %v1374
      %v1407 = vmax.f32 %v1343, %v1375
      %v1408 = vmax.f32 %v1344, %v1376
      %v1409 = vmax.f32 %v1345, %v1377
      %v1410 = vmax.f32 %v1346, %v1378
      %v1411 = vmax.f32 %v1347, %v1379
      %v1412 = vmax.f32 %v1348, %v1380
      %v1413 = vmax.f32 %v1349, %v1381
      %v1414 = vmax.f32 %v1350, %v1382
      %v1415 = vmax.f32 %v1351, %v1383
      %v1416 = vmax.f32 %v1352, %v1384
      %v1417 = vmax.f32 %v1353, %v1385
      %v1418 = vmax.f32 %v1354, %v1386
      %v1419 = vmax.f32 %v1355, %v1387
      %v1420 = vmax.f32 %v1356, %v1388
      %v1421 = vmax.f32 %v1357, %v1389
      %v1422 = vmax.f32 %v1358, %v1390
      %v1423 = vmax.f32 %v1359, %v1391
      %v1424 = vmax.f32 %v1360, %v1392
      %v1425 = vmax.f32 %v1361, %v1393
      %v1426 = vmax.f32 %v1362, %v1394
      %v1427 = vmax.f32 %v1363, %v1395
      %v1428 = vmax.f32 %v1364, %v1396
      %v1429 = vpack.c.bf16 %v1398, %v1397
      %v1430 = vpack.c.bf16 %v1400, %v1399
      %v1431 = vpack.c.bf16 %v1402, %v1401
      %v1432 = vpack.c.bf16 %v1404, %v1403
      %v1433 = vpack.c.bf16 %v1406, %v1405
      %v1434 = vpack.c.bf16 %v1408, %v1407
      %v1435 = vpack.c.bf16 %v1410, %v1409
      %v1436 = vpack.c.bf16 %v1412, %v1411
      %v1437 = vpack.c.bf16 %v1414, %v1413
      %v1438 = vpack.c.bf16 %v1416, %v1415
      %v1439 = vpack.c.bf16 %v1418, %v1417
      %v1440 = vpack.c.bf16 %v1420, %v1419
      %v1441 = vpack.c.bf16 %v1422, %v1421
      %v1442 = vpack.c.bf16 %v1424, %v1423
      %v1443 = vpack.c.bf16 %v1426, %v1425
      %v1444 = vpack.c.bf16 %v1428, %v1427
      %v1461 = vunpack.c.l.b16 %v1429
      %v1462 = vunpack.c.h.b16 %v1429
      %v1463 = vunpack.c.l.b16 %v1430
      %v1464 = vunpack.c.h.b16 %v1430
      %v1465 = vunpack.c.l.b16 %v1431
      %v1466 = vunpack.c.h.b16 %v1431
      %v1467 = vunpack.c.l.b16 %v1432
      %v1468 = vunpack.c.h.b16 %v1432
      %v1469 = vunpack.c.l.b16 %v1433
      %v1470 = vunpack.c.h.b16 %v1433
      %v1471 = vunpack.c.l.b16 %v1434
      %v1472 = vunpack.c.h.b16 %v1434
      %v1473 = vunpack.c.l.b16 %v1435
      %v1474 = vunpack.c.h.b16 %v1435
      %v1475 = vunpack.c.l.b16 %v1436
      %v1476 = vunpack.c.h.b16 %v1436
      %v1477 = vunpack.c.l.b16 %v1437
      %v1478 = vunpack.c.h.b16 %v1437
      %v1479 = vunpack.c.l.b16 %v1438
      %v1480 = vunpack.c.h.b16 %v1438
      %v1481 = vunpack.c.l.b16 %v1439
      %v1482 = vunpack.c.h.b16 %v1439
      %v1483 = vunpack.c.l.b16 %v1440
      %v1484 = vunpack.c.h.b16 %v1440
      %v1485 = vunpack.c.l.b16 %v1441
      %v1486 = vunpack.c.h.b16 %v1441
      %v1487 = vunpack.c.l.b16 %v1442
      %v1488 = vunpack.c.h.b16 %v1442
      %v1489 = vunpack.c.l.b16 %v1443
      %v1490 = vunpack.c.h.b16 %v1443
      %v1491 = vunpack.c.l.b16 %v1444
      %v1492 = vunpack.c.h.b16 %v1444
      %v1493 = vpack.c.b16 %v1461, %v1461
      %v1494 = vpack.c.b16 %v1462, %v1462
      %v1495 = vpack.c.b16 %v1463, %v1463
      %v1496 = vpack.c.b16 %v1464, %v1464
      %v1497 = vpack.c.b16 %v1465, %v1465
      %v1498 = vpack.c.b16 %v1466, %v1466
      %v1499 = vpack.c.b16 %v1467, %v1467
      %v1500 = vpack.c.b16 %v1468, %v1468
      %v1501 = vpack.c.b16 %v1469, %v1469
      %v1502 = vpack.c.b16 %v1470, %v1470
      %v1503 = vpack.c.b16 %v1471, %v1471
      %v1504 = vpack.c.b16 %v1472, %v1472
      %v1505 = vpack.c.b16 %v1473, %v1473
      %v1506 = vpack.c.b16 %v1474, %v1474
      %v1507 = vpack.c.b16 %v1475, %v1475
      %v1508 = vpack.c.b16 %v1476, %v1476
      %v1509 = vpack.c.b16 %v1477, %v1477
      %v1510 = vpack.c.b16 %v1478, %v1478
      %v1511 = vpack.c.b16 %v1479, %v1479
      %v1512 = vpack.c.b16 %v1480, %v1480
      %v1513 = vpack.c.b16 %v1481, %v1481
      %v1514 = vpack.c.b16 %v1482, %v1482
      %v1515 = vpack.c.b16 %v1483, %v1483
      %v1516 = vpack.c.b16 %v1484, %v1484
      %v1517 = vpack.c.b16 %v1485, %v1485
      %v1518 = vpack.c.b16 %v1486, %v1486
      %v1519 = vpack.c.b16 %v1487, %v1487
      %v1520 = vpack.c.b16 %v1488, %v1488
      %v1521 = vpack.c.b16 %v1489, %v1489
      %v1522 = vpack.c.b16 %v1490, %v1490
      %v1523 = vpack.c.b16 %v1491, %v1491
      %v1524 = vpack.c.b16 %v1492, %v1492
      %vm1557 = vcmask 519168
      %1558 = vst.msk [vmem:[%s238] sm:$0xf] %vm1557, %v1493
      %1559 = vst.msk [vmem:[%s238 + $0x4] sm:$0xf] %vm1557, %v1494
      %1560 = vst.msk [vmem:[%s238 + $0x8] sm:$0xf] %vm1557, %v1495
      %1561 = vst.msk [vmem:[%s238 + $0xc] sm:$0xf] %vm1557, %v1496
      %1562 = vst.msk [vmem:[%s238 + $0x10] sm:$0xf] %vm1557, %v1497
      %1563 = vst.msk [vmem:[%s238 + $0x14] sm:$0xf] %vm1557, %v1498
      %1564 = vst.msk [vmem:[%s238 + $0x18] sm:$0xf] %vm1557, %v1499
      %1565 = vst.msk [vmem:[%s238 + $0x1c] sm:$0xf] %vm1557, %v1500
      %1566 = vst.msk [vmem:[%s238 + $0x20] sm:$0xf] %vm1557, %v1501
      %1567 = vst.msk [vmem:[%s238 + $0x24] sm:$0xf] %vm1557, %v1502
      %1568 = vst.msk [vmem:[%s238 + $0x28] sm:$0xf] %vm1557, %v1503
      %1569 = vst.msk [vmem:[%s238 + $0x2c] sm:$0xf] %vm1557, %v1504
      %1570 = vst.msk [vmem:[%s238 + $0x30] sm:$0xf] %vm1557, %v1505
      %1571 = vst.msk [vmem:[%s238 + $0x34] sm:$0xf] %vm1557, %v1506
      %1572 = vst.msk [vmem:[%s238 + $0x38] sm:$0xf] %vm1557, %v1507
      %1573 = vst.msk [vmem:[%s238 + $0x3c] sm:$0xf] %vm1557, %v1508
      %1574 = vst.msk [vmem:[%s238 + $0x40] sm:$0xf] %vm1557, %v1509
      %1575 = vst.msk [vmem:[%s238 + $0x44] sm:$0xf] %vm1557, %v1510
      %1576 = vst.msk [vmem:[%s238 + $0x48] sm:$0xf] %vm1557, %v1511
      %1577 = vst.msk [vmem:[%s238 + $0x4c] sm:$0xf] %vm1557, %v1512
      %1578 = vst.msk [vmem:[%s238 + $0x50] sm:$0xf] %vm1557, %v1513
      %1579 = vst.msk [vmem:[%s238 + $0x54] sm:$0xf] %vm1557, %v1514
      %1580 = vst.msk [vmem:[%s238 + $0x58] sm:$0xf] %vm1557, %v1515
      %1581 = vst.msk [vmem:[%s238 + $0x5c] sm:$0xf] %vm1557, %v1516
      %1582 = vst.msk [vmem:[%s238 + $0x60] sm:$0xf] %vm1557, %v1517
      %1583 = vst.msk [vmem:[%s238 + $0x64] sm:$0xf] %vm1557, %v1518
      %1584 = vst.msk [vmem:[%s238 + $0x68] sm:$0xf] %vm1557, %v1519
      %1585 = vst.msk [vmem:[%s238 + $0x6c] sm:$0xf] %vm1557, %v1520
      %1586 = vst.msk [vmem:[%s238 + $0x70] sm:$0xf] %vm1557, %v1521
      %1587 = vst.msk [vmem:[%s238 + $0x74] sm:$0xf] %vm1557, %v1522
      %1588 = vst.msk [vmem:[%s238 + $0x78] sm:$0xf] %vm1557, %v1523
      %1589 = vst.msk [vmem:[%s238 + $0x7c] sm:$0xf] %vm1557, %v1524
      %s1590 = smul.u32 32, %s20
      %p1591 = scmp.lt.s32.totalorder %s19, 1
      %s1592 = scalar_select %p1591, %s19, 1
      %p1593 = scmp.lt.s32.totalorder %s1590, 31
      %s1594 = scalar_select %p1593, %s1590, 31
      %s1595 = smul.addr %s1592, 32
      %s1596 = sadd.s32 %s1594, %s1595
      %s1597 = smul.addr %s1596, 4
      %s1598 = scalar_lea.vmem %s4, %s1597
      // Predicated region
      $region37: #{patch_discriminator.4} parent=35 // pred_check
        %p1599 = pneg %p138
      $region38: #{patch_discriminator.4} parent=35 // pred_check_branch
        %1601 = sbr.rel (%p1599) target = $region40
      $region39: #{patch_discriminator.4} parent=35 // pred_region
        %s1602 = smul.u32 32, %s20
      $region40: #{patch_discriminator.4} parent=35 // pred_fallthru
        _
    $region36: #{patch_discriminator.4} parent=5 // pred_fallthru
      _
    %p1603 = scmp.le.s32.totalorder 2, %s10
    // Predicated region
    $region41: #{patch_discriminator.4} parent=5 // pred_check
      %p1604 = pneg %p1603
    $region42: #{patch_discriminator.4} parent=5 // pred_check_branch
      %1606 = sbr.rel (%p1604) target = $region44
    $region43: #{patch_discriminator.4} parent=5 // pred_region
      %s1607 = ssub.s32 %s10, 2
      // Predicated region
      $region45: #{patch_discriminator.4} parent=43 // pred_check
        %p1608 = pneg %p144
      $region46: #{patch_discriminator.4} parent=43 // pred_check_branch
        %1610 = sbr.rel (%p1608) target = $region48
      $region47: #{patch_discriminator.4} parent=43 // pred_region
        %s1611 = smul.u32 32, %s22
        %p1612 = scmp.lt.s32.totalorder %s21, 1
        %s1613 = scalar_select %p1612, %s21, 1
        %p1614 = scmp.lt.s32.totalorder %s1611, 31
        %s1615 = scalar_select %p1614, %s1611, 31
        %s1616 = smul.addr %s1613, 32
        %s1617 = sadd.s32 %s1615, %s1616
        %s1618 = smul.addr %s1617, 4
        %s1619 = scalar_lea.vmem %s4, %s1618
      $region48: #{patch_discriminator.4} parent=43 // pred_fallthru
        _
    $region44: #{patch_discriminator.4} parent=5 // pred_fallthru
      _
  $region6: #{patch_discriminator.4} parent=0 // loop_footer
    %s14 = sadd.s32 1, %s10
  $region7: #{patch_discriminator.4} parent=0 // loop_footer_branch
    %9 = sbr.rel target = $region3
  $region8: #{patch_discriminator.4} parent=0 // loop_exit
    _

// kernel: patch_discriminator.5
$region0: #{patch_discriminator.5}
  #allocation0 [shape = 'u32[]', space=smem, size = 0x4, offset = 0x4, fixed_abs, tag = 'smem constant byte address 0x4 - core index']
  #allocation1 [shape = 'u32[144,128]{1,0:T(1,128)}', space=vmem, size = 0x12000, scoped, tag = 'internal scratch']
  %s0 = inlined_call_operand.vmem [shape: bf16[2,8,9,512], index: 0, kind: input, shape index: {}]
  %s1 = inlined_call_operand.vmem [shape: bf16[2,512,128], index: 1, kind: input, shape index: {}]
  %s2 = inlined_call_operand.vmem [shape: f32[1,128], index: 2, kind: input, shape index: {}]
  %s3 = inlined_call_operand.vmem [shape: f32[1,128], index: 3, kind: input, shape index: {}]
  %s4 = inlined_call_operand.vmem [shape: bf16[2,64,128], index: 4, kind: output, shape index: {}]
  %s5 = sld [smem:[#allocation0]]
  $region49: #{patch_discriminator.5} parent=0
    _
  %s7 = ssub.s32 1, %s5
  %s8 = scalar_select 0, %s7, %s5
  loop: start=0, step=1, limit=4
  $region2: #{patch_discriminator.5} parent=0 // loop_pre_header
    _
  $region3: #{patch_discriminator.5} parent=0 // loop_header
    %s10 = sphi 0, %s14
    %p11 = scmp.ge.s32.totalorder %s10, 4
    %s17 = sphi 0, %s29
    %s18 = sphi 0, %s25
    %s19 = sphi 0, %s17
    %s20 = sphi 0, %s18
    %s21 = sphi 0, %s19
    %s22 = sphi 0, %s20
    %s34 = sphi 0, %s36
    %s37 = sphi 0, %s34
    %s38 = sphi 0, %s37
    %s54 = sphi 0, %s38
    %s58 = sphi 0, %s58
    %s60 = sphi 0, %s58
    %s61 = sphi 0, %s60
    %s75 = sphi 0, %s61
    %s79 = sphi 0, %s79
    %s81 = sphi 0, %s79
    %s82 = sphi 0, %s81
    %s96 = sphi 0, %s82
    %s100 = sphi 0, %s100
    %s102 = sphi 0, %s100
    %s103 = sphi 0, %s102
    %s117 = sphi 0, %s103
    %s125 = sphi 0, %s127
    %s128 = sphi 0, %s125
    %s129 = sphi 0, %s128
    %s145 = sphi 0, %s129
  $region4: #{patch_discriminator.5} parent=0 // loop_header_branch
    %13 = sbr.rel (%p11) target = $region8
  $region5: #{patch_discriminator.5} parent=0 // loop_body
    %s15 = ssub.s32 %s10, 1
    %s16 = ssub.s32 %s10, 2
    %s23 = sadd.s32 1, %s18
    %p24 = scmp.ge.s32.totalorder %s23, 1
    %s25 = scalar_select %p24, 0, %s23
    %s26 = sadd.s32 1, %s17
    %s27 = scalar_select %p24, %s26, %s17
    %p28 = scmp.ge.s32.totalorder %s27, 2
    %s29 = scalar_select %p28, 0, %s27
    %s30 = ssub.s32 %s17, %s29
    %s31 = ssub.s32 %s18, %s25
    %s32 = sor.u32 %s30, %s31
    %p33 = scmp.eq.s32.totalorder %s32, 0
    %s35 = sadd.s32 %s34, 1
    %s36 = scalar_select %p33, %s34, %s35
    %p39 = pneg %p33
    %p40 = scmp.eq.s32.totalorder %s10, 1
    %p41 = por %p39, %p40
    %p42 = scmp.ne.s32.totalorder %s34, %s37
    %p43 = scmp.eq.s32.totalorder %s10, 0
    %p44 = por %p42, %p43
    %p45 = scmp.ne.s32.totalorder %s34, %s37
    %p46 = scmp.eq.s32.totalorder %s15, 1
    %p47 = por %p45, %p46
    %p48 = scmp.ne.s32.totalorder %s37, %s38
    %p49 = scmp.eq.s32.totalorder %s15, 0
    %p50 = por %p48, %p49
    %p51 = scmp.ne.s32.totalorder %s37, %s38
    %p52 = scmp.eq.s32.totalorder %s16, 1
    %p53 = por %p51, %p52
    %p55 = scmp.ne.s32.totalorder %s38, %s54
    %p56 = scmp.eq.s32.totalorder %s16, 0
    %p57 = por %p55, %p56
    %s59 = sadd.s32 %s58, 1
    %p62 = scmp.eq.s32.totalorder %s10, 1
    %p63 = scmp.ne.s32.totalorder %s58, %s60
    %p64 = scmp.eq.s32.totalorder %s10, 0
    %p65 = por %p63, %p64
    %p66 = scmp.ne.s32.totalorder %s58, %s60
    %p67 = scmp.eq.s32.totalorder %s15, 1
    %p68 = por %p66, %p67
    %p69 = scmp.ne.s32.totalorder %s60, %s61
    %p70 = scmp.eq.s32.totalorder %s15, 0
    %p71 = por %p69, %p70
    %p72 = scmp.ne.s32.totalorder %s60, %s61
    %p73 = scmp.eq.s32.totalorder %s16, 1
    %p74 = por %p72, %p73
    %p76 = scmp.ne.s32.totalorder %s61, %s75
    %p77 = scmp.eq.s32.totalorder %s16, 0
    %p78 = por %p76, %p77
    %s80 = sadd.s32 %s79, 1
    %p83 = scmp.eq.s32.totalorder %s10, 1
    %p84 = scmp.ne.s32.totalorder %s79, %s81
    %p85 = scmp.eq.s32.totalorder %s10, 0
    %p86 = por %p84, %p85
    %p87 = scmp.ne.s32.totalorder %s79, %s81
    %p88 = scmp.eq.s32.totalorder %s15, 1
    %p89 = por %p87, %p88
    %p90 = scmp.ne.s32.totalorder %s81, %s82
    %p91 = scmp.eq.s32.totalorder %s15, 0
    %p92 = por %p90, %p91
    %p93 = scmp.ne.s32.totalorder %s81, %s82
    %p94 = scmp.eq.s32.totalorder %s16, 1
    %p95 = por %p93, %p94
    %p97 = scmp.ne.s32.totalorder %s82, %s96
    %p98 = scmp.eq.s32.totalorder %s16, 0
    %p99 = por %p97, %p98
    %s101 = sadd.s32 %s100, 1
    %p104 = scmp.eq.s32.totalorder %s10, 1
    %p105 = scmp.ne.s32.totalorder %s100, %s102
    %p106 = scmp.eq.s32.totalorder %s10, 0
    %p107 = por %p105, %p106
    %p108 = scmp.ne.s32.totalorder %s100, %s102
    %p109 = scmp.eq.s32.totalorder %s15, 1
    %p110 = por %p108, %p109
    %p111 = scmp.ne.s32.totalorder %s102, %s103
    %p112 = scmp.eq.s32.totalorder %s15, 0
    %p113 = por %p111, %p112
    %p114 = scmp.ne.s32.totalorder %s102, %s103
    %p115 = scmp.eq.s32.totalorder %s16, 1
    %p116 = por %p114, %p115
    %p118 = scmp.ne.s32.totalorder %s103, %s117
    %p119 = scmp.eq.s32.totalorder %s16, 0
    %p120 = por %p118, %p119
    %s121 = ssub.s32 %s17, %s29
    %s122 = ssub.s32 %s18, %s25
    %s123 = sor.u32 %s121, %s122
    %p124 = scmp.eq.s32.totalorder %s123, 0
    %s126 = sadd.s32 %s125, 1
    %s127 = scalar_select %p124, %s125, %s126
    %p130 = pneg %p124
    %p131 = scmp.eq.s32.totalorder %s10, 1
    %p132 = por %p130, %p131
    %p133 = scmp.ne.s32.totalorder %s125, %s128
    %p134 = scmp.eq.s32.totalorder %s10, 0
    %p135 = por %p133, %p134
    %p136 = scmp.ne.s32.totalorder %s125, %s128
    %p137 = scmp.eq.s32.totalorder %s15, 1
    %p138 = por %p136, %p137
    %p139 = scmp.ne.s32.totalorder %s128, %s129
    %p140 = scmp.eq.s32.totalorder %s15, 0
    %p141 = por %p139, %p140
    %p142 = scmp.ne.s32.totalorder %s128, %s129
    %p143 = scmp.eq.s32.totalorder %s16, 1
    %p144 = por %p142, %p143
    %p146 = scmp.ne.s32.totalorder %s129, %s145
    %p147 = scmp.eq.s32.totalorder %s16, 0
    %p148 = por %p146, %p147
    %p149 = scmp.le.s32.totalorder 1, %s10
    %p150 = scmp.lt.s32.totalorder %s10, 3
    %p151 = pnand %p149, %p150
    %p152 = pneg %p151
    // Predicated region
    $region9: #{patch_discriminator.5} parent=5 // pred_check
      _
    $region10: #{patch_discriminator.5} parent=5 // pred_check_branch
      %154 = sbr.rel (%p151) target = $region12
    $region11: #{patch_discriminator.5} parent=5 // pred_region
      %s155 = ssub.s32 %s10, 1
      // Predicated region
      $region13: #{patch_discriminator.5} parent=11 // pred_check
        %p156 = pneg %p71
      $region14: #{patch_discriminator.5} parent=11 // pred_check_branch
        %158 = sbr.rel (%p156) target = $region16
      $region15: #{patch_discriminator.5} parent=11 // pred_region
        _
      $region16: #{patch_discriminator.5} parent=11 // pred_fallthru
        _
      // Predicated region
      $region17: #{patch_discriminator.5} parent=11 // pred_check
        %p159 = pneg %p92
      $region18: #{patch_discriminator.5} parent=11 // pred_check_branch
        %161 = sbr.rel (%p159) target = $region20
      $region19: #{patch_discriminator.5} parent=11 // pred_region
        _
      $region20: #{patch_discriminator.5} parent=11 // pred_fallthru
        _
      // Predicated region
      $region21: #{patch_discriminator.5} parent=11 // pred_check
        %p162 = pneg %p113
      $region22: #{patch_discriminator.5} parent=11 // pred_check_branch
        %164 = sbr.rel (%p162) target = $region24
      $region23: #{patch_discriminator.5} parent=11 // pred_region
        _
      $region24: #{patch_discriminator.5} parent=11 // pred_fallthru
        _
    $region12: #{patch_discriminator.5} parent=5 // pred_fallthru
      _
    %p165 = scmp.lt.s32.totalorder %s10, 2
    // Predicated region
    $region25: #{patch_discriminator.5} parent=5 // pred_check
      %p166 = pneg %p165
    $region26: #{patch_discriminator.5} parent=5 // pred_check_branch
      %168 = sbr.rel (%p166) target = $region28
    $region27: #{patch_discriminator.5} parent=5 // pred_region
      // Predicated region
      $region29: #{patch_discriminator.5} parent=27 // pred_check
        %p169 = pneg %p44
      $region30: #{patch_discriminator.5} parent=27 // pred_check_branch
        %171 = sbr.rel (%p169) target = $region32
      $region31: #{patch_discriminator.5} parent=27 // pred_region
        %s172 = smul.u32 8, %s18
        %p173 = scmp.lt.s32.totalorder %s17, 1
        %s174 = scalar_select %p173, %s17, 1
        %p175 = scmp.lt.s32.totalorder %s172, 7
        %s176 = scalar_select %p175, %s172, 7
        %s177 = smul.addr %s176, 8
        %s178 = smul.addr %s174, 64
        %s179 = sadd.s32 %s177, %s178
        %s180 = smul.addr %s179, 4
        %s181 = scalar_lea.vmem %s0, %s180
        %s182 = smul.u32 8, %s18
      $region32: #{patch_discriminator.5} parent=27 // pred_fallthru
        _
    $region28: #{patch_discriminator.5} parent=5 // pred_fallthru
      _
    %p183 = scmp.le.s32.totalorder 1, %s10
    %p184 = scmp.lt.s32.totalorder %s10, 3
    %p185 = pnand %p183, %p184
    %p186 = pneg %p185
    // Predicated region
    $region33: #{patch_discriminator.5} parent=5 // pred_check
      _
    $region34: #{patch_discriminator.5} parent=5 // pred_check_branch
      %188 = sbr.rel (%p185) target = $region36
    $region35: #{patch_discriminator.5} parent=5 // pred_region
      %s189 = ssub.s32 %s10, 1
      %s190 = smul.u32 8, %s20
      %p191 = scmp.lt.s32.totalorder %s19, 1
      %s192 = scalar_select %p191, %s19, 1
      %p193 = scmp.lt.s32.totalorder %s190, 7
      %s194 = scalar_select %p193, %s190, 7
      %s195 = smul.addr %s194, 8
      %s196 = smul.addr %s192, 64
      %s197 = sadd.s32 %s195, %s196
      %s198 = smul.addr %s197, 4
      %s199 = scalar_lea.vmem %s0, %s198
      %p200 = pneg %p50
      %p201 = pneg %p47
      %p202 = pneg %p71
      %p203 = pneg %p68
      %p204 = pneg %p92
      %p205 = pneg %p89
      %p206 = pneg %p113
      %p207 = pneg %p110
      %p208 = pneg %p141
      %p209 = pneg %p138
      %s210 = smul.u32 8, %s20
      %p211 = scmp.lt.s32.totalorder %s19, 1
      %s212 = scalar_select %p211, %s19, 1
      %p213 = scmp.lt.s32.totalorder %s210, 7
      %s214 = scalar_select %p213, %s210, 7
      %s215 = smul.addr %s212, 8
      %s216 = sadd.s32 %s214, %s215
      %s217 = smul.addr %s216, 4
      %s218 = scalar_lea.vmem %s4, %s217
      %s219 = smul.u32 8, %s20
      %p220 = scmp.lt.s32.totalorder %s19, 1
      %s221 = scalar_select %p220, %s19, 1
      %p222 = scmp.lt.s32.totalorder %s219, 7
      %s223 = scalar_select %p222, %s219, 7
      %s224 = smul.addr %s223, 8
      %s225 = smul.addr %s221, 64
      %s226 = sadd.s32 %s224, %s225
      %s227 = smul.addr %s226, 4
      %s228 = scalar_lea.vmem %s0, %s227
      %s229 = smul.u32 8, %s20
      %s230 = smul.u32 8, %s20
      %p231 = scmp.lt.s32.totalorder %s19, 1
      %s232 = scalar_select %p231, %s19, 1
      %p233 = scmp.lt.s32.totalorder %s230, 7
      %s234 = scalar_select %p233, %s230, 7
      %s235 = smul.addr %s232, 8
      %s236 = sadd.s32 %s234, %s235
      %s237 = smul.addr %s236, 4
      %s238 = scalar_lea.vmem %s4, %s237
      %s239 = smul.u32 8, %s20
      %v241 = vld [vmem:[%s228] sm:$0xff]
      %v242 = vld [vmem:[%s228 + $0x8] sm:$0xff]
      %v243 = vld [vmem:[%s228 + $0x10] sm:$0x11]
      %v244 = vld [vmem:[%s228 + $0x18] sm:$0x11]
      %v245 = vld [vmem:[%s228 + $0x20] sm:$0xff]
      %v246 = vld [vmem:[%s228 + $0x28] sm:$0xff]
      %v247 = vld [vmem:[%s228 + $0x30] sm:$0x11]
      %v248 = vld [vmem:[%s228 + $0x38] sm:$0x11]
      %v249 = vld [vmem:[%s228 + $0x40] sm:$0xff]
      %v250 = vld [vmem:[%s228 + $0x48] sm:$0xff]
      %v251 = vld [vmem:[%s228 + $0x50] sm:$0x11]
      %v252 = vld [vmem:[%s228 + $0x58] sm:$0x11]
      %v253 = vld [vmem:[%s228 + $0x60] sm:$0xff]
      %v254 = vld [vmem:[%s228 + $0x68] sm:$0xff]
      %v255 = vld [vmem:[%s228 + $0x70] sm:$0x11]
      %v256 = vld [vmem:[%s228 + $0x78] sm:$0x11]
      %v257 = vld [vmem:[%s228 + $0x80] sm:$0xff]
      %v258 = vld [vmem:[%s228 + $0x88] sm:$0xff]
      %v259 = vld [vmem:[%s228 + $0x90] sm:$0x11]
      %v260 = vld [vmem:[%s228 + $0x98] sm:$0x11]
      %v261 = vld [vmem:[%s228 + $0xa0] sm:$0xff]
      %v262 = vld [vmem:[%s228 + $0xa8] sm:$0xff]
      %v263 = vld [vmem:[%s228 + $0xb0] sm:$0x11]
      %v264 = vld [vmem:[%s228 + $0xb8] sm:$0x11]
      %v265 = vld [vmem:[%s228 + $0xc0] sm:$0xff]
      %v266 = vld [vmem:[%s228 + $0xc8] sm:$0xff]
      %v267 = vld [vmem:[%s228 + $0xd0] sm:$0x11]
      %v268 = vld [vmem:[%s228 + $0xd8] sm:$0x11]
      %v269 = vld [vmem:[%s228 + $0xe0] sm:$0xff]
      %v270 = vld [vmem:[%s228 + $0xe8] sm:$0xff]
      %v271 = vld [vmem:[%s228 + $0xf0] sm:$0x11]
      %v272 = vld [vmem:[%s228 + $0xf8] sm:$0x11]
      %v273 = vld [vmem:[%s1] sm:$0xf]
      %v274 = vld [vmem:[%s1 + $0x4] sm:$0xf]
      %v275 = vld [vmem:[%s1 + $0x8] sm:$0xf]
      %v276 = vld [vmem:[%s1 + $0xc] sm:$0xf]
      %v277 = vld [vmem:[%s1 + $0x10] sm:$0xf]
      %v278 = vld [vmem:[%s1 + $0x14] sm:$0xf]
      %v279 = vld [vmem:[%s1 + $0x18] sm:$0xf]
      %v280 = vld [vmem:[%s1 + $0x1c] sm:$0xf]
      %v281 = vld [vmem:[%s1 + $0x20] sm:$0xf]
      %v282 = vld [vmem:[%s1 + $0x24] sm:$0xf]
      %v283 = vld [vmem:[%s1 + $0x28] sm:$0xf]
      %v284 = vld [vmem:[%s1 + $0x2c] sm:$0xf]
      %v285 = vld [vmem:[%s1 + $0x30] sm:$0xf]
      %v286 = vld [vmem:[%s1 + $0x34] sm:$0xf]
      %v287 = vld [vmem:[%s1 + $0x38] sm:$0xf]
      %v288 = vld [vmem:[%s1 + $0x3c] sm:$0xf]
      %v289 = vld [vmem:[%s1 + $0x40] sm:$0xf]
      %v290 = vld [vmem:[%s1 + $0x44] sm:$0xf]
      %v291 = vld [vmem:[%s1 + $0x48] sm:$0xf]
      %v292 = vld [vmem:[%s1 + $0x4c] sm:$0xf]
      %v293 = vld [vmem:[%s1 + $0x50] sm:$0xf]
      %v294 = vld [vmem:[%s1 + $0x54] sm:$0xf]
      %v295 = vld [vmem:[%s1 + $0x58] sm:$0xf]
      %v296 = vld [vmem:[%s1 + $0x5c] sm:$0xf]
      %v297 = vld [vmem:[%s1 + $0x60] sm:$0xf]
      %v298 = vld [vmem:[%s1 + $0x64] sm:$0xf]
      %v299 = vld [vmem:[%s1 + $0x68] sm:$0xf]
      %v300 = vld [vmem:[%s1 + $0x6c] sm:$0xf]
      %v301 = vld [vmem:[%s1 + $0x70] sm:$0xf]
      %v302 = vld [vmem:[%s1 + $0x74] sm:$0xf]
      %v303 = vld [vmem:[%s1 + $0x78] sm:$0xf]
      %v304 = vld [vmem:[%s1 + $0x7c] sm:$0xf]
      %v305 = vld [vmem:[%s1 + $0x80] sm:$0xf]
      %v306 = vld [vmem:[%s1 + $0x84] sm:$0xf]
      %v307 = vld [vmem:[%s1 + $0x88] sm:$0xf]
      %v308 = vld [vmem:[%s1 + $0x8c] sm:$0xf]
      %v309 = vld [vmem:[%s1 + $0x90] sm:$0xf]
      %v310 = vld [vmem:[%s1 + $0x94] sm:$0xf]
      %v311 = vld [vmem:[%s1 + $0x98] sm:$0xf]
      %v312 = vld [vmem:[%s1 + $0x9c] sm:$0xf]
      %v313 = vld [vmem:[%s1 + $0xa0] sm:$0xf]
      %v314 = vld [vmem:[%s1 + $0xa4] sm:$0xf]
      %v315 = vld [vmem:[%s1 + $0xa8] sm:$0xf]
      %v316 = vld [vmem:[%s1 + $0xac] sm:$0xf]
      %v317 = vld [vmem:[%s1 + $0xb0] sm:$0xf]
      %v318 = vld [vmem:[%s1 + $0xb4] sm:$0xf]
      %v319 = vld [vmem:[%s1 + $0xb8] sm:$0xf]
      %v320 = vld [vmem:[%s1 + $0xbc] sm:$0xf]
      %v321 = vld [vmem:[%s1 + $0xc0] sm:$0xf]
      %v322 = vld [vmem:[%s1 + $0xc4] sm:$0xf]
      %v323 = vld [vmem:[%s1 + $0xc8] sm:$0xf]
      %v324 = vld [vmem:[%s1 + $0xcc] sm:$0xf]
      %v325 = vld [vmem:[%s1 + $0xd0] sm:$0xf]
      %v326 = vld [vmem:[%s1 + $0xd4] sm:$0xf]
      %v327 = vld [vmem:[%s1 + $0xd8] sm:$0xf]
      %v328 = vld [vmem:[%s1 + $0xdc] sm:$0xf]
      %v329 = vld [vmem:[%s1 + $0xe0] sm:$0xf]
      %v330 = vld [vmem:[%s1 + $0xe4] sm:$0xf]
      %v331 = vld [vmem:[%s1 + $0xe8] sm:$0xf]
      %v332 = vld [vmem:[%s1 + $0xec] sm:$0xf]
      %v333 = vld [vmem:[%s1 + $0xf0] sm:$0xf]
      %v334 = vld [vmem:[%s1 + $0xf4] sm:$0xf]
      %v335 = vld [vmem:[%s1 + $0xf8] sm:$0xf]
      %v336 = vld [vmem:[%s1 + $0xfc] sm:$0xf]
      %vm337 = vsmask.f32 3328
      %vm338 = vsmask.f32 7440
      %vm339 = vmor %vm337, %vm338
      %v341 = vshrl.u32 %v241, 16
      %v343 = vrot.slane %v341, 4
      %v344 = vshll.u32 %v241, 16
      %v346 = vrot.slane %v344, 5
      %v347 = vor.u32 %v343, %v346
      %v348 = vrot.slane %v347, 4
      %v350 = vshll.u32 %v243, 16
      %v352 = vrot.slane %v350, 5
      %v353 = vsel %vm339, %v348, %v352
      %v355 = vshrl.u32 %v242, 16
      %v357 = vrot.slane %v355, 4
      %v358 = vshll.u32 %v242, 16
      %v360 = vrot.slane %v358, 5
      %v361 = vor.u32 %v357, %v360
      %v362 = vrot.slane %v361, 4
      %v364 = vshll.u32 %v244, 16
      %v366 = vrot.slane %v364, 5
      %v367 = vsel %vm339, %v362, %v366
      %v369 = vshrl.u32 %v245, 16
      %v371 = vrot.slane %v369, 4
      %v372 = vshll.u32 %v245, 16
      %v374 = vrot.slane %v372, 5
      %v375 = vor.u32 %v371, %v374
      %v376 = vrot.slane %v375, 4
      %v378 = vshll.u32 %v247, 16
      %v380 = vrot.slane %v378, 5
      %v381 = vsel %vm339, %v376, %v380
      %v383 = vshrl.u32 %v246, 16
      %v385 = vrot.slane %v383, 4
      %v386 = vshll.u32 %v246, 16
      %v388 = vrot.slane %v386, 5
      %v389 = vor.u32 %v385, %v388
      %v390 = vrot.slane %v389, 4
      %v392 = vshll.u32 %v248, 16
      %v394 = vrot.slane %v392, 5
      %v395 = vsel %vm339, %v390, %v394
      %v397 = vshrl.u32 %v249, 16
      %v399 = vrot.slane %v397, 4
      %v400 = vshll.u32 %v249, 16
      %v402 = vrot.slane %v400, 5
      %v403 = vor.u32 %v399, %v402
      %v404 = vrot.slane %v403, 4
      %v406 = vshll.u32 %v251, 16
      %v408 = vrot.slane %v406, 5
      %v409 = vsel %vm339, %v404, %v408
      %v411 = vshrl.u32 %v250, 16
      %v413 = vrot.slane %v411, 4
      %v414 = vshll.u32 %v250, 16
      %v416 = vrot.slane %v414, 5
      %v417 = vor.u32 %v413, %v416
      %v418 = vrot.slane %v417, 4
      %v420 = vshll.u32 %v252, 16
      %v422 = vrot.slane %v420, 5
      %v423 = vsel %vm339, %v418, %v422
      %v425 = vshrl.u32 %v253, 16
      %v427 = vrot.slane %v425, 4
      %v428 = vshll.u32 %v253, 16
      %v430 = vrot.slane %v428, 5
      %v431 = vor.u32 %v427, %v430
      %v432 = vrot.slane %v431, 4
      %v434 = vshll.u32 %v255, 16
      %v436 = vrot.slane %v434, 5
      %v437 = vsel %vm339, %v432, %v436
      %v439 = vshrl.u32 %v254, 16
      %v441 = vrot.slane %v439, 4
      %v442 = vshll.u32 %v254, 16
      %v444 = vrot.slane %v442, 5
      %v445 = vor.u32 %v441, %v444
      %v446 = vrot.slane %v445, 4
      %v448 = vshll.u32 %v256, 16
      %v450 = vrot.slane %v448, 5
      %v451 = vsel %vm339, %v446, %v450
      %v453 = vshrl.u32 %v257, 16
      %v455 = vrot.slane %v453, 4
      %v456 = vshll.u32 %v257, 16
      %v458 = vrot.slane %v456, 5
      %v459 = vor.u32 %v455, %v458
      %v460 = vrot.slane %v459, 4
      %v462 = vshll.u32 %v259, 16
      %v464 = vrot.slane %v462, 5
      %v465 = vsel %vm339, %v460, %v464
      %v467 = vshrl.u32 %v258, 16
      %v469 = vrot.slane %v467, 4
      %v470 = vshll.u32 %v258, 16
      %v472 = vrot.slane %v470, 5
      %v473 = vor.u32 %v469, %v472
      %v474 = vrot.slane %v473, 4
      %v476 = vshll.u32 %v260, 16
      %v478 = vrot.slane %v476, 5
      %v479 = vsel %vm339, %v474, %v478
      %v481 = vshrl.u32 %v261, 16
      %v483 = vrot.slane %v481, 4
      %v484 = vshll.u32 %v261, 16
      %v486 = vrot.slane %v484, 5
      %v487 = vor.u32 %v483, %v486
      %v488 = vrot.slane %v487, 4
      %v490 = vshll.u32 %v263, 16
      %v492 = vrot.slane %v490, 5
      %v493 = vsel %vm339, %v488, %v492
      %v495 = vshrl.u32 %v262, 16
      %v497 = vrot.slane %v495, 4
      %v498 = vshll.u32 %v262, 16
      %v500 = vrot.slane %v498, 5
      %v501 = vor.u32 %v497, %v500
      %v502 = vrot.slane %v501, 4
      %v504 = vshll.u32 %v264, 16
      %v506 = vrot.slane %v504, 5
      %v507 = vsel %vm339, %v502, %v506
      %v509 = vshrl.u32 %v265, 16
      %v511 = vrot.slane %v509, 4
      %v512 = vshll.u32 %v265, 16
      %v514 = vrot.slane %v512, 5
      %v515 = vor.u32 %v511, %v514
      %v516 = vrot.slane %v515, 4
      %v518 = vshll.u32 %v267, 16
      %v520 = vrot.slane %v518, 5
      %v521 = vsel %vm339, %v516, %v520
      %v523 = vshrl.u32 %v266, 16
      %v525 = vrot.slane %v523, 4
      %v526 = vshll.u32 %v266, 16
      %v528 = vrot.slane %v526, 5
      %v529 = vor.u32 %v525, %v528
      %v530 = vrot.slane %v529, 4
      %v532 = vshll.u32 %v268, 16
      %v534 = vrot.slane %v532, 5
      %v535 = vsel %vm339, %v530, %v534
      %v537 = vshrl.u32 %v269, 16
      %v539 = vrot.slane %v537, 4
      %v540 = vshll.u32 %v269, 16
      %v542 = vrot.slane %v540, 5
      %v543 = vor.u32 %v539, %v542
      %v544 = vrot.slane %v543, 4
      %v546 = vshll.u32 %v271, 16
      %v548 = vrot.slane %v546, 5
      %v549 = vsel %vm339, %v544, %v548
      %v551 = vshrl.u32 %v270, 16
      %v553 = vrot.slane %v551, 4
      %v554 = vshll.u32 %v270, 16
      %v556 = vrot.slane %v554, 5
      %v557 = vor.u32 %v553, %v556
      %v558 = vrot.slane %v557, 4
      %v560 = vshll.u32 %v272, 16
      %v562 = vrot.slane %v560, 5
      %v563 = vsel %vm339, %v558, %v562
      %s564 = scalar_lea.vmem %s1, 256
      %v565 = vld [vmem:[%s564] sm:$0xf]
      %v566 = vld [vmem:[%s564 + $0x4] sm:$0xf]
      %v567 = vld [vmem:[%s564 + $0x8] sm:$0xf]
      %v568 = vld [vmem:[%s564 + $0xc] sm:$0xf]
      %v569 = vld [vmem:[%s564 + $0x10] sm:$0xf]
      %v570 = vld [vmem:[%s564 + $0x14] sm:$0xf]
      %v571 = vld [vmem:[%s564 + $0x18] sm:$0xf]
      %v572 = vld [vmem:[%s564 + $0x1c] sm:$0xf]
      %v573 = vld [vmem:[%s564 + $0x20] sm:$0xf]
      %v574 = vld [vmem:[%s564 + $0x24] sm:$0xf]
      %v575 = vld [vmem:[%s564 + $0x28] sm:$0xf]
      %v576 = vld [vmem:[%s564 + $0x2c] sm:$0xf]
      %v577 = vld [vmem:[%s564 + $0x30] sm:$0xf]
      %v578 = vld [vmem:[%s564 + $0x34] sm:$0xf]
      %v579 = vld [vmem:[%s564 + $0x38] sm:$0xf]
      %v580 = vld [vmem:[%s564 + $0x3c] sm:$0xf]
      %v581 = vld [vmem:[%s564 + $0x40] sm:$0xf]
      %v582 = vld [vmem:[%s564 + $0x44] sm:$0xf]
      %v583 = vld [vmem:[%s564 + $0x48] sm:$0xf]
      %v584 = vld [vmem:[%s564 + $0x4c] sm:$0xf]
      %v585 = vld [vmem:[%s564 + $0x50] sm:$0xf]
      %v586 = vld [vmem:[%s564 + $0x54] sm:$0xf]
      %v587 = vld [vmem:[%s564 + $0x58] sm:$0xf]
      %v588 = vld [vmem:[%s564 + $0x5c] sm:$0xf]
      %v589 = vld [vmem:[%s564 + $0x60] sm:$0xf]
      %v590 = vld [vmem:[%s564 + $0x64] sm:$0xf]
      %v591 = vld [vmem:[%s564 + $0x68] sm:$0xf]
      %v592 = vld [vmem:[%s564 + $0x6c] sm:$0xf]
      %v593 = vld [vmem:[%s564 + $0x70] sm:$0xf]
      %v594 = vld [vmem:[%s564 + $0x74] sm:$0xf]
      %v595 = vld [vmem:[%s564 + $0x78] sm:$0xf]
      %v596 = vld [vmem:[%s564 + $0x7c] sm:$0xf]
      %v597 = vld [vmem:[%s564 + $0x80] sm:$0xf]
      %v598 = vld [vmem:[%s564 + $0x84] sm:$0xf]
      %v599 = vld [vmem:[%s564 + $0x88] sm:$0xf]
      %v600 = vld [vmem:[%s564 + $0x8c] sm:$0xf]
      %v601 = vld [vmem:[%s564 + $0x90] sm:$0xf]
      %v602 = vld [vmem:[%s564 + $0x94] sm:$0xf]
      %v603 = vld [vmem:[%s564 + $0x98] sm:$0xf]
      %v604 = vld [vmem:[%s564 + $0x9c] sm:$0xf]
      %v605 = vld [vmem:[%s564 + $0xa0] sm:$0xf]
      %v606 = vld [vmem:[%s564 + $0xa4] sm:$0xf]
      %v607 = vld [vmem:[%s564 + $0xa8] sm:$0xf]
      %v608 = vld [vmem:[%s564 + $0xac] sm:$0xf]
      %v609 = vld [vmem:[%s564 + $0xb0] sm:$0xf]
      %v610 = vld [vmem:[%s564 + $0xb4] sm:$0xf]
      %v611 = vld [vmem:[%s564 + $0xb8] sm:$0xf]
      %v612 = vld [vmem:[%s564 + $0xbc] sm:$0xf]
      %v613 = vld [vmem:[%s564 + $0xc0] sm:$0xf]
      %v614 = vld [vmem:[%s564 + $0xc4] sm:$0xf]
      %v615 = vld [vmem:[%s564 + $0xc8] sm:$0xf]
      %v616 = vld [vmem:[%s564 + $0xcc] sm:$0xf]
      %v617 = vld [vmem:[%s564 + $0xd0] sm:$0xf]
      %v618 = vld [vmem:[%s564 + $0xd4] sm:$0xf]
      %v619 = vld [vmem:[%s564 + $0xd8] sm:$0xf]
      %v620 = vld [vmem:[%s564 + $0xdc] sm:$0xf]
      %v621 = vld [vmem:[%s564 + $0xe0] sm:$0xf]
      %v622 = vld [vmem:[%s564 + $0xe4] sm:$0xf]
      %v623 = vld [vmem:[%s564 + $0xe8] sm:$0xf]
      %v624 = vld [vmem:[%s564 + $0xec] sm:$0xf]
      %v625 = vld [vmem:[%s564 + $0xf0] sm:$0xf]
      %v626 = vld [vmem:[%s564 + $0xf4] sm:$0xf]
      %v627 = vld [vmem:[%s564 + $0xf8] sm:$0xf]
      %v628 = vld [vmem:[%s564 + $0xfc] sm:$0xf]
      %v629 = vunpack.c.l.b16 %v353
      %v630 = vunpack.c.h.b16 %v353
      %v631 = vunpack.c.l.b16 %v367
      %v632 = vunpack.c.h.b16 %v367
      %v633 = vunpack.c.l.b16 %v381
      %v634 = vunpack.c.h.b16 %v381
      %v635 = vunpack.c.l.b16 %v395
      %v636 = vunpack.c.h.b16 %v395
      %v637 = vunpack.c.l.b16 %v409
      %v638 = vunpack.c.h.b16 %v409
      %v639 = vunpack.c.l.b16 %v423
      %v640 = vunpack.c.h.b16 %v423
      %v641 = vunpack.c.l.b16 %v437
      %v642 = vunpack.c.h.b16 %v437
      %v643 = vunpack.c.l.b16 %v451
      %v644 = vunpack.c.h.b16 %v451
      %v645 = vunpack.c.l.b16 %v465
      %v646 = vunpack.c.h.b16 %v465
      %v647 = vunpack.c.l.b16 %v479
      %v648 = vunpack.c.h.b16 %v479
      %v649 = vunpack.c.l.b16 %v493
      %v650 = vunpack.c.h.b16 %v493
      %v651 = vunpack.c.l.b16 %v507
      %v652 = vunpack.c.h.b16 %v507
      %v653 = vunpack.c.l.b16 %v521
      %v654 = vunpack.c.h.b16 %v521
      %v655 = vunpack.c.l.b16 %v535
      %v656 = vunpack.c.h.b16 %v535
      %v657 = vunpack.c.l.b16 %v549
      %v658 = vunpack.c.h.b16 %v549
      %v659 = vunpack.c.l.b16 %v563
      %v660 = vunpack.c.h.b16 %v563
      %v661 = vpack.c.b16 %v633, %v629
      %v662 = vpack.c.b16 %v634, %v630
      %v663 = vpack.c.b16 %v635, %v631
      %v664 = vpack.c.b16 %v636, %v632
      %v665 = vpack.c.b16 %v641, %v637
      %v666 = vpack.c.b16 %v642, %v638
      %v667 = vpack.c.b16 %v643, %v639
      %v668 = vpack.c.b16 %v644, %v640
      %v669 = vpack.c.b16 %v649, %v645
      %v670 = vpack.c.b16 %v650, %v646
      %v671 = vpack.c.b16 %v651, %v647
      %v672 = vpack.c.b16 %v652, %v648
      %v673 = vpack.c.b16 %v657, %v653
      %v674 = vpack.c.b16 %v658, %v654
      %v675 = vpack.c.b16 %v659, %v655
      %v676 = vpack.c.b16 %v660, %v656
      %v757 = vunpack.c.l.b16 %v565
      %v758 = vunpack.c.l.b16 %v566
      %v759 = vunpack.c.l.b16 %v567
      %v760 = vunpack.c.l.b16 %v568
      %v761 = vunpack.c.l.b16 %v569
      %v762 = vunpack.c.l.b16 %v570
      %v763 = vunpack.c.l.b16 %v571
      %v764 = vunpack.c.l.b16 %v572
      %v765 = vunpack.c.l.b16 %v573
      %v766 = vunpack.c.l.b16 %v574
      %v767 = vunpack.c.l.b16 %v575
      %v768 = vunpack.c.l.b16 %v576
      %v769 = vunpack.c.l.b16 %v577
      %v770 = vunpack.c.l.b16 %v578
      %v771 = vunpack.c.l.b16 %v579
      %v772 = vunpack.c.l.b16 %v580
      %v773 = vunpack.c.l.b16 %v581
      %v774 = vunpack.c.l.b16 %v582
      %v775 = vunpack.c.l.b16 %v583
      %v776 = vunpack.c.l.b16 %v584
      %v777 = vunpack.c.l.b16 %v585
      %v778 = vunpack.c.l.b16 %v586
      %v779 = vunpack.c.l.b16 %v587
      %v780 = vunpack.c.l.b16 %v588
      %v781 = vunpack.c.l.b16 %v589
      %v782 = vunpack.c.l.b16 %v590
      %v783 = vunpack.c.l.b16 %v591
      %v784 = vunpack.c.l.b16 %v592
      %v785 = vunpack.c.l.b16 %v593
      %v786 = vunpack.c.l.b16 %v594
      %v787 = vunpack.c.l.b16 %v595
      %v788 = vunpack.c.l.b16 %v596
      %v789 = vunpack.c.l.b16 %v597
      %v790 = vunpack.c.l.b16 %v598
      %v791 = vunpack.c.l.b16 %v599
      %v792 = vunpack.c.l.b16 %v600
      %v793 = vunpack.c.l.b16 %v601
      %v794 = vunpack.c.l.b16 %v602
      %v795 = vunpack.c.l.b16 %v603
      %v796 = vunpack.c.l.b16 %v604
      %v797 = vunpack.c.l.b16 %v605
      %v798 = vunpack.c.l.b16 %v606
      %v799 = vunpack.c.l.b16 %v607
      %v800 = vunpack.c.l.b16 %v608
      %v801 = vunpack.c.l.b16 %v609
      %v802 = vunpack.c.l.b16 %v610
      %v803 = vunpack.c.l.b16 %v611
      %v804 = vunpack.c.l.b16 %v612
      %v805 = vunpack.c.l.b16 %v613
      %v806 = vunpack.c.l.b16 %v614
      %v807 = vunpack.c.l.b16 %v615
      %v808 = vunpack.c.l.b16 %v616
      %v809 = vunpack.c.l.b16 %v617
      %v810 = vunpack.c.l.b16 %v618
      %v811 = vunpack.c.l.b16 %v619
      %v812 = vunpack.c.l.b16 %v620
      %v813 = vunpack.c.l.b16 %v621
      %v814 = vunpack.c.l.b16 %v622
      %v815 = vunpack.c.l.b16 %v623
      %v816 = vunpack.c.l.b16 %v624
      %v817 = vunpack.c.l.b16 %v625
      %v818 = vunpack.c.l.b16 %v626
      %v819 = vunpack.c.l.b16 %v627
      %v820 = vunpack.c.l.b16 %v628
      %v821 = vpack.c.b16 %v758, %v757
      %v822 = vpack.c.b16 %v760, %v759
      %v823 = vpack.c.b16 %v762, %v761
      %v824 = vpack.c.b16 %v764, %v763
      %v825 = vpack.c.b16 %v766, %v765
      %v826 = vpack.c.b16 %v768, %v767
      %v827 = vpack.c.b16 %v770, %v769
      %v828 = vpack.c.b16 %v772, %v771
      %v829 = vpack.c.b16 %v774, %v773
      %v830 = vpack.c.b16 %v776, %v775
      %v831 = vpack.c.b16 %v778, %v777
      %v832 = vpack.c.b16 %v780, %v779
      %v833 = vpack.c.b16 %v782, %v781
      %v834 = vpack.c.b16 %v784, %v783
      %v835 = vpack.c.b16 %v786, %v785
      %v836 = vpack.c.b16 %v788, %v787
      %v837 = vpack.c.b16 %v790, %v789
      %v838 = vpack.c.b16 %v792, %v791
      %v839 = vpack.c.b16 %v794, %v793
      %v840 = vpack.c.b16 %v796, %v795
      %v841 = vpack.c.b16 %v798, %v797
      %v842 = vpack.c.b16 %v800, %v799
      %v843 = vpack.c.b16 %v802, %v801
      %v844 = vpack.c.b16 %v804, %v803
      %v845 = vpack.c.b16 %v806, %v805
      %v846 = vpack.c.b16 %v808, %v807
      %v847 = vpack.c.b16 %v810, %v809
      %v848 = vpack.c.b16 %v812, %v811
      %v849 = vpack.c.b16 %v814, %v813
      %v850 = vpack.c.b16 %v816, %v815
      %v851 = vpack.c.b16 %v818, %v817
      %v852 = vpack.c.b16 %v820, %v819
      %885 = vmatprep.subr.bf16.mxu0 0
      %886 = vmatpush1.bf16.msra.mxu0 %v821
      %887 = vmatprep.subr.bf16.mxu0 0
      %888 = vmatpush1.bf16.msra.mxu0 %v822
      %889 = vmatprep.subr.bf16.mxu0 0
      %890 = vmatpush1.bf16.msra.mxu0 %v823
      %891 = vmatprep.subr.bf16.mxu0 0
      %892 = vmatpush1.bf16.msra.mxu0 %v824
      %893 = vmatprep.subr.bf16.mxu0 0
      %894 = vmatpush1.bf16.msra.mxu0 %v825
      %895 = vmatprep.subr.bf16.mxu0 0
      %896 = vmatpush1.bf16.msra.mxu0 %v826
      %897 = vmatprep.subr.bf16.mxu0 0
      %898 = vmatpush1.bf16.msra.mxu0 %v827
      %899 = vmatprep.subr.bf16.mxu0 0
      %900 = vmatpush1.bf16.msra.mxu0 %v828
      %901 = vmatprep.subr.bf16.mxu0 0
      %902 = vmatpush1.bf16.msra.mxu0 %v829
      %903 = vmatprep.subr.bf16.mxu0 0
      %904 = vmatpush1.bf16.msra.mxu0 %v830
      %905 = vmatprep.subr.bf16.mxu0 0
      %906 = vmatpush1.bf16.msra.mxu0 %v831
      %907 = vmatprep.subr.bf16.mxu0 0
      %908 = vmatpush1.bf16.msra.mxu0 %v832
      %909 = vmatprep.subr.bf16.mxu0 0
      %910 = vmatpush1.bf16.msra.mxu0 %v833
      %911 = vmatprep.subr.bf16.mxu0 0
      %912 = vmatpush1.bf16.msra.mxu0 %v834
      %913 = vmatprep.subr.bf16.mxu0 0
      %914 = vmatpush1.bf16.msra.mxu0 %v835
      %915 = vmatprep.subr.bf16.mxu0 0
      %916 = vmatpush1.bf16.msra.mxu0 %v836
      %917 = vmatprep.mubr.bf16.mxu0 %v662
      %918 = vmatmul.mubr.bf16.gmra.mrb[0].mxu0 %v661
      %v919 = vpop.f32.mrb[0].mxu0
      %v920 = vadd.f32 0.0, %v919
      %v921 = vpop.f32.mrb[0].mxu0
      %v922 = vpop.f32.mrb[0].mxu0
      %v923 = vadd.f32 0.0, %v922
      %v924 = vpop.f32.mrb[0].mxu0
      %925 = vmatprep.mubr.bf16.mxu0 %v666
      %926 = vmatmul.mubr.bf16.gmra.mrb[0].mxu0 %v665
      %v927 = vpop.f32.mrb[0].mxu0
      %v928 = vadd.f32 0.0, %v927
      %v929 = vpop.f32.mrb[0].mxu0
      %v930 = vpop.f32.mrb[0].mxu0
      %v931 = vadd.f32 0.0, %v930
      %v932 = vpop.f32.mrb[0].mxu0
      %933 = vmatprep.mubr.bf16.mxu0 %v670
      %934 = vmatmul.mubr.bf16.gmra.mrb[0].mxu0 %v669
      %v935 = vpop.f32.mrb[0].mxu0
      %v936 = vadd.f32 0.0, %v935
      %v937 = vpop.f32.mrb[0].mxu0
      %v938 = vpop.f32.mrb[0].mxu0
      %v939 = vadd.f32 0.0, %v938
      %v940 = vpop.f32.mrb[0].mxu0
      %941 = vmatprep.mubr.bf16.mxu0 %v674
      %942 = vmatmul.mubr.bf16.gmra.mrb[0].mxu0 %v673
      %v943 = vpop.f32.mrb[0].mxu0
      %v944 = vadd.f32 0.0, %v943
      %v945 = vpop.f32.mrb[0].mxu0
      %v946 = vpop.f32.mrb[0].mxu0
      %v947 = vadd.f32 0.0, %v946
      %v948 = vpop.f32.mrb[0].mxu0
      %949 = vdwg.mxu0
      %950 = vmatprep.subr.bf16.mxu0 0
      %951 = vmatpush1.bf16.msra.mxu0 %v837
      %952 = vmatprep.subr.bf16.mxu0 0
      %953 = vmatpush1.bf16.msra.mxu0 %v838
      %954 = vmatprep.subr.bf16.mxu0 0
      %955 = vmatpush1.bf16.msra.mxu0 %v839
      %956 = vmatprep.subr.bf16.mxu0 0
      %957 = vmatpush1.bf16.msra.mxu0 %v840
      %958 = vmatprep.subr.bf16.mxu0 0
      %959 = vmatpush1.bf16.msra.mxu0 %v841
      %960 = vmatprep.subr.bf16.mxu0 0
      %961 = vmatpush1.bf16.msra.mxu0 %v842
      %962 = vmatprep.subr.bf16.mxu0 0
      %963 = vmatpush1.bf16.msra.mxu0 %v843
      %964 = vmatprep.subr.bf16.mxu0 0
      %965 = vmatpush1.bf16.msra.mxu0 %v844
      %966 = vmatprep.subr.bf16.mxu0 0
      %967 = vmatpush1.bf16.msra.mxu0 %v845
      %968 = vmatprep.subr.bf16.mxu0 0
      %969 = vmatpush1.bf16.msra.mxu0 %v846
      %970 = vmatprep.subr.bf16.mxu0 0
      %971 = vmatpush1.bf16.msra.mxu0 %v847
      %972 = vmatprep.subr.bf16.mxu0 0
      %973 = vmatpush1.bf16.msra.mxu0 %v848
      %974 = vmatprep.subr.bf16.mxu0 0
      %975 = vmatpush1.bf16.msra.mxu0 %v849
      %976 = vmatprep.subr.bf16.mxu0 0
      %977 = vmatpush1.bf16.msra.mxu0 %v850
      %978 = vmatprep.subr.bf16.mxu0 0
      %979 = vmatpush1.bf16.msra.mxu0 %v851
      %980 = vmatprep.subr.bf16.mxu0 0
      %981 = vmatpush1.bf16.msra.mxu0 %v852
      %982 = vmatprep.mubr.bf16.mxu0 %v664
      %983 = vmatmul.mubr.bf16.gmra.mrb[0].mxu0 %v663
      %v984 = vpop.f32.mrb[0].mxu0
      %v985 = vadd.f32 %v920, %v984
      %v986 = vpop.f32.mrb[0].mxu0
      %v987 = vpop.f32.mrb[0].mxu0
      %v988 = vadd.f32 %v923, %v987
      %v989 = vpop.f32.mrb[0].mxu0
      %990 = vmatprep.mubr.bf16.mxu0 %v668
      %991 = vmatmul.mubr.bf16.gmra.mrb[0].mxu0 %v667
      %v992 = vpop.f32.mrb[0].mxu0
      %v993 = vadd.f32 %v928, %v992
      %v994 = vpop.f32.mrb[0].mxu0
      %v995 = vpop.f32.mrb[0].mxu0
      %v996 = vadd.f32 %v931, %v995
      %v997 = vpop.f32.mrb[0].mxu0
      %998 = vmatprep.mubr.bf16.mxu0 %v672
      %999 = vmatmul.mubr.bf16.gmra.mrb[0].mxu0 %v671
      %v1000 = vpop.f32.mrb[0].mxu0
      %v1001 = vadd.f32 %v936, %v1000
      %v1002 = vpop.f32.mrb[0].mxu0
      %v1003 = vpop.f32.mrb[0].mxu0
      %v1004 = vadd.f32 %v939, %v1003
      %v1005 = vpop.f32.mrb[0].mxu0
      %1006 = vmatprep.mubr.bf16.mxu0 %v676
      %1007 = vmatmul.mubr.bf16.gmra.mrb[0].mxu0 %v675
      %v1008 = vpop.f32.mrb[0].mxu0
      %v1009 = vadd.f32 %v944, %v1008
      %v1010 = vpop.f32.mrb[0].mxu0
      %v1011 = vpop.f32.mrb[0].mxu0
      %v1012 = vadd.f32 %v947, %v1011
      %v1013 = vpop.f32.mrb[0].mxu0
      %1014 = vdwg.mxu0
      %v1031 = vunpack.c.l.b16 %v241
      %v1032 = vunpack.c.h.b16 %v241
      %v1033 = vunpack.c.l.b16 %v242
      %v1034 = vunpack.c.h.b16 %v242
      %v1035 = vunpack.c.l.b16 %v245
      %v1036 = vunpack.c.h.b16 %v245
      %v1037 = vunpack.c.l.b16 %v246
      %v1038 = vunpack.c.h.b16 %v246
      %v1039 = vunpack.c.l.b16 %v249
      %v1040 = vunpack.c.h.b16 %v249
      %v1041 = vunpack.c.l.b16 %v250
      %v1042 = vunpack.c.h.b16 %v250
      %v1043 = vunpack.c.l.b16 %v253
      %v1044 = vunpack.c.h.b16 %v253
      %v1045 = vunpack.c.l.b16 %v254
      %v1046 = vunpack.c.h.b16 %v254
      %v1047 = vunpack.c.l.b16 %v257
      %v1048 = vunpack.c.h.b16 %v257
      %v1049 = vunpack.c.l.b16 %v258
      %v1050 = vunpack.c.h.b16 %v258
      %v1051 = vunpack.c.l.b16 %v261
      %v1052 = vunpack.c.h.b16 %v261
      %v1053 = vunpack.c.l.b16 %v262
      %v1054 = vunpack.c.h.b16 %v262
      %v1055 = vunpack.c.l.b16 %v265
      %v1056 = vunpack.c.h.b16 %v265
      %v1057 = vunpack.c.l.b16 %v266
      %v1058 = vunpack.c.h.b16 %v266
      %v1059 = vunpack.c.l.b16 %v269
      %v1060 = vunpack.c.h.b16 %v269
      %v1061 = vunpack.c.l.b16 %v270
      %v1062 = vunpack.c.h.b16 %v270
      %v1063 = vpack.c.b16 %v1035, %v1031
      %v1064 = vpack.c.b16 %v1036, %v1032
      %v1065 = vpack.c.b16 %v1037, %v1033
      %v1066 = vpack.c.b16 %v1038, %v1034
      %v1067 = vpack.c.b16 %v1043, %v1039
      %v1068 = vpack.c.b16 %v1044, %v1040
      %v1069 = vpack.c.b16 %v1045, %v1041
      %v1070 = vpack.c.b16 %v1046, %v1042
      %v1071 = vpack.c.b16 %v1051, %v1047
      %v1072 = vpack.c.b16 %v1052, %v1048
      %v1073 = vpack.c.b16 %v1053, %v1049
      %v1074 = vpack.c.b16 %v1054, %v1050
      %v1075 = vpack.c.b16 %v1059, %v1055
      %v1076 = vpack.c.b16 %v1060, %v1056
      %v1077 = vpack.c.b16 %v1061, %v1057
      %v1078 = vpack.c.b16 %v1062, %v1058
      %v1159 = vunpack.c.l.b16 %v273
      %v1160 = vunpack.c.l.b16 %v274
      %v1161 = vunpack.c.l.b16 %v275
      %v1162 = vunpack.c.l.b16 %v276
      %v1163 = vunpack.c.l.b16 %v277
      %v1164 = vunpack.c.l.b16 %v278
      %v1165 = vunpack.c.l.b16 %v279
      %v1166 = vunpack.c.l.b16 %v280
      %v1167 = vunpack.c.l.b16 %v281
      %v1168 = vunpack.c.l.b16 %v282
      %v1169 = vunpack.c.l.b16 %v283
      %v1170 = vunpack.c.l.b16 %v284
      %v1171 = vunpack.c.l.b16 %v285
      %v1172 = vunpack.c.l.b16 %v286
      %v1173 = vunpack.c.l.b16 %v287
      %v1174 = vunpack.c.l.b16 %v288
      %v1175 = vunpack.c.l.b16 %v289
      %v1176 = vunpack.c.l.b16 %v290
      %v1177 = vunpack.c.l.b16 %v291
      %v1178 = vunpack.c.l.b16 %v292
      %v1179 = vunpack.c.l.b16 %v293
      %v1180 = vunpack.c.l.b16 %v294
      %v1181 = vunpack.c.l.b16 %v295
      %v1182 = vunpack.c.l.b16 %v296
      %v1183 = vunpack.c.l.b16 %v297
      %v1184 = vunpack.c.l.b16 %v298
      %v1185 = vunpack.c.l.b16 %v299
      %v1186 = vunpack.c.l.b16 %v300
      %v1187 = vunpack.c.l.b16 %v301
      %v1188 = vunpack.c.l.b16 %v302
      %v1189 = vunpack.c.l.b16 %v303
      %v1190 = vunpack.c.l.b16 %v304
      %v1191 = vunpack.c.l.b16 %v305
      %v1192 = vunpack.c.l.b16 %v306
      %v1193 = vunpack.c.l.b16 %v307
      %v1194 = vunpack.c.l.b16 %v308
      %v1195 = vunpack.c.l.b16 %v309
      %v1196 = vunpack.c.l.b16 %v310
      %v1197 = vunpack.c.l.b16 %v311
      %v1198 = vunpack.c.l.b16 %v312
      %v1199 = vunpack.c.l.b16 %v313
      %v1200 = vunpack.c.l.b16 %v314
      %v1201 = vunpack.c.l.b16 %v315
      %v1202 = vunpack.c.l.b16 %v316
      %v1203 = vunpack.c.l.b16 %v317
      %v1204 = vunpack.c.l.b16 %v318
      %v1205 = vunpack.c.l.b16 %v319
      %v1206 = vunpack.c.l.b16 %v320
      %v1207 = vunpack.c.l.b16 %v321
      %v1208 = vunpack.c.l.b16 %v322
      %v1209 = vunpack.c.l.b16 %v323
      %v1210 = vunpack.c.l.b16 %v324
      %v1211 = vunpack.c.l.b16 %v325
      %v1212 = vunpack.c.l.b16 %v326
      %v1213 = vunpack.c.l.b16 %v327
      %v1214 = vunpack.c.l.b16 %v328
      %v1215 = vunpack.c.l.b16 %v329
      %v1216 = vunpack.c.l.b16 %v330
      %v1217 = vunpack.c.l.b16 %v331
      %v1218 = vunpack.c.l.b16 %v332
      %v1219 = vunpack.c.l.b16 %v333
      %v1220 = vunpack.c.l.b16 %v334
      %v1221 = vunpack.c.l.b16 %v335
      %v1222 = vunpack.c.l.b16 %v336
      %v1223 = vpack.c.b16 %v1160, %v1159
      %v1224 = vpack.c.b16 %v1162, %v1161
      %v1225 = vpack.c.b16 %v1164, %v1163
      %v1226 = vpack.c.b16 %v1166, %v1165
      %v1227 = vpack.c.b16 %v1168, %v1167
      %v1228 = vpack.c.b16 %v1170, %v1169
      %v1229 = vpack.c.b16 %v1172, %v1171
      %v1230 = vpack.c.b16 %v1174, %v1173
      %v1231 = vpack.c.b16 %v1176, %v1175
      %v1232 = vpack.c.b16 %v1178, %v1177
      %v1233 = vpack.c.b16 %v1180, %v1179
      %v1234 = vpack.c.b16 %v1182, %v1181
      %v1235 = vpack.c.b16 %v1184, %v1183
      %v1236 = vpack.c.b16 %v1186, %v1185
      %v1237 = vpack.c.b16 %v1188, %v1187
      %v1238 = vpack.c.b16 %v1190, %v1189
      %v1239 = vpack.c.b16 %v1192, %v1191
      %v1240 = vpack.c.b16 %v1194, %v1193
      %v1241 = vpack.c.b16 %v1196, %v1195
      %v1242 = vpack.c.b16 %v1198, %v1197
      %v1243 = vpack.c.b16 %v1200, %v1199
      %v1244 = vpack.c.b16 %v1202, %v1201
      %v1245 = vpack.c.b16 %v1204, %v1203
      %v1246 = vpack.c.b16 %v1206, %v1205
      %v1247 = vpack.c.b16 %v1208, %v1207
      %v1248 = vpack.c.b16 %v1210, %v1209
      %v1249 = vpack.c.b16 %v1212, %v1211
      %v1250 = vpack.c.b16 %v1214, %v1213
      %v1251 = vpack.c.b16 %v1216, %v1215
      %v1252 = vpack.c.b16 %v1218, %v1217
      %v1253 = vpack.c.b16 %v1220, %v1219
      %v1254 = vpack.c.b16 %v1222, %v1221
      %1287 = vmatprep.subr.bf16.mxu0 0
      %1288 = vmatpush1.bf16.msra.mxu0 %v1223
      %1289 = vmatprep.subr.bf16.mxu0 0
      %1290 = vmatpush1.bf16.msra.mxu0 %v1224
      %1291 = vmatprep.subr.bf16.mxu0 0
      %1292 = vmatpush1.bf16.msra.mxu0 %v1225
      %1293 = vmatprep.subr.bf16.mxu0 0
      %1294 = vmatpush1.bf16.msra.mxu0 %v1226
      %1295 = vmatprep.subr.bf16.mxu0 0
      %1296 = vmatpush1.bf16.msra.mxu0 %v1227
      %1297 = vmatprep.subr.bf16.mxu0 0
      %1298 = vmatpush1.bf16.msra.mxu0 %v1228
      %1299 = vmatprep.subr.bf16.mxu0 0
      %1300 = vmatpush1.bf16.msra.mxu0 %v1229
      %1301 = vmatprep.subr.bf16.mxu0 0
      %1302 = vmatpush1.bf16.msra.mxu0 %v1230
      %1303 = vmatprep.subr.bf16.mxu0 0
      %1304 = vmatpush1.bf16.msra.mxu0 %v1231
      %1305 = vmatprep.subr.bf16.mxu0 0
      %1306 = vmatpush1.bf16.msra.mxu0 %v1232
      %1307 = vmatprep.subr.bf16.mxu0 0
      %1308 = vmatpush1.bf16.msra.mxu0 %v1233
      %1309 = vmatprep.subr.bf16.mxu0 0
      %1310 = vmatpush1.bf16.msra.mxu0 %v1234
      %1311 = vmatprep.subr.bf16.mxu0 0
      %1312 = vmatpush1.bf16.msra.mxu0 %v1235
      %1313 = vmatprep.subr.bf16.mxu0 0
      %1314 = vmatpush1.bf16.msra.mxu0 %v1236
      %1315 = vmatprep.subr.bf16.mxu0 0
      %1316 = vmatpush1.bf16.msra.mxu0 %v1237
      %1317 = vmatprep.subr.bf16.mxu0 0
      %1318 = vmatpush1.bf16.msra.mxu0 %v1238
      %1319 = vmatprep.mubr.bf16.mxu0 %v1064
      %1320 = vmatmul.mubr.bf16.gmra.mrb[0].mxu0 %v1063
      %v1321 = vpop.f32.mrb[0].mxu0
      %v1322 = vadd.f32 %v985, %v1321
      %v1323 = vpop.f32.mrb[0].mxu0
      %v1324 = vpop.f32.mrb[0].mxu0
      %v1325 = vadd.f32 %v988, %v1324
      %v1326 = vpop.f32.mrb[0].mxu0
      %1327 = vmatprep.mubr.bf16.mxu0 %v1068
      %1328 = vmatmul.mubr.bf16.gmra.mrb[0].mxu0 %v1067
      %v1329 = vpop.f32.mrb[0].mxu0
      %v1330 = vadd.f32 %v993, %v1329
      %v1331 = vpop.f32.mrb[0].mxu0
      %v1332 = vpop.f32.mrb[0].mxu0
      %v1333 = vadd.f32 %v996, %v1332
      %v1334 = vpop.f32.mrb[0].mxu0
      %1335 = vmatprep.mubr.bf16.mxu0 %v1072
      %1336 = vmatmul.mubr.bf16.gmra.mrb[0].mxu0 %v1071
      %v1337 = vpop.f32.mrb[0].mxu0
      %v1338 = vadd.f32 %v1001, %v1337
      %v1339 = vpop.f32.mrb[0].mxu0
      %v1340 = vpop.f32.mrb[0].mxu0
      %v1341 = vadd.f32 %v1004, %v1340
      %v1342 = vpop.f32.mrb[0].mxu0
      %1343 = vmatprep.mubr.bf16.mxu0 %v1076
      %1344 = vmatmul.mubr.bf16.gmra.mrb[0].mxu0 %v1075
      %v1345 = vpop.f32.mrb[0].mxu0
      %v1346 = vadd.f32 %v1009, %v1345
      %v1347 = vpop.f32.mrb[0].mxu0
      %v1348 = vpop.f32.mrb[0].mxu0
      %v1349 = vadd.f32 %v1012, %v1348
      %v1350 = vpop.f32.mrb[0].mxu0
      %1351 = vdwg.mxu0
      %1352 = vmatprep.subr.bf16.mxu0 0
      %1353 = vmatpush1.bf16.msra.mxu0 %v1239
      %1354 = vmatprep.subr.bf16.mxu0 0
      %1355 = vmatpush1.bf16.msra.mxu0 %v1240
      %1356 = vmatprep.subr.bf16.mxu0 0
      %1357 = vmatpush1.bf16.msra.mxu0 %v1241
      %1358 = vmatprep.subr.bf16.mxu0 0
      %1359 = vmatpush1.bf16.msra.mxu0 %v1242
      %1360 = vmatprep.subr.bf16.mxu0 0
      %1361 = vmatpush1.bf16.msra.mxu0 %v1243
      %1362 = vmatprep.subr.bf16.mxu0 0
      %1363 = vmatpush1.bf16.msra.mxu0 %v1244
      %1364 = vmatprep.subr.bf16.mxu0 0
      %1365 = vmatpush1.bf16.msra.mxu0 %v1245
      %1366 = vmatprep.subr.bf16.mxu0 0
      %1367 = vmatpush1.bf16.msra.mxu0 %v1246
      %1368 = vmatprep.subr.bf16.mxu0 0
      %1369 = vmatpush1.bf16.msra.mxu0 %v1247
      %1370 = vmatprep.subr.bf16.mxu0 0
      %1371 = vmatpush1.bf16.msra.mxu0 %v1248
      %1372 = vmatprep.subr.bf16.mxu0 0
      %1373 = vmatpush1.bf16.msra.mxu0 %v1249
      %1374 = vmatprep.subr.bf16.mxu0 0
      %1375 = vmatpush1.bf16.msra.mxu0 %v1250
      %1376 = vmatprep.subr.bf16.mxu0 0
      %1377 = vmatpush1.bf16.msra.mxu0 %v1251
      %1378 = vmatprep.subr.bf16.mxu0 0
      %1379 = vmatpush1.bf16.msra.mxu0 %v1252
      %1380 = vmatprep.subr.bf16.mxu0 0
      %1381 = vmatpush1.bf16.msra.mxu0 %v1253
      %1382 = vmatprep.subr.bf16.mxu0 0
      %1383 = vmatpush1.bf16.msra.mxu0 %v1254
      %1384 = vmatprep.mubr.bf16.mxu0 %v1066
      %1385 = vmatmul.mubr.bf16.gmra.mrb[0].mxu0 %v1065
      %v1386 = vpop.f32.mrb[0].mxu0
      %v1387 = vadd.f32 %v1322, %v1386
      %v1388 = vpop.f32.mrb[0].mxu0
      %v1389 = vpop.f32.mrb[0].mxu0
      %v1390 = vadd.f32 %v1325, %v1389
      %v1391 = vpop.f32.mrb[0].mxu0
      %1392 = vmatprep.mubr.bf16.mxu0 %v1070
      %1393 = vmatmul.mubr.bf16.gmra.mrb[0].mxu0 %v1069
      %v1394 = vpop.f32.mrb[0].mxu0
      %v1395 = vadd.f32 %v1330, %v1394
      %v1396 = vpop.f32.mrb[0].mxu0
      %v1397 = vpop.f32.mrb[0].mxu0
      %v1398 = vadd.f32 %v1333, %v1397
      %v1399 = vpop.f32.mrb[0].mxu0
      %1400 = vmatprep.mubr.bf16.mxu0 %v1074
      %1401 = vmatmul.mubr.bf16.gmra.mrb[0].mxu0 %v1073
      %v1402 = vpop.f32.mrb[0].mxu0
      %v1403 = vadd.f32 %v1338, %v1402
      %v1404 = vpop.f32.mrb[0].mxu0
      %v1405 = vpop.f32.mrb[0].mxu0
      %v1406 = vadd.f32 %v1341, %v1405
      %v1407 = vpop.f32.mrb[0].mxu0
      %1408 = vmatprep.mubr.bf16.mxu0 %v1078
      %1409 = vmatmul.mubr.bf16.gmra.mrb[0].mxu0 %v1077
      %v1410 = vpop.f32.mrb[0].mxu0
      %v1411 = vadd.f32 %v1346, %v1410
      %v1412 = vpop.f32.mrb[0].mxu0
      %v1413 = vpop.f32.mrb[0].mxu0
      %v1414 = vadd.f32 %v1349, %v1413
      %v1415 = vpop.f32.mrb[0].mxu0
      %1416 = vdwg.mxu0
      %v1417 = vld [vmem:[%s2] sm:$0x1]
      %v1419 = vlaneseq
      %v1420 = vshrl.u32 %v1419, 7
      %v1421 = vsub.s32 0, %v1420
      %v1422 = vrot.slane %v1417, %v1421
      %v1424 = vmul.f32 %v1387, %v1422
      %v1425 = vmul.f32 %v1390, %v1422
      %v1426 = vmul.f32 %v1395, %v1422
      %v1427 = vmul.f32 %v1398, %v1422
      %v1428 = vmul.f32 %v1403, %v1422
      %v1429 = vmul.f32 %v1406, %v1422
      %v1430 = vmul.f32 %v1411, %v1422
      %v1431 = vmul.f32 %v1414, %v1422
      %v1432 = vld [vmem:[%s3] sm:$0x1]
      %v1434 = vlaneseq
      %v1435 = vshrl.u32 %v1434, 7
      %v1436 = vsub.s32 0, %v1435
      %v1437 = vrot.slane %v1432, %v1436
      %v1439 = vadd.f32 %v1424, %v1437
      %v1440 = vadd.f32 %v1425, %v1437
      %v1441 = vadd.f32 %v1426, %v1437
      %v1442 = vadd.f32 %v1427, %v1437
      %v1443 = vadd.f32 %v1428, %v1437
      %v1444 = vadd.f32 %v1429, %v1437
      %v1445 = vadd.f32 %v1430, %v1437
      %v1446 = vadd.f32 %v1431, %v1437
      %v1447 = vmul.f32 %v1439, 0.2
      %v1448 = vmul.f32 %v1440, 0.2
      %v1449 = vmul.f32 %v1441, 0.2
      %v1450 = vmul.f32 %v1442, 0.2
      %v1451 = vmul.f32 %v1443, 0.2
      %v1452 = vmul.f32 %v1444, 0.2
      %v1453 = vmul.f32 %v1445, 0.2
      %v1454 = vmul.f32 %v1446, 0.2
      %v1455 = vmax.f32 %v1439, %v1447
      %v1456 = vmax.f32 %v1440, %v1448
      %v1457 = vmax.f32 %v1441, %v1449
      %v1458 = vmax.f32 %v1442, %v1450
      %v1459 = vmax.f32 %v1443, %v1451
      %v1460 = vmax.f32 %v1444, %v1452
      %v1461 = vmax.f32 %v1445, %v1453
      %v1462 = vmax.f32 %v1446, %v1454
      %v1463 = vpack.c.bf16 %v1456, %v1455
      %v1464 = vpack.c.bf16 %v1458, %v1457
      %v1465 = vpack.c.bf16 %v1460, %v1459
      %v1466 = vpack.c.bf16 %v1462, %v1461
      %v1471 = vunpack.c.l.b16 %v1463
      %v1472 = vunpack.c.h.b16 %v1463
      %v1473 = vunpack.c.l.b16 %v1464
      %v1474 = vunpack.c.h.b16 %v1464
      %v1475 = vunpack.c.l.b16 %v1465
      %v1476 = vunpack.c.h.b16 %v1465
      %v1477 = vunpack.c.l.b16 %v1466
      %v1478 = vunpack.c.h.b16 %v1466
      %v1479 = vpack.c.b16 %v1471, %v1471
      %v1480 = vpack.c.b16 %v1472, %v1472
      %v1481 = vpack.c.b16 %v1473, %v1473
      %v1482 = vpack.c.b16 %v1474, %v1474
      %v1483 = vpack.c.b16 %v1475, %v1475
      %v1484 = vpack.c.b16 %v1476, %v1476
      %v1485 = vpack.c.b16 %v1477, %v1477
      %v1486 = vpack.c.b16 %v1478, %v1478
      %1495 = vst [vmem:[%s238] sm:$0xf] %v1479
      %1496 = vst [vmem:[%s238 + $0x4] sm:$0xf] %v1480
      %1497 = vst [vmem:[%s238 + $0x8] sm:$0xf] %v1481
      %1498 = vst [vmem:[%s238 + $0xc] sm:$0xf] %v1482
      %1499 = vst [vmem:[%s238 + $0x10] sm:$0xf] %v1483
      %1500 = vst [vmem:[%s238 + $0x14] sm:$0xf] %v1484
      %1501 = vst [vmem:[%s238 + $0x18] sm:$0xf] %v1485
      %1502 = vst [vmem:[%s238 + $0x1c] sm:$0xf] %v1486
      %s1503 = smul.u32 8, %s20
      %p1504 = scmp.lt.s32.totalorder %s19, 1
      %s1505 = scalar_select %p1504, %s19, 1
      %p1506 = scmp.lt.s32.totalorder %s1503, 7
      %s1507 = scalar_select %p1506, %s1503, 7
      %s1508 = smul.addr %s1505, 8
      %s1509 = sadd.s32 %s1507, %s1508
      %s1510 = smul.addr %s1509, 4
      %s1511 = scalar_lea.vmem %s4, %s1510
      // Predicated region
      $region37: #{patch_discriminator.5} parent=35 // pred_check
        %p1512 = pneg %p138
      $region38: #{patch_discriminator.5} parent=35 // pred_check_branch
        %1514 = sbr.rel (%p1512) target = $region40
      $region39: #{patch_discriminator.5} parent=35 // pred_region
        %s1515 = smul.u32 8, %s20
      $region40: #{patch_discriminator.5} parent=35 // pred_fallthru
        _
    $region36: #{patch_discriminator.5} parent=5 // pred_fallthru
      _
    %p1516 = scmp.le.s32.totalorder 2, %s10
    // Predicated region
    $region41: #{patch_discriminator.5} parent=5 // pred_check
      %p1517 = pneg %p1516
    $region42: #{patch_discriminator.5} parent=5 // pred_check_branch
      %1519 = sbr.rel (%p1517) target = $region44
    $region43: #{patch_discriminator.5} parent=5 // pred_region
      %s1520 = ssub.s32 %s10, 2
      // Predicated region
      $region45: #{patch_discriminator.5} parent=43 // pred_check
        %p1521 = pneg %p144
      $region46: #{patch_discriminator.5} parent=43 // pred_check_branch
        %1523 = sbr.rel (%p1521) target = $region48
      $region47: #{patch_discriminator.5} parent=43 // pred_region
        %s1524 = smul.u32 8, %s22
        %p1525 = scmp.lt.s32.totalorder %s21, 1
        %s1526 = scalar_select %p1525, %s21, 1
        %p1527 = scmp.lt.s32.totalorder %s1524, 7
        %s1528 = scalar_select %p1527, %s1524, 7
        %s1529 = smul.addr %s1526, 8
        %s1530 = sadd.s32 %s1528, %s1529
        %s1531 = smul.addr %s1530, 4
        %s1532 = scalar_lea.vmem %s4, %s1531
      $region48: #{patch_discriminator.5} parent=43 // pred_fallthru
        _
    $region44: #{patch_discriminator.5} parent=5 // pred_fallthru
      _
  $region6: #{patch_discriminator.5} parent=0 // loop_footer
    %s14 = sadd.s32 1, %s10
  $region7: #{patch_discriminator.5} parent=0 // loop_footer_branch
    %9 = sbr.rel target = $region3
  $region8: #{patch_discriminator.5} parent=0 // loop_exit
    _

// kernel: patch_discriminator.6
$region0: #{patch_discriminator.6}
  #allocation0 [shape = 'u32[]', space=smem, size = 0x4, offset = 0x4, fixed_abs, tag = 'smem constant byte address 0x4 - core index']
  #allocation1 [shape = 'u32[144,128]{1,0:T(1,128)}', space=vmem, size = 0x12000, scoped, tag = 'internal scratch']
  %s0 = inlined_call_operand.vmem [shape: bf16[2,4,5,1024], index: 0, kind: input, shape index: {}]
  %s1 = inlined_call_operand.vmem [shape: bf16[2,1024,256], index: 1, kind: input, shape index: {}]
  %s2 = inlined_call_operand.vmem [shape: f32[1,256], index: 2, kind: input, shape index: {}]
  %s3 = inlined_call_operand.vmem [shape: f32[1,256], index: 3, kind: input, shape index: {}]
  %s4 = inlined_call_operand.vmem [shape: bf16[2,16,256], index: 4, kind: output, shape index: {}]
  %s5 = sld [smem:[#allocation0]]
  $region49: #{patch_discriminator.6} parent=0
    _
  %s7 = ssub.s32 1, %s5
  %s8 = scalar_select 0, %s7, %s5
  loop: start=0, step=1, limit=4
  $region2: #{patch_discriminator.6} parent=0 // loop_pre_header
    _
  $region3: #{patch_discriminator.6} parent=0 // loop_header
    %s10 = sphi 0, %s14
    %p11 = scmp.ge.s32.totalorder %s10, 4
    %s17 = sphi 0, %s29
    %s18 = sphi 0, %s25
    %s19 = sphi 0, %s17
    %s20 = sphi 0, %s18
    %s21 = sphi 0, %s19
    %s22 = sphi 0, %s20
    %s34 = sphi 0, %s36
    %s37 = sphi 0, %s34
    %s38 = sphi 0, %s37
    %s54 = sphi 0, %s38
    %s58 = sphi 0, %s58
    %s60 = sphi 0, %s58
    %s61 = sphi 0, %s60
    %s75 = sphi 0, %s61
    %s79 = sphi 0, %s79
    %s81 = sphi 0, %s79
    %s82 = sphi 0, %s81
    %s96 = sphi 0, %s82
    %s100 = sphi 0, %s100
    %s102 = sphi 0, %s100
    %s103 = sphi 0, %s102
    %s117 = sphi 0, %s103
    %s125 = sphi 0, %s127
    %s128 = sphi 0, %s125
    %s129 = sphi 0, %s128
    %s145 = sphi 0, %s129
  $region4: #{patch_discriminator.6} parent=0 // loop_header_branch
    %13 = sbr.rel (%p11) target = $region8
  $region5: #{patch_discriminator.6} parent=0 // loop_body
    %s15 = ssub.s32 %s10, 1
    %s16 = ssub.s32 %s10, 2
    %s23 = sadd.s32 1, %s18
    %p24 = scmp.ge.s32.totalorder %s23, 1
    %s25 = scalar_select %p24, 0, %s23
    %s26 = sadd.s32 1, %s17
    %s27 = scalar_select %p24, %s26, %s17
    %p28 = scmp.ge.s32.totalorder %s27, 2
    %s29 = scalar_select %p28, 0, %s27
    %s30 = ssub.s32 %s17, %s29
    %s31 = ssub.s32 %s18, %s25
    %s32 = sor.u32 %s30, %s31
    %p33 = scmp.eq.s32.totalorder %s32, 0
    %s35 = sadd.s32 %s34, 1
    %s36 = scalar_select %p33, %s34, %s35
    %p39 = pneg %p33
    %p40 = scmp.eq.s32.totalorder %s10, 1
    %p41 = por %p39, %p40
    %p42 = scmp.ne.s32.totalorder %s34, %s37
    %p43 = scmp.eq.s32.totalorder %s10, 0
    %p44 = por %p42, %p43
    %p45 = scmp.ne.s32.totalorder %s34, %s37
    %p46 = scmp.eq.s32.totalorder %s15, 1
    %p47 = por %p45, %p46
    %p48 = scmp.ne.s32.totalorder %s37, %s38
    %p49 = scmp.eq.s32.totalorder %s15, 0
    %p50 = por %p48, %p49
    %p51 = scmp.ne.s32.totalorder %s37, %s38
    %p52 = scmp.eq.s32.totalorder %s16, 1
    %p53 = por %p51, %p52
    %p55 = scmp.ne.s32.totalorder %s38, %s54
    %p56 = scmp.eq.s32.totalorder %s16, 0
    %p57 = por %p55, %p56
    %s59 = sadd.s32 %s58, 1
    %p62 = scmp.eq.s32.totalorder %s10, 1
    %p63 = scmp.ne.s32.totalorder %s58, %s60
    %p64 = scmp.eq.s32.totalorder %s10, 0
    %p65 = por %p63, %p64
    %p66 = scmp.ne.s32.totalorder %s58, %s60
    %p67 = scmp.eq.s32.totalorder %s15, 1
    %p68 = por %p66, %p67
    %p69 = scmp.ne.s32.totalorder %s60, %s61
    %p70 = scmp.eq.s32.totalorder %s15, 0
    %p71 = por %p69, %p70
    %p72 = scmp.ne.s32.totalorder %s60, %s61
    %p73 = scmp.eq.s32.totalorder %s16, 1
    %p74 = por %p72, %p73
    %p76 = scmp.ne.s32.totalorder %s61, %s75
    %p77 = scmp.eq.s32.totalorder %s16, 0
    %p78 = por %p76, %p77
    %s80 = sadd.s32 %s79, 1
    %p83 = scmp.eq.s32.totalorder %s10, 1
    %p84 = scmp.ne.s32.totalorder %s79, %s81
    %p85 = scmp.eq.s32.totalorder %s10, 0
    %p86 = por %p84, %p85
    %p87 = scmp.ne.s32.totalorder %s79, %s81
    %p88 = scmp.eq.s32.totalorder %s15, 1
    %p89 = por %p87, %p88
    %p90 = scmp.ne.s32.totalorder %s81, %s82
    %p91 = scmp.eq.s32.totalorder %s15, 0
    %p92 = por %p90, %p91
    %p93 = scmp.ne.s32.totalorder %s81, %s82
    %p94 = scmp.eq.s32.totalorder %s16, 1
    %p95 = por %p93, %p94
    %p97 = scmp.ne.s32.totalorder %s82, %s96
    %p98 = scmp.eq.s32.totalorder %s16, 0
    %p99 = por %p97, %p98
    %s101 = sadd.s32 %s100, 1
    %p104 = scmp.eq.s32.totalorder %s10, 1
    %p105 = scmp.ne.s32.totalorder %s100, %s102
    %p106 = scmp.eq.s32.totalorder %s10, 0
    %p107 = por %p105, %p106
    %p108 = scmp.ne.s32.totalorder %s100, %s102
    %p109 = scmp.eq.s32.totalorder %s15, 1
    %p110 = por %p108, %p109
    %p111 = scmp.ne.s32.totalorder %s102, %s103
    %p112 = scmp.eq.s32.totalorder %s15, 0
    %p113 = por %p111, %p112
    %p114 = scmp.ne.s32.totalorder %s102, %s103
    %p115 = scmp.eq.s32.totalorder %s16, 1
    %p116 = por %p114, %p115
    %p118 = scmp.ne.s32.totalorder %s103, %s117
    %p119 = scmp.eq.s32.totalorder %s16, 0
    %p120 = por %p118, %p119
    %s121 = ssub.s32 %s17, %s29
    %s122 = ssub.s32 %s18, %s25
    %s123 = sor.u32 %s121, %s122
    %p124 = scmp.eq.s32.totalorder %s123, 0
    %s126 = sadd.s32 %s125, 1
    %s127 = scalar_select %p124, %s125, %s126
    %p130 = pneg %p124
    %p131 = scmp.eq.s32.totalorder %s10, 1
    %p132 = por %p130, %p131
    %p133 = scmp.ne.s32.totalorder %s125, %s128
    %p134 = scmp.eq.s32.totalorder %s10, 0
    %p135 = por %p133, %p134
    %p136 = scmp.ne.s32.totalorder %s125, %s128
    %p137 = scmp.eq.s32.totalorder %s15, 1
    %p138 = por %p136, %p137
    %p139 = scmp.ne.s32.totalorder %s128, %s129
    %p140 = scmp.eq.s32.totalorder %s15, 0
    %p141 = por %p139, %p140
    %p142 = scmp.ne.s32.totalorder %s128, %s129
    %p143 = scmp.eq.s32.totalorder %s16, 1
    %p144 = por %p142, %p143
    %p146 = scmp.ne.s32.totalorder %s129, %s145
    %p147 = scmp.eq.s32.totalorder %s16, 0
    %p148 = por %p146, %p147
    %p149 = scmp.le.s32.totalorder 1, %s10
    %p150 = scmp.lt.s32.totalorder %s10, 3
    %p151 = pnand %p149, %p150
    %p152 = pneg %p151
    // Predicated region
    $region9: #{patch_discriminator.6} parent=5 // pred_check
      _
    $region10: #{patch_discriminator.6} parent=5 // pred_check_branch
      %154 = sbr.rel (%p151) target = $region12
    $region11: #{patch_discriminator.6} parent=5 // pred_region
      %s155 = ssub.s32 %s10, 1
      // Predicated region
      $region13: #{patch_discriminator.6} parent=11 // pred_check
        %p156 = pneg %p71
      $region14: #{patch_discriminator.6} parent=11 // pred_check_branch
        %158 = sbr.rel (%p156) target = $region16
      $region15: #{patch_discriminator.6} parent=11 // pred_region
        _
      $region16: #{patch_discriminator.6} parent=11 // pred_fallthru
        _
      // Predicated region
      $region17: #{patch_discriminator.6} parent=11 // pred_check
        %p159 = pneg %p92
      $region18: #{patch_discriminator.6} parent=11 // pred_check_branch
        %161 = sbr.rel (%p159) target = $region20
      $region19: #{patch_discriminator.6} parent=11 // pred_region
        _
      $region20: #{patch_discriminator.6} parent=11 // pred_fallthru
        _
      // Predicated region
      $region21: #{patch_discriminator.6} parent=11 // pred_check
        %p162 = pneg %p113
      $region22: #{patch_discriminator.6} parent=11 // pred_check_branch
        %164 = sbr.rel (%p162) target = $region24
      $region23: #{patch_discriminator.6} parent=11 // pred_region
        _
      $region24: #{patch_discriminator.6} parent=11 // pred_fallthru
        _
    $region12: #{patch_discriminator.6} parent=5 // pred_fallthru
      _
    %p165 = scmp.lt.s32.totalorder %s10, 2
    // Predicated region
    $region25: #{patch_discriminator.6} parent=5 // pred_check
      %p166 = pneg %p165
    $region26: #{patch_discriminator.6} parent=5 // pred_check_branch
      %168 = sbr.rel (%p166) target = $region28
    $region27: #{patch_discriminator.6} parent=5 // pred_region
      // Predicated region
      $region29: #{patch_discriminator.6} parent=27 // pred_check
        %p169 = pneg %p44
      $region30: #{patch_discriminator.6} parent=27 // pred_check_branch
        %171 = sbr.rel (%p169) target = $region32
      $region31: #{patch_discriminator.6} parent=27 // pred_region
        %s172 = smul.u32 4, %s18
        %p173 = scmp.lt.s32.totalorder %s17, 1
        %s174 = scalar_select %p173, %s17, 1
        %p175 = scmp.lt.s32.totalorder %s172, 3
        %s176 = scalar_select %p175, %s172, 3
        %s177 = smul.addr %s176, 8
        %s178 = smul.addr %s174, 32
        %s179 = sadd.s32 %s177, %s178
        %s180 = smul.addr %s179, 4
        %s181 = scalar_lea.vmem %s0, %s180
        %s182 = smul.u32 4, %s18
      $region32: #{patch_discriminator.6} parent=27 // pred_fallthru
        _
    $region28: #{patch_discriminator.6} parent=5 // pred_fallthru
      _
    %p183 = scmp.le.s32.totalorder 1, %s10
    %p184 = scmp.lt.s32.totalorder %s10, 3
    %p185 = pnand %p183, %p184
    %p186 = pneg %p185
    // Predicated region
    $region33: #{patch_discriminator.6} parent=5 // pred_check
      _
    $region34: #{patch_discriminator.6} parent=5 // pred_check_branch
      %188 = sbr.rel (%p185) target = $region36
    $region35: #{patch_discriminator.6} parent=5 // pred_region
      %s189 = ssub.s32 %s10, 1
      %s190 = smul.u32 4, %s20
      %p191 = scmp.lt.s32.totalorder %s19, 1
      %s192 = scalar_select %p191, %s19, 1
      %p193 = scmp.lt.s32.totalorder %s190, 3
      %s194 = scalar_select %p193, %s190, 3
      %s195 = smul.addr %s194, 8
      %s196 = smul.addr %s192, 32
      %s197 = sadd.s32 %s195, %s196
      %s198 = smul.addr %s197, 4
      %s199 = scalar_lea.vmem %s0, %s198
      %p200 = pneg %p50
      %p201 = pneg %p47
      %p202 = pneg %p71
      %p203 = pneg %p68
      %p204 = pneg %p92
      %p205 = pneg %p89
      %p206 = pneg %p113
      %p207 = pneg %p110
      %p208 = pneg %p141
      %p209 = pneg %p138
      %s210 = smul.u32 2, %s20
      %p211 = scmp.lt.s32.totalorder %s19, 1
      %s212 = scalar_select %p211, %s19, 1
      %p213 = scmp.lt.s32.totalorder %s210, 1
      %s214 = scalar_select %p213, %s210, 1
      %s215 = smul.addr %s214, 2
      %s216 = smul.addr %s212, 4
      %s217 = sadd.s32 %s215, %s216
      %s218 = smul.addr %s217, 4
      %s219 = scalar_lea.vmem %s4, %s218
      %s220 = smul.u32 4, %s20
      %p221 = scmp.lt.s32.totalorder %s19, 1
      %s222 = scalar_select %p221, %s19, 1
      %p223 = scmp.lt.s32.totalorder %s220, 3
      %s224 = scalar_select %p223, %s220, 3
      %s225 = smul.addr %s224, 8
      %s226 = smul.addr %s222, 32
      %s227 = sadd.s32 %s225, %s226
      %s228 = smul.addr %s227, 4
      %s229 = scalar_lea.vmem %s0, %s228
      %s230 = smul.u32 4, %s20
      %s231 = smul.u32 2, %s20
      %p232 = scmp.lt.s32.totalorder %s19, 1
      %s233 = scalar_select %p232, %s19, 1
      %p234 = scmp.lt.s32.totalorder %s231, 1
      %s235 = scalar_select %p234, %s231, 1
      %s236 = smul.addr %s235, 2
      %s237 = smul.addr %s233, 4
      %s238 = sadd.s32 %s236, %s237
      %s239 = smul.addr %s238, 4
      %s240 = scalar_lea.vmem %s4, %s239
      %s241 = smul.u32 2, %s20
      %v242 = vld [vmem:[%s229] sm:$0x77]
      %v243 = vld [vmem:[%s229 + $0x8] sm:$0x77]
      %v244 = vld [vmem:[%s229 + $0x10] sm:$0x77]
      %v245 = vld [vmem:[%s229 + $0x18] sm:$0x77]
      %v246 = vld [vmem:[%s229 + $0x20] sm:$0x77]
      %v247 = vld [vmem:[%s229 + $0x28] sm:$0x77]
      %v248 = vld [vmem:[%s229 + $0x30] sm:$0x77]
      %v249 = vld [vmem:[%s229 + $0x38] sm:$0x77]
      %v250 = vld [vmem:[%s229 + $0x40] sm:$0x77]
      %v251 = vld [vmem:[%s229 + $0x48] sm:$0x77]
      %v252 = vld [vmem:[%s229 + $0x50] sm:$0x77]
      %v253 = vld [vmem:[%s229 + $0x58] sm:$0x77]
      %v254 = vld [vmem:[%s229 + $0x60] sm:$0x77]
      %v255 = vld [vmem:[%s229 + $0x68] sm:$0x77]
      %v256 = vld [vmem:[%s229 + $0x70] sm:$0x77]
      %v257 = vld [vmem:[%s229 + $0x78] sm:$0x77]
      %v275 = vunpack.c.l.s4 1983009808
      %v276 = vunpack.c.0.s8 %v275
      %v277 = vlaneseq
      %v278 = vshrl.u32 %v277, 7
      %v279 = vsub.s32 %v276, %v278
      %v280 = vrot.slane %v242, %v279
      %v282 = vunpack.c.l.s4 1983009808
      %v283 = vunpack.c.0.s8 %v282
      %v284 = vlaneseq
      %v285 = vshrl.u32 %v284, 7
      %v286 = vsub.s32 %v283, %v285
      %v287 = vrot.slane %v243, %v286
      %v288 = vcombine.low %v280, %v287
      %v290 = vunpack.c.l.s4 1983009808
      %v291 = vunpack.c.0.s8 %v290
      %v292 = vlaneseq
      %v293 = vshrl.u32 %v292, 7
      %v294 = vsub.s32 %v291, %v293
      %v295 = vrot.slane %v244, %v294
      %v297 = vunpack.c.l.s4 1983009808
      %v298 = vunpack.c.0.s8 %v297
      %v299 = vlaneseq
      %v300 = vshrl.u32 %v299, 7
      %v301 = vsub.s32 %v298, %v300
      %v302 = vrot.slane %v245, %v301
      %v303 = vcombine.low %v295, %v302
      %v305 = vunpack.c.l.s4 1983009808
      %v306 = vunpack.c.0.s8 %v305
      %v307 = vlaneseq
      %v308 = vshrl.u32 %v307, 7
      %v309 = vsub.s32 %v306, %v308
      %v310 = vrot.slane %v246, %v309
      %v312 = vunpack.c.l.s4 1983009808
      %v313 = vunpack.c.0.s8 %v312
      %v314 = vlaneseq
      %v315 = vshrl.u32 %v314, 7
      %v316 = vsub.s32 %v313, %v315
      %v317 = vrot.slane %v247, %v316
      %v318 = vcombine.low %v310, %v317
      %v320 = vunpack.c.l.s4 1983009808
      %v321 = vunpack.c.0.s8 %v320
      %v322 = vlaneseq
      %v323 = vshrl.u32 %v322, 7
      %v324 = vsub.s32 %v321, %v323
      %v325 = vrot.slane %v248, %v324
      %v327 = vunpack.c.l.s4 1983009808
      %v328 = vunpack.c.0.s8 %v327
      %v329 = vlaneseq
      %v330 = vshrl.u32 %v329, 7
      %v331 = vsub.s32 %v328, %v330
      %v332 = vrot.slane %v249, %v331
      %v333 = vcombine.low %v325, %v332
      %v335 = vunpack.c.l.s4 1983009808
      %v336 = vunpack.c.0.s8 %v335
      %v337 = vlaneseq
      %v338 = vshrl.u32 %v337, 7
      %v339 = vsub.s32 %v336, %v338
      %v340 = vrot.slane %v250, %v339
      %v342 = vunpack.c.l.s4 1983009808
      %v343 = vunpack.c.0.s8 %v342
      %v344 = vlaneseq
      %v345 = vshrl.u32 %v344, 7
      %v346 = vsub.s32 %v343, %v345
      %v347 = vrot.slane %v251, %v346
      %v348 = vcombine.low %v340, %v347
      %v350 = vunpack.c.l.s4 1983009808
      %v351 = vunpack.c.0.s8 %v350
      %v352 = vlaneseq
      %v353 = vshrl.u32 %v352, 7
      %v354 = vsub.s32 %v351, %v353
      %v355 = vrot.slane %v252, %v354
      %v357 = vunpack.c.l.s4 1983009808
      %v358 = vunpack.c.0.s8 %v357
      %v359 = vlaneseq
      %v360 = vshrl.u32 %v359, 7
      %v361 = vsub.s32 %v358, %v360
      %v362 = vrot.slane %v253, %v361
      %v363 = vcombine.low %v355, %v362
      %v365 = vunpack.c.l.s4 1983009808
      %v366 = vunpack.c.0.s8 %v365
      %v367 = vlaneseq
      %v368 = vshrl.u32 %v367, 7
      %v369 = vsub.s32 %v366, %v368
      %v370 = vrot.slane %v254, %v369
      %v372 = vunpack.c.l.s4 1983009808
      %v373 = vunpack.c.0.s8 %v372
      %v374 = vlaneseq
      %v375 = vshrl.u32 %v374, 7
      %v376 = vsub.s32 %v373, %v375
      %v377 = vrot.slane %v255, %v376
      %v378 = vcombine.low %v370, %v377
      %v380 = vunpack.c.l.s4 1983009808
      %v381 = vunpack.c.0.s8 %v380
      %v382 = vlaneseq
      %v383 = vshrl.u32 %v382, 7
      %v384 = vsub.s32 %v381, %v383
      %v385 = vrot.slane %v256, %v384
      %v387 = vunpack.c.l.s4 1983009808
      %v388 = vunpack.c.0.s8 %v387
      %v389 = vlaneseq
      %v390 = vshrl.u32 %v389, 7
      %v391 = vsub.s32 %v388, %v390
      %v392 = vrot.slane %v257, %v391
      %v393 = vcombine.low %v385, %v392
      %v394 = vld [vmem:[%s1] sm:$0xff]
      %v395 = vld [vmem:[%s1 + $0x8] sm:$0xff]
      %v396 = vld [vmem:[%s1 + $0x10] sm:$0xff]
      %v397 = vld [vmem:[%s1 + $0x18] sm:$0xff]
      %v398 = vld [vmem:[%s1 + $0x20] sm:$0xff]
      %v399 = vld [vmem:[%s1 + $0x28] sm:$0xff]
      %v400 = vld [vmem:[%s1 + $0x30] sm:$0xff]
      %v401 = vld [vmem:[%s1 + $0x38] sm:$0xff]
      %v402 = vld [vmem:[%s1 + $0x40] sm:$0xff]
      %v403 = vld [vmem:[%s1 + $0x48] sm:$0xff]
      %v404 = vld [vmem:[%s1 + $0x50] sm:$0xff]
      %v405 = vld [vmem:[%s1 + $0x58] sm:$0xff]
      %v406 = vld [vmem:[%s1 + $0x60] sm:$0xff]
      %v407 = vld [vmem:[%s1 + $0x68] sm:$0xff]
      %v408 = vld [vmem:[%s1 + $0x70] sm:$0xff]
      %v409 = vld [vmem:[%s1 + $0x78] sm:$0xff]
      %v410 = vld [vmem:[%s1 + $0x80] sm:$0xff]
      %v411 = vld [vmem:[%s1 + $0x88] sm:$0xff]
      %v412 = vld [vmem:[%s1 + $0x90] sm:$0xff]
      %v413 = vld [vmem:[%s1 + $0x98] sm:$0xff]
      %v414 = vld [vmem:[%s1 + $0xa0] sm:$0xff]
      %v415 = vld [vmem:[%s1 + $0xa8] sm:$0xff]
      %v416 = vld [vmem:[%s1 + $0xb0] sm:$0xff]
      %v417 = vld [vmem:[%s1 + $0xb8] sm:$0xff]
      %v418 = vld [vmem:[%s1 + $0xc0] sm:$0xff]
      %v419 = vld [vmem:[%s1 + $0xc8] sm:$0xff]
      %v420 = vld [vmem:[%s1 + $0xd0] sm:$0xff]
      %v421 = vld [vmem:[%s1 + $0xd8] sm:$0xff]
      %v422 = vld [vmem:[%s1 + $0xe0] sm:$0xff]
      %v423 = vld [vmem:[%s1 + $0xe8] sm:$0xff]
      %v424 = vld [vmem:[%s1 + $0xf0] sm:$0xff]
      %v425 = vld [vmem:[%s1 + $0xf8] sm:$0xff]
      %v426 = vld [vmem:[%s1 + $0x100] sm:$0xff]
      %v427 = vld [vmem:[%s1 + $0x108] sm:$0xff]
      %v428 = vld [vmem:[%s1 + $0x110] sm:$0xff]
      %v429 = vld [vmem:[%s1 + $0x118] sm:$0xff]
      %v430 = vld [vmem:[%s1 + $0x120] sm:$0xff]
      %v431 = vld [vmem:[%s1 + $0x128] sm:$0xff]
      %v432 = vld [vmem:[%s1 + $0x130] sm:$0xff]
      %v433 = vld [vmem:[%s1 + $0x138] sm:$0xff]
      %v434 = vld [vmem:[%s1 + $0x140] sm:$0xff]
      %v435 = vld [vmem:[%s1 + $0x148] sm:$0xff]
      %v436 = vld [vmem:[%s1 + $0x150] sm:$0xff]
      %v437 = vld [vmem:[%s1 + $0x158] sm:$0xff]
      %v438 = vld [vmem:[%s1 + $0x160] sm:$0xff]
      %v439 = vld [vmem:[%s1 + $0x168] sm:$0xff]
      %v440 = vld [vmem:[%s1 + $0x170] sm:$0xff]
      %v441 = vld [vmem:[%s1 + $0x178] sm:$0xff]
      %v442 = vld [vmem:[%s1 + $0x180] sm:$0xff]
      %v443 = vld [vmem:[%s1 + $0x188] sm:$0xff]
      %v444 = vld [vmem:[%s1 + $0x190] sm:$0xff]
      %v445 = vld [vmem:[%s1 + $0x198] sm:$0xff]
      %v446 = vld [vmem:[%s1 + $0x1a0] sm:$0xff]
      %v447 = vld [vmem:[%s1 + $0x1a8] sm:$0xff]
      %v448 = vld [vmem:[%s1 + $0x1b0] sm:$0xff]
      %v449 = vld [vmem:[%s1 + $0x1b8] sm:$0xff]
      %v450 = vld [vmem:[%s1 + $0x1c0] sm:$0xff]
      %v451 = vld [vmem:[%s1 + $0x1c8] sm:$0xff]
      %v452 = vld [vmem:[%s1 + $0x1d0] sm:$0xff]
      %v453 = vld [vmem:[%s1 + $0x1d8] sm:$0xff]
      %v454 = vld [vmem:[%s1 + $0x1e0] sm:$0xff]
      %v455 = vld [vmem:[%s1 + $0x1e8] sm:$0xff]
      %v456 = vld [vmem:[%s1 + $0x1f0] sm:$0xff]
      %v457 = vld [vmem:[%s1 + $0x1f8] sm:$0xff]
      %v458 = vld [vmem:[%s1 + $0x200] sm:$0xff]
      %v459 = vld [vmem:[%s1 + $0x208] sm:$0xff]
      %v460 = vld [vmem:[%s1 + $0x210] sm:$0xff]
      %v461 = vld [vmem:[%s1 + $0x218] sm:$0xff]
      %v462 = vld [vmem:[%s1 + $0x220] sm:$0xff]
      %v463 = vld [vmem:[%s1 + $0x228] sm:$0xff]
      %v464 = vld [vmem:[%s1 + $0x230] sm:$0xff]
      %v465 = vld [vmem:[%s1 + $0x238] sm:$0xff]
      %v466 = vld [vmem:[%s1 + $0x240] sm:$0xff]
      %v467 = vld [vmem:[%s1 + $0x248] sm:$0xff]
      %v468 = vld [vmem:[%s1 + $0x250] sm:$0xff]
      %v469 = vld [vmem:[%s1 + $0x258] sm:$0xff]
      %v470 = vld [vmem:[%s1 + $0x260] sm:$0xff]
      %v471 = vld [vmem:[%s1 + $0x268] sm:$0xff]
      %v472 = vld [vmem:[%s1 + $0x270] sm:$0xff]
      %v473 = vld [vmem:[%s1 + $0x278] sm:$0xff]
      %v474 = vld [vmem:[%s1 + $0x280] sm:$0xff]
      %v475 = vld [vmem:[%s1 + $0x288] sm:$0xff]
      %v476 = vld [vmem:[%s1 + $0x290] sm:$0xff]
      %v477 = vld [vmem:[%s1 + $0x298] sm:$0xff]
      %v478 = vld [vmem:[%s1 + $0x2a0] sm:$0xff]
      %v479 = vld [vmem:[%s1 + $0x2a8] sm:$0xff]
      %v480 = vld [vmem:[%s1 + $0x2b0] sm:$0xff]
      %v481 = vld [vmem:[%s1 + $0x2b8] sm:$0xff]
      %v482 = vld [vmem:[%s1 + $0x2c0] sm:$0xff]
      %v483 = vld [vmem:[%s1 + $0x2c8] sm:$0xff]
      %v484 = vld [vmem:[%s1 + $0x2d0] sm:$0xff]
      %v485 = vld [vmem:[%s1 + $0x2d8] sm:$0xff]
      %v486 = vld [vmem:[%s1 + $0x2e0] sm:$0xff]
      %v487 = vld [vmem:[%s1 + $0x2e8] sm:$0xff]
      %v488 = vld [vmem:[%s1 + $0x2f0] sm:$0xff]
      %v489 = vld [vmem:[%s1 + $0x2f8] sm:$0xff]
      %v490 = vld [vmem:[%s1 + $0x300] sm:$0xff]
      %v491 = vld [vmem:[%s1 + $0x308] sm:$0xff]
      %v492 = vld [vmem:[%s1 + $0x310] sm:$0xff]
      %v493 = vld [vmem:[%s1 + $0x318] sm:$0xff]
      %v494 = vld [vmem:[%s1 + $0x320] sm:$0xff]
      %v495 = vld [vmem:[%s1 + $0x328] sm:$0xff]
      %v496 = vld [vmem:[%s1 + $0x330] sm:$0xff]
      %v497 = vld [vmem:[%s1 + $0x338] sm:$0xff]
      %v498 = vld [vmem:[%s1 + $0x340] sm:$0xff]
      %v499 = vld [vmem:[%s1 + $0x348] sm:$0xff]
      %v500 = vld [vmem:[%s1 + $0x350] sm:$0xff]
      %v501 = vld [vmem:[%s1 + $0x358] sm:$0xff]
      %v502 = vld [vmem:[%s1 + $0x360] sm:$0xff]
      %v503 = vld [vmem:[%s1 + $0x368] sm:$0xff]
      %v504 = vld [vmem:[%s1 + $0x370] sm:$0xff]
      %v505 = vld [vmem:[%s1 + $0x378] sm:$0xff]
      %v506 = vld [vmem:[%s1 + $0x380] sm:$0xff]
      %v507 = vld [vmem:[%s1 + $0x388] sm:$0xff]
      %v508 = vld [vmem:[%s1 + $0x390] sm:$0xff]
      %v509 = vld [vmem:[%s1 + $0x398] sm:$0xff]
      %v510 = vld [vmem:[%s1 + $0x3a0] sm:$0xff]
      %v511 = vld [vmem:[%s1 + $0x3a8] sm:$0xff]
      %v512 = vld [vmem:[%s1 + $0x3b0] sm:$0xff]
      %v513 = vld [vmem:[%s1 + $0x3b8] sm:$0xff]
      %v514 = vld [vmem:[%s1 + $0x3c0] sm:$0xff]
      %v515 = vld [vmem:[%s1 + $0x3c8] sm:$0xff]
      %v516 = vld [vmem:[%s1 + $0x3d0] sm:$0xff]
      %v517 = vld [vmem:[%s1 + $0x3d8] sm:$0xff]
      %v518 = vld [vmem:[%s1 + $0x3e0] sm:$0xff]
      %v519 = vld [vmem:[%s1 + $0x3e8] sm:$0xff]
      %v520 = vld [vmem:[%s1 + $0x3f0] sm:$0xff]
      %v521 = vld [vmem:[%s1 + $0x3f8] sm:$0xff]
      %v522 = vcombine.high %v280, %v287
      %v523 = vcombine.high %v295, %v302
      %v524 = vcombine.high %v310, %v317
      %v525 = vcombine.high %v325, %v332
      %v526 = vcombine.high %v340, %v347
      %v527 = vcombine.high %v355, %v362
      %v528 = vcombine.high %v370, %v377
      %v529 = vcombine.high %v385, %v392
      %vm530 = vsmask.f32 1280
      %vm531 = vsmask.f32 3336
      %vm532 = vmor %vm530, %vm531
      %vm533 = vsmask.f32 5392
      %vm534 = vmor %vm532, %vm533
      %vm535 = vsmask.f32 7448
      %vm536 = vmor %vm534, %vm535
      %v538 = vshrl.u32 %v288, 16
      %v540 = vrot.slane %v538, 6
      %v541 = vshll.u32 %v288, 16
      %v543 = vrot.slane %v541, 7
      %v544 = vor.u32 %v540, %v543
      %v545 = vrot.slane %v544, 2
      %v547 = vshll.u32 %v522, 16
      %v549 = vrot.slane %v547, 7
      %v550 = vsel %vm536, %v545, %v549
      %v552 = vshrl.u32 %v303, 16
      %v554 = vrot.slane %v552, 6
      %v555 = vshll.u32 %v303, 16
      %v557 = vrot.slane %v555, 7
      %v558 = vor.u32 %v554, %v557
      %v559 = vrot.slane %v558, 2
      %v561 = vshll.u32 %v523, 16
      %v563 = vrot.slane %v561, 7
      %v564 = vsel %vm536, %v559, %v563
      %v566 = vshrl.u32 %v318, 16
      %v568 = vrot.slane %v566, 6
      %v569 = vshll.u32 %v318, 16
      %v571 = vrot.slane %v569, 7
      %v572 = vor.u32 %v568, %v571
      %v573 = vrot.slane %v572, 2
      %v575 = vshll.u32 %v524, 16
      %v577 = vrot.slane %v575, 7
      %v578 = vsel %vm536, %v573, %v577
      %v580 = vshrl.u32 %v333, 16
      %v582 = vrot.slane %v580, 6
      %v583 = vshll.u32 %v333, 16
      %v585 = vrot.slane %v583, 7
      %v586 = vor.u32 %v582, %v585
      %v587 = vrot.slane %v586, 2
      %v589 = vshll.u32 %v525, 16
      %v591 = vrot.slane %v589, 7
      %v592 = vsel %vm536, %v587, %v591
      %v594 = vshrl.u32 %v348, 16
      %v596 = vrot.slane %v594, 6
      %v597 = vshll.u32 %v348, 16
      %v599 = vrot.slane %v597, 7
      %v600 = vor.u32 %v596, %v599
      %v601 = vrot.slane %v600, 2
      %v603 = vshll.u32 %v526, 16
      %v605 = vrot.slane %v603, 7
      %v606 = vsel %vm536, %v601, %v605
      %v608 = vshrl.u32 %v363, 16
      %v610 = vrot.slane %v608, 6
      %v611 = vshll.u32 %v363, 16
      %v613 = vrot.slane %v611, 7
      %v614 = vor.u32 %v610, %v613
      %v615 = vrot.slane %v614, 2
      %v617 = vshll.u32 %v527, 16
      %v619 = vrot.slane %v617, 7
      %v620 = vsel %vm536, %v615, %v619
      %v622 = vshrl.u32 %v378, 16
      %v624 = vrot.slane %v622, 6
      %v625 = vshll.u32 %v378, 16
      %v627 = vrot.slane %v625, 7
      %v628 = vor.u32 %v624, %v627
      %v629 = vrot.slane %v628, 2
      %v631 = vshll.u32 %v528, 16
      %v633 = vrot.slane %v631, 7
      %v634 = vsel %vm536, %v629, %v633
      %v636 = vshrl.u32 %v393, 16
      %v638 = vrot.slane %v636, 6
      %v639 = vshll.u32 %v393, 16
      %v641 = vrot.slane %v639, 7
      %v642 = vor.u32 %v638, %v641
      %v643 = vrot.slane %v642, 2
      %v645 = vshll.u32 %v529, 16
      %v647 = vrot.slane %v645, 7
      %v648 = vsel %vm536, %v643, %v647
      %s649 = scalar_lea.vmem %s1, 1024
      %v650 = vld [vmem:[%s649] sm:$0xff]
      %v651 = vld [vmem:[%s649 + $0x8] sm:$0xff]
      %v652 = vld [vmem:[%s649 + $0x10] sm:$0xff]
      %v653 = vld [vmem:[%s649 + $0x18] sm:$0xff]
      %v654 = vld [vmem:[%s649 + $0x20] sm:$0xff]
      %v655 = vld [vmem:[%s649 + $0x28] sm:$0xff]
      %v656 = vld [vmem:[%s649 + $0x30] sm:$0xff]
      %v657 = vld [vmem:[%s649 + $0x38] sm:$0xff]
      %v658 = vld [vmem:[%s649 + $0x40] sm:$0xff]
      %v659 = vld [vmem:[%s649 + $0x48] sm:$0xff]
      %v660 = vld [vmem:[%s649 + $0x50] sm:$0xff]
      %v661 = vld [vmem:[%s649 + $0x58] sm:$0xff]
      %v662 = vld [vmem:[%s649 + $0x60] sm:$0xff]
      %v663 = vld [vmem:[%s649 + $0x68] sm:$0xff]
      %v664 = vld [vmem:[%s649 + $0x70] sm:$0xff]
      %v665 = vld [vmem:[%s649 + $0x78] sm:$0xff]
      %v666 = vld [vmem:[%s649 + $0x80] sm:$0xff]
      %v667 = vld [vmem:[%s649 + $0x88] sm:$0xff]
      %v668 = vld [vmem:[%s649 + $0x90] sm:$0xff]
      %v669 = vld [vmem:[%s649 + $0x98] sm:$0xff]
      %v670 = vld [vmem:[%s649 + $0xa0] sm:$0xff]
      %v671 = vld [vmem:[%s649 + $0xa8] sm:$0xff]
      %v672 = vld [vmem:[%s649 + $0xb0] sm:$0xff]
      %v673 = vld [vmem:[%s649 + $0xb8] sm:$0xff]
      %v674 = vld [vmem:[%s649 + $0xc0] sm:$0xff]
      %v675 = vld [vmem:[%s649 + $0xc8] sm:$0xff]
      %v676 = vld [vmem:[%s649 + $0xd0] sm:$0xff]
      %v677 = vld [vmem:[%s649 + $0xd8] sm:$0xff]
      %v678 = vld [vmem:[%s649 + $0xe0] sm:$0xff]
      %v679 = vld [vmem:[%s649 + $0xe8] sm:$0xff]
      %v680 = vld [vmem:[%s649 + $0xf0] sm:$0xff]
      %v681 = vld [vmem:[%s649 + $0xf8] sm:$0xff]
      %v682 = vld [vmem:[%s649 + $0x100] sm:$0xff]
      %v683 = vld [vmem:[%s649 + $0x108] sm:$0xff]
      %v684 = vld [vmem:[%s649 + $0x110] sm:$0xff]
      %v685 = vld [vmem:[%s649 + $0x118] sm:$0xff]
      %v686 = vld [vmem:[%s649 + $0x120] sm:$0xff]
      %v687 = vld [vmem:[%s649 + $0x128] sm:$0xff]
      %v688 = vld [vmem:[%s649 + $0x130] sm:$0xff]
      %v689 = vld [vmem:[%s649 + $0x138] sm:$0xff]
      %v690 = vld [vmem:[%s649 + $0x140] sm:$0xff]
      %v691 = vld [vmem:[%s649 + $0x148] sm:$0xff]
      %v692 = vld [vmem:[%s649 + $0x150] sm:$0xff]
      %v693 = vld [vmem:[%s649 + $0x158] sm:$0xff]
      %v694 = vld [vmem:[%s649 + $0x160] sm:$0xff]
      %v695 = vld [vmem:[%s649 + $0x168] sm:$0xff]
      %v696 = vld [vmem:[%s649 + $0x170] sm:$0xff]
      %v697 = vld [vmem:[%s649 + $0x178] sm:$0xff]
      %v698 = vld [vmem:[%s649 + $0x180] sm:$0xff]
      %v699 = vld [vmem:[%s649 + $0x188] sm:$0xff]
      %v700 = vld [vmem:[%s649 + $0x190] sm:$0xff]
      %v701 = vld [vmem:[%s649 + $0x198] sm:$0xff]
      %v702 = vld [vmem:[%s649 + $0x1a0] sm:$0xff]
      %v703 = vld [vmem:[%s649 + $0x1a8] sm:$0xff]
      %v704 = vld [vmem:[%s649 + $0x1b0] sm:$0xff]
      %v705 = vld [vmem:[%s649 + $0x1b8] sm:$0xff]
      %v706 = vld [vmem:[%s649 + $0x1c0] sm:$0xff]
      %v707 = vld [vmem:[%s649 + $0x1c8] sm:$0xff]
      %v708 = vld [vmem:[%s649 + $0x1d0] sm:$0xff]
      %v709 = vld [vmem:[%s649 + $0x1d8] sm:$0xff]
      %v710 = vld [vmem:[%s649 + $0x1e0] sm:$0xff]
      %v711 = vld [vmem:[%s649 + $0x1e8] sm:$0xff]
      %v712 = vld [vmem:[%s649 + $0x1f0] sm:$0xff]
      %v713 = vld [vmem:[%s649 + $0x1f8] sm:$0xff]
      %v714 = vld [vmem:[%s649 + $0x200] sm:$0xff]
      %v715 = vld [vmem:[%s649 + $0x208] sm:$0xff]
      %v716 = vld [vmem:[%s649 + $0x210] sm:$0xff]
      %v717 = vld [vmem:[%s649 + $0x218] sm:$0xff]
      %v718 = vld [vmem:[%s649 + $0x220] sm:$0xff]
      %v719 = vld [vmem:[%s649 + $0x228] sm:$0xff]
      %v720 = vld [vmem:[%s649 + $0x230] sm:$0xff]
      %v721 = vld [vmem:[%s649 + $0x238] sm:$0xff]
      %v722 = vld [vmem:[%s649 + $0x240] sm:$0xff]
      %v723 = vld [vmem:[%s649 + $0x248] sm:$0xff]
      %v724 = vld [vmem:[%s649 + $0x250] sm:$0xff]
      %v725 = vld [vmem:[%s649 + $0x258] sm:$0xff]
      %v726 = vld [vmem:[%s649 + $0x260] sm:$0xff]
      %v727 = vld [vmem:[%s649 + $0x268] sm:$0xff]
      %v728 = vld [vmem:[%s649 + $0x270] sm:$0xff]
      %v729 = vld [vmem:[%s649 + $0x278] sm:$0xff]
      %v730 = vld [vmem:[%s649 + $0x280] sm:$0xff]
      %v731 = vld [vmem:[%s649 + $0x288] sm:$0xff]
      %v732 = vld [vmem:[%s649 + $0x290] sm:$0xff]
      %v733 = vld [vmem:[%s649 + $0x298] sm:$0xff]
      %v734 = vld [vmem:[%s649 + $0x2a0] sm:$0xff]
      %v735 = vld [vmem:[%s649 + $0x2a8] sm:$0xff]
      %v736 = vld [vmem:[%s649 + $0x2b0] sm:$0xff]
      %v737 = vld [vmem:[%s649 + $0x2b8] sm:$0xff]
      %v738 = vld [vmem:[%s649 + $0x2c0] sm:$0xff]
      %v739 = vld [vmem:[%s649 + $0x2c8] sm:$0xff]
      %v740 = vld [vmem:[%s649 + $0x2d0] sm:$0xff]
      %v741 = vld [vmem:[%s649 + $0x2d8] sm:$0xff]
      %v742 = vld [vmem:[%s649 + $0x2e0] sm:$0xff]
      %v743 = vld [vmem:[%s649 + $0x2e8] sm:$0xff]
      %v744 = vld [vmem:[%s649 + $0x2f0] sm:$0xff]
      %v745 = vld [vmem:[%s649 + $0x2f8] sm:$0xff]
      %v746 = vld [vmem:[%s649 + $0x300] sm:$0xff]
      %v747 = vld [vmem:[%s649 + $0x308] sm:$0xff]
      %v748 = vld [vmem:[%s649 + $0x310] sm:$0xff]
      %v749 = vld [vmem:[%s649 + $0x318] sm:$0xff]
      %v750 = vld [vmem:[%s649 + $0x320] sm:$0xff]
      %v751 = vld [vmem:[%s649 + $0x328] sm:$0xff]
      %v752 = vld [vmem:[%s649 + $0x330] sm:$0xff]
      %v753 = vld [vmem:[%s649 + $0x338] sm:$0xff]
      %v754 = vld [vmem:[%s649 + $0x340] sm:$0xff]
      %v755 = vld [vmem:[%s649 + $0x348] sm:$0xff]
      %v756 = vld [vmem:[%s649 + $0x350] sm:$0xff]
      %v757 = vld [vmem:[%s649 + $0x358] sm:$0xff]
      %v758 = vld [vmem:[%s649 + $0x360] sm:$0xff]
      %v759 = vld [vmem:[%s649 + $0x368] sm:$0xff]
      %v760 = vld [vmem:[%s649 + $0x370] sm:$0xff]
      %v761 = vld [vmem:[%s649 + $0x378] sm:$0xff]
      %v762 = vld [vmem:[%s649 + $0x380] sm:$0xff]
      %v763 = vld [vmem:[%s649 + $0x388] sm:$0xff]
      %v764 = vld [vmem:[%s649 + $0x390] sm:$0xff]
      %v765 = vld [vmem:[%s649 + $0x398] sm:$0xff]
      %v766 = vld [vmem:[%s649 + $0x3a0] sm:$0xff]
      %v767 = vld [vmem:[%s649 + $0x3a8] sm:$0xff]
      %v768 = vld [vmem:[%s649 + $0x3b0] sm:$0xff]
      %v769 = vld [vmem:[%s649 + $0x3b8] sm:$0xff]
      %v770 = vld [vmem:[%s649 + $0x3c0] sm:$0xff]
      %v771 = vld [vmem:[%s649 + $0x3c8] sm:$0xff]
      %v772 = vld [vmem:[%s649 + $0x3d0] sm:$0xff]
      %v773 = vld [vmem:[%s649 + $0x3d8] sm:$0xff]
      %v774 = vld [vmem:[%s649 + $0x3e0] sm:$0xff]
      %v775 = vld [vmem:[%s649 + $0x3e8] sm:$0xff]
      %v776 = vld [vmem:[%s649 + $0x3f0] sm:$0xff]
      %v777 = vld [vmem:[%s649 + $0x3f8] sm:$0xff]
      %v778 = vcombine.low %v550, %v578
      %v779 = vcombine.high %v550, %v578
      %v780 = vcombine.low %v606, %v634
      %v781 = vcombine.high %v606, %v634
      %v783 = vunpack.c.l.s4 1983009808
      %v784 = vunpack.c.0.s8 %v783
      %v785 = vlaneseq
      %v786 = vshrl.u32 %v785, 7
      %v787 = vsub.s32 %v784, %v786
      %v788 = vrot.slane %v778, %v787
      %v790 = vunpack.c.l.s4 1983009808
      %v791 = vunpack.c.0.s8 %v790
      %v792 = vlaneseq
      %v793 = vshrl.u32 %v792, 7
      %v794 = vsub.s32 %v791, %v793
      %v795 = vrot.slane %v779, %v794
      %v797 = vunpack.c.l.s4 1983009808
      %v798 = vunpack.c.0.s8 %v797
      %v799 = vlaneseq
      %v800 = vshrl.u32 %v799, 7
      %v801 = vsub.s32 %v798, %v800
      %v802 = vrot.slane %v780, %v801
      %v804 = vunpack.c.l.s4 1983009808
      %v805 = vunpack.c.0.s8 %v804
      %v806 = vlaneseq
      %v807 = vshrl.u32 %v806, 7
      %v808 = vsub.s32 %v805, %v807
      %v809 = vrot.slane %v781, %v808
      %v810 = vcombine.low %v788, %v802
      %v811 = vcombine.high %v788, %v802
      %v812 = vcombine.low %v795, %v809
      %v813 = vcombine.high %v795, %v809
      %v814 = vcombine.low %v564, %v592
      %v815 = vcombine.high %v564, %v592
      %v816 = vcombine.low %v620, %v648
      %v817 = vcombine.high %v620, %v648
      %v819 = vunpack.c.l.s4 1983009808
      %v820 = vunpack.c.0.s8 %v819
      %v821 = vlaneseq
      %v822 = vshrl.u32 %v821, 7
      %v823 = vsub.s32 %v820, %v822
      %v824 = vrot.slane %v814, %v823
      %v826 = vunpack.c.l.s4 1983009808
      %v827 = vunpack.c.0.s8 %v826
      %v828 = vlaneseq
      %v829 = vshrl.u32 %v828, 7
      %v830 = vsub.s32 %v827, %v829
      %v831 = vrot.slane %v815, %v830
      %v833 = vunpack.c.l.s4 1983009808
      %v834 = vunpack.c.0.s8 %v833
      %v835 = vlaneseq
      %v836 = vshrl.u32 %v835, 7
      %v837 = vsub.s32 %v834, %v836
      %v838 = vrot.slane %v816, %v837
      %v840 = vunpack.c.l.s4 1983009808
      %v841 = vunpack.c.0.s8 %v840
      %v842 = vlaneseq
      %v843 = vshrl.u32 %v842, 7
      %v844 = vsub.s32 %v841, %v843
      %v845 = vrot.slane %v817, %v844
      %v846 = vcombine.low %v824, %v838
      %v847 = vcombine.high %v824, %v838
      %v848 = vcombine.low %v831, %v845
      %v849 = vcombine.high %v831, %v845
      %v986 = vunpack.c.l.b16 %v650
      %v987 = vunpack.c.h.b16 %v650
      %v988 = vunpack.c.l.b16 %v651
      %v989 = vunpack.c.h.b16 %v651
      %v990 = vunpack.c.l.b16 %v652
      %v991 = vunpack.c.h.b16 %v652
      %v992 = vunpack.c.l.b16 %v653
      %v993 = vunpack.c.h.b16 %v653
      %v994 = vunpack.c.l.b16 %v654
      %v995 = vunpack.c.h.b16 %v654
      %v996 = vunpack.c.l.b16 %v655
      %v997 = vunpack.c.h.b16 %v655
      %v998 = vunpack.c.l.b16 %v656
      %v999 = vunpack.c.h.b16 %v656
      %v1000 = vunpack.c.l.b16 %v657
      %v1001 = vunpack.c.h.b16 %v657
      %v1002 = vunpack.c.l.b16 %v658
      %v1003 = vunpack.c.h.b16 %v658
      %v1004 = vunpack.c.l.b16 %v659
      %v1005 = vunpack.c.h.b16 %v659
      %v1006 = vunpack.c.l.b16 %v660
      %v1007 = vunpack.c.h.b16 %v660
      %v1008 = vunpack.c.l.b16 %v661
      %v1009 = vunpack.c.h.b16 %v661
      %v1010 = vunpack.c.l.b16 %v662
      %v1011 = vunpack.c.h.b16 %v662
      %v1012 = vunpack.c.l.b16 %v663
      %v1013 = vunpack.c.h.b16 %v663
      %v1014 = vunpack.c.l.b16 %v664
      %v1015 = vunpack.c.h.b16 %v664
      %v1016 = vunpack.c.l.b16 %v665
      %v1017 = vunpack.c.h.b16 %v665
      %v1018 = vunpack.c.l.b16 %v666
      %v1019 = vunpack.c.h.b16 %v666
      %v1020 = vunpack.c.l.b16 %v667
      %v1021 = vunpack.c.h.b16 %v667
      %v1022 = vunpack.c.l.b16 %v668
      %v1023 = vunpack.c.h.b16 %v668
      %v1024 = vunpack.c.l.b16 %v669
      %v1025 = vunpack.c.h.b16 %v669
      %v1026 = vunpack.c.l.b16 %v670
      %v1027 = vunpack.c.h.b16 %v670
      %v1028 = vunpack.c.l.b16 %v671
      %v1029 = vunpack.c.h.b16 %v671
      %v1030 = vunpack.c.l.b16 %v672
      %v1031 = vunpack.c.h.b16 %v672
      %v1032 = vunpack.c.l.b16 %v673
      %v1033 = vunpack.c.h.b16 %v673
      %v1034 = vunpack.c.l.b16 %v674
      %v1035 = vunpack.c.h.b16 %v674
      %v1036 = vunpack.c.l.b16 %v675
      %v1037 = vunpack.c.h.b16 %v675
      %v1038 = vunpack.c.l.b16 %v676
      %v1039 = vunpack.c.h.b16 %v676
      %v1040 = vunpack.c.l.b16 %v677
      %v1041 = vunpack.c.h.b16 %v677
      %v1042 = vunpack.c.l.b16 %v678
      %v1043 = vunpack.c.h.b16 %v678
      %v1044 = vunpack.c.l.b16 %v679
      %v1045 = vunpack.c.h.b16 %v679
      %v1046 = vunpack.c.l.b16 %v680
      %v1047 = vunpack.c.h.b16 %v680
      %v1048 = vunpack.c.l.b16 %v681
      %v1049 = vunpack.c.h.b16 %v681
      %v1050 = vunpack.c.l.b16 %v682
      %v1051 = vunpack.c.h.b16 %v682
      %v1052 = vunpack.c.l.b16 %v683
      %v1053 = vunpack.c.h.b16 %v683
      %v1054 = vunpack.c.l.b16 %v684
      %v1055 = vunpack.c.h.b16 %v684
      %v1056 = vunpack.c.l.b16 %v685
      %v1057 = vunpack.c.h.b16 %v685
      %v1058 = vunpack.c.l.b16 %v686
      %v1059 = vunpack.c.h.b16 %v686
      %v1060 = vunpack.c.l.b16 %v687
      %v1061 = vunpack.c.h.b16 %v687
      %v1062 = vunpack.c.l.b16 %v688
      %v1063 = vunpack.c.h.b16 %v688
      %v1064 = vunpack.c.l.b16 %v689
      %v1065 = vunpack.c.h.b16 %v689
      %v1066 = vunpack.c.l.b16 %v690
      %v1067 = vunpack.c.h.b16 %v690
      %v1068 = vunpack.c.l.b16 %v691
      %v1069 = vunpack.c.h.b16 %v691
      %v1070 = vunpack.c.l.b16 %v692
      %v1071 = vunpack.c.h.b16 %v692
      %v1072 = vunpack.c.l.b16 %v693
      %v1073 = vunpack.c.h.b16 %v693
      %v1074 = vunpack.c.l.b16 %v694
      %v1075 = vunpack.c.h.b16 %v694
      %v1076 = vunpack.c.l.b16 %v695
      %v1077 = vunpack.c.h.b16 %v695
      %v1078 = vunpack.c.l.b16 %v696
      %v1079 = vunpack.c.h.b16 %v696
      %v1080 = vunpack.c.l.b16 %v697
      %v1081 = vunpack.c.h.b16 %v697
      %v1082 = vunpack.c.l.b16 %v698
      %v1083 = vunpack.c.h.b16 %v698
      %v1084 = vunpack.c.l.b16 %v699
      %v1085 = vunpack.c.h.b16 %v699
      %v1086 = vunpack.c.l.b16 %v700
      %v1087 = vunpack.c.h.b16 %v700
      %v1088 = vunpack.c.l.b16 %v701
      %v1089 = vunpack.c.h.b16 %v701
      %v1090 = vunpack.c.l.b16 %v702
      %v1091 = vunpack.c.h.b16 %v702
      %v1092 = vunpack.c.l.b16 %v703
      %v1093 = vunpack.c.h.b16 %v703
      %v1094 = vunpack.c.l.b16 %v704
      %v1095 = vunpack.c.h.b16 %v704
      %v1096 = vunpack.c.l.b16 %v705
      %v1097 = vunpack.c.h.b16 %v705
      %v1098 = vunpack.c.l.b16 %v706
      %v1099 = vunpack.c.h.b16 %v706
      %v1100 = vunpack.c.l.b16 %v707
      %v1101 = vunpack.c.h.b16 %v707
      %v1102 = vunpack.c.l.b16 %v708
      %v1103 = vunpack.c.h.b16 %v708
      %v1104 = vunpack.c.l.b16 %v709
      %v1105 = vunpack.c.h.b16 %v709
      %v1106 = vunpack.c.l.b16 %v710
      %v1107 = vunpack.c.h.b16 %v710
      %v1108 = vunpack.c.l.b16 %v711
      %v1109 = vunpack.c.h.b16 %v711
      %v1110 = vunpack.c.l.b16 %v712
      %v1111 = vunpack.c.h.b16 %v712
      %v1112 = vunpack.c.l.b16 %v713
      %v1113 = vunpack.c.h.b16 %v713
      %v1114 = vunpack.c.l.b16 %v714
      %v1115 = vunpack.c.h.b16 %v714
      %v1116 = vunpack.c.l.b16 %v715
      %v1117 = vunpack.c.h.b16 %v715
      %v1118 = vunpack.c.l.b16 %v716
      %v1119 = vunpack.c.h.b16 %v716
      %v1120 = vunpack.c.l.b16 %v717
      %v1121 = vunpack.c.h.b16 %v717
      %v1122 = vunpack.c.l.b16 %v718
      %v1123 = vunpack.c.h.b16 %v718
      %v1124 = vunpack.c.l.b16 %v719
      %v1125 = vunpack.c.h.b16 %v719
      %v1126 = vunpack.c.l.b16 %v720
      %v1127 = vunpack.c.h.b16 %v720
      %v1128 = vunpack.c.l.b16 %v721
      %v1129 = vunpack.c.h.b16 %v721
      %v1130 = vunpack.c.l.b16 %v722
      %v1131 = vunpack.c.h.b16 %v722
      %v1132 = vunpack.c.l.b16 %v723
      %v1133 = vunpack.c.h.b16 %v723
      %v1134 = vunpack.c.l.b16 %v724
      %v1135 = vunpack.c.h.b16 %v724
      %v1136 = vunpack.c.l.b16 %v725
      %v1137 = vunpack.c.h.b16 %v725
      %v1138 = vunpack.c.l.b16 %v726
      %v1139 = vunpack.c.h.b16 %v726
      %v1140 = vunpack.c.l.b16 %v727
      %v1141 = vunpack.c.h.b16 %v727
      %v1142 = vunpack.c.l.b16 %v728
      %v1143 = vunpack.c.h.b16 %v728
      %v1144 = vunpack.c.l.b16 %v729
      %v1145 = vunpack.c.h.b16 %v729
      %v1146 = vunpack.c.l.b16 %v730
      %v1147 = vunpack.c.h.b16 %v730
      %v1148 = vunpack.c.l.b16 %v731
      %v1149 = vunpack.c.h.b16 %v731
      %v1150 = vunpack.c.l.b16 %v732
      %v1151 = vunpack.c.h.b16 %v732
      %v1152 = vunpack.c.l.b16 %v733
      %v1153 = vunpack.c.h.b16 %v733
      %v1154 = vunpack.c.l.b16 %v734
      %v1155 = vunpack.c.h.b16 %v734
      %v1156 = vunpack.c.l.b16 %v735
      %v1157 = vunpack.c.h.b16 %v735
      %v1158 = vunpack.c.l.b16 %v736
      %v1159 = vunpack.c.h.b16 %v736
      %v1160 = vunpack.c.l.b16 %v737
      %v1161 = vunpack.c.h.b16 %v737
      %v1162 = vunpack.c.l.b16 %v738
      %v1163 = vunpack.c.h.b16 %v738
      %v1164 = vunpack.c.l.b16 %v739
      %v1165 = vunpack.c.h.b16 %v739
      %v1166 = vunpack.c.l.b16 %v740
      %v1167 = vunpack.c.h.b16 %v740
      %v1168 = vunpack.c.l.b16 %v741
      %v1169 = vunpack.c.h.b16 %v741
      %v1170 = vunpack.c.l.b16 %v742
      %v1171 = vunpack.c.h.b16 %v742
      %v1172 = vunpack.c.l.b16 %v743
      %v1173 = vunpack.c.h.b16 %v743
      %v1174 = vunpack.c.l.b16 %v744
      %v1175 = vunpack.c.h.b16 %v744
      %v1176 = vunpack.c.l.b16 %v745
      %v1177 = vunpack.c.h.b16 %v745
      %v1178 = vunpack.c.l.b16 %v746
      %v1179 = vunpack.c.h.b16 %v746
      %v1180 = vunpack.c.l.b16 %v747
      %v1181 = vunpack.c.h.b16 %v747
      %v1182 = vunpack.c.l.b16 %v748
      %v1183 = vunpack.c.h.b16 %v748
      %v1184 = vunpack.c.l.b16 %v749
      %v1185 = vunpack.c.h.b16 %v749
      %v1186 = vunpack.c.l.b16 %v750
      %v1187 = vunpack.c.h.b16 %v750
      %v1188 = vunpack.c.l.b16 %v751
      %v1189 = vunpack.c.h.b16 %v751
      %v1190 = vunpack.c.l.b16 %v752
      %v1191 = vunpack.c.h.b16 %v752
      %v1192 = vunpack.c.l.b16 %v753
      %v1193 = vunpack.c.h.b16 %v753
      %v1194 = vunpack.c.l.b16 %v754
      %v1195 = vunpack.c.h.b16 %v754
      %v1196 = vunpack.c.l.b16 %v755
      %v1197 = vunpack.c.h.b16 %v755
      %v1198 = vunpack.c.l.b16 %v756
      %v1199 = vunpack.c.h.b16 %v756
      %v1200 = vunpack.c.l.b16 %v757
      %v1201 = vunpack.c.h.b16 %v757
      %v1202 = vunpack.c.l.b16 %v758
      %v1203 = vunpack.c.h.b16 %v758
      %v1204 = vunpack.c.l.b16 %v759
      %v1205 = vunpack.c.h.b16 %v759
      %v1206 = vunpack.c.l.b16 %v760
      %v1207 = vunpack.c.h.b16 %v760
      %v1208 = vunpack.c.l.b16 %v761
      %v1209 = vunpack.c.h.b16 %v761
      %v1210 = vunpack.c.l.b16 %v762
      %v1211 = vunpack.c.h.b16 %v762
      %v1212 = vunpack.c.l.b16 %v763
      %v1213 = vunpack.c.h.b16 %v763
      %v1214 = vunpack.c.l.b16 %v764
      %v1215 = vunpack.c.h.b16 %v764
      %v1216 = vunpack.c.l.b16 %v765
      %v1217 = vunpack.c.h.b16 %v765
      %v1218 = vunpack.c.l.b16 %v766
      %v1219 = vunpack.c.h.b16 %v766
      %v1220 = vunpack.c.l.b16 %v767
      %v1221 = vunpack.c.h.b16 %v767
      %v1222 = vunpack.c.l.b16 %v768
      %v1223 = vunpack.c.h.b16 %v768
      %v1224 = vunpack.c.l.b16 %v769
      %v1225 = vunpack.c.h.b16 %v769
      %v1226 = vunpack.c.l.b16 %v770
      %v1227 = vunpack.c.h.b16 %v770
      %v1228 = vunpack.c.l.b16 %v771
      %v1229 = vunpack.c.h.b16 %v771
      %v1230 = vunpack.c.l.b16 %v772
      %v1231 = vunpack.c.h.b16 %v772
      %v1232 = vunpack.c.l.b16 %v773
      %v1233 = vunpack.c.h.b16 %v773
      %v1234 = vunpack.c.l.b16 %v774
      %v1235 = vunpack.c.h.b16 %v774
      %v1236 = vunpack.c.l.b16 %v775
      %v1237 = vunpack.c.h.b16 %v775
      %v1238 = vunpack.c.l.b16 %v776
      %v1239 = vunpack.c.h.b16 %v776
      %v1240 = vunpack.c.l.b16 %v777
      %v1241 = vunpack.c.h.b16 %v777
      %v1242 = vpack.c.b16 %v988, %v986
      %v1243 = vpack.c.b16 %v989, %v987
      %v1244 = vpack.c.b16 %v992, %v990
      %v1245 = vpack.c.b16 %v993, %v991
      %v1246 = vpack.c.b16 %v996, %v994
      %v1247 = vpack.c.b16 %v997, %v995
      %v1248 = vpack.c.b16 %v1000, %v998
      %v1249 = vpack.c.b16 %v1001, %v999
      %v1250 = vpack.c.b16 %v1004, %v1002
      %v1251 = vpack.c.b16 %v1005, %v1003
      %v1252 = vpack.c.b16 %v1008, %v1006
      %v1253 = vpack.c.b16 %v1009, %v1007
      %v1254 = vpack.c.b16 %v1012, %v1010
      %v1255 = vpack.c.b16 %v1013, %v1011
      %v1256 = vpack.c.b16 %v1016, %v1014
      %v1257 = vpack.c.b16 %v1017, %v1015
      %v1258 = vpack.c.b16 %v1020, %v1018
      %v1259 = vpack.c.b16 %v1021, %v1019
      %v1260 = vpack.c.b16 %v1024, %v1022
      %v1261 = vpack.c.b16 %v1025, %v1023
      %v1262 = vpack.c.b16 %v1028, %v1026
      %v1263 = vpack.c.b16 %v1029, %v1027
      %v1264 = vpack.c.b16 %v1032, %v1030
      %v1265 = vpack.c.b16 %v1033, %v1031
      %v1266 = vpack.c.b16 %v1036, %v1034
      %v1267 = vpack.c.b16 %v1037, %v1035
      %v1268 = vpack.c.b16 %v1040, %v1038
      %v1269 = vpack.c.b16 %v1041, %v1039
      %v1270 = vpack.c.b16 %v1044, %v1042
      %v1271 = vpack.c.b16 %v1045, %v1043
      %v1272 = vpack.c.b16 %v1048, %v1046
      %v1273 = vpack.c.b16 %v1049, %v1047
      %v1274 = vpack.c.b16 %v1052, %v1050
      %v1275 = vpack.c.b16 %v1053, %v1051
      %v1276 = vpack.c.b16 %v1056, %v1054
      %v1277 = vpack.c.b16 %v1057, %v1055
      %v1278 = vpack.c.b16 %v1060, %v1058
      %v1279 = vpack.c.b16 %v1061, %v1059
      %v1280 = vpack.c.b16 %v1064, %v1062
      %v1281 = vpack.c.b16 %v1065, %v1063
      %v1282 = vpack.c.b16 %v1068, %v1066
      %v1283 = vpack.c.b16 %v1069, %v1067
      %v1284 = vpack.c.b16 %v1072, %v1070
      %v1285 = vpack.c.b16 %v1073, %v1071
      %v1286 = vpack.c.b16 %v1076, %v1074
      %v1287 = vpack.c.b16 %v1077, %v1075
      %v1288 = vpack.c.b16 %v1080, %v1078
      %v1289 = vpack.c.b16 %v1081, %v1079
      %v1290 = vpack.c.b16 %v1084, %v1082
      %v1291 = vpack.c.b16 %v1085, %v1083
      %v1292 = vpack.c.b16 %v1088, %v1086
      %v1293 = vpack.c.b16 %v1089, %v1087
      %v1294 = vpack.c.b16 %v1092, %v1090
      %v1295 = vpack.c.b16 %v1093, %v1091
      %v1296 = vpack.c.b16 %v1096, %v1094
      %v1297 = vpack.c.b16 %v1097, %v1095
      %v1298 = vpack.c.b16 %v1100, %v1098
      %v1299 = vpack.c.b16 %v1101, %v1099
      %v1300 = vpack.c.b16 %v1104, %v1102
      %v1301 = vpack.c.b16 %v1105, %v1103
      %v1302 = vpack.c.b16 %v1108, %v1106
      %v1303 = vpack.c.b16 %v1109, %v1107
      %v1304 = vpack.c.b16 %v1112, %v1110
      %v1305 = vpack.c.b16 %v1113, %v1111
      %v1306 = vpack.c.b16 %v1116, %v1114
      %v1307 = vpack.c.b16 %v1117, %v1115
      %v1308 = vpack.c.b16 %v1120, %v1118
      %v1309 = vpack.c.b16 %v1121, %v1119
      %v1310 = vpack.c.b16 %v1124, %v1122
      %v1311 = vpack.c.b16 %v1125, %v1123
      %v1312 = vpack.c.b16 %v1128, %v1126
      %v1313 = vpack.c.b16 %v1129, %v1127
      %v1314 = vpack.c.b16 %v1132, %v1130
      %v1315 = vpack.c.b16 %v1133, %v1131
      %v1316 = vpack.c.b16 %v1136, %v1134
      %v1317 = vpack.c.b16 %v1137, %v1135
      %v1318 = vpack.c.b16 %v1140, %v1138
      %v1319 = vpack.c.b16 %v1141, %v1139
      %v1320 = vpack.c.b16 %v1144, %v1142
      %v1321 = vpack.c.b16 %v1145, %v1143
      %v1322 = vpack.c.b16 %v1148, %v1146
      %v1323 = vpack.c.b16 %v1149, %v1147
      %v1324 = vpack.c.b16 %v1152, %v1150
      %v1325 = vpack.c.b16 %v1153, %v1151
      %v1326 = vpack.c.b16 %v1156, %v1154
      %v1327 = vpack.c.b16 %v1157, %v1155
      %v1328 = vpack.c.b16 %v1160, %v1158
      %v1329 = vpack.c.b16 %v1161, %v1159
      %v1330 = vpack.c.b16 %v1164, %v1162
      %v1331 = vpack.c.b16 %v1165, %v1163
      %v1332 = vpack.c.b16 %v1168, %v1166
      %v1333 = vpack.c.b16 %v1169, %v1167
      %v1334 = vpack.c.b16 %v1172, %v1170
      %v1335 = vpack.c.b16 %v1173, %v1171
      %v1336 = vpack.c.b16 %v1176, %v1174
      %v1337 = vpack.c.b16 %v1177, %v1175
      %v1338 = vpack.c.b16 %v1180, %v1178
      %v1339 = vpack.c.b16 %v1181, %v1179
      %v1340 = vpack.c.b16 %v1184, %v1182
      %v1341 = vpack.c.b16 %v1185, %v1183
      %v1342 = vpack.c.b16 %v1188, %v1186
      %v1343 = vpack.c.b16 %v1189, %v1187
      %v1344 = vpack.c.b16 %v1192, %v1190
      %v1345 = vpack.c.b16 %v1193, %v1191
      %v1346 = vpack.c.b16 %v1196, %v1194
      %v1347 = vpack.c.b16 %v1197, %v1195
      %v1348 = vpack.c.b16 %v1200, %v1198
      %v1349 = vpack.c.b16 %v1201, %v1199
      %v1350 = vpack.c.b16 %v1204, %v1202
      %v1351 = vpack.c.b16 %v1205, %v1203
      %v1352 = vpack.c.b16 %v1208, %v1206
      %v1353 = vpack.c.b16 %v1209, %v1207
      %v1354 = vpack.c.b16 %v1212, %v1210
      %v1355 = vpack.c.b16 %v1213, %v1211
      %v1356 = vpack.c.b16 %v1216, %v1214
      %v1357 = vpack.c.b16 %v1217, %v1215
      %v1358 = vpack.c.b16 %v1220, %v1218
      %v1359 = vpack.c.b16 %v1221, %v1219
      %v1360 = vpack.c.b16 %v1224, %v1222
      %v1361 = vpack.c.b16 %v1225, %v1223
      %v1362 = vpack.c.b16 %v1228, %v1226
      %v1363 = vpack.c.b16 %v1229, %v1227
      %v1364 = vpack.c.b16 %v1232, %v1230
      %v1365 = vpack.c.b16 %v1233, %v1231
      %v1366 = vpack.c.b16 %v1236, %v1234
      %v1367 = vpack.c.b16 %v1237, %v1235
      %v1368 = vpack.c.b16 %v1240, %v1238
      %v1369 = vpack.c.b16 %v1241, %v1239
      %1498 = vmatprep.subr.bf16.mxu0 %v1243
      %1499 = vmatpush1.bf16.msra.mxu0 %v1242
      %1500 = vmatprep.subr.bf16.mxu0 %v1245
      %1501 = vmatpush1.bf16.msra.mxu0 %v1244
      %1502 = vmatprep.subr.bf16.mxu0 %v1247
      %1503 = vmatpush1.bf16.msra.mxu0 %v1246
      %1504 = vmatprep.subr.bf16.mxu0 %v1249
      %1505 = vmatpush1.bf16.msra.mxu0 %v1248
      %1506 = vmatprep.subr.bf16.mxu0 %v1251
      %1507 = vmatpush1.bf16.msra.mxu0 %v1250
      %1508 = vmatprep.subr.bf16.mxu0 %v1253
      %1509 = vmatpush1.bf16.msra.mxu0 %v1252
      %1510 = vmatprep.subr.bf16.mxu0 %v1255
      %1511 = vmatpush1.bf16.msra.mxu0 %v1254
      %1512 = vmatprep.subr.bf16.mxu0 %v1257
      %1513 = vmatpush1.bf16.msra.mxu0 %v1256
      %1514 = vmatprep.subr.bf16.mxu0 %v1259
      %1515 = vmatpush1.bf16.msra.mxu0 %v1258
      %1516 = vmatprep.subr.bf16.mxu0 %v1261
      %1517 = vmatpush1.bf16.msra.mxu0 %v1260
      %1518 = vmatprep.subr.bf16.mxu0 %v1263
      %1519 = vmatpush1.bf16.msra.mxu0 %v1262
      %1520 = vmatprep.subr.bf16.mxu0 %v1265
      %1521 = vmatpush1.bf16.msra.mxu0 %v1264
      %1522 = vmatprep.subr.bf16.mxu0 %v1267
      %1523 = vmatpush1.bf16.msra.mxu0 %v1266
      %1524 = vmatprep.subr.bf16.mxu0 %v1269
      %1525 = vmatpush1.bf16.msra.mxu0 %v1268
      %1526 = vmatprep.subr.bf16.mxu0 %v1271
      %1527 = vmatpush1.bf16.msra.mxu0 %v1270
      %1528 = vmatprep.subr.bf16.mxu0 %v1273
      %1529 = vmatpush1.bf16.msra.mxu0 %v1272
      %1530 = vmatprep.mubr.bf16.mxu0 %v811
      %1531 = vmatmul.mubr.bf16.gmra.mrb[0].mxu0 %v810
      %v1532 = vpop.f32.mrb[0].mxu0
      %v1533 = vadd.f32 0.0, %v1532
      %v1534 = vpop.f32.mrb[0].mxu0
      %v1535 = vadd.f32 0.0, %v1534
      %v1536 = vpop.f32.mrb[0].mxu0
      %v1537 = vadd.f32 0.0, %v1536
      %v1538 = vpop.f32.mrb[0].mxu0
      %v1539 = vadd.f32 0.0, %v1538
      %1540 = vdwg.mxu0
      %1541 = vmatprep.subr.bf16.mxu0 %v1275
      %1542 = vmatpush1.bf16.msra.mxu0 %v1274
      %1543 = vmatprep.subr.bf16.mxu0 %v1277
      %1544 = vmatpush1.bf16.msra.mxu0 %v1276
      %1545 = vmatprep.subr.bf16.mxu0 %v1279
      %1546 = vmatpush1.bf16.msra.mxu0 %v1278
      %1547 = vmatprep.subr.bf16.mxu0 %v1281
      %1548 = vmatpush1.bf16.msra.mxu0 %v1280
      %1549 = vmatprep.subr.bf16.mxu0 %v1283
      %1550 = vmatpush1.bf16.msra.mxu0 %v1282
      %1551 = vmatprep.subr.bf16.mxu0 %v1285
      %1552 = vmatpush1.bf16.msra.mxu0 %v1284
      %1553 = vmatprep.subr.bf16.mxu0 %v1287
      %1554 = vmatpush1.bf16.msra.mxu0 %v1286
      %1555 = vmatprep.subr.bf16.mxu0 %v1289
      %1556 = vmatpush1.bf16.msra.mxu0 %v1288
      %1557 = vmatprep.subr.bf16.mxu0 %v1291
      %1558 = vmatpush1.bf16.msra.mxu0 %v1290
      %1559 = vmatprep.subr.bf16.mxu0 %v1293
      %1560 = vmatpush1.bf16.msra.mxu0 %v1292
      %1561 = vmatprep.subr.bf16.mxu0 %v1295
      %1562 = vmatpush1.bf16.msra.mxu0 %v1294
      %1563 = vmatprep.subr.bf16.mxu0 %v1297
      %1564 = vmatpush1.bf16.msra.mxu0 %v1296
      %1565 = vmatprep.subr.bf16.mxu0 %v1299
      %1566 = vmatpush1.bf16.msra.mxu0 %v1298
      %1567 = vmatprep.subr.bf16.mxu0 %v1301
      %1568 = vmatpush1.bf16.msra.mxu0 %v1300
      %1569 = vmatprep.subr.bf16.mxu0 %v1303
      %1570 = vmatpush1.bf16.msra.mxu0 %v1302
      %1571 = vmatprep.subr.bf16.mxu0 %v1305
      %1572 = vmatpush1.bf16.msra.mxu0 %v1304
      %1573 = vmatprep.mubr.bf16.mxu0 %v813
      %1574 = vmatmul.mubr.bf16.gmra.mrb[0].mxu0 %v812
      %v1575 = vpop.f32.mrb[0].mxu0
      %v1576 = vadd.f32 %v1533, %v1575
      %v1577 = vpop.f32.mrb[0].mxu0
      %v1578 = vadd.f32 %v1535, %v1577
      %v1579 = vpop.f32.mrb[0].mxu0
      %v1580 = vadd.f32 %v1537, %v1579
      %v1581 = vpop.f32.mrb[0].mxu0
      %v1582 = vadd.f32 %v1539, %v1581
      %1583 = vdwg.mxu0
      %1584 = vmatprep.subr.bf16.mxu0 %v1307
      %1585 = vmatpush1.bf16.msra.mxu0 %v1306
      %1586 = vmatprep.subr.bf16.mxu0 %v1309
      %1587 = vmatpush1.bf16.msra.mxu0 %v1308
      %1588 = vmatprep.subr.bf16.mxu0 %v1311
      %1589 = vmatpush1.bf16.msra.mxu0 %v1310
      %1590 = vmatprep.subr.bf16.mxu0 %v1313
      %1591 = vmatpush1.bf16.msra.mxu0 %v1312
      %1592 = vmatprep.subr.bf16.mxu0 %v1315
      %1593 = vmatpush1.bf16.msra.mxu0 %v1314
      %1594 = vmatprep.subr.bf16.mxu0 %v1317
      %1595 = vmatpush1.bf16.msra.mxu0 %v1316
      %1596 = vmatprep.subr.bf16.mxu0 %v1319
      %1597 = vmatpush1.bf16.msra.mxu0 %v1318
      %1598 = vmatprep.subr.bf16.mxu0 %v1321
      %1599 = vmatpush1.bf16.msra.mxu0 %v1320
      %1600 = vmatprep.subr.bf16.mxu0 %v1323
      %1601 = vmatpush1.bf16.msra.mxu0 %v1322
      %1602 = vmatprep.subr.bf16.mxu0 %v1325
      %1603 = vmatpush1.bf16.msra.mxu0 %v1324
      %1604 = vmatprep.subr.bf16.mxu0 %v1327
      %1605 = vmatpush1.bf16.msra.mxu0 %v1326
      %1606 = vmatprep.subr.bf16.mxu0 %v1329
      %1607 = vmatpush1.bf16.msra.mxu0 %v1328
      %1608 = vmatprep.subr.bf16.mxu0 %v1331
      %1609 = vmatpush1.bf16.msra.mxu0 %v1330
      %1610 = vmatprep.subr.bf16.mxu0 %v1333
      %1611 = vmatpush1.bf16.msra.mxu0 %v1332
      %1612 = vmatprep.subr.bf16.mxu0 %v1335
      %1613 = vmatpush1.bf16.msra.mxu0 %v1334
      %1614 = vmatprep.subr.bf16.mxu0 %v1337
      %1615 = vmatpush1.bf16.msra.mxu0 %v1336
      %1616 = vmatprep.mubr.bf16.mxu0 %v847
      %1617 = vmatmul.mubr.bf16.gmra.mrb[0].mxu0 %v846
      %v1618 = vpop.f32.mrb[0].mxu0
      %v1619 = vadd.f32 %v1576, %v1618
      %v1620 = vpop.f32.mrb[0].mxu0
      %v1621 = vadd.f32 %v1578, %v1620
      %v1622 = vpop.f32.mrb[0].mxu0
      %v1623 = vadd.f32 %v1580, %v1622
      %v1624 = vpop.f32.mrb[0].mxu0
      %v1625 = vadd.f32 %v1582, %v1624
      %1626 = vdwg.mxu0
      %1627 = vmatprep.subr.bf16.mxu0 %v1339
      %1628 = vmatpush1.bf16.msra.mxu0 %v1338
      %1629 = vmatprep.subr.bf16.mxu0 %v1341
      %1630 = vmatpush1.bf16.msra.mxu0 %v1340
      %1631 = vmatprep.subr.bf16.mxu0 %v1343
      %1632 = vmatpush1.bf16.msra.mxu0 %v1342
      %1633 = vmatprep.subr.bf16.mxu0 %v1345
      %1634 = vmatpush1.bf16.msra.mxu0 %v1344
      %1635 = vmatprep.subr.bf16.mxu0 %v1347
      %1636 = vmatpush1.bf16.msra.mxu0 %v1346
      %1637 = vmatprep.subr.bf16.mxu0 %v1349
      %1638 = vmatpush1.bf16.msra.mxu0 %v1348
      %1639 = vmatprep.subr.bf16.mxu0 %v1351
      %1640 = vmatpush1.bf16.msra.mxu0 %v1350
      %1641 = vmatprep.subr.bf16.mxu0 %v1353
      %1642 = vmatpush1.bf16.msra.mxu0 %v1352
      %1643 = vmatprep.subr.bf16.mxu0 %v1355
      %1644 = vmatpush1.bf16.msra.mxu0 %v1354
      %1645 = vmatprep.subr.bf16.mxu0 %v1357
      %1646 = vmatpush1.bf16.msra.mxu0 %v1356
      %1647 = vmatprep.subr.bf16.mxu0 %v1359
      %1648 = vmatpush1.bf16.msra.mxu0 %v1358
      %1649 = vmatprep.subr.bf16.mxu0 %v1361
      %1650 = vmatpush1.bf16.msra.mxu0 %v1360
      %1651 = vmatprep.subr.bf16.mxu0 %v1363
      %1652 = vmatpush1.bf16.msra.mxu0 %v1362
      %1653 = vmatprep.subr.bf16.mxu0 %v1365
      %1654 = vmatpush1.bf16.msra.mxu0 %v1364
      %1655 = vmatprep.subr.bf16.mxu0 %v1367
      %1656 = vmatpush1.bf16.msra.mxu0 %v1366
      %1657 = vmatprep.subr.bf16.mxu0 %v1369
      %1658 = vmatpush1.bf16.msra.mxu0 %v1368
      %1659 = vmatprep.mubr.bf16.mxu0 %v849
      %1660 = vmatmul.mubr.bf16.gmra.mrb[0].mxu0 %v848
      %v1661 = vpop.f32.mrb[0].mxu0
      %v1662 = vadd.f32 %v1619, %v1661
      %v1663 = vpop.f32.mrb[0].mxu0
      %v1664 = vadd.f32 %v1621, %v1663
      %v1665 = vpop.f32.mrb[0].mxu0
      %v1666 = vadd.f32 %v1623, %v1665
      %v1667 = vpop.f32.mrb[0].mxu0
      %v1668 = vadd.f32 %v1625, %v1667
      %1669 = vdwg.mxu0
      %v1670 = vcombine.low %v288, %v318
      %v1671 = vcombine.high %v288, %v318
      %v1672 = vcombine.low %v348, %v378
      %v1673 = vcombine.high %v348, %v378
      %v1675 = vunpack.c.l.s4 1983009808
      %v1676 = vunpack.c.0.s8 %v1675
      %v1677 = vlaneseq
      %v1678 = vshrl.u32 %v1677, 7
      %v1679 = vsub.s32 %v1676, %v1678
      %v1680 = vrot.slane %v1670, %v1679
      %v1682 = vunpack.c.l.s4 1983009808
      %v1683 = vunpack.c.0.s8 %v1682
      %v1684 = vlaneseq
      %v1685 = vshrl.u32 %v1684, 7
      %v1686 = vsub.s32 %v1683, %v1685
      %v1687 = vrot.slane %v1671, %v1686
      %v1689 = vunpack.c.l.s4 1983009808
      %v1690 = vunpack.c.0.s8 %v1689
      %v1691 = vlaneseq
      %v1692 = vshrl.u32 %v1691, 7
      %v1693 = vsub.s32 %v1690, %v1692
      %v1694 = vrot.slane %v1672, %v1693
      %v1696 = vunpack.c.l.s4 1983009808
      %v1697 = vunpack.c.0.s8 %v1696
      %v1698 = vlaneseq
      %v1699 = vshrl.u32 %v1698, 7
      %v1700 = vsub.s32 %v1697, %v1699
      %v1701 = vrot.slane %v1673, %v1700
      %v1702 = vcombine.low %v1680, %v1694
      %v1703 = vcombine.high %v1680, %v1694
      %v1704 = vcombine.low %v1687, %v1701
      %v1705 = vcombine.high %v1687, %v1701
      %v1706 = vcombine.low %v303, %v333
      %v1707 = vcombine.high %v303, %v333
      %v1708 = vcombine.low %v363, %v393
      %v1709 = vcombine.high %v363, %v393
      %v1711 = vunpack.c.l.s4 1983009808
      %v1712 = vunpack.c.0.s8 %v1711
      %v1713 = vlaneseq
      %v1714 = vshrl.u32 %v1713, 7
      %v1715 = vsub.s32 %v1712, %v1714
      %v1716 = vrot.slane %v1706, %v1715
      %v1718 = vunpack.c.l.s4 1983009808
      %v1719 = vunpack.c.0.s8 %v1718
      %v1720 = vlaneseq
      %v1721 = vshrl.u32 %v1720, 7
      %v1722 = vsub.s32 %v1719, %v1721
      %v1723 = vrot.slane %v1707, %v1722
      %v1725 = vunpack.c.l.s4 1983009808
      %v1726 = vunpack.c.0.s8 %v1725
      %v1727 = vlaneseq
      %v1728 = vshrl.u32 %v1727, 7
      %v1729 = vsub.s32 %v1726, %v1728
      %v1730 = vrot.slane %v1708, %v1729
      %v1732 = vunpack.c.l.s4 1983009808
      %v1733 = vunpack.c.0.s8 %v1732
      %v1734 = vlaneseq
      %v1735 = vshrl.u32 %v1734, 7
      %v1736 = vsub.s32 %v1733, %v1735
      %v1737 = vrot.slane %v1709, %v1736
      %v1738 = vcombine.low %v1716, %v1730
      %v1739 = vcombine.high %v1716, %v1730
      %v1740 = vcombine.low %v1723, %v1737
      %v1741 = vcombine.high %v1723, %v1737
      %v1878 = vunpack.c.l.b16 %v394
      %v1879 = vunpack.c.h.b16 %v394
      %v1880 = vunpack.c.l.b16 %v395
      %v1881 = vunpack.c.h.b16 %v395
      %v1882 = vunpack.c.l.b16 %v396
      %v1883 = vunpack.c.h.b16 %v396
      %v1884 = vunpack.c.l.b16 %v397
      %v1885 = vunpack.c.h.b16 %v397
      %v1886 = vunpack.c.l.b16 %v398
      %v1887 = vunpack.c.h.b16 %v398
      %v1888 = vunpack.c.l.b16 %v399
      %v1889 = vunpack.c.h.b16 %v399
      %v1890 = vunpack.c.l.b16 %v400
      %v1891 = vunpack.c.h.b16 %v400
      %v1892 = vunpack.c.l.b16 %v401
      %v1893 = vunpack.c.h.b16 %v401
      %v1894 = vunpack.c.l.b16 %v402
      %v1895 = vunpack.c.h.b16 %v402
      %v1896 = vunpack.c.l.b16 %v403
      %v1897 = vunpack.c.h.b16 %v403
      %v1898 = vunpack.c.l.b16 %v404
      %v1899 = vunpack.c.h.b16 %v404
      %v1900 = vunpack.c.l.b16 %v405
      %v1901 = vunpack.c.h.b16 %v405
      %v1902 = vunpack.c.l.b16 %v406
      %v1903 = vunpack.c.h.b16 %v406
      %v1904 = vunpack.c.l.b16 %v407
      %v1905 = vunpack.c.h.b16 %v407
      %v1906 = vunpack.c.l.b16 %v408
      %v1907 = vunpack.c.h.b16 %v408
      %v1908 = vunpack.c.l.b16 %v409
      %v1909 = vunpack.c.h.b16 %v409
      %v1910 = vunpack.c.l.b16 %v410
      %v1911 = vunpack.c.h.b16 %v410
      %v1912 = vunpack.c.l.b16 %v411
      %v1913 = vunpack.c.h.b16 %v411
      %v1914 = vunpack.c.l.b16 %v412
      %v1915 = vunpack.c.h.b16 %v412
      %v1916 = vunpack.c.l.b16 %v413
      %v1917 = vunpack.c.h.b16 %v413
      %v1918 = vunpack.c.l.b16 %v414
      %v1919 = vunpack.c.h.b16 %v414
      %v1920 = vunpack.c.l.b16 %v415
      %v1921 = vunpack.c.h.b16 %v415
      %v1922 = vunpack.c.l.b16 %v416
      %v1923 = vunpack.c.h.b16 %v416
      %v1924 = vunpack.c.l.b16 %v417
      %v1925 = vunpack.c.h.b16 %v417
      %v1926 = vunpack.c.l.b16 %v418
      %v1927 = vunpack.c.h.b16 %v418
      %v1928 = vunpack.c.l.b16 %v419
      %v1929 = vunpack.c.h.b16 %v419
      %v1930 = vunpack.c.l.b16 %v420
      %v1931 = vunpack.c.h.b16 %v420
      %v1932 = vunpack.c.l.b16 %v421
      %v1933 = vunpack.c.h.b16 %v421
      %v1934 = vunpack.c.l.b16 %v422
      %v1935 = vunpack.c.h.b16 %v422
      %v1936 = vunpack.c.l.b16 %v423
      %v1937 = vunpack.c.h.b16 %v423
      %v1938 = vunpack.c.l.b16 %v424
      %v1939 = vunpack.c.h.b16 %v424
      %v1940 = vunpack.c.l.b16 %v425
      %v1941 = vunpack.c.h.b16 %v425
      %v1942 = vunpack.c.l.b16 %v426
      %v1943 = vunpack.c.h.b16 %v426
      %v1944 = vunpack.c.l.b16 %v427
      %v1945 = vunpack.c.h.b16 %v427
      %v1946 = vunpack.c.l.b16 %v428
      %v1947 = vunpack.c.h.b16 %v428
      %v1948 = vunpack.c.l.b16 %v429
      %v1949 = vunpack.c.h.b16 %v429
      %v1950 = vunpack.c.l.b16 %v430
      %v1951 = vunpack.c.h.b16 %v430
      %v1952 = vunpack.c.l.b16 %v431
      %v1953 = vunpack.c.h.b16 %v431
      %v1954 = vunpack.c.l.b16 %v432
      %v1955 = vunpack.c.h.b16 %v432
      %v1956 = vunpack.c.l.b16 %v433
      %v1957 = vunpack.c.h.b16 %v433
      %v1958 = vunpack.c.l.b16 %v434
      %v1959 = vunpack.c.h.b16 %v434
      %v1960 = vunpack.c.l.b16 %v435
      %v1961 = vunpack.c.h.b16 %v435
      %v1962 = vunpack.c.l.b16 %v436
      %v1963 = vunpack.c.h.b16 %v436
      %v1964 = vunpack.c.l.b16 %v437
      %v1965 = vunpack.c.h.b16 %v437
      %v1966 = vunpack.c.l.b16 %v438
      %v1967 = vunpack.c.h.b16 %v438
      %v1968 = vunpack.c.l.b16 %v439
      %v1969 = vunpack.c.h.b16 %v439
      %v1970 = vunpack.c.l.b16 %v440
      %v1971 = vunpack.c.h.b16 %v440
      %v1972 = vunpack.c.l.b16 %v441
      %v1973 = vunpack.c.h.b16 %v441
      %v1974 = vunpack.c.l.b16 %v442
      %v1975 = vunpack.c.h.b16 %v442
      %v1976 = vunpack.c.l.b16 %v443
      %v1977 = vunpack.c.h.b16 %v443
      %v1978 = vunpack.c.l.b16 %v444
      %v1979 = vunpack.c.h.b16 %v444
      %v1980 = vunpack.c.l.b16 %v445
      %v1981 = vunpack.c.h.b16 %v445
      %v1982 = vunpack.c.l.b16 %v446
      %v1983 = vunpack.c.h.b16 %v446
      %v1984 = vunpack.c.l.b16 %v447
      %v1985 = vunpack.c.h.b16 %v447
      %v1986 = vunpack.c.l.b16 %v448
      %v1987 = vunpack.c.h.b16 %v448
      %v1988 = vunpack.c.l.b16 %v449
      %v1989 = vunpack.c.h.b16 %v449
      %v1990 = vunpack.c.l.b16 %v450
      %v1991 = vunpack.c.h.b16 %v450
      %v1992 = vunpack.c.l.b16 %v451
      %v1993 = vunpack.c.h.b16 %v451
      %v1994 = vunpack.c.l.b16 %v452
      %v1995 = vunpack.c.h.b16 %v452
      %v1996 = vunpack.c.l.b16 %v453
      %v1997 = vunpack.c.h.b16 %v453
      %v1998 = vunpack.c.l.b16 %v454
      %v1999 = vunpack.c.h.b16 %v454
      %v2000 = vunpack.c.l.b16 %v455
      %v2001 = vunpack.c.h.b16 %v455
      %v2002 = vunpack.c.l.b16 %v456
      %v2003 = vunpack.c.h.b16 %v456
      %v2004 = vunpack.c.l.b16 %v457
      %v2005 = vunpack.c.h.b16 %v457
      %v2006 = vunpack.c.l.b16 %v458
      %v2007 = vunpack.c.h.b16 %v458
      %v2008 = vunpack.c.l.b16 %v459
      %v2009 = vunpack.c.h.b16 %v459
      %v2010 = vunpack.c.l.b16 %v460
      %v2011 = vunpack.c.h.b16 %v460
      %v2012 = vunpack.c.l.b16 %v461
      %v2013 = vunpack.c.h.b16 %v461
      %v2014 = vunpack.c.l.b16 %v462
      %v2015 = vunpack.c.h.b16 %v462
      %v2016 = vunpack.c.l.b16 %v463
      %v2017 = vunpack.c.h.b16 %v463
      %v2018 = vunpack.c.l.b16 %v464
      %v2019 = vunpack.c.h.b16 %v464
      %v2020 = vunpack.c.l.b16 %v465
      %v2021 = vunpack.c.h.b16 %v465
      %v2022 = vunpack.c.l.b16 %v466
      %v2023 = vunpack.c.h.b16 %v466
      %v2024 = vunpack.c.l.b16 %v467
      %v2025 = vunpack.c.h.b16 %v467
      %v2026 = vunpack.c.l.b16 %v468
      %v2027 = vunpack.c.h.b16 %v468
      %v2028 = vunpack.c.l.b16 %v469
      %v2029 = vunpack.c.h.b16 %v469
      %v2030 = vunpack.c.l.b16 %v470
      %v2031 = vunpack.c.h.b16 %v470
      %v2032 = vunpack.c.l.b16 %v471
      %v2033 = vunpack.c.h.b16 %v471
      %v2034 = vunpack.c.l.b16 %v472
      %v2035 = vunpack.c.h.b16 %v472
      %v2036 = vunpack.c.l.b16 %v473
      %v2037 = vunpack.c.h.b16 %v473
      %v2038 = vunpack.c.l.b16 %v474
      %v2039 = vunpack.c.h.b16 %v474
      %v2040 = vunpack.c.l.b16 %v475
      %v2041 = vunpack.c.h.b16 %v475
      %v2042 = vunpack.c.l.b16 %v476
      %v2043 = vunpack.c.h.b16 %v476
      %v2044 = vunpack.c.l.b16 %v477
      %v2045 = vunpack.c.h.b16 %v477
      %v2046 = vunpack.c.l.b16 %v478
      %v2047 = vunpack.c.h.b16 %v478
      %v2048 = vunpack.c.l.b16 %v479
      %v2049 = vunpack.c.h.b16 %v479
      %v2050 = vunpack.c.l.b16 %v480
      %v2051 = vunpack.c.h.b16 %v480
      %v2052 = vunpack.c.l.b16 %v481
      %v2053 = vunpack.c.h.b16 %v481
      %v2054 = vunpack.c.l.b16 %v482
      %v2055 = vunpack.c.h.b16 %v482
      %v2056 = vunpack.c.l.b16 %v483
      %v2057 = vunpack.c.h.b16 %v483
      %v2058 = vunpack.c.l.b16 %v484
      %v2059 = vunpack.c.h.b16 %v484
      %v2060 = vunpack.c.l.b16 %v485
      %v2061 = vunpack.c.h.b16 %v485
      %v2062 = vunpack.c.l.b16 %v486
      %v2063 = vunpack.c.h.b16 %v486
      %v2064 = vunpack.c.l.b16 %v487
      %v2065 = vunpack.c.h.b16 %v487
      %v2066 = vunpack.c.l.b16 %v488
      %v2067 = vunpack.c.h.b16 %v488
      %v2068 = vunpack.c.l.b16 %v489
      %v2069 = vunpack.c.h.b16 %v489
      %v2070 = vunpack.c.l.b16 %v490
      %v2071 = vunpack.c.h.b16 %v490
      %v2072 = vunpack.c.l.b16 %v491
      %v2073 = vunpack.c.h.b16 %v491
      %v2074 = vunpack.c.l.b16 %v492
      %v2075 = vunpack.c.h.b16 %v492
      %v2076 = vunpack.c.l.b16 %v493
      %v2077 = vunpack.c.h.b16 %v493
      %v2078 = vunpack.c.l.b16 %v494
      %v2079 = vunpack.c.h.b16 %v494
      %v2080 = vunpack.c.l.b16 %v495
      %v2081 = vunpack.c.h.b16 %v495
      %v2082 = vunpack.c.l.b16 %v496
      %v2083 = vunpack.c.h.b16 %v496
      %v2084 = vunpack.c.l.b16 %v497
      %v2085 = vunpack.c.h.b16 %v497
      %v2086 = vunpack.c.l.b16 %v498
      %v2087 = vunpack.c.h.b16 %v498
      %v2088 = vunpack.c.l.b16 %v499
      %v2089 = vunpack.c.h.b16 %v499
      %v2090 = vunpack.c.l.b16 %v500
      %v2091 = vunpack.c.h.b16 %v500
      %v2092 = vunpack.c.l.b16 %v501
      %v2093 = vunpack.c.h.b16 %v501
      %v2094 = vunpack.c.l.b16 %v502
      %v2095 = vunpack.c.h.b16 %v502
      %v2096 = vunpack.c.l.b16 %v503
      %v2097 = vunpack.c.h.b16 %v503
      %v2098 = vunpack.c.l.b16 %v504
      %v2099 = vunpack.c.h.b16 %v504
      %v2100 = vunpack.c.l.b16 %v505
      %v2101 = vunpack.c.h.b16 %v505
      %v2102 = vunpack.c.l.b16 %v506
      %v2103 = vunpack.c.h.b16 %v506
      %v2104 = vunpack.c.l.b16 %v507
      %v2105 = vunpack.c.h.b16 %v507
      %v2106 = vunpack.c.l.b16 %v508
      %v2107 = vunpack.c.h.b16 %v508
      %v2108 = vunpack.c.l.b16 %v509
      %v2109 = vunpack.c.h.b16 %v509
      %v2110 = vunpack.c.l.b16 %v510
      %v2111 = vunpack.c.h.b16 %v510
      %v2112 = vunpack.c.l.b16 %v511
      %v2113 = vunpack.c.h.b16 %v511
      %v2114 = vunpack.c.l.b16 %v512
      %v2115 = vunpack.c.h.b16 %v512
      %v2116 = vunpack.c.l.b16 %v513
      %v2117 = vunpack.c.h.b16 %v513
      %v2118 = vunpack.c.l.b16 %v514
      %v2119 = vunpack.c.h.b16 %v514
      %v2120 = vunpack.c.l.b16 %v515
      %v2121 = vunpack.c.h.b16 %v515
      %v2122 = vunpack.c.l.b16 %v516
      %v2123 = vunpack.c.h.b16 %v516
      %v2124 = vunpack.c.l.b16 %v517
      %v2125 = vunpack.c.h.b16 %v517
      %v2126 = vunpack.c.l.b16 %v518
      %v2127 = vunpack.c.h.b16 %v518
      %v2128 = vunpack.c.l.b16 %v519
      %v2129 = vunpack.c.h.b16 %v519
      %v2130 = vunpack.c.l.b16 %v520
      %v2131 = vunpack.c.h.b16 %v520
      %v2132 = vunpack.c.l.b16 %v521
      %v2133 = vunpack.c.h.b16 %v521
      %v2134 = vpack.c.b16 %v1880, %v1878
      %v2135 = vpack.c.b16 %v1881, %v1879
      %v2136 = vpack.c.b16 %v1884, %v1882
      %v2137 = vpack.c.b16 %v1885, %v1883
      %v2138 = vpack.c.b16 %v1888, %v1886
      %v2139 = vpack.c.b16 %v1889, %v1887
      %v2140 = vpack.c.b16 %v1892, %v1890
      %v2141 = vpack.c.b16 %v1893, %v1891
      %v2142 = vpack.c.b16 %v1896, %v1894
      %v2143 = vpack.c.b16 %v1897, %v1895
      %v2144 = vpack.c.b16 %v1900, %v1898
      %v2145 = vpack.c.b16 %v1901, %v1899
      %v2146 = vpack.c.b16 %v1904, %v1902
      %v2147 = vpack.c.b16 %v1905, %v1903
      %v2148 = vpack.c.b16 %v1908, %v1906
      %v2149 = vpack.c.b16 %v1909, %v1907
      %v2150 = vpack.c.b16 %v1912, %v1910
      %v2151 = vpack.c.b16 %v1913, %v1911
      %v2152 = vpack.c.b16 %v1916, %v1914
      %v2153 = vpack.c.b16 %v1917, %v1915
      %v2154 = vpack.c.b16 %v1920, %v1918
      %v2155 = vpack.c.b16 %v1921, %v1919
      %v2156 = vpack.c.b16 %v1924, %v1922
      %v2157 = vpack.c.b16 %v1925, %v1923
      %v2158 = vpack.c.b16 %v1928, %v1926
      %v2159 = vpack.c.b16 %v1929, %v1927
      %v2160 = vpack.c.b16 %v1932, %v1930
      %v2161 = vpack.c.b16 %v1933, %v1931
      %v2162 = vpack.c.b16 %v1936, %v1934
      %v2163 = vpack.c.b16 %v1937, %v1935
      %v2164 = vpack.c.b16 %v1940, %v1938
      %v2165 = vpack.c.b16 %v1941, %v1939
      %v2166 = vpack.c.b16 %v1944, %v1942
      %v2167 = vpack.c.b16 %v1945, %v1943
      %v2168 = vpack.c.b16 %v1948, %v1946
      %v2169 = vpack.c.b16 %v1949, %v1947
      %v2170 = vpack.c.b16 %v1952, %v1950
      %v2171 = vpack.c.b16 %v1953, %v1951
      %v2172 = vpack.c.b16 %v1956, %v1954
      %v2173 = vpack.c.b16 %v1957, %v1955
      %v2174 = vpack.c.b16 %v1960, %v1958
      %v2175 = vpack.c.b16 %v1961, %v1959
      %v2176 = vpack.c.b16 %v1964, %v1962
      %v2177 = vpack.c.b16 %v1965, %v1963
      %v2178 = vpack.c.b16 %v1968, %v1966
      %v2179 = vpack.c.b16 %v1969, %v1967
      %v2180 = vpack.c.b16 %v1972, %v1970
      %v2181 = vpack.c.b16 %v1973, %v1971
      %v2182 = vpack.c.b16 %v1976, %v1974
      %v2183 = vpack.c.b16 %v1977, %v1975
      %v2184 = vpack.c.b16 %v1980, %v1978
      %v2185 = vpack.c.b16 %v1981, %v1979
      %v2186 = vpack.c.b16 %v1984, %v1982
      %v2187 = vpack.c.b16 %v1985, %v1983
      %v2188 = vpack.c.b16 %v1988, %v1986
      %v2189 = vpack.c.b16 %v1989, %v1987
      %v2190 = vpack.c.b16 %v1992, %v1990
      %v2191 = vpack.c.b16 %v1993, %v1991
      %v2192 = vpack.c.b16 %v1996, %v1994
      %v2193 = vpack.c.b16 %v1997, %v1995
      %v2194 = vpack.c.b16 %v2000, %v1998
      %v2195 = vpack.c.b16 %v2001, %v1999
      %v2196 = vpack.c.b16 %v2004, %v2002
      %v2197 = vpack.c.b16 %v2005, %v2003
      %v2198 = vpack.c.b16 %v2008, %v2006
      %v2199 = vpack.c.b16 %v2009, %v2007
      %v2200 = vpack.c.b16 %v2012, %v2010
      %v2201 = vpack.c.b16 %v2013, %v2011
      %v2202 = vpack.c.b16 %v2016, %v2014
      %v2203 = vpack.c.b16 %v2017, %v2015
      %v2204 = vpack.c.b16 %v2020, %v2018
      %v2205 = vpack.c.b16 %v2021, %v2019
      %v2206 = vpack.c.b16 %v2024, %v2022
      %v2207 = vpack.c.b16 %v2025, %v2023
      %v2208 = vpack.c.b16 %v2028, %v2026
      %v2209 = vpack.c.b16 %v2029, %v2027
      %v2210 = vpack.c.b16 %v2032, %v2030
      %v2211 = vpack.c.b16 %v2033, %v2031
      %v2212 = vpack.c.b16 %v2036, %v2034
      %v2213 = vpack.c.b16 %v2037, %v2035
      %v2214 = vpack.c.b16 %v2040, %v2038
      %v2215 = vpack.c.b16 %v2041, %v2039
      %v2216 = vpack.c.b16 %v2044, %v2042
      %v2217 = vpack.c.b16 %v2045, %v2043
      %v2218 = vpack.c.b16 %v2048, %v2046
      %v2219 = vpack.c.b16 %v2049, %v2047
      %v2220 = vpack.c.b16 %v2052, %v2050
      %v2221 = vpack.c.b16 %v2053, %v2051
      %v2222 = vpack.c.b16 %v2056, %v2054
      %v2223 = vpack.c.b16 %v2057, %v2055
      %v2224 = vpack.c.b16 %v2060, %v2058
      %v2225 = vpack.c.b16 %v2061, %v2059
      %v2226 = vpack.c.b16 %v2064, %v2062
      %v2227 = vpack.c.b16 %v2065, %v2063
      %v2228 = vpack.c.b16 %v2068, %v2066
      %v2229 = vpack.c.b16 %v2069, %v2067
      %v2230 = vpack.c.b16 %v2072, %v2070
      %v2231 = vpack.c.b16 %v2073, %v2071
      %v2232 = vpack.c.b16 %v2076, %v2074
      %v2233 = vpack.c.b16 %v2077, %v2075
      %v2234 = vpack.c.b16 %v2080, %v2078
      %v2235 = vpack.c.b16 %v2081, %v2079
      %v2236 = vpack.c.b16 %v2084, %v2082
      %v2237 = vpack.c.b16 %v2085, %v2083
      %v2238 = vpack.c.b16 %v2088, %v2086
      %v2239 = vpack.c.b16 %v2089, %v2087
      %v2240 = vpack.c.b16 %v2092, %v2090
      %v2241 = vpack.c.b16 %v2093, %v2091
      %v2242 = vpack.c.b16 %v2096, %v2094
      %v2243 = vpack.c.b16 %v2097, %v2095
      %v2244 = vpack.c.b16 %v2100, %v2098
      %v2245 = vpack.c.b16 %v2101, %v2099
      %v2246 = vpack.c.b16 %v2104, %v2102
      %v2247 = vpack.c.b16 %v2105, %v2103
      %v2248 = vpack.c.b16 %v2108, %v2106
      %v2249 = vpack.c.b16 %v2109, %v2107
      %v2250 = vpack.c.b16 %v2112, %v2110
      %v2251 = vpack.c.b16 %v2113, %v2111
      %v2252 = vpack.c.b16 %v2116, %v2114
      %v2253 = vpack.c.b16 %v2117, %v2115
      %v2254 = vpack.c.b16 %v2120, %v2118
      %v2255 = vpack.c.b16 %v2121, %v2119
      %v2256 = vpack.c.b16 %v2124, %v2122
      %v2257 = vpack.c.b16 %v2125, %v2123
      %v2258 = vpack.c.b16 %v2128, %v2126
      %v2259 = vpack.c.b16 %v2129, %v2127
      %v2260 = vpack.c.b16 %v2132, %v2130
      %v2261 = vpack.c.b16 %v2133, %v2131
      %2390 = vmatprep.subr.bf16.mxu0 %v2135
      %2391 = vmatpush1.bf16.msra.mxu0 %v2134
      %2392 = vmatprep.subr.bf16.mxu0 %v2137
      %2393 = vmatpush1.bf16.msra.mxu0 %v2136
      %2394 = vmatprep.subr.bf16.mxu0 %v2139
      %2395 = vmatpush1.bf16.msra.mxu0 %v2138
      %2396 = vmatprep.subr.bf16.mxu0 %v2141
      %2397 = vmatpush1.bf16.msra.mxu0 %v2140
      %2398 = vmatprep.subr.bf16.mxu0 %v2143
      %2399 = vmatpush1.bf16.msra.mxu0 %v2142
      %2400 = vmatprep.subr.bf16.mxu0 %v2145
      %2401 = vmatpush1.bf16.msra.mxu0 %v2144
      %2402 = vmatprep.subr.bf16.mxu0 %v2147
      %2403 = vmatpush1.bf16.msra.mxu0 %v2146
      %2404 = vmatprep.subr.bf16.mxu0 %v2149
      %2405 = vmatpush1.bf16.msra.mxu0 %v2148
      %2406 = vmatprep.subr.bf16.mxu0 %v2151
      %2407 = vmatpush1.bf16.msra.mxu0 %v2150
      %2408 = vmatprep.subr.bf16.mxu0 %v2153
      %2409 = vmatpush1.bf16.msra.mxu0 %v2152
      %2410 = vmatprep.subr.bf16.mxu0 %v2155
      %2411 = vmatpush1.bf16.msra.mxu0 %v2154
      %2412 = vmatprep.subr.bf16.mxu0 %v2157
      %2413 = vmatpush1.bf16.msra.mxu0 %v2156
      %2414 = vmatprep.subr.bf16.mxu0 %v2159
      %2415 = vmatpush1.bf16.msra.mxu0 %v2158
      %2416 = vmatprep.subr.bf16.mxu0 %v2161
      %2417 = vmatpush1.bf16.msra.mxu0 %v2160
      %2418 = vmatprep.subr.bf16.mxu0 %v2163
      %2419 = vmatpush1.bf16.msra.mxu0 %v2162
      %2420 = vmatprep.subr.bf16.mxu0 %v2165
      %2421 = vmatpush1.bf16.msra.mxu0 %v2164
      %2422 = vmatprep.mubr.bf16.mxu0 %v1703
      %2423 = vmatmul.mubr.bf16.gmra.mrb[0].mxu0 %v1702
      %v2424 = vpop.f32.mrb[0].mxu0
      %v2425 = vadd.f32 %v1662, %v2424
      %v2426 = vpop.f32.mrb[0].mxu0
      %v2427 = vadd.f32 %v1664, %v2426
      %v2428 = vpop.f32.mrb[0].mxu0
      %v2429 = vadd.f32 %v1666, %v2428
      %v2430 = vpop.f32.mrb[0].mxu0
      %v2431 = vadd.f32 %v1668, %v2430
      %2432 = vdwg.mxu0
      %2433 = vmatprep.subr.bf16.mxu0 %v2167
      %2434 = vmatpush1.bf16.msra.mxu0 %v2166
      %2435 = vmatprep.subr.bf16.mxu0 %v2169
      %2436 = vmatpush1.bf16.msra.mxu0 %v2168
      %2437 = vmatprep.subr.bf16.mxu0 %v2171
      %2438 = vmatpush1.bf16.msra.mxu0 %v2170
      %2439 = vmatprep.subr.bf16.mxu0 %v2173
      %2440 = vmatpush1.bf16.msra.mxu0 %v2172
      %2441 = vmatprep.subr.bf16.mxu0 %v2175
      %2442 = vmatpush1.bf16.msra.mxu0 %v2174
      %2443 = vmatprep.subr.bf16.mxu0 %v2177
      %2444 = vmatpush1.bf16.msra.mxu0 %v2176
      %2445 = vmatprep.subr.bf16.mxu0 %v2179
      %2446 = vmatpush1.bf16.msra.mxu0 %v2178
      %2447 = vmatprep.subr.bf16.mxu0 %v2181
      %2448 = vmatpush1.bf16.msra.mxu0 %v2180
      %2449 = vmatprep.subr.bf16.mxu0 %v2183
      %2450 = vmatpush1.bf16.msra.mxu0 %v2182
      %2451 = vmatprep.subr.bf16.mxu0 %v2185
      %2452 = vmatpush1.bf16.msra.mxu0 %v2184
      %2453 = vmatprep.subr.bf16.mxu0 %v2187
      %2454 = vmatpush1.bf16.msra.mxu0 %v2186
      %2455 = vmatprep.subr.bf16.mxu0 %v2189
      %2456 = vmatpush1.bf16.msra.mxu0 %v2188
      %2457 = vmatprep.subr.bf16.mxu0 %v2191
      %2458 = vmatpush1.bf16.msra.mxu0 %v2190
      %2459 = vmatprep.subr.bf16.mxu0 %v2193
      %2460 = vmatpush1.bf16.msra.mxu0 %v2192
      %2461 = vmatprep.subr.bf16.mxu0 %v2195
      %2462 = vmatpush1.bf16.msra.mxu0 %v2194
      %2463 = vmatprep.subr.bf16.mxu0 %v2197
      %2464 = vmatpush1.bf16.msra.mxu0 %v2196
      %2465 = vmatprep.mubr.bf16.mxu0 %v1705
      %2466 = vmatmul.mubr.bf16.gmra.mrb[0].mxu0 %v1704
      %v2467 = vpop.f32.mrb[0].mxu0
      %v2468 = vadd.f32 %v2425, %v2467
      %v2469 = vpop.f32.mrb[0].mxu0
      %v2470 = vadd.f32 %v2427, %v2469
      %v2471 = vpop.f32.mrb[0].mxu0
      %v2472 = vadd.f32 %v2429, %v2471
      %v2473 = vpop.f32.mrb[0].mxu0
      %v2474 = vadd.f32 %v2431, %v2473
      %2475 = vdwg.mxu0
      %2476 = vmatprep.subr.bf16.mxu0 %v2199
      %2477 = vmatpush1.bf16.msra.mxu0 %v2198
      %2478 = vmatprep.subr.bf16.mxu0 %v2201
      %2479 = vmatpush1.bf16.msra.mxu0 %v2200
      %2480 = vmatprep.subr.bf16.mxu0 %v2203
      %2481 = vmatpush1.bf16.msra.mxu0 %v2202
      %2482 = vmatprep.subr.bf16.mxu0 %v2205
      %2483 = vmatpush1.bf16.msra.mxu0 %v2204
      %2484 = vmatprep.subr.bf16.mxu0 %v2207
      %2485 = vmatpush1.bf16.msra.mxu0 %v2206
      %2486 = vmatprep.subr.bf16.mxu0 %v2209
      %2487 = vmatpush1.bf16.msra.mxu0 %v2208
      %2488 = vmatprep.subr.bf16.mxu0 %v2211
      %2489 = vmatpush1.bf16.msra.mxu0 %v2210
      %2490 = vmatprep.subr.bf16.mxu0 %v2213
      %2491 = vmatpush1.bf16.msra.mxu0 %v2212
      %2492 = vmatprep.subr.bf16.mxu0 %v2215
      %2493 = vmatpush1.bf16.msra.mxu0 %v2214
      %2494 = vmatprep.subr.bf16.mxu0 %v2217
      %2495 = vmatpush1.bf16.msra.mxu0 %v2216
      %2496 = vmatprep.subr.bf16.mxu0 %v2219
      %2497 = vmatpush1.bf16.msra.mxu0 %v2218
      %2498 = vmatprep.subr.bf16.mxu0 %v2221
      %2499 = vmatpush1.bf16.msra.mxu0 %v2220
      %2500 = vmatprep.subr.bf16.mxu0 %v2223
      %2501 = vmatpush1.bf16.msra.mxu0 %v2222
      %2502 = vmatprep.subr.bf16.mxu0 %v2225
      %2503 = vmatpush1.bf16.msra.mxu0 %v2224
      %2504 = vmatprep.subr.bf16.mxu0 %v2227
      %2505 = vmatpush1.bf16.msra.mxu0 %v2226
      %2506 = vmatprep.subr.bf16.mxu0 %v2229
      %2507 = vmatpush1.bf16.msra.mxu0 %v2228
      %2508 = vmatprep.mubr.bf16.mxu0 %v1739
      %2509 = vmatmul.mubr.bf16.gmra.mrb[0].mxu0 %v1738
      %v2510 = vpop.f32.mrb[0].mxu0
      %v2511 = vadd.f32 %v2468, %v2510
      %v2512 = vpop.f32.mrb[0].mxu0
      %v2513 = vadd.f32 %v2470, %v2512
      %v2514 = vpop.f32.mrb[0].mxu0
      %v2515 = vadd.f32 %v2472, %v2514
      %v2516 = vpop.f32.mrb[0].mxu0
      %v2517 = vadd.f32 %v2474, %v2516
      %2518 = vdwg.mxu0
      %2519 = vmatprep.subr.bf16.mxu0 %v2231
      %2520 = vmatpush1.bf16.msra.mxu0 %v2230
      %2521 = vmatprep.subr.bf16.mxu0 %v2233
      %2522 = vmatpush1.bf16.msra.mxu0 %v2232
      %2523 = vmatprep.subr.bf16.mxu0 %v2235
      %2524 = vmatpush1.bf16.msra.mxu0 %v2234
      %2525 = vmatprep.subr.bf16.mxu0 %v2237
      %2526 = vmatpush1.bf16.msra.mxu0 %v2236
      %2527 = vmatprep.subr.bf16.mxu0 %v2239
      %2528 = vmatpush1.bf16.msra.mxu0 %v2238
      %2529 = vmatprep.subr.bf16.mxu0 %v2241
      %2530 = vmatpush1.bf16.msra.mxu0 %v2240
      %2531 = vmatprep.subr.bf16.mxu0 %v2243
      %2532 = vmatpush1.bf16.msra.mxu0 %v2242
      %2533 = vmatprep.subr.bf16.mxu0 %v2245
      %2534 = vmatpush1.bf16.msra.mxu0 %v2244
      %2535 = vmatprep.subr.bf16.mxu0 %v2247
      %2536 = vmatpush1.bf16.msra.mxu0 %v2246
      %2537 = vmatprep.subr.bf16.mxu0 %v2249
      %2538 = vmatpush1.bf16.msra.mxu0 %v2248
      %2539 = vmatprep.subr.bf16.mxu0 %v2251
      %2540 = vmatpush1.bf16.msra.mxu0 %v2250
      %2541 = vmatprep.subr.bf16.mxu0 %v2253
      %2542 = vmatpush1.bf16.msra.mxu0 %v2252
      %2543 = vmatprep.subr.bf16.mxu0 %v2255
      %2544 = vmatpush1.bf16.msra.mxu0 %v2254
      %2545 = vmatprep.subr.bf16.mxu0 %v2257
      %2546 = vmatpush1.bf16.msra.mxu0 %v2256
      %2547 = vmatprep.subr.bf16.mxu0 %v2259
      %2548 = vmatpush1.bf16.msra.mxu0 %v2258
      %2549 = vmatprep.subr.bf16.mxu0 %v2261
      %2550 = vmatpush1.bf16.msra.mxu0 %v2260
      %2551 = vmatprep.mubr.bf16.mxu0 %v1741
      %2552 = vmatmul.mubr.bf16.gmra.mrb[0].mxu0 %v1740
      %v2553 = vpop.f32.mrb[0].mxu0
      %v2554 = vadd.f32 %v2511, %v2553
      %v2555 = vpop.f32.mrb[0].mxu0
      %v2556 = vadd.f32 %v2513, %v2555
      %v2557 = vpop.f32.mrb[0].mxu0
      %v2558 = vadd.f32 %v2515, %v2557
      %v2559 = vpop.f32.mrb[0].mxu0
      %v2560 = vadd.f32 %v2517, %v2559
      %2561 = vdwg.mxu0
      %v2562 = vld [vmem:[%s2] sm:$0x3]
      %v2564 = vlaneseq
      %v2565 = vshrl.u32 %v2564, 7
      %v2566 = vsub.s32 0, %v2565
      %v2567 = vrot.slane %v2562, %v2566
      %v2568 = vlaneseq
      %v2569 = vshrl.u32 %v2568, 7
      %v2570 = vsub.s32 1, %v2569
      %v2571 = vrot.slane %v2562, %v2570
      %v2574 = vmul.f32 %v2554, %v2567
      %v2575 = vmul.f32 %v2556, %v2571
      %v2576 = vmul.f32 %v2558, %v2567
      %v2577 = vmul.f32 %v2560, %v2571
      %v2578 = vld [vmem:[%s3] sm:$0x3]
      %v2580 = vlaneseq
      %v2581 = vshrl.u32 %v2580, 7
      %v2582 = vsub.s32 0, %v2581
      %v2583 = vrot.slane %v2578, %v2582
      %v2584 = vlaneseq
      %v2585 = vshrl.u32 %v2584, 7
      %v2586 = vsub.s32 1, %v2585
      %v2587 = vrot.slane %v2578, %v2586
      %v2590 = vadd.f32 %v2574, %v2583
      %v2591 = vadd.f32 %v2575, %v2587
      %v2592 = vadd.f32 %v2576, %v2583
      %v2593 = vadd.f32 %v2577, %v2587
      %v2594 = vmul.f32 %v2590, 0.2
      %v2595 = vmul.f32 %v2591, 0.2
      %v2596 = vmul.f32 %v2592, 0.2
      %v2597 = vmul.f32 %v2593, 0.2
      %v2598 = vmax.f32 %v2590, %v2594
      %v2599 = vmax.f32 %v2591, %v2595
      %v2600 = vmax.f32 %v2592, %v2596
      %v2601 = vmax.f32 %v2593, %v2597
      %v2602 = vpack.c.bf16 %v2600, %v2598
      %v2603 = vpack.c.bf16 %v2601, %v2599
      %v2606 = vunpack.c.l.b16 %v2602
      %v2607 = vunpack.c.l.b16 %v2603
      %v2608 = vunpack.c.h.b16 %v2602
      %v2609 = vunpack.c.h.b16 %v2603
      %v2610 = vpack.c.b16 %v2607, %v2606
      %v2611 = vpack.c.b16 %v2609, %v2608
      %2614 = vst [vmem:[%s240] sm:$0xff] %v2610
      %2615 = vst [vmem:[%s240 + $0x8] sm:$0xff] %v2611
      %s2616 = smul.u32 2, %s20
      %p2617 = scmp.lt.s32.totalorder %s19, 1
      %s2618 = scalar_select %p2617, %s19, 1
      %p2619 = scmp.lt.s32.totalorder %s2616, 1
      %s2620 = scalar_select %p2619, %s2616, 1
      %s2621 = smul.addr %s2620, 2
      %s2622 = smul.addr %s2618, 4
      %s2623 = sadd.s32 %s2621, %s2622
      %s2624 = smul.addr %s2623, 4
      %s2625 = scalar_lea.vmem %s4, %s2624
      // Predicated region
      $region37: #{patch_discriminator.6} parent=35 // pred_check
        %p2626 = pneg %p138
      $region38: #{patch_discriminator.6} parent=35 // pred_check_branch
        %2628 = sbr.rel (%p2626) target = $region40
      $region39: #{patch_discriminator.6} parent=35 // pred_region
        %s2629 = smul.u32 2, %s20
      $region40: #{patch_discriminator.6} parent=35 // pred_fallthru
        _
    $region36: #{patch_discriminator.6} parent=5 // pred_fallthru
      _
    %p2630 = scmp.le.s32.totalorder 2, %s10
    // Predicated region
    $region41: #{patch_discriminator.6} parent=5 // pred_check
      %p2631 = pneg %p2630
    $region42: #{patch_discriminator.6} parent=5 // pred_check_branch
      %2633 = sbr.rel (%p2631) target = $region44
    $region43: #{patch_discriminator.6} parent=5 // pred_region
      %s2634 = ssub.s32 %s10, 2
      // Predicated region
      $region45: #{patch_discriminator.6} parent=43 // pred_check
        %p2635 = pneg %p144
      $region46: #{patch_discriminator.6} parent=43 // pred_check_branch
        %2637 = sbr.rel (%p2635) target = $region48
      $region47: #{patch_discriminator.6} parent=43 // pred_region
        %s2638 = smul.u32 2, %s22
        %p2639 = scmp.lt.s32.totalorder %s21, 1
        %s2640 = scalar_select %p2639, %s21, 1
        %p2641 = scmp.lt.s32.totalorder %s2638, 1
        %s2642 = scalar_select %p2641, %s2638, 1
        %s2643 = smul.addr %s2642, 2
        %s2644 = smul.addr %s2640, 4
        %s2645 = sadd.s32 %s2643, %s2644
        %s2646 = smul.addr %s2645, 4
        %s2647 = scalar_lea.vmem %s4, %s2646
      $region48: #{patch_discriminator.6} parent=43 // pred_fallthru
        _
    $region44: #{patch_discriminator.6} parent=5 // pred_fallthru
      _
  $region6: #{patch_discriminator.6} parent=0 // loop_footer
    %s14 = sadd.s32 1, %s10
  $region7: #{patch_discriminator.6} parent=0 // loop_footer_branch
    %9 = sbr.rel target = $region3
  $region8: #{patch_discriminator.6} parent=0 // loop_exit
    _

// kernel: patch_discriminator.7
$region0: #{patch_discriminator.7}
  #allocation0 [shape = 'u32[]', space=smem, size = 0x4, offset = 0x4, fixed_abs, tag = 'smem constant byte address 0x4 - core index']
  #allocation1 [shape = 'u32[144,128]{1,0:T(1,128)}', space=vmem, size = 0x12000, scoped, tag = 'internal scratch']
  %s0 = inlined_call_operand.vmem [shape: bf16[2,3,6,1024], index: 0, kind: input, shape index: {}]
  %s1 = inlined_call_operand.vmem [shape: bf16[4,1024,128], index: 1, kind: input, shape index: {}]
  %s2 = inlined_call_operand.vmem [shape: f32[1,128], index: 2, kind: input, shape index: {}]
  %s3 = inlined_call_operand.vmem [shape: f32[1,128], index: 3, kind: input, shape index: {}]
  %s4 = inlined_call_operand.vmem [shape: bf16[2,9,128], index: 4, kind: output, shape index: {}]
  %s5 = sld [smem:[#allocation0]]
  $region49: #{patch_discriminator.7} parent=0
    _
  %s7 = ssub.s32 1, %s5
  %s8 = scalar_select 0, %s7, %s5
  loop: start=0, step=1, limit=4
  $region2: #{patch_discriminator.7} parent=0 // loop_pre_header
    _
  $region3: #{patch_discriminator.7} parent=0 // loop_header
    %s10 = sphi 0, %s14
    %p11 = scmp.ge.s32.totalorder %s10, 4
    %s17 = sphi 0, %s29
    %s18 = sphi 0, %s25
    %s19 = sphi 0, %s17
    %s20 = sphi 0, %s18
    %s21 = sphi 0, %s19
    %s22 = sphi 0, %s20
    %s34 = sphi 0, %s36
    %s37 = sphi 0, %s34
    %s38 = sphi 0, %s37
    %s54 = sphi 0, %s38
    %s58 = sphi 0, %s58
    %s60 = sphi 0, %s58
    %s61 = sphi 0, %s60
    %s75 = sphi 0, %s61
    %s79 = sphi 0, %s79
    %s81 = sphi 0, %s79
    %s82 = sphi 0, %s81
    %s96 = sphi 0, %s82
    %s100 = sphi 0, %s100
    %s102 = sphi 0, %s100
    %s103 = sphi 0, %s102
    %s117 = sphi 0, %s103
    %s125 = sphi 0, %s127
    %s128 = sphi 0, %s125
    %s129 = sphi 0, %s128
    %s145 = sphi 0, %s129
  $region4: #{patch_discriminator.7} parent=0 // loop_header_branch
    %13 = sbr.rel (%p11) target = $region8
  $region5: #{patch_discriminator.7} parent=0 // loop_body
    %s15 = ssub.s32 %s10, 1
    %s16 = ssub.s32 %s10, 2
    %s23 = sadd.s32 1, %s18
    %p24 = scmp.ge.s32.totalorder %s23, 1
    %s25 = scalar_select %p24, 0, %s23
    %s26 = sadd.s32 1, %s17
    %s27 = scalar_select %p24, %s26, %s17
    %p28 = scmp.ge.s32.totalorder %s27, 2
    %s29 = scalar_select %p28, 0, %s27
    %s30 = ssub.s32 %s17, %s29
    %s31 = ssub.s32 %s18, %s25
    %s32 = sor.u32 %s30, %s31
    %p33 = scmp.eq.s32.totalorder %s32, 0
    %s35 = sadd.s32 %s34, 1
    %s36 = scalar_select %p33, %s34, %s35
    %p39 = pneg %p33
    %p40 = scmp.eq.s32.totalorder %s10, 1
    %p41 = por %p39, %p40
    %p42 = scmp.ne.s32.totalorder %s34, %s37
    %p43 = scmp.eq.s32.totalorder %s10, 0
    %p44 = por %p42, %p43
    %p45 = scmp.ne.s32.totalorder %s34, %s37
    %p46 = scmp.eq.s32.totalorder %s15, 1
    %p47 = por %p45, %p46
    %p48 = scmp.ne.s32.totalorder %s37, %s38
    %p49 = scmp.eq.s32.totalorder %s15, 0
    %p50 = por %p48, %p49
    %p51 = scmp.ne.s32.totalorder %s37, %s38
    %p52 = scmp.eq.s32.totalorder %s16, 1
    %p53 = por %p51, %p52
    %p55 = scmp.ne.s32.totalorder %s38, %s54
    %p56 = scmp.eq.s32.totalorder %s16, 0
    %p57 = por %p55, %p56
    %s59 = sadd.s32 %s58, 1
    %p62 = scmp.eq.s32.totalorder %s10, 1
    %p63 = scmp.ne.s32.totalorder %s58, %s60
    %p64 = scmp.eq.s32.totalorder %s10, 0
    %p65 = por %p63, %p64
    %p66 = scmp.ne.s32.totalorder %s58, %s60
    %p67 = scmp.eq.s32.totalorder %s15, 1
    %p68 = por %p66, %p67
    %p69 = scmp.ne.s32.totalorder %s60, %s61
    %p70 = scmp.eq.s32.totalorder %s15, 0
    %p71 = por %p69, %p70
    %p72 = scmp.ne.s32.totalorder %s60, %s61
    %p73 = scmp.eq.s32.totalorder %s16, 1
    %p74 = por %p72, %p73
    %p76 = scmp.ne.s32.totalorder %s61, %s75
    %p77 = scmp.eq.s32.totalorder %s16, 0
    %p78 = por %p76, %p77
    %s80 = sadd.s32 %s79, 1
    %p83 = scmp.eq.s32.totalorder %s10, 1
    %p84 = scmp.ne.s32.totalorder %s79, %s81
    %p85 = scmp.eq.s32.totalorder %s10, 0
    %p86 = por %p84, %p85
    %p87 = scmp.ne.s32.totalorder %s79, %s81
    %p88 = scmp.eq.s32.totalorder %s15, 1
    %p89 = por %p87, %p88
    %p90 = scmp.ne.s32.totalorder %s81, %s82
    %p91 = scmp.eq.s32.totalorder %s15, 0
    %p92 = por %p90, %p91
    %p93 = scmp.ne.s32.totalorder %s81, %s82
    %p94 = scmp.eq.s32.totalorder %s16, 1
    %p95 = por %p93, %p94
    %p97 = scmp.ne.s32.totalorder %s82, %s96
    %p98 = scmp.eq.s32.totalorder %s16, 0
    %p99 = por %p97, %p98
    %s101 = sadd.s32 %s100, 1
    %p104 = scmp.eq.s32.totalorder %s10, 1
    %p105 = scmp.ne.s32.totalorder %s100, %s102
    %p106 = scmp.eq.s32.totalorder %s10, 0
    %p107 = por %p105, %p106
    %p108 = scmp.ne.s32.totalorder %s100, %s102
    %p109 = scmp.eq.s32.totalorder %s15, 1
    %p110 = por %p108, %p109
    %p111 = scmp.ne.s32.totalorder %s102, %s103
    %p112 = scmp.eq.s32.totalorder %s15, 0
    %p113 = por %p111, %p112
    %p114 = scmp.ne.s32.totalorder %s102, %s103
    %p115 = scmp.eq.s32.totalorder %s16, 1
    %p116 = por %p114, %p115
    %p118 = scmp.ne.s32.totalorder %s103, %s117
    %p119 = scmp.eq.s32.totalorder %s16, 0
    %p120 = por %p118, %p119
    %s121 = ssub.s32 %s17, %s29
    %s122 = ssub.s32 %s18, %s25
    %s123 = sor.u32 %s121, %s122
    %p124 = scmp.eq.s32.totalorder %s123, 0
    %s126 = sadd.s32 %s125, 1
    %s127 = scalar_select %p124, %s125, %s126
    %p130 = pneg %p124
    %p131 = scmp.eq.s32.totalorder %s10, 1
    %p132 = por %p130, %p131
    %p133 = scmp.ne.s32.totalorder %s125, %s128
    %p134 = scmp.eq.s32.totalorder %s10, 0
    %p135 = por %p133, %p134
    %p136 = scmp.ne.s32.totalorder %s125, %s128
    %p137 = scmp.eq.s32.totalorder %s15, 1
    %p138 = por %p136, %p137
    %p139 = scmp.ne.s32.totalorder %s128, %s129
    %p140 = scmp.eq.s32.totalorder %s15, 0
    %p141 = por %p139, %p140
    %p142 = scmp.ne.s32.totalorder %s128, %s129
    %p143 = scmp.eq.s32.totalorder %s16, 1
    %p144 = por %p142, %p143
    %p146 = scmp.ne.s32.totalorder %s129, %s145
    %p147 = scmp.eq.s32.totalorder %s16, 0
    %p148 = por %p146, %p147
    %p149 = scmp.le.s32.totalorder 1, %s10
    %p150 = scmp.lt.s32.totalorder %s10, 3
    %p151 = pnand %p149, %p150
    %p152 = pneg %p151
    // Predicated region
    $region9: #{patch_discriminator.7} parent=5 // pred_check
      _
    $region10: #{patch_discriminator.7} parent=5 // pred_check_branch
      %154 = sbr.rel (%p151) target = $region12
    $region11: #{patch_discriminator.7} parent=5 // pred_region
      %s155 = ssub.s32 %s10, 1
      // Predicated region
      $region13: #{patch_discriminator.7} parent=11 // pred_check
        %p156 = pneg %p71
      $region14: #{patch_discriminator.7} parent=11 // pred_check_branch
        %158 = sbr.rel (%p156) target = $region16
      $region15: #{patch_discriminator.7} parent=11 // pred_region
        _
      $region16: #{patch_discriminator.7} parent=11 // pred_fallthru
        _
      // Predicated region
      $region17: #{patch_discriminator.7} parent=11 // pred_check
        %p159 = pneg %p92
      $region18: #{patch_discriminator.7} parent=11 // pred_check_branch
        %161 = sbr.rel (%p159) target = $region20
      $region19: #{patch_discriminator.7} parent=11 // pred_region
        _
      $region20: #{patch_discriminator.7} parent=11 // pred_fallthru
        _
      // Predicated region
      $region21: #{patch_discriminator.7} parent=11 // pred_check
        %p162 = pneg %p113
      $region22: #{patch_discriminator.7} parent=11 // pred_check_branch
        %164 = sbr.rel (%p162) target = $region24
      $region23: #{patch_discriminator.7} parent=11 // pred_region
        _
      $region24: #{patch_discriminator.7} parent=11 // pred_fallthru
        _
    $region12: #{patch_discriminator.7} parent=5 // pred_fallthru
      _
    %p165 = scmp.lt.s32.totalorder %s10, 2
    // Predicated region
    $region25: #{patch_discriminator.7} parent=5 // pred_check
      %p166 = pneg %p165
    $region26: #{patch_discriminator.7} parent=5 // pred_check_branch
      %168 = sbr.rel (%p166) target = $region28
    $region27: #{patch_discriminator.7} parent=5 // pred_region
      // Predicated region
      $region29: #{patch_discriminator.7} parent=27 // pred_check
        %p169 = pneg %p44
      $region30: #{patch_discriminator.7} parent=27 // pred_check_branch
        %171 = sbr.rel (%p169) target = $region32
      $region31: #{patch_discriminator.7} parent=27 // pred_region
        %s172 = smul.u32 3, %s18
        %p173 = scmp.lt.s32.totalorder %s17, 1
        %s174 = scalar_select %p173, %s17, 1
        %p175 = scmp.lt.s32.totalorder %s172, 2
        %s176 = scalar_select %p175, %s172, 2
        %s177 = smul.addr %s176, 8
        %s178 = smul.addr %s174, 24
        %s179 = sadd.s32 %s177, %s178
        %s180 = smul.addr %s179, 4
        %s181 = scalar_lea.vmem %s0, %s180
        %s182 = smul.u32 3, %s18
      $region32: #{patch_discriminator.7} parent=27 // pred_fallthru
        _
    $region28: #{patch_discriminator.7} parent=5 // pred_fallthru
      _
    %p183 = scmp.le.s32.totalorder 1, %s10
    %p184 = scmp.lt.s32.totalorder %s10, 3
    %p185 = pnand %p183, %p184
    %p186 = pneg %p185
    // Predicated region
    $region33: #{patch_discriminator.7} parent=5 // pred_check
      _
    $region34: #{patch_discriminator.7} parent=5 // pred_check_branch
      %188 = sbr.rel (%p185) target = $region36
    $region35: #{patch_discriminator.7} parent=5 // pred_region
      %s189 = ssub.s32 %s10, 1
      %s190 = smul.u32 3, %s20
      %p191 = scmp.lt.s32.totalorder %s19, 1
      %s192 = scalar_select %p191, %s19, 1
      %p193 = scmp.lt.s32.totalorder %s190, 2
      %s194 = scalar_select %p193, %s190, 2
      %s195 = smul.addr %s194, 8
      %s196 = smul.addr %s192, 24
      %s197 = sadd.s32 %s195, %s196
      %s198 = smul.addr %s197, 4
      %s199 = scalar_lea.vmem %s0, %s198
      %p200 = pneg %p50
      %p201 = pneg %p47
      %p202 = pneg %p71
      %p203 = pneg %p68
      %p204 = pneg %p92
      %p205 = pneg %p89
      %p206 = pneg %p113
      %p207 = pneg %p110
      %p208 = pneg %p141
      %p209 = pneg %p138
      %s210 = smul.u32 2, %s20
      %p211 = scmp.lt.s32.totalorder %s19, 1
      %s212 = scalar_select %p211, %s19, 1
      %p213 = scmp.lt.s32.totalorder %s210, 1
      %s214 = scalar_select %p213, %s210, 1
      %s215 = smul.addr %s212, 2
      %s216 = sadd.s32 %s214, %s215
      %s217 = smul.addr %s216, 4
      %s218 = scalar_lea.vmem %s4, %s217
      %s219 = smul.u32 3, %s20
      %p220 = scmp.lt.s32.totalorder %s19, 1
      %s221 = scalar_select %p220, %s19, 1
      %p222 = scmp.lt.s32.totalorder %s219, 2
      %s223 = scalar_select %p222, %s219, 2
      %s224 = smul.addr %s223, 8
      %s225 = smul.addr %s221, 24
      %s226 = sadd.s32 %s224, %s225
      %s227 = smul.addr %s226, 4
      %s228 = scalar_lea.vmem %s0, %s227
      %s229 = smul.u32 3, %s20
      %s230 = smul.u32 2, %s20
      %p231 = scmp.lt.s32.totalorder %s19, 1
      %s232 = scalar_select %p231, %s19, 1
      %p233 = scmp.lt.s32.totalorder %s230, 1
      %s234 = scalar_select %p233, %s230, 1
      %s235 = smul.addr %s232, 2
      %s236 = sadd.s32 %s234, %s235
      %s237 = smul.addr %s236, 4
      %s238 = scalar_lea.vmem %s4, %s237
      %s239 = smul.u32 2, %s20
      %v241 = vld [vmem:[%s228] sm:$0x77]
      %v242 = vld [vmem:[%s228 + $0x8] sm:$0x77]
      %v243 = vld [vmem:[%s228 + $0x10] sm:$0x77]
      %v244 = vld [vmem:[%s228 + $0x18] sm:$0x77]
      %v245 = vld [vmem:[%s228 + $0x20] sm:$0x77]
      %v246 = vld [vmem:[%s228 + $0x28] sm:$0x77]
      %v247 = vld [vmem:[%s228 + $0x30] sm:$0x77]
      %v248 = vld [vmem:[%s228 + $0x38] sm:$0x77]
      %v249 = vld [vmem:[%s228 + $0x40] sm:$0x77]
      %v250 = vld [vmem:[%s228 + $0x48] sm:$0x77]
      %v251 = vld [vmem:[%s228 + $0x50] sm:$0x77]
      %v252 = vld [vmem:[%s228 + $0x58] sm:$0x77]
      %v266 = vunpack.c.l.s4 1966171168
      %v267 = vunpack.c.0.s8 %v266
      %v268 = vlaneseq
      %v269 = vshrl.u32 %v268, 7
      %v270 = vsub.s32 %v267, %v269
      %v271 = vrot.slane %v241, %v270
      %v273 = vunpack.c.l.s4 1966171168
      %v274 = vunpack.c.0.s8 %v273
      %v275 = vlaneseq
      %v276 = vshrl.u32 %v275, 7
      %v277 = vsub.s32 %v274, %v276
      %v278 = vrot.slane %v242, %v277
      %v280 = vunpack.c.l.s4 1966171168
      %v281 = vunpack.c.0.s8 %v280
      %v282 = vlaneseq
      %v283 = vshrl.u32 %v282, 7
      %v284 = vsub.s32 %v281, %v283
      %v285 = vrot.slane %v243, %v284
      %v287 = vunpack.c.l.s4 1966171168
      %v288 = vunpack.c.0.s8 %v287
      %v289 = vlaneseq
      %v290 = vshrl.u32 %v289, 7
      %v291 = vsub.s32 %v288, %v290
      %v292 = vrot.slane %v244, %v291
      %v293 = vcombine.low %v271, %v278
      %v294 = vcombine.high %v271, %v278
      %v295 = vcombine.low %v285, %v292
      %v296 = vcombine.high %v285, %v292
      %v298 = vunpack.c.l.s4 1966171168
      %v299 = vunpack.c.0.s8 %v298
      %v300 = vlaneseq
      %v301 = vshrl.u32 %v300, 7
      %v302 = vsub.s32 %v299, %v301
      %v303 = vrot.slane %v293, %v302
      %v305 = vunpack.c.l.s4 1966171168
      %v306 = vunpack.c.0.s8 %v305
      %v307 = vlaneseq
      %v308 = vshrl.u32 %v307, 7
      %v309 = vsub.s32 %v306, %v308
      %v310 = vrot.slane %v294, %v309
      %v312 = vunpack.c.l.s4 1966171168
      %v313 = vunpack.c.0.s8 %v312
      %v314 = vlaneseq
      %v315 = vshrl.u32 %v314, 7
      %v316 = vsub.s32 %v313, %v315
      %v317 = vrot.slane %v295, %v316
      %v319 = vunpack.c.l.s4 1966171168
      %v320 = vunpack.c.0.s8 %v319
      %v321 = vlaneseq
      %v322 = vshrl.u32 %v321, 7
      %v323 = vsub.s32 %v320, %v322
      %v324 = vrot.slane %v296, %v323
      %v325 = vcombine.low %v303, %v317
      %v326 = vcombine.low %v310, %v324
      %v328 = vunpack.c.l.s4 1966171168
      %v329 = vunpack.c.0.s8 %v328
      %v330 = vlaneseq
      %v331 = vshrl.u32 %v330, 7
      %v332 = vsub.s32 %v329, %v331
      %v333 = vrot.slane %v245, %v332
      %v335 = vunpack.c.l.s4 1966171168
      %v336 = vunpack.c.0.s8 %v335
      %v337 = vlaneseq
      %v338 = vshrl.u32 %v337, 7
      %v339 = vsub.s32 %v336, %v338
      %v340 = vrot.slane %v246, %v339
      %v342 = vunpack.c.l.s4 1966171168
      %v343 = vunpack.c.0.s8 %v342
      %v344 = vlaneseq
      %v345 = vshrl.u32 %v344, 7
      %v346 = vsub.s32 %v343, %v345
      %v347 = vrot.slane %v247, %v346
      %v349 = vunpack.c.l.s4 1966171168
      %v350 = vunpack.c.0.s8 %v349
      %v351 = vlaneseq
      %v352 = vshrl.u32 %v351, 7
      %v353 = vsub.s32 %v350, %v352
      %v354 = vrot.slane %v248, %v353
      %v355 = vcombine.low %v333, %v340
      %v356 = vcombine.high %v333, %v340
      %v357 = vcombine.low %v347, %v354
      %v358 = vcombine.high %v347, %v354
      %v360 = vunpack.c.l.s4 1966171168
      %v361 = vunpack.c.0.s8 %v360
      %v362 = vlaneseq
      %v363 = vshrl.u32 %v362, 7
      %v364 = vsub.s32 %v361, %v363
      %v365 = vrot.slane %v355, %v364
      %v367 = vunpack.c.l.s4 1966171168
      %v368 = vunpack.c.0.s8 %v367
      %v369 = vlaneseq
      %v370 = vshrl.u32 %v369, 7
      %v371 = vsub.s32 %v368, %v370
      %v372 = vrot.slane %v356, %v371
      %v374 = vunpack.c.l.s4 1966171168
      %v375 = vunpack.c.0.s8 %v374
      %v376 = vlaneseq
      %v377 = vshrl.u32 %v376, 7
      %v378 = vsub.s32 %v375, %v377
      %v379 = vrot.slane %v357, %v378
      %v381 = vunpack.c.l.s4 1966171168
      %v382 = vunpack.c.0.s8 %v381
      %v383 = vlaneseq
      %v384 = vshrl.u32 %v383, 7
      %v385 = vsub.s32 %v382, %v384
      %v386 = vrot.slane %v358, %v385
      %v387 = vcombine.low %v365, %v379
      %v388 = vcombine.low %v372, %v386
      %v390 = vunpack.c.l.s4 1966171168
      %v391 = vunpack.c.0.s8 %v390
      %v392 = vlaneseq
      %v393 = vshrl.u32 %v392, 7
      %v394 = vsub.s32 %v391, %v393
      %v395 = vrot.slane %v249, %v394
      %v397 = vunpack.c.l.s4 1966171168
      %v398 = vunpack.c.0.s8 %v397
      %v399 = vlaneseq
      %v400 = vshrl.u32 %v399, 7
      %v401 = vsub.s32 %v398, %v400
      %v402 = vrot.slane %v250, %v401
      %v404 = vunpack.c.l.s4 1966171168
      %v405 = vunpack.c.0.s8 %v404
      %v406 = vlaneseq
      %v407 = vshrl.u32 %v406, 7
      %v408 = vsub.s32 %v405, %v407
      %v409 = vrot.slane %v251, %v408
      %v411 = vunpack.c.l.s4 1966171168
      %v412 = vunpack.c.0.s8 %v411
      %v413 = vlaneseq
      %v414 = vshrl.u32 %v413, 7
      %v415 = vsub.s32 %v412, %v414
      %v416 = vrot.slane %v252, %v415
      %v417 = vcombine.low %v395, %v402
      %v418 = vcombine.high %v395, %v402
      %v419 = vcombine.low %v409, %v416
      %v420 = vcombine.high %v409, %v416
      %v422 = vunpack.c.l.s4 1966171168
      %v423 = vunpack.c.0.s8 %v422
      %v424 = vlaneseq
      %v425 = vshrl.u32 %v424, 7
      %v426 = vsub.s32 %v423, %v425
      %v427 = vrot.slane %v417, %v426
      %v429 = vunpack.c.l.s4 1966171168
      %v430 = vunpack.c.0.s8 %v429
      %v431 = vlaneseq
      %v432 = vshrl.u32 %v431, 7
      %v433 = vsub.s32 %v430, %v432
      %v434 = vrot.slane %v418, %v433
      %v436 = vunpack.c.l.s4 1966171168
      %v437 = vunpack.c.0.s8 %v436
      %v438 = vlaneseq
      %v439 = vshrl.u32 %v438, 7
      %v440 = vsub.s32 %v437, %v439
      %v441 = vrot.slane %v419, %v440
      %v443 = vunpack.c.l.s4 1966171168
      %v444 = vunpack.c.0.s8 %v443
      %v445 = vlaneseq
      %v446 = vshrl.u32 %v445, 7
      %v447 = vsub.s32 %v444, %v446
      %v448 = vrot.slane %v420, %v447
      %v449 = vcombine.low %v427, %v441
      %v450 = vcombine.low %v434, %v448
      %v451 = vunpack.i.l.s16 %v325
      %v452 = vunpack.i.h.s16 %v325
      %v453 = vunpack.i.l.s16 %v326
      %v454 = vunpack.i.l.s16 %v387
      %v455 = vunpack.i.h.s16 %v387
      %v456 = vunpack.i.l.s16 %v388
      %v457 = vunpack.i.l.s16 %v449
      %v458 = vunpack.i.h.s16 %v449
      %v459 = vunpack.i.l.s16 %v450
      %v460 = vld [vmem:[%s1] sm:$0xf]
      %v461 = vld [vmem:[%s1 + $0x4] sm:$0xf]
      %v462 = vld [vmem:[%s1 + $0x8] sm:$0xf]
      %v463 = vld [vmem:[%s1 + $0xc] sm:$0xf]
      %v464 = vld [vmem:[%s1 + $0x10] sm:$0xf]
      %v465 = vld [vmem:[%s1 + $0x14] sm:$0xf]
      %v466 = vld [vmem:[%s1 + $0x18] sm:$0xf]
      %v467 = vld [vmem:[%s1 + $0x1c] sm:$0xf]
      %v468 = vld [vmem:[%s1 + $0x20] sm:$0xf]
      %v469 = vld [vmem:[%s1 + $0x24] sm:$0xf]
      %v470 = vld [vmem:[%s1 + $0x28] sm:$0xf]
      %v471 = vld [vmem:[%s1 + $0x2c] sm:$0xf]
      %v472 = vld [vmem:[%s1 + $0x30] sm:$0xf]
      %v473 = vld [vmem:[%s1 + $0x34] sm:$0xf]
      %v474 = vld [vmem:[%s1 + $0x38] sm:$0xf]
      %v475 = vld [vmem:[%s1 + $0x3c] sm:$0xf]
      %v476 = vld [vmem:[%s1 + $0x40] sm:$0xf]
      %v477 = vld [vmem:[%s1 + $0x44] sm:$0xf]
      %v478 = vld [vmem:[%s1 + $0x48] sm:$0xf]
      %v479 = vld [vmem:[%s1 + $0x4c] sm:$0xf]
      %v480 = vld [vmem:[%s1 + $0x50] sm:$0xf]
      %v481 = vld [vmem:[%s1 + $0x54] sm:$0xf]
      %v482 = vld [vmem:[%s1 + $0x58] sm:$0xf]
      %v483 = vld [vmem:[%s1 + $0x5c] sm:$0xf]
      %v484 = vld [vmem:[%s1 + $0x60] sm:$0xf]
      %v485 = vld [vmem:[%s1 + $0x64] sm:$0xf]
      %v486 = vld [vmem:[%s1 + $0x68] sm:$0xf]
      %v487 = vld [vmem:[%s1 + $0x6c] sm:$0xf]
      %v488 = vld [vmem:[%s1 + $0x70] sm:$0xf]
      %v489 = vld [vmem:[%s1 + $0x74] sm:$0xf]
      %v490 = vld [vmem:[%s1 + $0x78] sm:$0xf]
      %v491 = vld [vmem:[%s1 + $0x7c] sm:$0xf]
      %v492 = vld [vmem:[%s1 + $0x80] sm:$0xf]
      %v493 = vld [vmem:[%s1 + $0x84] sm:$0xf]
      %v494 = vld [vmem:[%s1 + $0x88] sm:$0xf]
      %v495 = vld [vmem:[%s1 + $0x8c] sm:$0xf]
      %v496 = vld [vmem:[%s1 + $0x90] sm:$0xf]
      %v497 = vld [vmem:[%s1 + $0x94] sm:$0xf]
      %v498 = vld [vmem:[%s1 + $0x98] sm:$0xf]
      %v499 = vld [vmem:[%s1 + $0x9c] sm:$0xf]
      %v500 = vld [vmem:[%s1 + $0xa0] sm:$0xf]
      %v501 = vld [vmem:[%s1 + $0xa4] sm:$0xf]
      %v502 = vld [vmem:[%s1 + $0xa8] sm:$0xf]
      %v503 = vld [vmem:[%s1 + $0xac] sm:$0xf]
      %v504 = vld [vmem:[%s1 + $0xb0] sm:$0xf]
      %v505 = vld [vmem:[%s1 + $0xb4] sm:$0xf]
      %v506 = vld [vmem:[%s1 + $0xb8] sm:$0xf]
      %v507 = vld [vmem:[%s1 + $0xbc] sm:$0xf]
      %v508 = vld [vmem:[%s1 + $0xc0] sm:$0xf]
      %v509 = vld [vmem:[%s1 + $0xc4] sm:$0xf]
      %v510 = vld [vmem:[%s1 + $0xc8] sm:$0xf]
      %v511 = vld [vmem:[%s1 + $0xcc] sm:$0xf]
      %v512 = vld [vmem:[%s1 + $0xd0] sm:$0xf]
      %v513 = vld [vmem:[%s1 + $0xd4] sm:$0xf]
      %v514 = vld [vmem:[%s1 + $0xd8] sm:$0xf]
      %v515 = vld [vmem:[%s1 + $0xdc] sm:$0xf]
      %v516 = vld [vmem:[%s1 + $0xe0] sm:$0xf]
      %v517 = vld [vmem:[%s1 + $0xe4] sm:$0xf]
      %v518 = vld [vmem:[%s1 + $0xe8] sm:$0xf]
      %v519 = vld [vmem:[%s1 + $0xec] sm:$0xf]
      %v520 = vld [vmem:[%s1 + $0xf0] sm:$0xf]
      %v521 = vld [vmem:[%s1 + $0xf4] sm:$0xf]
      %v522 = vld [vmem:[%s1 + $0xf8] sm:$0xf]
      %v523 = vld [vmem:[%s1 + $0xfc] sm:$0xf]
      %v524 = vld [vmem:[%s1 + $0x100] sm:$0xf]
      %v525 = vld [vmem:[%s1 + $0x104] sm:$0xf]
      %v526 = vld [vmem:[%s1 + $0x108] sm:$0xf]
      %v527 = vld [vmem:[%s1 + $0x10c] sm:$0xf]
      %v528 = vld [vmem:[%s1 + $0x110] sm:$0xf]
      %v529 = vld [vmem:[%s1 + $0x114] sm:$0xf]
      %v530 = vld [vmem:[%s1 + $0x118] sm:$0xf]
      %v531 = vld [vmem:[%s1 + $0x11c] sm:$0xf]
      %v532 = vld [vmem:[%s1 + $0x120] sm:$0xf]
      %v533 = vld [vmem:[%s1 + $0x124] sm:$0xf]
      %v534 = vld [vmem:[%s1 + $0x128] sm:$0xf]
      %v535 = vld [vmem:[%s1 + $0x12c] sm:$0xf]
      %v536 = vld [vmem:[%s1 + $0x130] sm:$0xf]
      %v537 = vld [vmem:[%s1 + $0x134] sm:$0xf]
      %v538 = vld [vmem:[%s1 + $0x138] sm:$0xf]
      %v539 = vld [vmem:[%s1 + $0x13c] sm:$0xf]
      %v540 = vld [vmem:[%s1 + $0x140] sm:$0xf]
      %v541 = vld [vmem:[%s1 + $0x144] sm:$0xf]
      %v542 = vld [vmem:[%s1 + $0x148] sm:$0xf]
      %v543 = vld [vmem:[%s1 + $0x14c] sm:$0xf]
      %v544 = vld [vmem:[%s1 + $0x150] sm:$0xf]
      %v545 = vld [vmem:[%s1 + $0x154] sm:$0xf]
      %v546 = vld [vmem:[%s1 + $0x158] sm:$0xf]
      %v547 = vld [vmem:[%s1 + $0x15c] sm:$0xf]
      %v548 = vld [vmem:[%s1 + $0x160] sm:$0xf]
      %v549 = vld [vmem:[%s1 + $0x164] sm:$0xf]
      %v550 = vld [vmem:[%s1 + $0x168] sm:$0xf]
      %v551 = vld [vmem:[%s1 + $0x16c] sm:$0xf]
      %v552 = vld [vmem:[%s1 + $0x170] sm:$0xf]
      %v553 = vld [vmem:[%s1 + $0x174] sm:$0xf]
      %v554 = vld [vmem:[%s1 + $0x178] sm:$0xf]
      %v555 = vld [vmem:[%s1 + $0x17c] sm:$0xf]
      %v556 = vld [vmem:[%s1 + $0x180] sm:$0xf]
      %v557 = vld [vmem:[%s1 + $0x184] sm:$0xf]
      %v558 = vld [vmem:[%s1 + $0x188] sm:$0xf]
      %v559 = vld [vmem:[%s1 + $0x18c] sm:$0xf]
      %v560 = vld [vmem:[%s1 + $0x190] sm:$0xf]
      %v561 = vld [vmem:[%s1 + $0x194] sm:$0xf]
      %v562 = vld [vmem:[%s1 + $0x198] sm:$0xf]
      %v563 = vld [vmem:[%s1 + $0x19c] sm:$0xf]
      %v564 = vld [vmem:[%s1 + $0x1a0] sm:$0xf]
      %v565 = vld [vmem:[%s1 + $0x1a4] sm:$0xf]
      %v566 = vld [vmem:[%s1 + $0x1a8] sm:$0xf]
      %v567 = vld [vmem:[%s1 + $0x1ac] sm:$0xf]
      %v568 = vld [vmem:[%s1 + $0x1b0] sm:$0xf]
      %v569 = vld [vmem:[%s1 + $0x1b4] sm:$0xf]
      %v570 = vld [vmem:[%s1 + $0x1b8] sm:$0xf]
      %v571 = vld [vmem:[%s1 + $0x1bc] sm:$0xf]
      %v572 = vld [vmem:[%s1 + $0x1c0] sm:$0xf]
      %v573 = vld [vmem:[%s1 + $0x1c4] sm:$0xf]
      %v574 = vld [vmem:[%s1 + $0x1c8] sm:$0xf]
      %v575 = vld [vmem:[%s1 + $0x1cc] sm:$0xf]
      %v576 = vld [vmem:[%s1 + $0x1d0] sm:$0xf]
      %v577 = vld [vmem:[%s1 + $0x1d4] sm:$0xf]
      %v578 = vld [vmem:[%s1 + $0x1d8] sm:$0xf]
      %v579 = vld [vmem:[%s1 + $0x1dc] sm:$0xf]
      %v580 = vld [vmem:[%s1 + $0x1e0] sm:$0xf]
      %v581 = vld [vmem:[%s1 + $0x1e4] sm:$0xf]
      %v582 = vld [vmem:[%s1 + $0x1e8] sm:$0xf]
      %v583 = vld [vmem:[%s1 + $0x1ec] sm:$0xf]
      %v584 = vld [vmem:[%s1 + $0x1f0] sm:$0xf]
      %v585 = vld [vmem:[%s1 + $0x1f4] sm:$0xf]
      %v586 = vld [vmem:[%s1 + $0x1f8] sm:$0xf]
      %v587 = vld [vmem:[%s1 + $0x1fc] sm:$0xf]
      %v588 = vunpack.i.h.s16 %v326
      %v589 = vunpack.i.h.s16 %v388
      %v590 = vunpack.i.h.s16 %v450
      %s591 = scalar_lea.vmem %s1, 512
      %v592 = vld [vmem:[%s591] sm:$0xf]
      %v593 = vld [vmem:[%s591 + $0x4] sm:$0xf]
      %v594 = vld [vmem:[%s591 + $0x8] sm:$0xf]
      %v595 = vld [vmem:[%s591 + $0xc] sm:$0xf]
      %v596 = vld [vmem:[%s591 + $0x10] sm:$0xf]
      %v597 = vld [vmem:[%s591 + $0x14] sm:$0xf]
      %v598 = vld [vmem:[%s591 + $0x18] sm:$0xf]
      %v599 = vld [vmem:[%s591 + $0x1c] sm:$0xf]
      %v600 = vld [vmem:[%s591 + $0x20] sm:$0xf]
      %v601 = vld [vmem:[%s591 + $0x24] sm:$0xf]
      %v602 = vld [vmem:[%s591 + $0x28] sm:$0xf]
      %v603 = vld [vmem:[%s591 + $0x2c] sm:$0xf]
      %v604 = vld [vmem:[%s591 + $0x30] sm:$0xf]
      %v605 = vld [vmem:[%s591 + $0x34] sm:$0xf]
      %v606 = vld [vmem:[%s591 + $0x38] sm:$0xf]
      %v607 = vld [vmem:[%s591 + $0x3c] sm:$0xf]
      %v608 = vld [vmem:[%s591 + $0x40] sm:$0xf]
      %v609 = vld [vmem:[%s591 + $0x44] sm:$0xf]
      %v610 = vld [vmem:[%s591 + $0x48] sm:$0xf]
      %v611 = vld [vmem:[%s591 + $0x4c] sm:$0xf]
      %v612 = vld [vmem:[%s591 + $0x50] sm:$0xf]
      %v613 = vld [vmem:[%s591 + $0x54] sm:$0xf]
      %v614 = vld [vmem:[%s591 + $0x58] sm:$0xf]
      %v615 = vld [vmem:[%s591 + $0x5c] sm:$0xf]
      %v616 = vld [vmem:[%s591 + $0x60] sm:$0xf]
      %v617 = vld [vmem:[%s591 + $0x64] sm:$0xf]
      %v618 = vld [vmem:[%s591 + $0x68] sm:$0xf]
      %v619 = vld [vmem:[%s591 + $0x6c] sm:$0xf]
      %v620 = vld [vmem:[%s591 + $0x70] sm:$0xf]
      %v621 = vld [vmem:[%s591 + $0x74] sm:$0xf]
      %v622 = vld [vmem:[%s591 + $0x78] sm:$0xf]
      %v623 = vld [vmem:[%s591 + $0x7c] sm:$0xf]
      %v624 = vld [vmem:[%s591 + $0x80] sm:$0xf]
      %v625 = vld [vmem:[%s591 + $0x84] sm:$0xf]
      %v626 = vld [vmem:[%s591 + $0x88] sm:$0xf]
      %v627 = vld [vmem:[%s591 + $0x8c] sm:$0xf]
      %v628 = vld [vmem:[%s591 + $0x90] sm:$0xf]
      %v629 = vld [vmem:[%s591 + $0x94] sm:$0xf]
      %v630 = vld [vmem:[%s591 + $0x98] sm:$0xf]
      %v631 = vld [vmem:[%s591 + $0x9c] sm:$0xf]
      %v632 = vld [vmem:[%s591 + $0xa0] sm:$0xf]
      %v633 = vld [vmem:[%s591 + $0xa4] sm:$0xf]
      %v634 = vld [vmem:[%s591 + $0xa8] sm:$0xf]
      %v635 = vld [vmem:[%s591 + $0xac] sm:$0xf]
      %v636 = vld [vmem:[%s591 + $0xb0] sm:$0xf]
      %v637 = vld [vmem:[%s591 + $0xb4] sm:$0xf]
      %v638 = vld [vmem:[%s591 + $0xb8] sm:$0xf]
      %v639 = vld [vmem:[%s591 + $0xbc] sm:$0xf]
      %v640 = vld [vmem:[%s591 + $0xc0] sm:$0xf]
      %v641 = vld [vmem:[%s591 + $0xc4] sm:$0xf]
      %v642 = vld [vmem:[%s591 + $0xc8] sm:$0xf]
      %v643 = vld [vmem:[%s591 + $0xcc] sm:$0xf]
      %v644 = vld [vmem:[%s591 + $0xd0] sm:$0xf]
      %v645 = vld [vmem:[%s591 + $0xd4] sm:$0xf]
      %v646 = vld [vmem:[%s591 + $0xd8] sm:$0xf]
      %v647 = vld [vmem:[%s591 + $0xdc] sm:$0xf]
      %v648 = vld [vmem:[%s591 + $0xe0] sm:$0xf]
      %v649 = vld [vmem:[%s591 + $0xe4] sm:$0xf]
      %v650 = vld [vmem:[%s591 + $0xe8] sm:$0xf]
      %v651 = vld [vmem:[%s591 + $0xec] sm:$0xf]
      %v652 = vld [vmem:[%s591 + $0xf0] sm:$0xf]
      %v653 = vld [vmem:[%s591 + $0xf4] sm:$0xf]
      %v654 = vld [vmem:[%s591 + $0xf8] sm:$0xf]
      %v655 = vld [vmem:[%s591 + $0xfc] sm:$0xf]
      %v656 = vld [vmem:[%s591 + $0x100] sm:$0xf]
      %v657 = vld [vmem:[%s591 + $0x104] sm:$0xf]
      %v658 = vld [vmem:[%s591 + $0x108] sm:$0xf]
      %v659 = vld [vmem:[%s591 + $0x10c] sm:$0xf]
      %v660 = vld [vmem:[%s591 + $0x110] sm:$0xf]
      %v661 = vld [vmem:[%s591 + $0x114] sm:$0xf]
      %v662 = vld [vmem:[%s591 + $0x118] sm:$0xf]
      %v663 = vld [vmem:[%s591 + $0x11c] sm:$0xf]
      %v664 = vld [vmem:[%s591 + $0x120] sm:$0xf]
      %v665 = vld [vmem:[%s591 + $0x124] sm:$0xf]
      %v666 = vld [vmem:[%s591 + $0x128] sm:$0xf]
      %v667 = vld [vmem:[%s591 + $0x12c] sm:$0xf]
      %v668 = vld [vmem:[%s591 + $0x130] sm:$0xf]
      %v669 = vld [vmem:[%s591 + $0x134] sm:$0xf]
      %v670 = vld [vmem:[%s591 + $0x138] sm:$0xf]
      %v671 = vld [vmem:[%s591 + $0x13c] sm:$0xf]
      %v672 = vld [vmem:[%s591 + $0x140] sm:$0xf]
      %v673 = vld [vmem:[%s591 + $0x144] sm:$0xf]
      %v674 = vld [vmem:[%s591 + $0x148] sm:$0xf]
      %v675 = vld [vmem:[%s591 + $0x14c] sm:$0xf]
      %v676 = vld [vmem:[%s591 + $0x150] sm:$0xf]
      %v677 = vld [vmem:[%s591 + $0x154] sm:$0xf]
      %v678 = vld [vmem:[%s591 + $0x158] sm:$0xf]
      %v679 = vld [vmem:[%s591 + $0x15c] sm:$0xf]
      %v680 = vld [vmem:[%s591 + $0x160] sm:$0xf]
      %v681 = vld [vmem:[%s591 + $0x164] sm:$0xf]
      %v682 = vld [vmem:[%s591 + $0x168] sm:$0xf]
      %v683 = vld [vmem:[%s591 + $0x16c] sm:$0xf]
      %v684 = vld [vmem:[%s591 + $0x170] sm:$0xf]
      %v685 = vld [vmem:[%s591 + $0x174] sm:$0xf]
      %v686 = vld [vmem:[%s591 + $0x178] sm:$0xf]
      %v687 = vld [vmem:[%s591 + $0x17c] sm:$0xf]
      %v688 = vld [vmem:[%s591 + $0x180] sm:$0xf]
      %v689 = vld [vmem:[%s591 + $0x184] sm:$0xf]
      %v690 = vld [vmem:[%s591 + $0x188] sm:$0xf]
      %v691 = vld [vmem:[%s591 + $0x18c] sm:$0xf]
      %v692 = vld [vmem:[%s591 + $0x190] sm:$0xf]
      %v693 = vld [vmem:[%s591 + $0x194] sm:$0xf]
      %v694 = vld [vmem:[%s591 + $0x198] sm:$0xf]
      %v695 = vld [vmem:[%s591 + $0x19c] sm:$0xf]
      %v696 = vld [vmem:[%s591 + $0x1a0] sm:$0xf]
      %v697 = vld [vmem:[%s591 + $0x1a4] sm:$0xf]
      %v698 = vld [vmem:[%s591 + $0x1a8] sm:$0xf]
      %v699 = vld [vmem:[%s591 + $0x1ac] sm:$0xf]
      %v700 = vld [vmem:[%s591 + $0x1b0] sm:$0xf]
      %v701 = vld [vmem:[%s591 + $0x1b4] sm:$0xf]
      %v702 = vld [vmem:[%s591 + $0x1b8] sm:$0xf]
      %v703 = vld [vmem:[%s591 + $0x1bc] sm:$0xf]
      %v704 = vld [vmem:[%s591 + $0x1c0] sm:$0xf]
      %v705 = vld [vmem:[%s591 + $0x1c4] sm:$0xf]
      %v706 = vld [vmem:[%s591 + $0x1c8] sm:$0xf]
      %v707 = vld [vmem:[%s591 + $0x1cc] sm:$0xf]
      %v708 = vld [vmem:[%s591 + $0x1d0] sm:$0xf]
      %v709 = vld [vmem:[%s591 + $0x1d4] sm:$0xf]
      %v710 = vld [vmem:[%s591 + $0x1d8] sm:$0xf]
      %v711 = vld [vmem:[%s591 + $0x1dc] sm:$0xf]
      %v712 = vld [vmem:[%s591 + $0x1e0] sm:$0xf]
      %v713 = vld [vmem:[%s591 + $0x1e4] sm:$0xf]
      %v714 = vld [vmem:[%s591 + $0x1e8] sm:$0xf]
      %v715 = vld [vmem:[%s591 + $0x1ec] sm:$0xf]
      %v716 = vld [vmem:[%s591 + $0x1f0] sm:$0xf]
      %v717 = vld [vmem:[%s591 + $0x1f4] sm:$0xf]
      %v718 = vld [vmem:[%s591 + $0x1f8] sm:$0xf]
      %v719 = vld [vmem:[%s591 + $0x1fc] sm:$0xf]
      %v720 = vpack.i.b16 %v453, %v452
      %v721 = vpack.i.b16 %v455, %v588
      %v722 = vpack.i.b16 %v589, %v456
      %v723 = vpack.i.b16 %v459, %v458
      %v725 = vcombine.low %v720, %v721
      %v726 = vcombine.high %v720, %v721
      %v727 = vcombine.low %v722, %v723
      %v728 = vcombine.high %v722, %v723
      %v729 = vcombine.high %v590, %v590
      %v731 = vunpack.c.l.s4 1966171168
      %v732 = vunpack.c.0.s8 %v731
      %v733 = vlaneseq
      %v734 = vshrl.u32 %v733, 7
      %v735 = vsub.s32 %v732, %v734
      %v736 = vrot.slane %v725, %v735
      %v738 = vunpack.c.l.s4 1966171168
      %v739 = vunpack.c.0.s8 %v738
      %v740 = vlaneseq
      %v741 = vshrl.u32 %v740, 7
      %v742 = vsub.s32 %v739, %v741
      %v743 = vrot.slane %v726, %v742
      %v745 = vunpack.c.l.s4 1966171168
      %v746 = vunpack.c.0.s8 %v745
      %v747 = vlaneseq
      %v748 = vshrl.u32 %v747, 7
      %v749 = vsub.s32 %v746, %v748
      %v750 = vrot.slane %v727, %v749
      %v752 = vunpack.c.l.s4 1966171168
      %v753 = vunpack.c.0.s8 %v752
      %v754 = vlaneseq
      %v755 = vshrl.u32 %v754, 7
      %v756 = vsub.s32 %v753, %v755
      %v757 = vrot.slane %v728, %v756
      %v759 = vunpack.c.l.s4 1966171168
      %v760 = vunpack.c.0.s8 %v759
      %v761 = vlaneseq
      %v762 = vshrl.u32 %v761, 7
      %v763 = vsub.s32 %v760, %v762
      %v764 = vrot.slane %v590, %v763
      %v766 = vunpack.c.l.s4 1966171168
      %v767 = vunpack.c.0.s8 %v766
      %v768 = vlaneseq
      %v769 = vshrl.u32 %v768, 7
      %v770 = vsub.s32 %v767, %v769
      %v771 = vrot.slane %v729, %v770
      %v772 = vcombine.low %v736, %v750
      %v773 = vcombine.high %v736, %v750
      %v774 = vcombine.low %v743, %v757
      %v775 = vcombine.high %v743, %v757
      %v776 = vcombine.high %v764, %v764
      %v777 = vcombine.high %v771, %v771
      %v779 = vunpack.c.l.s4 1966171168
      %v780 = vunpack.c.0.s8 %v779
      %v781 = vlaneseq
      %v782 = vshrl.u32 %v781, 7
      %v783 = vsub.s32 %v780, %v782
      %v784 = vrot.slane %v772, %v783
      %v786 = vunpack.c.l.s4 1966171168
      %v787 = vunpack.c.0.s8 %v786
      %v788 = vlaneseq
      %v789 = vshrl.u32 %v788, 7
      %v790 = vsub.s32 %v787, %v789
      %v791 = vrot.slane %v774, %v790
      %v793 = vunpack.c.l.s4 1966171168
      %v794 = vunpack.c.0.s8 %v793
      %v795 = vlaneseq
      %v796 = vshrl.u32 %v795, 7
      %v797 = vsub.s32 %v794, %v796
      %v798 = vrot.slane %v773, %v797
      %v800 = vunpack.c.l.s4 1966171168
      %v801 = vunpack.c.0.s8 %v800
      %v802 = vlaneseq
      %v803 = vshrl.u32 %v802, 7
      %v804 = vsub.s32 %v801, %v803
      %v805 = vrot.slane %v775, %v804
      %v807 = vunpack.c.l.s4 1966171168
      %v808 = vunpack.c.0.s8 %v807
      %v809 = vlaneseq
      %v810 = vshrl.u32 %v809, 7
      %v811 = vsub.s32 %v808, %v810
      %v812 = vrot.slane %v764, %v811
      %v814 = vunpack.c.l.s4 1966171168
      %v815 = vunpack.c.0.s8 %v814
      %v816 = vlaneseq
      %v817 = vshrl.u32 %v816, 7
      %v818 = vsub.s32 %v815, %v817
      %v819 = vrot.slane %v771, %v818
      %v821 = vunpack.c.l.s4 1966171168
      %v822 = vunpack.c.0.s8 %v821
      %v823 = vlaneseq
      %v824 = vshrl.u32 %v823, 7
      %v825 = vsub.s32 %v822, %v824
      %v826 = vrot.slane %v776, %v825
      %v828 = vunpack.c.l.s4 1966171168
      %v829 = vunpack.c.0.s8 %v828
      %v830 = vlaneseq
      %v831 = vshrl.u32 %v830, 7
      %v832 = vsub.s32 %v829, %v831
      %v833 = vrot.slane %v777, %v832
      %v834 = vcombine.low %v784, %v812
      %v835 = vcombine.high %v784, %v812
      %v836 = vcombine.low %v791, %v819
      %v837 = vcombine.high %v791, %v819
      %v838 = vcombine.low %v798, %v826
      %v839 = vcombine.high %v798, %v826
      %v840 = vcombine.low %v805, %v833
      %v841 = vcombine.high %v805, %v833
      %v978 = vunpack.c.l.b16 %v592
      %v979 = vunpack.c.l.b16 %v593
      %v980 = vunpack.c.l.b16 %v594
      %v981 = vunpack.c.l.b16 %v595
      %v982 = vunpack.c.l.b16 %v596
      %v983 = vunpack.c.l.b16 %v597
      %v984 = vunpack.c.l.b16 %v598
      %v985 = vunpack.c.l.b16 %v599
      %v986 = vunpack.c.l.b16 %v600
      %v987 = vunpack.c.l.b16 %v601
      %v988 = vunpack.c.l.b16 %v602
      %v989 = vunpack.c.l.b16 %v603
      %v990 = vunpack.c.l.b16 %v604
      %v991 = vunpack.c.l.b16 %v605
      %v992 = vunpack.c.l.b16 %v606
      %v993 = vunpack.c.l.b16 %v607
      %v994 = vunpack.c.l.b16 %v608
      %v995 = vunpack.c.l.b16 %v609
      %v996 = vunpack.c.l.b16 %v610
      %v997 = vunpack.c.l.b16 %v611
      %v998 = vunpack.c.l.b16 %v612
      %v999 = vunpack.c.l.b16 %v613
      %v1000 = vunpack.c.l.b16 %v614
      %v1001 = vunpack.c.l.b16 %v615
      %v1002 = vunpack.c.l.b16 %v616
      %v1003 = vunpack.c.l.b16 %v617
      %v1004 = vunpack.c.l.b16 %v618
      %v1005 = vunpack.c.l.b16 %v619
      %v1006 = vunpack.c.l.b16 %v620
      %v1007 = vunpack.c.l.b16 %v621
      %v1008 = vunpack.c.l.b16 %v622
      %v1009 = vunpack.c.l.b16 %v623
      %v1010 = vunpack.c.l.b16 %v624
      %v1011 = vunpack.c.l.b16 %v625
      %v1012 = vunpack.c.l.b16 %v626
      %v1013 = vunpack.c.l.b16 %v627
      %v1014 = vunpack.c.l.b16 %v628
      %v1015 = vunpack.c.l.b16 %v629
      %v1016 = vunpack.c.l.b16 %v630
      %v1017 = vunpack.c.l.b16 %v631
      %v1018 = vunpack.c.l.b16 %v632
      %v1019 = vunpack.c.l.b16 %v633
      %v1020 = vunpack.c.l.b16 %v634
      %v1021 = vunpack.c.l.b16 %v635
      %v1022 = vunpack.c.l.b16 %v636
      %v1023 = vunpack.c.l.b16 %v637
      %v1024 = vunpack.c.l.b16 %v638
      %v1025 = vunpack.c.l.b16 %v639
      %v1026 = vunpack.c.l.b16 %v640
      %v1027 = vunpack.c.l.b16 %v641
      %v1028 = vunpack.c.l.b16 %v642
      %v1029 = vunpack.c.l.b16 %v643
      %v1030 = vunpack.c.l.b16 %v644
      %v1031 = vunpack.c.l.b16 %v645
      %v1032 = vunpack.c.l.b16 %v646
      %v1033 = vunpack.c.l.b16 %v647
      %v1034 = vunpack.c.l.b16 %v648
      %v1035 = vunpack.c.l.b16 %v649
      %v1036 = vunpack.c.l.b16 %v650
      %v1037 = vunpack.c.l.b16 %v651
      %v1038 = vunpack.c.l.b16 %v652
      %v1039 = vunpack.c.l.b16 %v653
      %v1040 = vunpack.c.l.b16 %v654
      %v1041 = vunpack.c.l.b16 %v655
      %v1042 = vunpack.c.l.b16 %v656
      %v1043 = vunpack.c.l.b16 %v657
      %v1044 = vunpack.c.l.b16 %v658
      %v1045 = vunpack.c.l.b16 %v659
      %v1046 = vunpack.c.l.b16 %v660
      %v1047 = vunpack.c.l.b16 %v661
      %v1048 = vunpack.c.l.b16 %v662
      %v1049 = vunpack.c.l.b16 %v663
      %v1050 = vunpack.c.l.b16 %v664
      %v1051 = vunpack.c.l.b16 %v665
      %v1052 = vunpack.c.l.b16 %v666
      %v1053 = vunpack.c.l.b16 %v667
      %v1054 = vunpack.c.l.b16 %v668
      %v1055 = vunpack.c.l.b16 %v669
      %v1056 = vunpack.c.l.b16 %v670
      %v1057 = vunpack.c.l.b16 %v671
      %v1058 = vunpack.c.l.b16 %v672
      %v1059 = vunpack.c.l.b16 %v673
      %v1060 = vunpack.c.l.b16 %v674
      %v1061 = vunpack.c.l.b16 %v675
      %v1062 = vunpack.c.l.b16 %v676
      %v1063 = vunpack.c.l.b16 %v677
      %v1064 = vunpack.c.l.b16 %v678
      %v1065 = vunpack.c.l.b16 %v679
      %v1066 = vunpack.c.l.b16 %v680
      %v1067 = vunpack.c.l.b16 %v681
      %v1068 = vunpack.c.l.b16 %v682
      %v1069 = vunpack.c.l.b16 %v683
      %v1070 = vunpack.c.l.b16 %v684
      %v1071 = vunpack.c.l.b16 %v685
      %v1072 = vunpack.c.l.b16 %v686
      %v1073 = vunpack.c.l.b16 %v687
      %v1074 = vunpack.c.l.b16 %v688
      %v1075 = vunpack.c.l.b16 %v689
      %v1076 = vunpack.c.l.b16 %v690
      %v1077 = vunpack.c.l.b16 %v691
      %v1078 = vunpack.c.l.b16 %v692
      %v1079 = vunpack.c.l.b16 %v693
      %v1080 = vunpack.c.l.b16 %v694
      %v1081 = vunpack.c.l.b16 %v695
      %v1082 = vunpack.c.l.b16 %v696
      %v1083 = vunpack.c.l.b16 %v697
      %v1084 = vunpack.c.l.b16 %v698
      %v1085 = vunpack.c.l.b16 %v699
      %v1086 = vunpack.c.l.b16 %v700
      %v1087 = vunpack.c.l.b16 %v701
      %v1088 = vunpack.c.l.b16 %v702
      %v1089 = vunpack.c.l.b16 %v703
      %v1090 = vunpack.c.l.b16 %v704
      %v1091 = vunpack.c.l.b16 %v705
      %v1092 = vunpack.c.l.b16 %v706
      %v1093 = vunpack.c.l.b16 %v707
      %v1094 = vunpack.c.l.b16 %v708
      %v1095 = vunpack.c.l.b16 %v709
      %v1096 = vunpack.c.l.b16 %v710
      %v1097 = vunpack.c.l.b16 %v711
      %v1098 = vunpack.c.l.b16 %v712
      %v1099 = vunpack.c.l.b16 %v713
      %v1100 = vunpack.c.l.b16 %v714
      %v1101 = vunpack.c.l.b16 %v715
      %v1102 = vunpack.c.l.b16 %v716
      %v1103 = vunpack.c.l.b16 %v717
      %v1104 = vunpack.c.l.b16 %v718
      %v1105 = vunpack.c.l.b16 %v719
      %v1106 = vpack.c.b16 %v979, %v978
      %v1107 = vpack.c.b16 %v981, %v980
      %v1108 = vpack.c.b16 %v983, %v982
      %v1109 = vpack.c.b16 %v985, %v984
      %v1110 = vpack.c.b16 %v987, %v986
      %v1111 = vpack.c.b16 %v989, %v988
      %v1112 = vpack.c.b16 %v991, %v990
      %v1113 = vpack.c.b16 %v993, %v992
      %v1114 = vpack.c.b16 %v995, %v994
      %v1115 = vpack.c.b16 %v997, %v996
      %v1116 = vpack.c.b16 %v999, %v998
      %v1117 = vpack.c.b16 %v1001, %v1000
      %v1118 = vpack.c.b16 %v1003, %v1002
      %v1119 = vpack.c.b16 %v1005, %v1004
      %v1120 = vpack.c.b16 %v1007, %v1006
      %v1121 = vpack.c.b16 %v1009, %v1008
      %v1122 = vpack.c.b16 %v1011, %v1010
      %v1123 = vpack.c.b16 %v1013, %v1012
      %v1124 = vpack.c.b16 %v1015, %v1014
      %v1125 = vpack.c.b16 %v1017, %v1016
      %v1126 = vpack.c.b16 %v1019, %v1018
      %v1127 = vpack.c.b16 %v1021, %v1020
      %v1128 = vpack.c.b16 %v1023, %v1022
      %v1129 = vpack.c.b16 %v1025, %v1024
      %v1130 = vpack.c.b16 %v1027, %v1026
      %v1131 = vpack.c.b16 %v1029, %v1028
      %v1132 = vpack.c.b16 %v1031, %v1030
      %v1133 = vpack.c.b16 %v1033, %v1032
      %v1134 = vpack.c.b16 %v1035, %v1034
      %v1135 = vpack.c.b16 %v1037, %v1036
      %v1136 = vpack.c.b16 %v1039, %v1038
      %v1137 = vpack.c.b16 %v1041, %v1040
      %v1138 = vpack.c.b16 %v1043, %v1042
      %v1139 = vpack.c.b16 %v1045, %v1044
      %v1140 = vpack.c.b16 %v1047, %v1046
      %v1141 = vpack.c.b16 %v1049, %v1048
      %v1142 = vpack.c.b16 %v1051, %v1050
      %v1143 = vpack.c.b16 %v1053, %v1052
      %v1144 = vpack.c.b16 %v1055, %v1054
      %v1145 = vpack.c.b16 %v1057, %v1056
      %v1146 = vpack.c.b16 %v1059, %v1058
      %v1147 = vpack.c.b16 %v1061, %v1060
      %v1148 = vpack.c.b16 %v1063, %v1062
      %v1149 = vpack.c.b16 %v1065, %v1064
      %v1150 = vpack.c.b16 %v1067, %v1066
      %v1151 = vpack.c.b16 %v1069, %v1068
      %v1152 = vpack.c.b16 %v1071, %v1070
      %v1153 = vpack.c.b16 %v1073, %v1072
      %v1154 = vpack.c.b16 %v1075, %v1074
      %v1155 = vpack.c.b16 %v1077, %v1076
      %v1156 = vpack.c.b16 %v1079, %v1078
      %v1157 = vpack.c.b16 %v1081, %v1080
      %v1158 = vpack.c.b16 %v1083, %v1082
      %v1159 = vpack.c.b16 %v1085, %v1084
      %v1160 = vpack.c.b16 %v1087, %v1086
      %v1161 = vpack.c.b16 %v1089, %v1088
      %v1162 = vpack.c.b16 %v1091, %v1090
      %v1163 = vpack.c.b16 %v1093, %v1092
      %v1164 = vpack.c.b16 %v1095, %v1094
      %v1165 = vpack.c.b16 %v1097, %v1096
      %v1166 = vpack.c.b16 %v1099, %v1098
      %v1167 = vpack.c.b16 %v1101, %v1100
      %v1168 = vpack.c.b16 %v1103, %v1102
      %v1169 = vpack.c.b16 %v1105, %v1104
      %1234 = vmatprep.subr.bf16.mxu0 0
      %1235 = vmatpush1.bf16.msra.mxu0 %v1106
      %1236 = vmatprep.subr.bf16.mxu0 0
      %1237 = vmatpush1.bf16.msra.mxu0 %v1107
      %1238 = vmatprep.subr.bf16.mxu0 0
      %1239 = vmatpush1.bf16.msra.mxu0 %v1108
      %1240 = vmatprep.subr.bf16.mxu0 0
      %1241 = vmatpush1.bf16.msra.mxu0 %v1109
      %1242 = vmatprep.subr.bf16.mxu0 0
      %1243 = vmatpush1.bf16.msra.mxu0 %v1110
      %1244 = vmatprep.subr.bf16.mxu0 0
      %1245 = vmatpush1.bf16.msra.mxu0 %v1111
      %1246 = vmatprep.subr.bf16.mxu0 0
      %1247 = vmatpush1.bf16.msra.mxu0 %v1112
      %1248 = vmatprep.subr.bf16.mxu0 0
      %1249 = vmatpush1.bf16.msra.mxu0 %v1113
      %1250 = vmatprep.subr.bf16.mxu0 0
      %1251 = vmatpush1.bf16.msra.mxu0 %v1114
      %1252 = vmatprep.subr.bf16.mxu0 0
      %1253 = vmatpush1.bf16.msra.mxu0 %v1115
      %1254 = vmatprep.subr.bf16.mxu0 0
      %1255 = vmatpush1.bf16.msra.mxu0 %v1116
      %1256 = vmatprep.subr.bf16.mxu0 0
      %1257 = vmatpush1.bf16.msra.mxu0 %v1117
      %1258 = vmatprep.subr.bf16.mxu0 0
      %1259 = vmatpush1.bf16.msra.mxu0 %v1118
      %1260 = vmatprep.subr.bf16.mxu0 0
      %1261 = vmatpush1.bf16.msra.mxu0 %v1119
      %1262 = vmatprep.subr.bf16.mxu0 0
      %1263 = vmatpush1.bf16.msra.mxu0 %v1120
      %1264 = vmatprep.subr.bf16.mxu0 0
      %1265 = vmatpush1.bf16.msra.mxu0 %v1121
      %1266 = vmatprep.mubr.bf16.mxu0 %v838
      %1267 = vmatmul.mubr.bf16.gmra.mrb[0].mxu0 %v834
      %v1268 = vpop.f32.mrb[0].mxu0
      %v1269 = vadd.f32 0.0, %v1268
      %v1270 = vpop.f32.mrb[0].mxu0
      %v1271 = vpop.f32.mrb[0].mxu0
      %v1272 = vadd.f32 0.0, %v1271
      %v1273 = vpop.f32.mrb[0].mxu0
      %1274 = vdwg.mxu0
      %1275 = vmatprep.subr.bf16.mxu0 0
      %1276 = vmatpush1.bf16.msra.mxu0 %v1122
      %1277 = vmatprep.subr.bf16.mxu0 0
      %1278 = vmatpush1.bf16.msra.mxu0 %v1123
      %1279 = vmatprep.subr.bf16.mxu0 0
      %1280 = vmatpush1.bf16.msra.mxu0 %v1124
      %1281 = vmatprep.subr.bf16.mxu0 0
      %1282 = vmatpush1.bf16.msra.mxu0 %v1125
      %1283 = vmatprep.subr.bf16.mxu0 0
      %1284 = vmatpush1.bf16.msra.mxu0 %v1126
      %1285 = vmatprep.subr.bf16.mxu0 0
      %1286 = vmatpush1.bf16.msra.mxu0 %v1127
      %1287 = vmatprep.subr.bf16.mxu0 0
      %1288 = vmatpush1.bf16.msra.mxu0 %v1128
      %1289 = vmatprep.subr.bf16.mxu0 0
      %1290 = vmatpush1.bf16.msra.mxu0 %v1129
      %1291 = vmatprep.subr.bf16.mxu0 0
      %1292 = vmatpush1.bf16.msra.mxu0 %v1130
      %1293 = vmatprep.subr.bf16.mxu0 0
      %1294 = vmatpush1.bf16.msra.mxu0 %v1131
      %1295 = vmatprep.subr.bf16.mxu0 0
      %1296 = vmatpush1.bf16.msra.mxu0 %v1132
      %1297 = vmatprep.subr.bf16.mxu0 0
      %1298 = vmatpush1.bf16.msra.mxu0 %v1133
      %1299 = vmatprep.subr.bf16.mxu0 0
      %1300 = vmatpush1.bf16.msra.mxu0 %v1134
      %1301 = vmatprep.subr.bf16.mxu0 0
      %1302 = vmatpush1.bf16.msra.mxu0 %v1135
      %1303 = vmatprep.subr.bf16.mxu0 0
      %1304 = vmatpush1.bf16.msra.mxu0 %v1136
      %1305 = vmatprep.subr.bf16.mxu0 0
      %1306 = vmatpush1.bf16.msra.mxu0 %v1137
      %1307 = vmatprep.mubr.bf16.mxu0 %v839
      %1308 = vmatmul.mubr.bf16.gmra.mrb[0].mxu0 %v835
      %v1309 = vpop.f32.mrb[0].mxu0
      %v1310 = vadd.f32 %v1269, %v1309
      %v1311 = vpop.f32.mrb[0].mxu0
      %v1312 = vpop.f32.mrb[0].mxu0
      %v1313 = vadd.f32 %v1272, %v1312
      %v1314 = vpop.f32.mrb[0].mxu0
      %1315 = vdwg.mxu0
      %1316 = vmatprep.subr.bf16.mxu0 0
      %1317 = vmatpush1.bf16.msra.mxu0 %v1138
      %1318 = vmatprep.subr.bf16.mxu0 0
      %1319 = vmatpush1.bf16.msra.mxu0 %v1139
      %1320 = vmatprep.subr.bf16.mxu0 0
      %1321 = vmatpush1.bf16.msra.mxu0 %v1140
      %1322 = vmatprep.subr.bf16.mxu0 0
      %1323 = vmatpush1.bf16.msra.mxu0 %v1141
      %1324 = vmatprep.subr.bf16.mxu0 0
      %1325 = vmatpush1.bf16.msra.mxu0 %v1142
      %1326 = vmatprep.subr.bf16.mxu0 0
      %1327 = vmatpush1.bf16.msra.mxu0 %v1143
      %1328 = vmatprep.subr.bf16.mxu0 0
      %1329 = vmatpush1.bf16.msra.mxu0 %v1144
      %1330 = vmatprep.subr.bf16.mxu0 0
      %1331 = vmatpush1.bf16.msra.mxu0 %v1145
      %1332 = vmatprep.subr.bf16.mxu0 0
      %1333 = vmatpush1.bf16.msra.mxu0 %v1146
      %1334 = vmatprep.subr.bf16.mxu0 0
      %1335 = vmatpush1.bf16.msra.mxu0 %v1147
      %1336 = vmatprep.subr.bf16.mxu0 0
      %1337 = vmatpush1.bf16.msra.mxu0 %v1148
      %1338 = vmatprep.subr.bf16.mxu0 0
      %1339 = vmatpush1.bf16.msra.mxu0 %v1149
      %1340 = vmatprep.subr.bf16.mxu0 0
      %1341 = vmatpush1.bf16.msra.mxu0 %v1150
      %1342 = vmatprep.subr.bf16.mxu0 0
      %1343 = vmatpush1.bf16.msra.mxu0 %v1151
      %1344 = vmatprep.subr.bf16.mxu0 0
      %1345 = vmatpush1.bf16.msra.mxu0 %v1152
      %1346 = vmatprep.subr.bf16.mxu0 0
      %1347 = vmatpush1.bf16.msra.mxu0 %v1153
      %1348 = vmatprep.mubr.bf16.mxu0 %v840
      %1349 = vmatmul.mubr.bf16.gmra.mrb[0].mxu0 %v836
      %v1350 = vpop.f32.mrb[0].mxu0
      %v1351 = vadd.f32 %v1310, %v1350
      %v1352 = vpop.f32.mrb[0].mxu0
      %v1353 = vpop.f32.mrb[0].mxu0
      %v1354 = vadd.f32 %v1313, %v1353
      %v1355 = vpop.f32.mrb[0].mxu0
      %1356 = vdwg.mxu0
      %1357 = vmatprep.subr.bf16.mxu0 0
      %1358 = vmatpush1.bf16.msra.mxu0 %v1154
      %1359 = vmatprep.subr.bf16.mxu0 0
      %1360 = vmatpush1.bf16.msra.mxu0 %v1155
      %1361 = vmatprep.subr.bf16.mxu0 0
      %1362 = vmatpush1.bf16.msra.mxu0 %v1156
      %1363 = vmatprep.subr.bf16.mxu0 0
      %1364 = vmatpush1.bf16.msra.mxu0 %v1157
      %1365 = vmatprep.subr.bf16.mxu0 0
      %1366 = vmatpush1.bf16.msra.mxu0 %v1158
      %1367 = vmatprep.subr.bf16.mxu0 0
      %1368 = vmatpush1.bf16.msra.mxu0 %v1159
      %1369 = vmatprep.subr.bf16.mxu0 0
      %1370 = vmatpush1.bf16.msra.mxu0 %v1160
      %1371 = vmatprep.subr.bf16.mxu0 0
      %1372 = vmatpush1.bf16.msra.mxu0 %v1161
      %1373 = vmatprep.subr.bf16.mxu0 0
      %1374 = vmatpush1.bf16.msra.mxu0 %v1162
      %1375 = vmatprep.subr.bf16.mxu0 0
      %1376 = vmatpush1.bf16.msra.mxu0 %v1163
      %1377 = vmatprep.subr.bf16.mxu0 0
      %1378 = vmatpush1.bf16.msra.mxu0 %v1164
      %1379 = vmatprep.subr.bf16.mxu0 0
      %1380 = vmatpush1.bf16.msra.mxu0 %v1165
      %1381 = vmatprep.subr.bf16.mxu0 0
      %1382 = vmatpush1.bf16.msra.mxu0 %v1166
      %1383 = vmatprep.subr.bf16.mxu0 0
      %1384 = vmatpush1.bf16.msra.mxu0 %v1167
      %1385 = vmatprep.subr.bf16.mxu0 0
      %1386 = vmatpush1.bf16.msra.mxu0 %v1168
      %1387 = vmatprep.subr.bf16.mxu0 0
      %1388 = vmatpush1.bf16.msra.mxu0 %v1169
      %1389 = vmatprep.mubr.bf16.mxu0 %v841
      %1390 = vmatmul.mubr.bf16.gmra.mrb[0].mxu0 %v837
      %v1391 = vpop.f32.mrb[0].mxu0
      %v1392 = vadd.f32 %v1351, %v1391
      %v1393 = vpop.f32.mrb[0].mxu0
      %v1394 = vpop.f32.mrb[0].mxu0
      %v1395 = vadd.f32 %v1354, %v1394
      %v1396 = vpop.f32.mrb[0].mxu0
      %1397 = vdwg.mxu0
      %v1398 = vpack.i.b16 %v452, %v451
      %v1399 = vpack.i.b16 %v454, %v453
      %v1400 = vpack.i.b16 %v456, %v455
      %v1401 = vpack.i.b16 %v458, %v457
      %v1403 = vcombine.low %v1398, %v1399
      %v1404 = vcombine.high %v1398, %v1399
      %v1405 = vcombine.low %v1400, %v1401
      %v1406 = vcombine.high %v1400, %v1401
      %v1407 = vcombine.high %v459, %v459
      %v1409 = vunpack.c.l.s4 1966171168
      %v1410 = vunpack.c.0.s8 %v1409
      %v1411 = vlaneseq
      %v1412 = vshrl.u32 %v1411, 7
      %v1413 = vsub.s32 %v1410, %v1412
      %v1414 = vrot.slane %v1403, %v1413
      %v1416 = vunpack.c.l.s4 1966171168
      %v1417 = vunpack.c.0.s8 %v1416
      %v1418 = vlaneseq
      %v1419 = vshrl.u32 %v1418, 7
      %v1420 = vsub.s32 %v1417, %v1419
      %v1421 = vrot.slane %v1404, %v1420
      %v1423 = vunpack.c.l.s4 1966171168
      %v1424 = vunpack.c.0.s8 %v1423
      %v1425 = vlaneseq
      %v1426 = vshrl.u32 %v1425, 7
      %v1427 = vsub.s32 %v1424, %v1426
      %v1428 = vrot.slane %v1405, %v1427
      %v1430 = vunpack.c.l.s4 1966171168
      %v1431 = vunpack.c.0.s8 %v1430
      %v1432 = vlaneseq
      %v1433 = vshrl.u32 %v1432, 7
      %v1434 = vsub.s32 %v1431, %v1433
      %v1435 = vrot.slane %v1406, %v1434
      %v1437 = vunpack.c.l.s4 1966171168
      %v1438 = vunpack.c.0.s8 %v1437
      %v1439 = vlaneseq
      %v1440 = vshrl.u32 %v1439, 7
      %v1441 = vsub.s32 %v1438, %v1440
      %v1442 = vrot.slane %v459, %v1441
      %v1444 = vunpack.c.l.s4 1966171168
      %v1445 = vunpack.c.0.s8 %v1444
      %v1446 = vlaneseq
      %v1447 = vshrl.u32 %v1446, 7
      %v1448 = vsub.s32 %v1445, %v1447
      %v1449 = vrot.slane %v1407, %v1448
      %v1450 = vcombine.low %v1414, %v1428
      %v1451 = vcombine.high %v1414, %v1428
      %v1452 = vcombine.low %v1421, %v1435
      %v1453 = vcombine.high %v1421, %v1435
      %v1454 = vcombine.high %v1442, %v1442
      %v1455 = vcombine.high %v1449, %v1449
      %v1457 = vunpack.c.l.s4 1966171168
      %v1458 = vunpack.c.0.s8 %v1457
      %v1459 = vlaneseq
      %v1460 = vshrl.u32 %v1459, 7
      %v1461 = vsub.s32 %v1458, %v1460
      %v1462 = vrot.slane %v1450, %v1461
      %v1464 = vunpack.c.l.s4 1966171168
      %v1465 = vunpack.c.0.s8 %v1464
      %v1466 = vlaneseq
      %v1467 = vshrl.u32 %v1466, 7
      %v1468 = vsub.s32 %v1465, %v1467
      %v1469 = vrot.slane %v1452, %v1468
      %v1471 = vunpack.c.l.s4 1966171168
      %v1472 = vunpack.c.0.s8 %v1471
      %v1473 = vlaneseq
      %v1474 = vshrl.u32 %v1473, 7
      %v1475 = vsub.s32 %v1472, %v1474
      %v1476 = vrot.slane %v1451, %v1475
      %v1478 = vunpack.c.l.s4 1966171168
      %v1479 = vunpack.c.0.s8 %v1478
      %v1480 = vlaneseq
      %v1481 = vshrl.u32 %v1480, 7
      %v1482 = vsub.s32 %v1479, %v1481
      %v1483 = vrot.slane %v1453, %v1482
      %v1485 = vunpack.c.l.s4 1966171168
      %v1486 = vunpack.c.0.s8 %v1485
      %v1487 = vlaneseq
      %v1488 = vshrl.u32 %v1487, 7
      %v1489 = vsub.s32 %v1486, %v1488
      %v1490 = vrot.slane %v1442, %v1489
      %v1492 = vunpack.c.l.s4 1966171168
      %v1493 = vunpack.c.0.s8 %v1492
      %v1494 = vlaneseq
      %v1495 = vshrl.u32 %v1494, 7
      %v1496 = vsub.s32 %v1493, %v1495
      %v1497 = vrot.slane %v1449, %v1496
      %v1499 = vunpack.c.l.s4 1966171168
      %v1500 = vunpack.c.0.s8 %v1499
      %v1501 = vlaneseq
      %v1502 = vshrl.u32 %v1501, 7
      %v1503 = vsub.s32 %v1500, %v1502
      %v1504 = vrot.slane %v1454, %v1503
      %v1506 = vunpack.c.l.s4 1966171168
      %v1507 = vunpack.c.0.s8 %v1506
      %v1508 = vlaneseq
      %v1509 = vshrl.u32 %v1508, 7
      %v1510 = vsub.s32 %v1507, %v1509
      %v1511 = vrot.slane %v1455, %v1510
      %v1512 = vcombine.low %v1462, %v1490
      %v1513 = vcombine.high %v1462, %v1490
      %v1514 = vcombine.low %v1469, %v1497
      %v1515 = vcombine.high %v1469, %v1497
      %v1516 = vcombine.low %v1476, %v1504
      %v1517 = vcombine.high %v1476, %v1504
      %v1518 = vcombine.low %v1483, %v1511
      %v1519 = vcombine.high %v1483, %v1511
      %v1656 = vunpack.c.l.b16 %v460
      %v1657 = vunpack.c.l.b16 %v461
      %v1658 = vunpack.c.l.b16 %v462
      %v1659 = vunpack.c.l.b16 %v463
      %v1660 = vunpack.c.l.b16 %v464
      %v1661 = vunpack.c.l.b16 %v465
      %v1662 = vunpack.c.l.b16 %v466
      %v1663 = vunpack.c.l.b16 %v467
      %v1664 = vunpack.c.l.b16 %v468
      %v1665 = vunpack.c.l.b16 %v469
      %v1666 = vunpack.c.l.b16 %v470
      %v1667 = vunpack.c.l.b16 %v471
      %v1668 = vunpack.c.l.b16 %v472
      %v1669 = vunpack.c.l.b16 %v473
      %v1670 = vunpack.c.l.b16 %v474
      %v1671 = vunpack.c.l.b16 %v475
      %v1672 = vunpack.c.l.b16 %v476
      %v1673 = vunpack.c.l.b16 %v477
      %v1674 = vunpack.c.l.b16 %v478
      %v1675 = vunpack.c.l.b16 %v479
      %v1676 = vunpack.c.l.b16 %v480
      %v1677 = vunpack.c.l.b16 %v481
      %v1678 = vunpack.c.l.b16 %v482
      %v1679 = vunpack.c.l.b16 %v483
      %v1680 = vunpack.c.l.b16 %v484
      %v1681 = vunpack.c.l.b16 %v485
      %v1682 = vunpack.c.l.b16 %v486
      %v1683 = vunpack.c.l.b16 %v487
      %v1684 = vunpack.c.l.b16 %v488
      %v1685 = vunpack.c.l.b16 %v489
      %v1686 = vunpack.c.l.b16 %v490
      %v1687 = vunpack.c.l.b16 %v491
      %v1688 = vunpack.c.l.b16 %v492
      %v1689 = vunpack.c.l.b16 %v493
      %v1690 = vunpack.c.l.b16 %v494
      %v1691 = vunpack.c.l.b16 %v495
      %v1692 = vunpack.c.l.b16 %v496
      %v1693 = vunpack.c.l.b16 %v497
      %v1694 = vunpack.c.l.b16 %v498
      %v1695 = vunpack.c.l.b16 %v499
      %v1696 = vunpack.c.l.b16 %v500
      %v1697 = vunpack.c.l.b16 %v501
      %v1698 = vunpack.c.l.b16 %v502
      %v1699 = vunpack.c.l.b16 %v503
      %v1700 = vunpack.c.l.b16 %v504
      %v1701 = vunpack.c.l.b16 %v505
      %v1702 = vunpack.c.l.b16 %v506
      %v1703 = vunpack.c.l.b16 %v507
      %v1704 = vunpack.c.l.b16 %v508
      %v1705 = vunpack.c.l.b16 %v509
      %v1706 = vunpack.c.l.b16 %v510
      %v1707 = vunpack.c.l.b16 %v511
      %v1708 = vunpack.c.l.b16 %v512
      %v1709 = vunpack.c.l.b16 %v513
      %v1710 = vunpack.c.l.b16 %v514
      %v1711 = vunpack.c.l.b16 %v515
      %v1712 = vunpack.c.l.b16 %v516
      %v1713 = vunpack.c.l.b16 %v517
      %v1714 = vunpack.c.l.b16 %v518
      %v1715 = vunpack.c.l.b16 %v519
      %v1716 = vunpack.c.l.b16 %v520
      %v1717 = vunpack.c.l.b16 %v521
      %v1718 = vunpack.c.l.b16 %v522
      %v1719 = vunpack.c.l.b16 %v523
      %v1720 = vunpack.c.l.b16 %v524
      %v1721 = vunpack.c.l.b16 %v525
      %v1722 = vunpack.c.l.b16 %v526
      %v1723 = vunpack.c.l.b16 %v527
      %v1724 = vunpack.c.l.b16 %v528
      %v1725 = vunpack.c.l.b16 %v529
      %v1726 = vunpack.c.l.b16 %v530
      %v1727 = vunpack.c.l.b16 %v531
      %v1728 = vunpack.c.l.b16 %v532
      %v1729 = vunpack.c.l.b16 %v533
      %v1730 = vunpack.c.l.b16 %v534
      %v1731 = vunpack.c.l.b16 %v535
      %v1732 = vunpack.c.l.b16 %v536
      %v1733 = vunpack.c.l.b16 %v537
      %v1734 = vunpack.c.l.b16 %v538
      %v1735 = vunpack.c.l.b16 %v539
      %v1736 = vunpack.c.l.b16 %v540
      %v1737 = vunpack.c.l.b16 %v541
      %v1738 = vunpack.c.l.b16 %v542
      %v1739 = vunpack.c.l.b16 %v543
      %v1740 = vunpack.c.l.b16 %v544
      %v1741 = vunpack.c.l.b16 %v545
      %v1742 = vunpack.c.l.b16 %v546
      %v1743 = vunpack.c.l.b16 %v547
      %v1744 = vunpack.c.l.b16 %v548
      %v1745 = vunpack.c.l.b16 %v549
      %v1746 = vunpack.c.l.b16 %v550
      %v1747 = vunpack.c.l.b16 %v551
      %v1748 = vunpack.c.l.b16 %v552
      %v1749 = vunpack.c.l.b16 %v553
      %v1750 = vunpack.c.l.b16 %v554
      %v1751 = vunpack.c.l.b16 %v555
      %v1752 = vunpack.c.l.b16 %v556
      %v1753 = vunpack.c.l.b16 %v557
      %v1754 = vunpack.c.l.b16 %v558
      %v1755 = vunpack.c.l.b16 %v559
      %v1756 = vunpack.c.l.b16 %v560
      %v1757 = vunpack.c.l.b16 %v561
      %v1758 = vunpack.c.l.b16 %v562
      %v1759 = vunpack.c.l.b16 %v563
      %v1760 = vunpack.c.l.b16 %v564
      %v1761 = vunpack.c.l.b16 %v565
      %v1762 = vunpack.c.l.b16 %v566
      %v1763 = vunpack.c.l.b16 %v567
      %v1764 = vunpack.c.l.b16 %v568
      %v1765 = vunpack.c.l.b16 %v569
      %v1766 = vunpack.c.l.b16 %v570
      %v1767 = vunpack.c.l.b16 %v571
      %v1768 = vunpack.c.l.b16 %v572
      %v1769 = vunpack.c.l.b16 %v573
      %v1770 = vunpack.c.l.b16 %v574
      %v1771 = vunpack.c.l.b16 %v575
      %v1772 = vunpack.c.l.b16 %v576
      %v1773 = vunpack.c.l.b16 %v577
      %v1774 = vunpack.c.l.b16 %v578
      %v1775 = vunpack.c.l.b16 %v579
      %v1776 = vunpack.c.l.b16 %v580
      %v1777 = vunpack.c.l.b16 %v581
      %v1778 = vunpack.c.l.b16 %v582
      %v1779 = vunpack.c.l.b16 %v583
      %v1780 = vunpack.c.l.b16 %v584
      %v1781 = vunpack.c.l.b16 %v585
      %v1782 = vunpack.c.l.b16 %v586
      %v1783 = vunpack.c.l.b16 %v587
      %v1784 = vpack.c.b16 %v1657, %v1656
      %v1785 = vpack.c.b16 %v1659, %v1658
      %v1786 = vpack.c.b16 %v1661, %v1660
      %v1787 = vpack.c.b16 %v1663, %v1662
      %v1788 = vpack.c.b16 %v1665, %v1664
      %v1789 = vpack.c.b16 %v1667, %v1666
      %v1790 = vpack.c.b16 %v1669, %v1668
      %v1791 = vpack.c.b16 %v1671, %v1670
      %v1792 = vpack.c.b16 %v1673, %v1672
      %v1793 = vpack.c.b16 %v1675, %v1674
      %v1794 = vpack.c.b16 %v1677, %v1676
      %v1795 = vpack.c.b16 %v1679, %v1678
      %v1796 = vpack.c.b16 %v1681, %v1680
      %v1797 = vpack.c.b16 %v1683, %v1682
      %v1798 = vpack.c.b16 %v1685, %v1684
      %v1799 = vpack.c.b16 %v1687, %v1686
      %v1800 = vpack.c.b16 %v1689, %v1688
      %v1801 = vpack.c.b16 %v1691, %v1690
      %v1802 = vpack.c.b16 %v1693, %v1692
      %v1803 = vpack.c.b16 %v1695, %v1694
      %v1804 = vpack.c.b16 %v1697, %v1696
      %v1805 = vpack.c.b16 %v1699, %v1698
      %v1806 = vpack.c.b16 %v1701, %v1700
      %v1807 = vpack.c.b16 %v1703, %v1702
      %v1808 = vpack.c.b16 %v1705, %v1704
      %v1809 = vpack.c.b16 %v1707, %v1706
      %v1810 = vpack.c.b16 %v1709, %v1708
      %v1811 = vpack.c.b16 %v1711, %v1710
      %v1812 = vpack.c.b16 %v1713, %v1712
      %v1813 = vpack.c.b16 %v1715, %v1714
      %v1814 = vpack.c.b16 %v1717, %v1716
      %v1815 = vpack.c.b16 %v1719, %v1718
      %v1816 = vpack.c.b16 %v1721, %v1720
      %v1817 = vpack.c.b16 %v1723, %v1722
      %v1818 = vpack.c.b16 %v1725, %v1724
      %v1819 = vpack.c.b16 %v1727, %v1726
      %v1820 = vpack.c.b16 %v1729, %v1728
      %v1821 = vpack.c.b16 %v1731, %v1730
      %v1822 = vpack.c.b16 %v1733, %v1732
      %v1823 = vpack.c.b16 %v1735, %v1734
      %v1824 = vpack.c.b16 %v1737, %v1736
      %v1825 = vpack.c.b16 %v1739, %v1738
      %v1826 = vpack.c.b16 %v1741, %v1740
      %v1827 = vpack.c.b16 %v1743, %v1742
      %v1828 = vpack.c.b16 %v1745, %v1744
      %v1829 = vpack.c.b16 %v1747, %v1746
      %v1830 = vpack.c.b16 %v1749, %v1748
      %v1831 = vpack.c.b16 %v1751, %v1750
      %v1832 = vpack.c.b16 %v1753, %v1752
      %v1833 = vpack.c.b16 %v1755, %v1754
      %v1834 = vpack.c.b16 %v1757, %v1756
      %v1835 = vpack.c.b16 %v1759, %v1758
      %v1836 = vpack.c.b16 %v1761, %v1760
      %v1837 = vpack.c.b16 %v1763, %v1762
      %v1838 = vpack.c.b16 %v1765, %v1764
      %v1839 = vpack.c.b16 %v1767, %v1766
      %v1840 = vpack.c.b16 %v1769, %v1768
      %v1841 = vpack.c.b16 %v1771, %v1770
      %v1842 = vpack.c.b16 %v1773, %v1772
      %v1843 = vpack.c.b16 %v1775, %v1774
      %v1844 = vpack.c.b16 %v1777, %v1776
      %v1845 = vpack.c.b16 %v1779, %v1778
      %v1846 = vpack.c.b16 %v1781, %v1780
      %v1847 = vpack.c.b16 %v1783, %v1782
      %1912 = vmatprep.subr.bf16.mxu0 0
      %1913 = vmatpush1.bf16.msra.mxu0 %v1784
      %1914 = vmatprep.subr.bf16.mxu0 0
      %1915 = vmatpush1.bf16.msra.mxu0 %v1785
      %1916 = vmatprep.subr.bf16.mxu0 0
      %1917 = vmatpush1.bf16.msra.mxu0 %v1786
      %1918 = vmatprep.subr.bf16.mxu0 0
      %1919 = vmatpush1.bf16.msra.mxu0 %v1787
      %1920 = vmatprep.subr.bf16.mxu0 0
      %1921 = vmatpush1.bf16.msra.mxu0 %v1788
      %1922 = vmatprep.subr.bf16.mxu0 0
      %1923 = vmatpush1.bf16.msra.mxu0 %v1789
      %1924 = vmatprep.subr.bf16.mxu0 0
      %1925 = vmatpush1.bf16.msra.mxu0 %v1790
      %1926 = vmatprep.subr.bf16.mxu0 0
      %1927 = vmatpush1.bf16.msra.mxu0 %v1791
      %1928 = vmatprep.subr.bf16.mxu0 0
      %1929 = vmatpush1.bf16.msra.mxu0 %v1792
      %1930 = vmatprep.subr.bf16.mxu0 0
      %1931 = vmatpush1.bf16.msra.mxu0 %v1793
      %1932 = vmatprep.subr.bf16.mxu0 0
      %1933 = vmatpush1.bf16.msra.mxu0 %v1794
      %1934 = vmatprep.subr.bf16.mxu0 0
      %1935 = vmatpush1.bf16.msra.mxu0 %v1795
      %1936 = vmatprep.subr.bf16.mxu0 0
      %1937 = vmatpush1.bf16.msra.mxu0 %v1796
      %1938 = vmatprep.subr.bf16.mxu0 0
      %1939 = vmatpush1.bf16.msra.mxu0 %v1797
      %1940 = vmatprep.subr.bf16.mxu0 0
      %1941 = vmatpush1.bf16.msra.mxu0 %v1798
      %1942 = vmatprep.subr.bf16.mxu0 0
      %1943 = vmatpush1.bf16.msra.mxu0 %v1799
      %1944 = vmatprep.mubr.bf16.mxu0 %v1516
      %1945 = vmatmul.mubr.bf16.gmra.mrb[0].mxu0 %v1512
      %v1946 = vpop.f32.mrb[0].mxu0
      %v1947 = vadd.f32 %v1392, %v1946
      %v1948 = vpop.f32.mrb[0].mxu0
      %v1949 = vpop.f32.mrb[0].mxu0
      %v1950 = vadd.f32 %v1395, %v1949
      %v1951 = vpop.f32.mrb[0].mxu0
      %1952 = vdwg.mxu0
      %1953 = vmatprep.subr.bf16.mxu0 0
      %1954 = vmatpush1.bf16.msra.mxu0 %v1800
      %1955 = vmatprep.subr.bf16.mxu0 0
      %1956 = vmatpush1.bf16.msra.mxu0 %v1801
      %1957 = vmatprep.subr.bf16.mxu0 0
      %1958 = vmatpush1.bf16.msra.mxu0 %v1802
      %1959 = vmatprep.subr.bf16.mxu0 0
      %1960 = vmatpush1.bf16.msra.mxu0 %v1803
      %1961 = vmatprep.subr.bf16.mxu0 0
      %1962 = vmatpush1.bf16.msra.mxu0 %v1804
      %1963 = vmatprep.subr.bf16.mxu0 0
      %1964 = vmatpush1.bf16.msra.mxu0 %v1805
      %1965 = vmatprep.subr.bf16.mxu0 0
      %1966 = vmatpush1.bf16.msra.mxu0 %v1806
      %1967 = vmatprep.subr.bf16.mxu0 0
      %1968 = vmatpush1.bf16.msra.mxu0 %v1807
      %1969 = vmatprep.subr.bf16.mxu0 0
      %1970 = vmatpush1.bf16.msra.mxu0 %v1808
      %1971 = vmatprep.subr.bf16.mxu0 0
      %1972 = vmatpush1.bf16.msra.mxu0 %v1809
      %1973 = vmatprep.subr.bf16.mxu0 0
      %1974 = vmatpush1.bf16.msra.mxu0 %v1810
      %1975 = vmatprep.subr.bf16.mxu0 0
      %1976 = vmatpush1.bf16.msra.mxu0 %v1811
      %1977 = vmatprep.subr.bf16.mxu0 0
      %1978 = vmatpush1.bf16.msra.mxu0 %v1812
      %1979 = vmatprep.subr.bf16.mxu0 0
      %1980 = vmatpush1.bf16.msra.mxu0 %v1813
      %1981 = vmatprep.subr.bf16.mxu0 0
      %1982 = vmatpush1.bf16.msra.mxu0 %v1814
      %1983 = vmatprep.subr.bf16.mxu0 0
      %1984 = vmatpush1.bf16.msra.mxu0 %v1815
      %1985 = vmatprep.mubr.bf16.mxu0 %v1517
      %1986 = vmatmul.mubr.bf16.gmra.mrb[0].mxu0 %v1513
      %v1987 = vpop.f32.mrb[0].mxu0
      %v1988 = vadd.f32 %v1947, %v1987
      %v1989 = vpop.f32.mrb[0].mxu0
      %v1990 = vpop.f32.mrb[0].mxu0
      %v1991 = vadd.f32 %v1950, %v1990
      %v1992 = vpop.f32.mrb[0].mxu0
      %1993 = vdwg.mxu0
      %1994 = vmatprep.subr.bf16.mxu0 0
      %1995 = vmatpush1.bf16.msra.mxu0 %v1816
      %1996 = vmatprep.subr.bf16.mxu0 0
      %1997 = vmatpush1.bf16.msra.mxu0 %v1817
      %1998 = vmatprep.subr.bf16.mxu0 0
      %1999 = vmatpush1.bf16.msra.mxu0 %v1818
      %2000 = vmatprep.subr.bf16.mxu0 0
      %2001 = vmatpush1.bf16.msra.mxu0 %v1819
      %2002 = vmatprep.subr.bf16.mxu0 0
      %2003 = vmatpush1.bf16.msra.mxu0 %v1820
      %2004 = vmatprep.subr.bf16.mxu0 0
      %2005 = vmatpush1.bf16.msra.mxu0 %v1821
      %2006 = vmatprep.subr.bf16.mxu0 0
      %2007 = vmatpush1.bf16.msra.mxu0 %v1822
      %2008 = vmatprep.subr.bf16.mxu0 0
      %2009 = vmatpush1.bf16.msra.mxu0 %v1823
      %2010 = vmatprep.subr.bf16.mxu0 0
      %2011 = vmatpush1.bf16.msra.mxu0 %v1824
      %2012 = vmatprep.subr.bf16.mxu0 0
      %2013 = vmatpush1.bf16.msra.mxu0 %v1825
      %2014 = vmatprep.subr.bf16.mxu0 0
      %2015 = vmatpush1.bf16.msra.mxu0 %v1826
      %2016 = vmatprep.subr.bf16.mxu0 0
      %2017 = vmatpush1.bf16.msra.mxu0 %v1827
      %2018 = vmatprep.subr.bf16.mxu0 0
      %2019 = vmatpush1.bf16.msra.mxu0 %v1828
      %2020 = vmatprep.subr.bf16.mxu0 0
      %2021 = vmatpush1.bf16.msra.mxu0 %v1829
      %2022 = vmatprep.subr.bf16.mxu0 0
      %2023 = vmatpush1.bf16.msra.mxu0 %v1830
      %2024 = vmatprep.subr.bf16.mxu0 0
      %2025 = vmatpush1.bf16.msra.mxu0 %v1831
      %2026 = vmatprep.mubr.bf16.mxu0 %v1518
      %2027 = vmatmul.mubr.bf16.gmra.mrb[0].mxu0 %v1514
      %v2028 = vpop.f32.mrb[0].mxu0
      %v2029 = vadd.f32 %v1988, %v2028
      %v2030 = vpop.f32.mrb[0].mxu0
      %v2031 = vpop.f32.mrb[0].mxu0
      %v2032 = vadd.f32 %v1991, %v2031
      %v2033 = vpop.f32.mrb[0].mxu0
      %2034 = vdwg.mxu0
      %2035 = vmatprep.subr.bf16.mxu0 0
      %2036 = vmatpush1.bf16.msra.mxu0 %v1832
      %2037 = vmatprep.subr.bf16.mxu0 0
      %2038 = vmatpush1.bf16.msra.mxu0 %v1833
      %2039 = vmatprep.subr.bf16.mxu0 0
      %2040 = vmatpush1.bf16.msra.mxu0 %v1834
      %2041 = vmatprep.subr.bf16.mxu0 0
      %2042 = vmatpush1.bf16.msra.mxu0 %v1835
      %2043 = vmatprep.subr.bf16.mxu0 0
      %2044 = vmatpush1.bf16.msra.mxu0 %v1836
      %2045 = vmatprep.subr.bf16.mxu0 0
      %2046 = vmatpush1.bf16.msra.mxu0 %v1837
      %2047 = vmatprep.subr.bf16.mxu0 0
      %2048 = vmatpush1.bf16.msra.mxu0 %v1838
      %2049 = vmatprep.subr.bf16.mxu0 0
      %2050 = vmatpush1.bf16.msra.mxu0 %v1839
      %2051 = vmatprep.subr.bf16.mxu0 0
      %2052 = vmatpush1.bf16.msra.mxu0 %v1840
      %2053 = vmatprep.subr.bf16.mxu0 0
      %2054 = vmatpush1.bf16.msra.mxu0 %v1841
      %2055 = vmatprep.subr.bf16.mxu0 0
      %2056 = vmatpush1.bf16.msra.mxu0 %v1842
      %2057 = vmatprep.subr.bf16.mxu0 0
      %2058 = vmatpush1.bf16.msra.mxu0 %v1843
      %2059 = vmatprep.subr.bf16.mxu0 0
      %2060 = vmatpush1.bf16.msra.mxu0 %v1844
      %2061 = vmatprep.subr.bf16.mxu0 0
      %2062 = vmatpush1.bf16.msra.mxu0 %v1845
      %2063 = vmatprep.subr.bf16.mxu0 0
      %2064 = vmatpush1.bf16.msra.mxu0 %v1846
      %2065 = vmatprep.subr.bf16.mxu0 0
      %2066 = vmatpush1.bf16.msra.mxu0 %v1847
      %2067 = vmatprep.mubr.bf16.mxu0 %v1519
      %2068 = vmatmul.mubr.bf16.gmra.mrb[0].mxu0 %v1515
      %v2069 = vpop.f32.mrb[0].mxu0
      %v2070 = vadd.f32 %v2029, %v2069
      %v2071 = vpop.f32.mrb[0].mxu0
      %v2072 = vpop.f32.mrb[0].mxu0
      %v2073 = vadd.f32 %v2032, %v2072
      %v2074 = vpop.f32.mrb[0].mxu0
      %2075 = vdwg.mxu0
      %v2076 = vcombine.high %v303, %v317
      %v2077 = vcombine.high %v365, %v379
      %v2078 = vcombine.high %v427, %v441
      %v2079 = vunpack.i.l.s16 %v2076
      %v2080 = vunpack.i.l.s16 %v2077
      %v2081 = vunpack.i.l.s16 %v2078
      %s2082 = scalar_lea.vmem %s1, 1024
      %v2083 = vld [vmem:[%s2082] sm:$0xf]
      %v2084 = vld [vmem:[%s2082 + $0x4] sm:$0xf]
      %v2085 = vld [vmem:[%s2082 + $0x8] sm:$0xf]
      %v2086 = vld [vmem:[%s2082 + $0xc] sm:$0xf]
      %v2087 = vld [vmem:[%s2082 + $0x10] sm:$0xf]
      %v2088 = vld [vmem:[%s2082 + $0x14] sm:$0xf]
      %v2089 = vld [vmem:[%s2082 + $0x18] sm:$0xf]
      %v2090 = vld [vmem:[%s2082 + $0x1c] sm:$0xf]
      %v2091 = vld [vmem:[%s2082 + $0x20] sm:$0xf]
      %v2092 = vld [vmem:[%s2082 + $0x24] sm:$0xf]
      %v2093 = vld [vmem:[%s2082 + $0x28] sm:$0xf]
      %v2094 = vld [vmem:[%s2082 + $0x2c] sm:$0xf]
      %v2095 = vld [vmem:[%s2082 + $0x30] sm:$0xf]
      %v2096 = vld [vmem:[%s2082 + $0x34] sm:$0xf]
      %v2097 = vld [vmem:[%s2082 + $0x38] sm:$0xf]
      %v2098 = vld [vmem:[%s2082 + $0x3c] sm:$0xf]
      %v2099 = vld [vmem:[%s2082 + $0x40] sm:$0xf]
      %v2100 = vld [vmem:[%s2082 + $0x44] sm:$0xf]
      %v2101 = vld [vmem:[%s2082 + $0x48] sm:$0xf]
      %v2102 = vld [vmem:[%s2082 + $0x4c] sm:$0xf]
      %v2103 = vld [vmem:[%s2082 + $0x50] sm:$0xf]
      %v2104 = vld [vmem:[%s2082 + $0x54] sm:$0xf]
      %v2105 = vld [vmem:[%s2082 + $0x58] sm:$0xf]
      %v2106 = vld [vmem:[%s2082 + $0x5c] sm:$0xf]
      %v2107 = vld [vmem:[%s2082 + $0x60] sm:$0xf]
      %v2108 = vld [vmem:[%s2082 + $0x64] sm:$0xf]
      %v2109 = vld [vmem:[%s2082 + $0x68] sm:$0xf]
      %v2110 = vld [vmem:[%s2082 + $0x6c] sm:$0xf]
      %v2111 = vld [vmem:[%s2082 + $0x70] sm:$0xf]
      %v2112 = vld [vmem:[%s2082 + $0x74] sm:$0xf]
      %v2113 = vld [vmem:[%s2082 + $0x78] sm:$0xf]
      %v2114 = vld [vmem:[%s2082 + $0x7c] sm:$0xf]
      %v2115 = vld [vmem:[%s2082 + $0x80] sm:$0xf]
      %v2116 = vld [vmem:[%s2082 + $0x84] sm:$0xf]
      %v2117 = vld [vmem:[%s2082 + $0x88] sm:$0xf]
      %v2118 = vld [vmem:[%s2082 + $0x8c] sm:$0xf]
      %v2119 = vld [vmem:[%s2082 + $0x90] sm:$0xf]
      %v2120 = vld [vmem:[%s2082 + $0x94] sm:$0xf]
      %v2121 = vld [vmem:[%s2082 + $0x98] sm:$0xf]
      %v2122 = vld [vmem:[%s2082 + $0x9c] sm:$0xf]
      %v2123 = vld [vmem:[%s2082 + $0xa0] sm:$0xf]
      %v2124 = vld [vmem:[%s2082 + $0xa4] sm:$0xf]
      %v2125 = vld [vmem:[%s2082 + $0xa8] sm:$0xf]
      %v2126 = vld [vmem:[%s2082 + $0xac] sm:$0xf]
      %v2127 = vld [vmem:[%s2082 + $0xb0] sm:$0xf]
      %v2128 = vld [vmem:[%s2082 + $0xb4] sm:$0xf]
      %v2129 = vld [vmem:[%s2082 + $0xb8] sm:$0xf]
      %v2130 = vld [vmem:[%s2082 + $0xbc] sm:$0xf]
      %v2131 = vld [vmem:[%s2082 + $0xc0] sm:$0xf]
      %v2132 = vld [vmem:[%s2082 + $0xc4] sm:$0xf]
      %v2133 = vld [vmem:[%s2082 + $0xc8] sm:$0xf]
      %v2134 = vld [vmem:[%s2082 + $0xcc] sm:$0xf]
      %v2135 = vld [vmem:[%s2082 + $0xd0] sm:$0xf]
      %v2136 = vld [vmem:[%s2082 + $0xd4] sm:$0xf]
      %v2137 = vld [vmem:[%s2082 + $0xd8] sm:$0xf]
      %v2138 = vld [vmem:[%s2082 + $0xdc] sm:$0xf]
      %v2139 = vld [vmem:[%s2082 + $0xe0] sm:$0xf]
      %v2140 = vld [vmem:[%s2082 + $0xe4] sm:$0xf]
      %v2141 = vld [vmem:[%s2082 + $0xe8] sm:$0xf]
      %v2142 = vld [vmem:[%s2082 + $0xec] sm:$0xf]
      %v2143 = vld [vmem:[%s2082 + $0xf0] sm:$0xf]
      %v2144 = vld [vmem:[%s2082 + $0xf4] sm:$0xf]
      %v2145 = vld [vmem:[%s2082 + $0xf8] sm:$0xf]
      %v2146 = vld [vmem:[%s2082 + $0xfc] sm:$0xf]
      %v2147 = vld [vmem:[%s2082 + $0x100] sm:$0xf]
      %v2148 = vld [vmem:[%s2082 + $0x104] sm:$0xf]
      %v2149 = vld [vmem:[%s2082 + $0x108] sm:$0xf]
      %v2150 = vld [vmem:[%s2082 + $0x10c] sm:$0xf]
      %v2151 = vld [vmem:[%s2082 + $0x110] sm:$0xf]
      %v2152 = vld [vmem:[%s2082 + $0x114] sm:$0xf]
      %v2153 = vld [vmem:[%s2082 + $0x118] sm:$0xf]
      %v2154 = vld [vmem:[%s2082 + $0x11c] sm:$0xf]
      %v2155 = vld [vmem:[%s2082 + $0x120] sm:$0xf]
      %v2156 = vld [vmem:[%s2082 + $0x124] sm:$0xf]
      %v2157 = vld [vmem:[%s2082 + $0x128] sm:$0xf]
      %v2158 = vld [vmem:[%s2082 + $0x12c] sm:$0xf]
      %v2159 = vld [vmem:[%s2082 + $0x130] sm:$0xf]
      %v2160 = vld [vmem:[%s2082 + $0x134] sm:$0xf]
      %v2161 = vld [vmem:[%s2082 + $0x138] sm:$0xf]
      %v2162 = vld [vmem:[%s2082 + $0x13c] sm:$0xf]
      %v2163 = vld [vmem:[%s2082 + $0x140] sm:$0xf]
      %v2164 = vld [vmem:[%s2082 + $0x144] sm:$0xf]
      %v2165 = vld [vmem:[%s2082 + $0x148] sm:$0xf]
      %v2166 = vld [vmem:[%s2082 + $0x14c] sm:$0xf]
      %v2167 = vld [vmem:[%s2082 + $0x150] sm:$0xf]
      %v2168 = vld [vmem:[%s2082 + $0x154] sm:$0xf]
      %v2169 = vld [vmem:[%s2082 + $0x158] sm:$0xf]
      %v2170 = vld [vmem:[%s2082 + $0x15c] sm:$0xf]
      %v2171 = vld [vmem:[%s2082 + $0x160] sm:$0xf]
      %v2172 = vld [vmem:[%s2082 + $0x164] sm:$0xf]
      %v2173 = vld [vmem:[%s2082 + $0x168] sm:$0xf]
      %v2174 = vld [vmem:[%s2082 + $0x16c] sm:$0xf]
      %v2175 = vld [vmem:[%s2082 + $0x170] sm:$0xf]
      %v2176 = vld [vmem:[%s2082 + $0x174] sm:$0xf]
      %v2177 = vld [vmem:[%s2082 + $0x178] sm:$0xf]
      %v2178 = vld [vmem:[%s2082 + $0x17c] sm:$0xf]
      %v2179 = vld [vmem:[%s2082 + $0x180] sm:$0xf]
      %v2180 = vld [vmem:[%s2082 + $0x184] sm:$0xf]
      %v2181 = vld [vmem:[%s2082 + $0x188] sm:$0xf]
      %v2182 = vld [vmem:[%s2082 + $0x18c] sm:$0xf]
      %v2183 = vld [vmem:[%s2082 + $0x190] sm:$0xf]
      %v2184 = vld [vmem:[%s2082 + $0x194] sm:$0xf]
      %v2185 = vld [vmem:[%s2082 + $0x198] sm:$0xf]
      %v2186 = vld [vmem:[%s2082 + $0x19c] sm:$0xf]
      %v2187 = vld [vmem:[%s2082 + $0x1a0] sm:$0xf]
      %v2188 = vld [vmem:[%s2082 + $0x1a4] sm:$0xf]
      %v2189 = vld [vmem:[%s2082 + $0x1a8] sm:$0xf]
      %v2190 = vld [vmem:[%s2082 + $0x1ac] sm:$0xf]
      %v2191 = vld [vmem:[%s2082 + $0x1b0] sm:$0xf]
      %v2192 = vld [vmem:[%s2082 + $0x1b4] sm:$0xf]
      %v2193 = vld [vmem:[%s2082 + $0x1b8] sm:$0xf]
      %v2194 = vld [vmem:[%s2082 + $0x1bc] sm:$0xf]
      %v2195 = vld [vmem:[%s2082 + $0x1c0] sm:$0xf]
      %v2196 = vld [vmem:[%s2082 + $0x1c4] sm:$0xf]
      %v2197 = vld [vmem:[%s2082 + $0x1c8] sm:$0xf]
      %v2198 = vld [vmem:[%s2082 + $0x1cc] sm:$0xf]
      %v2199 = vld [vmem:[%s2082 + $0x1d0] sm:$0xf]
      %v2200 = vld [vmem:[%s2082 + $0x1d4] sm:$0xf]
      %v2201 = vld [vmem:[%s2082 + $0x1d8] sm:$0xf]
      %v2202 = vld [vmem:[%s2082 + $0x1dc] sm:$0xf]
      %v2203 = vld [vmem:[%s2082 + $0x1e0] sm:$0xf]
      %v2204 = vld [vmem:[%s2082 + $0x1e4] sm:$0xf]
      %v2205 = vld [vmem:[%s2082 + $0x1e8] sm:$0xf]
      %v2206 = vld [vmem:[%s2082 + $0x1ec] sm:$0xf]
      %v2207 = vld [vmem:[%s2082 + $0x1f0] sm:$0xf]
      %v2208 = vld [vmem:[%s2082 + $0x1f4] sm:$0xf]
      %v2209 = vld [vmem:[%s2082 + $0x1f8] sm:$0xf]
      %v2210 = vld [vmem:[%s2082 + $0x1fc] sm:$0xf]
      %v2211 = vpack.i.b16 %v588, %v453
      %v2212 = vpack.i.b16 %v456, %v2079
      %v2213 = vpack.i.b16 %v2080, %v589
      %v2214 = vpack.i.b16 %v590, %v459
      %v2216 = vcombine.low %v2211, %v2212
      %v2217 = vcombine.high %v2211, %v2212
      %v2218 = vcombine.low %v2213, %v2214
      %v2219 = vcombine.high %v2213, %v2214
      %v2220 = vcombine.high %v2081, %v2081
      %v2222 = vunpack.c.l.s4 1966171168
      %v2223 = vunpack.c.0.s8 %v2222
      %v2224 = vlaneseq
      %v2225 = vshrl.u32 %v2224, 7
      %v2226 = vsub.s32 %v2223, %v2225
      %v2227 = vrot.slane %v2216, %v2226
      %v2229 = vunpack.c.l.s4 1966171168
      %v2230 = vunpack.c.0.s8 %v2229
      %v2231 = vlaneseq
      %v2232 = vshrl.u32 %v2231, 7
      %v2233 = vsub.s32 %v2230, %v2232
      %v2234 = vrot.slane %v2217, %v2233
      %v2236 = vunpack.c.l.s4 1966171168
      %v2237 = vunpack.c.0.s8 %v2236
      %v2238 = vlaneseq
      %v2239 = vshrl.u32 %v2238, 7
      %v2240 = vsub.s32 %v2237, %v2239
      %v2241 = vrot.slane %v2218, %v2240
      %v2243 = vunpack.c.l.s4 1966171168
      %v2244 = vunpack.c.0.s8 %v2243
      %v2245 = vlaneseq
      %v2246 = vshrl.u32 %v2245, 7
      %v2247 = vsub.s32 %v2244, %v2246
      %v2248 = vrot.slane %v2219, %v2247
      %v2250 = vunpack.c.l.s4 1966171168
      %v2251 = vunpack.c.0.s8 %v2250
      %v2252 = vlaneseq
      %v2253 = vshrl.u32 %v2252, 7
      %v2254 = vsub.s32 %v2251, %v2253
      %v2255 = vrot.slane %v2081, %v2254
      %v2257 = vunpack.c.l.s4 1966171168
      %v2258 = vunpack.c.0.s8 %v2257
      %v2259 = vlaneseq
      %v2260 = vshrl.u32 %v2259, 7
      %v2261 = vsub.s32 %v2258, %v2260
      %v2262 = vrot.slane %v2220, %v2261
      %v2263 = vcombine.low %v2227, %v2241
      %v2264 = vcombine.high %v2227, %v2241
      %v2265 = vcombine.low %v2234, %v2248
      %v2266 = vcombine.high %v2234, %v2248
      %v2267 = vcombine.high %v2255, %v2255
      %v2268 = vcombine.high %v2262, %v2262
      %v2270 = vunpack.c.l.s4 1966171168
      %v2271 = vunpack.c.0.s8 %v2270
      %v2272 = vlaneseq
      %v2273 = vshrl.u32 %v2272, 7
      %v2274 = vsub.s32 %v2271, %v2273
      %v2275 = vrot.slane %v2263, %v2274
      %v2277 = vunpack.c.l.s4 1966171168
      %v2278 = vunpack.c.0.s8 %v2277
      %v2279 = vlaneseq
      %v2280 = vshrl.u32 %v2279, 7
      %v2281 = vsub.s32 %v2278, %v2280
      %v2282 = vrot.slane %v2265, %v2281
      %v2284 = vunpack.c.l.s4 1966171168
      %v2285 = vunpack.c.0.s8 %v2284
      %v2286 = vlaneseq
      %v2287 = vshrl.u32 %v2286, 7
      %v2288 = vsub.s32 %v2285, %v2287
      %v2289 = vrot.slane %v2264, %v2288
      %v2291 = vunpack.c.l.s4 1966171168
      %v2292 = vunpack.c.0.s8 %v2291
      %v2293 = vlaneseq
      %v2294 = vshrl.u32 %v2293, 7
      %v2295 = vsub.s32 %v2292, %v2294
      %v2296 = vrot.slane %v2266, %v2295
      %v2298 = vunpack.c.l.s4 1966171168
      %v2299 = vunpack.c.0.s8 %v2298
      %v2300 = vlaneseq
      %v2301 = vshrl.u32 %v2300, 7
      %v2302 = vsub.s32 %v2299, %v2301
      %v2303 = vrot.slane %v2255, %v2302
      %v2305 = vunpack.c.l.s4 1966171168
      %v2306 = vunpack.c.0.s8 %v2305
      %v2307 = vlaneseq
      %v2308 = vshrl.u32 %v2307, 7
      %v2309 = vsub.s32 %v2306, %v2308
      %v2310 = vrot.slane %v2262, %v2309
      %v2312 = vunpack.c.l.s4 1966171168
      %v2313 = vunpack.c.0.s8 %v2312
      %v2314 = vlaneseq
      %v2315 = vshrl.u32 %v2314, 7
      %v2316 = vsub.s32 %v2313, %v2315
      %v2317 = vrot.slane %v2267, %v2316
      %v2319 = vunpack.c.l.s4 1966171168
      %v2320 = vunpack.c.0.s8 %v2319
      %v2321 = vlaneseq
      %v2322 = vshrl.u32 %v2321, 7
      %v2323 = vsub.s32 %v2320, %v2322
      %v2324 = vrot.slane %v2268, %v2323
      %v2325 = vcombine.low %v2275, %v2303
      %v2326 = vcombine.high %v2275, %v2303
      %v2327 = vcombine.low %v2282, %v2310
      %v2328 = vcombine.high %v2282, %v2310
      %v2329 = vcombine.low %v2289, %v2317
      %v2330 = vcombine.high %v2289, %v2317
      %v2331 = vcombine.low %v2296, %v2324
      %v2332 = vcombine.high %v2296, %v2324
      %v2469 = vunpack.c.l.b16 %v2083
      %v2470 = vunpack.c.l.b16 %v2084
      %v2471 = vunpack.c.l.b16 %v2085
      %v2472 = vunpack.c.l.b16 %v2086
      %v2473 = vunpack.c.l.b16 %v2087
      %v2474 = vunpack.c.l.b16 %v2088
      %v2475 = vunpack.c.l.b16 %v2089
      %v2476 = vunpack.c.l.b16 %v2090
      %v2477 = vunpack.c.l.b16 %v2091
      %v2478 = vunpack.c.l.b16 %v2092
      %v2479 = vunpack.c.l.b16 %v2093
      %v2480 = vunpack.c.l.b16 %v2094
      %v2481 = vunpack.c.l.b16 %v2095
      %v2482 = vunpack.c.l.b16 %v2096
      %v2483 = vunpack.c.l.b16 %v2097
      %v2484 = vunpack.c.l.b16 %v2098
      %v2485 = vunpack.c.l.b16 %v2099
      %v2486 = vunpack.c.l.b16 %v2100
      %v2487 = vunpack.c.l.b16 %v2101
      %v2488 = vunpack.c.l.b16 %v2102
      %v2489 = vunpack.c.l.b16 %v2103
      %v2490 = vunpack.c.l.b16 %v2104
      %v2491 = vunpack.c.l.b16 %v2105
      %v2492 = vunpack.c.l.b16 %v2106
      %v2493 = vunpack.c.l.b16 %v2107
      %v2494 = vunpack.c.l.b16 %v2108
      %v2495 = vunpack.c.l.b16 %v2109
      %v2496 = vunpack.c.l.b16 %v2110
      %v2497 = vunpack.c.l.b16 %v2111
      %v2498 = vunpack.c.l.b16 %v2112
      %v2499 = vunpack.c.l.b16 %v2113
      %v2500 = vunpack.c.l.b16 %v2114
      %v2501 = vunpack.c.l.b16 %v2115
      %v2502 = vunpack.c.l.b16 %v2116
      %v2503 = vunpack.c.l.b16 %v2117
      %v2504 = vunpack.c.l.b16 %v2118
      %v2505 = vunpack.c.l.b16 %v2119
      %v2506 = vunpack.c.l.b16 %v2120
      %v2507 = vunpack.c.l.b16 %v2121
      %v2508 = vunpack.c.l.b16 %v2122
      %v2509 = vunpack.c.l.b16 %v2123
      %v2510 = vunpack.c.l.b16 %v2124
      %v2511 = vunpack.c.l.b16 %v2125
      %v2512 = vunpack.c.l.b16 %v2126
      %v2513 = vunpack.c.l.b16 %v2127
      %v2514 = vunpack.c.l.b16 %v2128
      %v2515 = vunpack.c.l.b16 %v2129
      %v2516 = vunpack.c.l.b16 %v2130
      %v2517 = vunpack.c.l.b16 %v2131
      %v2518 = vunpack.c.l.b16 %v2132
      %v2519 = vunpack.c.l.b16 %v2133
      %v2520 = vunpack.c.l.b16 %v2134
      %v2521 = vunpack.c.l.b16 %v2135
      %v2522 = vunpack.c.l.b16 %v2136
      %v2523 = vunpack.c.l.b16 %v2137
      %v2524 = vunpack.c.l.b16 %v2138
      %v2525 = vunpack.c.l.b16 %v2139
      %v2526 = vunpack.c.l.b16 %v2140
      %v2527 = vunpack.c.l.b16 %v2141
      %v2528 = vunpack.c.l.b16 %v2142
      %v2529 = vunpack.c.l.b16 %v2143
      %v2530 = vunpack.c.l.b16 %v2144
      %v2531 = vunpack.c.l.b16 %v2145
      %v2532 = vunpack.c.l.b16 %v2146
      %v2533 = vunpack.c.l.b16 %v2147
      %v2534 = vunpack.c.l.b16 %v2148
      %v2535 = vunpack.c.l.b16 %v2149
      %v2536 = vunpack.c.l.b16 %v2150
      %v2537 = vunpack.c.l.b16 %v2151
      %v2538 = vunpack.c.l.b16 %v2152
      %v2539 = vunpack.c.l.b16 %v2153
      %v2540 = vunpack.c.l.b16 %v2154
      %v2541 = vunpack.c.l.b16 %v2155
      %v2542 = vunpack.c.l.b16 %v2156
      %v2543 = vunpack.c.l.b16 %v2157
      %v2544 = vunpack.c.l.b16 %v2158
      %v2545 = vunpack.c.l.b16 %v2159
      %v2546 = vunpack.c.l.b16 %v2160
      %v2547 = vunpack.c.l.b16 %v2161
      %v2548 = vunpack.c.l.b16 %v2162
      %v2549 = vunpack.c.l.b16 %v2163
      %v2550 = vunpack.c.l.b16 %v2164
      %v2551 = vunpack.c.l.b16 %v2165
      %v2552 = vunpack.c.l.b16 %v2166
      %v2553 = vunpack.c.l.b16 %v2167
      %v2554 = vunpack.c.l.b16 %v2168
      %v2555 = vunpack.c.l.b16 %v2169
      %v2556 = vunpack.c.l.b16 %v2170
      %v2557 = vunpack.c.l.b16 %v2171
      %v2558 = vunpack.c.l.b16 %v2172
      %v2559 = vunpack.c.l.b16 %v2173
      %v2560 = vunpack.c.l.b16 %v2174
      %v2561 = vunpack.c.l.b16 %v2175
      %v2562 = vunpack.c.l.b16 %v2176
      %v2563 = vunpack.c.l.b16 %v2177
      %v2564 = vunpack.c.l.b16 %v2178
      %v2565 = vunpack.c.l.b16 %v2179
      %v2566 = vunpack.c.l.b16 %v2180
      %v2567 = vunpack.c.l.b16 %v2181
      %v2568 = vunpack.c.l.b16 %v2182
      %v2569 = vunpack.c.l.b16 %v2183
      %v2570 = vunpack.c.l.b16 %v2184
      %v2571 = vunpack.c.l.b16 %v2185
      %v2572 = vunpack.c.l.b16 %v2186
      %v2573 = vunpack.c.l.b16 %v2187
      %v2574 = vunpack.c.l.b16 %v2188
      %v2575 = vunpack.c.l.b16 %v2189
      %v2576 = vunpack.c.l.b16 %v2190
      %v2577 = vunpack.c.l.b16 %v2191
      %v2578 = vunpack.c.l.b16 %v2192
      %v2579 = vunpack.c.l.b16 %v2193
      %v2580 = vunpack.c.l.b16 %v2194
      %v2581 = vunpack.c.l.b16 %v2195
      %v2582 = vunpack.c.l.b16 %v2196
      %v2583 = vunpack.c.l.b16 %v2197
      %v2584 = vunpack.c.l.b16 %v2198
      %v2585 = vunpack.c.l.b16 %v2199
      %v2586 = vunpack.c.l.b16 %v2200
      %v2587 = vunpack.c.l.b16 %v2201
      %v2588 = vunpack.c.l.b16 %v2202
      %v2589 = vunpack.c.l.b16 %v2203
      %v2590 = vunpack.c.l.b16 %v2204
      %v2591 = vunpack.c.l.b16 %v2205
      %v2592 = vunpack.c.l.b16 %v2206
      %v2593 = vunpack.c.l.b16 %v2207
      %v2594 = vunpack.c.l.b16 %v2208
      %v2595 = vunpack.c.l.b16 %v2209
      %v2596 = vunpack.c.l.b16 %v2210
      %v2597 = vpack.c.b16 %v2470, %v2469
      %v2598 = vpack.c.b16 %v2472, %v2471
      %v2599 = vpack.c.b16 %v2474, %v2473
      %v2600 = vpack.c.b16 %v2476, %v2475
      %v2601 = vpack.c.b16 %v2478, %v2477
      %v2602 = vpack.c.b16 %v2480, %v2479
      %v2603 = vpack.c.b16 %v2482, %v2481
      %v2604 = vpack.c.b16 %v2484, %v2483
      %v2605 = vpack.c.b16 %v2486, %v2485
      %v2606 = vpack.c.b16 %v2488, %v2487
      %v2607 = vpack.c.b16 %v2490, %v2489
      %v2608 = vpack.c.b16 %v2492, %v2491
      %v2609 = vpack.c.b16 %v2494, %v2493
      %v2610 = vpack.c.b16 %v2496, %v2495
      %v2611 = vpack.c.b16 %v2498, %v2497
      %v2612 = vpack.c.b16 %v2500, %v2499
      %v2613 = vpack.c.b16 %v2502, %v2501
      %v2614 = vpack.c.b16 %v2504, %v2503
      %v2615 = vpack.c.b16 %v2506, %v2505
      %v2616 = vpack.c.b16 %v2508, %v2507
      %v2617 = vpack.c.b16 %v2510, %v2509
      %v2618 = vpack.c.b16 %v2512, %v2511
      %v2619 = vpack.c.b16 %v2514, %v2513
      %v2620 = vpack.c.b16 %v2516, %v2515
      %v2621 = vpack.c.b16 %v2518, %v2517
      %v2622 = vpack.c.b16 %v2520, %v2519
      %v2623 = vpack.c.b16 %v2522, %v2521
      %v2624 = vpack.c.b16 %v2524, %v2523
      %v2625 = vpack.c.b16 %v2526, %v2525
      %v2626 = vpack.c.b16 %v2528, %v2527
      %v2627 = vpack.c.b16 %v2530, %v2529
      %v2628 = vpack.c.b16 %v2532, %v2531
      %v2629 = vpack.c.b16 %v2534, %v2533
      %v2630 = vpack.c.b16 %v2536, %v2535
      %v2631 = vpack.c.b16 %v2538, %v2537
      %v2632 = vpack.c.b16 %v2540, %v2539
      %v2633 = vpack.c.b16 %v2542, %v2541
      %v2634 = vpack.c.b16 %v2544, %v2543
      %v2635 = vpack.c.b16 %v2546, %v2545
      %v2636 = vpack.c.b16 %v2548, %v2547
      %v2637 = vpack.c.b16 %v2550, %v2549
      %v2638 = vpack.c.b16 %v2552, %v2551
      %v2639 = vpack.c.b16 %v2554, %v2553
      %v2640 = vpack.c.b16 %v2556, %v2555
      %v2641 = vpack.c.b16 %v2558, %v2557
      %v2642 = vpack.c.b16 %v2560, %v2559
      %v2643 = vpack.c.b16 %v2562, %v2561
      %v2644 = vpack.c.b16 %v2564, %v2563
      %v2645 = vpack.c.b16 %v2566, %v2565
      %v2646 = vpack.c.b16 %v2568, %v2567
      %v2647 = vpack.c.b16 %v2570, %v2569
      %v2648 = vpack.c.b16 %v2572, %v2571
      %v2649 = vpack.c.b16 %v2574, %v2573
      %v2650 = vpack.c.b16 %v2576, %v2575
      %v2651 = vpack.c.b16 %v2578, %v2577
      %v2652 = vpack.c.b16 %v2580, %v2579
      %v2653 = vpack.c.b16 %v2582, %v2581
      %v2654 = vpack.c.b16 %v2584, %v2583
      %v2655 = vpack.c.b16 %v2586, %v2585
      %v2656 = vpack.c.b16 %v2588, %v2587
      %v2657 = vpack.c.b16 %v2590, %v2589
      %v2658 = vpack.c.b16 %v2592, %v2591
      %v2659 = vpack.c.b16 %v2594, %v2593
      %v2660 = vpack.c.b16 %v2596, %v2595
      %2725 = vmatprep.subr.bf16.mxu0 0
      %2726 = vmatpush1.bf16.msra.mxu0 %v2597
      %2727 = vmatprep.subr.bf16.mxu0 0
      %2728 = vmatpush1.bf16.msra.mxu0 %v2598
      %2729 = vmatprep.subr.bf16.mxu0 0
      %2730 = vmatpush1.bf16.msra.mxu0 %v2599
      %2731 = vmatprep.subr.bf16.mxu0 0
      %2732 = vmatpush1.bf16.msra.mxu0 %v2600
      %2733 = vmatprep.subr.bf16.mxu0 0
      %2734 = vmatpush1.bf16.msra.mxu0 %v2601
      %2735 = vmatprep.subr.bf16.mxu0 0
      %2736 = vmatpush1.bf16.msra.mxu0 %v2602
      %2737 = vmatprep.subr.bf16.mxu0 0
      %2738 = vmatpush1.bf16.msra.mxu0 %v2603
      %2739 = vmatprep.subr.bf16.mxu0 0
      %2740 = vmatpush1.bf16.msra.mxu0 %v2604
      %2741 = vmatprep.subr.bf16.mxu0 0
      %2742 = vmatpush1.bf16.msra.mxu0 %v2605
      %2743 = vmatprep.subr.bf16.mxu0 0
      %2744 = vmatpush1.bf16.msra.mxu0 %v2606
      %2745 = vmatprep.subr.bf16.mxu0 0
      %2746 = vmatpush1.bf16.msra.mxu0 %v2607
      %2747 = vmatprep.subr.bf16.mxu0 0
      %2748 = vmatpush1.bf16.msra.mxu0 %v2608
      %2749 = vmatprep.subr.bf16.mxu0 0
      %2750 = vmatpush1.bf16.msra.mxu0 %v2609
      %2751 = vmatprep.subr.bf16.mxu0 0
      %2752 = vmatpush1.bf16.msra.mxu0 %v2610
      %2753 = vmatprep.subr.bf16.mxu0 0
      %2754 = vmatpush1.bf16.msra.mxu0 %v2611
      %2755 = vmatprep.subr.bf16.mxu0 0
      %2756 = vmatpush1.bf16.msra.mxu0 %v2612
      %2757 = vmatprep.mubr.bf16.mxu0 %v2329
      %2758 = vmatmul.mubr.bf16.gmra.mrb[0].mxu0 %v2325
      %v2759 = vpop.f32.mrb[0].mxu0
      %v2760 = vadd.f32 0.0, %v2759
      %v2761 = vpop.f32.mrb[0].mxu0
      %v2762 = vpop.f32.mrb[0].mxu0
      %v2763 = vadd.f32 0.0, %v2762
      %v2764 = vpop.f32.mrb[0].mxu0
      %2765 = vdwg.mxu0
      %2766 = vmatprep.subr.bf16.mxu0 0
      %2767 = vmatpush1.bf16.msra.mxu0 %v2613
      %2768 = vmatprep.subr.bf16.mxu0 0
      %2769 = vmatpush1.bf16.msra.mxu0 %v2614
      %2770 = vmatprep.subr.bf16.mxu0 0
      %2771 = vmatpush1.bf16.msra.mxu0 %v2615
      %2772 = vmatprep.subr.bf16.mxu0 0
      %2773 = vmatpush1.bf16.msra.mxu0 %v2616
      %2774 = vmatprep.subr.bf16.mxu0 0
      %2775 = vmatpush1.bf16.msra.mxu0 %v2617
      %2776 = vmatprep.subr.bf16.mxu0 0
      %2777 = vmatpush1.bf16.msra.mxu0 %v2618
      %2778 = vmatprep.subr.bf16.mxu0 0
      %2779 = vmatpush1.bf16.msra.mxu0 %v2619
      %2780 = vmatprep.subr.bf16.mxu0 0
      %2781 = vmatpush1.bf16.msra.mxu0 %v2620
      %2782 = vmatprep.subr.bf16.mxu0 0
      %2783 = vmatpush1.bf16.msra.mxu0 %v2621
      %2784 = vmatprep.subr.bf16.mxu0 0
      %2785 = vmatpush1.bf16.msra.mxu0 %v2622
      %2786 = vmatprep.subr.bf16.mxu0 0
      %2787 = vmatpush1.bf16.msra.mxu0 %v2623
      %2788 = vmatprep.subr.bf16.mxu0 0
      %2789 = vmatpush1.bf16.msra.mxu0 %v2624
      %2790 = vmatprep.subr.bf16.mxu0 0
      %2791 = vmatpush1.bf16.msra.mxu0 %v2625
      %2792 = vmatprep.subr.bf16.mxu0 0
      %2793 = vmatpush1.bf16.msra.mxu0 %v2626
      %2794 = vmatprep.subr.bf16.mxu0 0
      %2795 = vmatpush1.bf16.msra.mxu0 %v2627
      %2796 = vmatprep.subr.bf16.mxu0 0
      %2797 = vmatpush1.bf16.msra.mxu0 %v2628
      %2798 = vmatprep.mubr.bf16.mxu0 %v2330
      %2799 = vmatmul.mubr.bf16.gmra.mrb[0].mxu0 %v2326
      %v2800 = vpop.f32.mrb[0].mxu0
      %v2801 = vadd.f32 %v2760, %v2800
      %v2802 = vpop.f32.mrb[0].mxu0
      %v2803 = vpop.f32.mrb[0].mxu0
      %v2804 = vadd.f32 %v2763, %v2803
      %v2805 = vpop.f32.mrb[0].mxu0
      %2806 = vdwg.mxu0
      %2807 = vmatprep.subr.bf16.mxu0 0
      %2808 = vmatpush1.bf16.msra.mxu0 %v2629
      %2809 = vmatprep.subr.bf16.mxu0 0
      %2810 = vmatpush1.bf16.msra.mxu0 %v2630
      %2811 = vmatprep.subr.bf16.mxu0 0
      %2812 = vmatpush1.bf16.msra.mxu0 %v2631
      %2813 = vmatprep.subr.bf16.mxu0 0
      %2814 = vmatpush1.bf16.msra.mxu0 %v2632
      %2815 = vmatprep.subr.bf16.mxu0 0
      %2816 = vmatpush1.bf16.msra.mxu0 %v2633
      %2817 = vmatprep.subr.bf16.mxu0 0
      %2818 = vmatpush1.bf16.msra.mxu0 %v2634
      %2819 = vmatprep.subr.bf16.mxu0 0
      %2820 = vmatpush1.bf16.msra.mxu0 %v2635
      %2821 = vmatprep.subr.bf16.mxu0 0
      %2822 = vmatpush1.bf16.msra.mxu0 %v2636
      %2823 = vmatprep.subr.bf16.mxu0 0
      %2824 = vmatpush1.bf16.msra.mxu0 %v2637
      %2825 = vmatprep.subr.bf16.mxu0 0
      %2826 = vmatpush1.bf16.msra.mxu0 %v2638
      %2827 = vmatprep.subr.bf16.mxu0 0
      %2828 = vmatpush1.bf16.msra.mxu0 %v2639
      %2829 = vmatprep.subr.bf16.mxu0 0
      %2830 = vmatpush1.bf16.msra.mxu0 %v2640
      %2831 = vmatprep.subr.bf16.mxu0 0
      %2832 = vmatpush1.bf16.msra.mxu0 %v2641
      %2833 = vmatprep.subr.bf16.mxu0 0
      %2834 = vmatpush1.bf16.msra.mxu0 %v2642
      %2835 = vmatprep.subr.bf16.mxu0 0
      %2836 = vmatpush1.bf16.msra.mxu0 %v2643
      %2837 = vmatprep.subr.bf16.mxu0 0
      %2838 = vmatpush1.bf16.msra.mxu0 %v2644
      %2839 = vmatprep.mubr.bf16.mxu0 %v2331
      %2840 = vmatmul.mubr.bf16.gmra.mrb[0].mxu0 %v2327
      %v2841 = vpop.f32.mrb[0].mxu0
      %v2842 = vadd.f32 %v2801, %v2841
      %v2843 = vpop.f32.mrb[0].mxu0
      %v2844 = vpop.f32.mrb[0].mxu0
      %v2845 = vadd.f32 %v2804, %v2844
      %v2846 = vpop.f32.mrb[0].mxu0
      %2847 = vdwg.mxu0
      %2848 = vmatprep.subr.bf16.mxu0 0
      %2849 = vmatpush1.bf16.msra.mxu0 %v2645
      %2850 = vmatprep.subr.bf16.mxu0 0
      %2851 = vmatpush1.bf16.msra.mxu0 %v2646
      %2852 = vmatprep.subr.bf16.mxu0 0
      %2853 = vmatpush1.bf16.msra.mxu0 %v2647
      %2854 = vmatprep.subr.bf16.mxu0 0
      %2855 = vmatpush1.bf16.msra.mxu0 %v2648
      %2856 = vmatprep.subr.bf16.mxu0 0
      %2857 = vmatpush1.bf16.msra.mxu0 %v2649
      %2858 = vmatprep.subr.bf16.mxu0 0
      %2859 = vmatpush1.bf16.msra.mxu0 %v2650
      %2860 = vmatprep.subr.bf16.mxu0 0
      %2861 = vmatpush1.bf16.msra.mxu0 %v2651
      %2862 = vmatprep.subr.bf16.mxu0 0
      %2863 = vmatpush1.bf16.msra.mxu0 %v2652
      %2864 = vmatprep.subr.bf16.mxu0 0
      %2865 = vmatpush1.bf16.msra.mxu0 %v2653
      %2866 = vmatprep.subr.bf16.mxu0 0
      %2867 = vmatpush1.bf16.msra.mxu0 %v2654
      %2868 = vmatprep.subr.bf16.mxu0 0
      %2869 = vmatpush1.bf16.msra.mxu0 %v2655
      %2870 = vmatprep.subr.bf16.mxu0 0
      %2871 = vmatpush1.bf16.msra.mxu0 %v2656
      %2872 = vmatprep.subr.bf16.mxu0 0
      %2873 = vmatpush1.bf16.msra.mxu0 %v2657
      %2874 = vmatprep.subr.bf16.mxu0 0
      %2875 = vmatpush1.bf16.msra.mxu0 %v2658
      %2876 = vmatprep.subr.bf16.mxu0 0
      %2877 = vmatpush1.bf16.msra.mxu0 %v2659
      %2878 = vmatprep.subr.bf16.mxu0 0
      %2879 = vmatpush1.bf16.msra.mxu0 %v2660
      %2880 = vmatprep.mubr.bf16.mxu0 %v2332
      %2881 = vmatmul.mubr.bf16.gmra.mrb[0].mxu0 %v2328
      %v2882 = vpop.f32.mrb[0].mxu0
      %v2883 = vadd.f32 %v2842, %v2882
      %v2884 = vpop.f32.mrb[0].mxu0
      %v2885 = vpop.f32.mrb[0].mxu0
      %v2886 = vadd.f32 %v2845, %v2885
      %v2887 = vpop.f32.mrb[0].mxu0
      %2888 = vdwg.mxu0
      %v2889 = vadd.f32 %v2070, %v2883
      %v2890 = vadd.f32 %v2073, %v2886
      %v2891 = vunpack.i.h.s16 %v2076
      %v2892 = vunpack.i.h.s16 %v2077
      %v2893 = vunpack.i.h.s16 %v2078
      %s2894 = scalar_lea.vmem %s1, 1536
      %v2895 = vld [vmem:[%s2894] sm:$0xf]
      %v2896 = vld [vmem:[%s2894 + $0x4] sm:$0xf]
      %v2897 = vld [vmem:[%s2894 + $0x8] sm:$0xf]
      %v2898 = vld [vmem:[%s2894 + $0xc] sm:$0xf]
      %v2899 = vld [vmem:[%s2894 + $0x10] sm:$0xf]
      %v2900 = vld [vmem:[%s2894 + $0x14] sm:$0xf]
      %v2901 = vld [vmem:[%s2894 + $0x18] sm:$0xf]
      %v2902 = vld [vmem:[%s2894 + $0x1c] sm:$0xf]
      %v2903 = vld [vmem:[%s2894 + $0x20] sm:$0xf]
      %v2904 = vld [vmem:[%s2894 + $0x24] sm:$0xf]
      %v2905 = vld [vmem:[%s2894 + $0x28] sm:$0xf]
      %v2906 = vld [vmem:[%s2894 + $0x2c] sm:$0xf]
      %v2907 = vld [vmem:[%s2894 + $0x30] sm:$0xf]
      %v2908 = vld [vmem:[%s2894 + $0x34] sm:$0xf]
      %v2909 = vld [vmem:[%s2894 + $0x38] sm:$0xf]
      %v2910 = vld [vmem:[%s2894 + $0x3c] sm:$0xf]
      %v2911 = vld [vmem:[%s2894 + $0x40] sm:$0xf]
      %v2912 = vld [vmem:[%s2894 + $0x44] sm:$0xf]
      %v2913 = vld [vmem:[%s2894 + $0x48] sm:$0xf]
      %v2914 = vld [vmem:[%s2894 + $0x4c] sm:$0xf]
      %v2915 = vld [vmem:[%s2894 + $0x50] sm:$0xf]
      %v2916 = vld [vmem:[%s2894 + $0x54] sm:$0xf]
      %v2917 = vld [vmem:[%s2894 + $0x58] sm:$0xf]
      %v2918 = vld [vmem:[%s2894 + $0x5c] sm:$0xf]
      %v2919 = vld [vmem:[%s2894 + $0x60] sm:$0xf]
      %v2920 = vld [vmem:[%s2894 + $0x64] sm:$0xf]
      %v2921 = vld [vmem:[%s2894 + $0x68] sm:$0xf]
      %v2922 = vld [vmem:[%s2894 + $0x6c] sm:$0xf]
      %v2923 = vld [vmem:[%s2894 + $0x70] sm:$0xf]
      %v2924 = vld [vmem:[%s2894 + $0x74] sm:$0xf]
      %v2925 = vld [vmem:[%s2894 + $0x78] sm:$0xf]
      %v2926 = vld [vmem:[%s2894 + $0x7c] sm:$0xf]
      %v2927 = vld [vmem:[%s2894 + $0x80] sm:$0xf]
      %v2928 = vld [vmem:[%s2894 + $0x84] sm:$0xf]
      %v2929 = vld [vmem:[%s2894 + $0x88] sm:$0xf]
      %v2930 = vld [vmem:[%s2894 + $0x8c] sm:$0xf]
      %v2931 = vld [vmem:[%s2894 + $0x90] sm:$0xf]
      %v2932 = vld [vmem:[%s2894 + $0x94] sm:$0xf]
      %v2933 = vld [vmem:[%s2894 + $0x98] sm:$0xf]
      %v2934 = vld [vmem:[%s2894 + $0x9c] sm:$0xf]
      %v2935 = vld [vmem:[%s2894 + $0xa0] sm:$0xf]
      %v2936 = vld [vmem:[%s2894 + $0xa4] sm:$0xf]
      %v2937 = vld [vmem:[%s2894 + $0xa8] sm:$0xf]
      %v2938 = vld [vmem:[%s2894 + $0xac] sm:$0xf]
      %v2939 = vld [vmem:[%s2894 + $0xb0] sm:$0xf]
      %v2940 = vld [vmem:[%s2894 + $0xb4] sm:$0xf]
      %v2941 = vld [vmem:[%s2894 + $0xb8] sm:$0xf]
      %v2942 = vld [vmem:[%s2894 + $0xbc] sm:$0xf]
      %v2943 = vld [vmem:[%s2894 + $0xc0] sm:$0xf]
      %v2944 = vld [vmem:[%s2894 + $0xc4] sm:$0xf]
      %v2945 = vld [vmem:[%s2894 + $0xc8] sm:$0xf]
      %v2946 = vld [vmem:[%s2894 + $0xcc] sm:$0xf]
      %v2947 = vld [vmem:[%s2894 + $0xd0] sm:$0xf]
      %v2948 = vld [vmem:[%s2894 + $0xd4] sm:$0xf]
      %v2949 = vld [vmem:[%s2894 + $0xd8] sm:$0xf]
      %v2950 = vld [vmem:[%s2894 + $0xdc] sm:$0xf]
      %v2951 = vld [vmem:[%s2894 + $0xe0] sm:$0xf]
      %v2952 = vld [vmem:[%s2894 + $0xe4] sm:$0xf]
      %v2953 = vld [vmem:[%s2894 + $0xe8] sm:$0xf]
      %v2954 = vld [vmem:[%s2894 + $0xec] sm:$0xf]
      %v2955 = vld [vmem:[%s2894 + $0xf0] sm:$0xf]
      %v2956 = vld [vmem:[%s2894 + $0xf4] sm:$0xf]
      %v2957 = vld [vmem:[%s2894 + $0xf8] sm:$0xf]
      %v2958 = vld [vmem:[%s2894 + $0xfc] sm:$0xf]
      %v2959 = vld [vmem:[%s2894 + $0x100] sm:$0xf]
      %v2960 = vld [vmem:[%s2894 + $0x104] sm:$0xf]
      %v2961 = vld [vmem:[%s2894 + $0x108] sm:$0xf]
      %v2962 = vld [vmem:[%s2894 + $0x10c] sm:$0xf]
      %v2963 = vld [vmem:[%s2894 + $0x110] sm:$0xf]
      %v2964 = vld [vmem:[%s2894 + $0x114] sm:$0xf]
      %v2965 = vld [vmem:[%s2894 + $0x118] sm:$0xf]
      %v2966 = vld [vmem:[%s2894 + $0x11c] sm:$0xf]
      %v2967 = vld [vmem:[%s2894 + $0x120] sm:$0xf]
      %v2968 = vld [vmem:[%s2894 + $0x124] sm:$0xf]
      %v2969 = vld [vmem:[%s2894 + $0x128] sm:$0xf]
      %v2970 = vld [vmem:[%s2894 + $0x12c] sm:$0xf]
      %v2971 = vld [vmem:[%s2894 + $0x130] sm:$0xf]
      %v2972 = vld [vmem:[%s2894 + $0x134] sm:$0xf]
      %v2973 = vld [vmem:[%s2894 + $0x138] sm:$0xf]
      %v2974 = vld [vmem:[%s2894 + $0x13c] sm:$0xf]
      %v2975 = vld [vmem:[%s2894 + $0x140] sm:$0xf]
      %v2976 = vld [vmem:[%s2894 + $0x144] sm:$0xf]
      %v2977 = vld [vmem:[%s2894 + $0x148] sm:$0xf]
      %v2978 = vld [vmem:[%s2894 + $0x14c] sm:$0xf]
      %v2979 = vld [vmem:[%s2894 + $0x150] sm:$0xf]
      %v2980 = vld [vmem:[%s2894 + $0x154] sm:$0xf]
      %v2981 = vld [vmem:[%s2894 + $0x158] sm:$0xf]
      %v2982 = vld [vmem:[%s2894 + $0x15c] sm:$0xf]
      %v2983 = vld [vmem:[%s2894 + $0x160] sm:$0xf]
      %v2984 = vld [vmem:[%s2894 + $0x164] sm:$0xf]
      %v2985 = vld [vmem:[%s2894 + $0x168] sm:$0xf]
      %v2986 = vld [vmem:[%s2894 + $0x16c] sm:$0xf]
      %v2987 = vld [vmem:[%s2894 + $0x170] sm:$0xf]
      %v2988 = vld [vmem:[%s2894 + $0x174] sm:$0xf]
      %v2989 = vld [vmem:[%s2894 + $0x178] sm:$0xf]
      %v2990 = vld [vmem:[%s2894 + $0x17c] sm:$0xf]
      %v2991 = vld [vmem:[%s2894 + $0x180] sm:$0xf]
      %v2992 = vld [vmem:[%s2894 + $0x184] sm:$0xf]
      %v2993 = vld [vmem:[%s2894 + $0x188] sm:$0xf]
      %v2994 = vld [vmem:[%s2894 + $0x18c] sm:$0xf]
      %v2995 = vld [vmem:[%s2894 + $0x190] sm:$0xf]
      %v2996 = vld [vmem:[%s2894 + $0x194] sm:$0xf]
      %v2997 = vld [vmem:[%s2894 + $0x198] sm:$0xf]
      %v2998 = vld [vmem:[%s2894 + $0x19c] sm:$0xf]
      %v2999 = vld [vmem:[%s2894 + $0x1a0] sm:$0xf]
      %v3000 = vld [vmem:[%s2894 + $0x1a4] sm:$0xf]
      %v3001 = vld [vmem:[%s2894 + $0x1a8] sm:$0xf]
      %v3002 = vld [vmem:[%s2894 + $0x1ac] sm:$0xf]
      %v3003 = vld [vmem:[%s2894 + $0x1b0] sm:$0xf]
      %v3004 = vld [vmem:[%s2894 + $0x1b4] sm:$0xf]
      %v3005 = vld [vmem:[%s2894 + $0x1b8] sm:$0xf]
      %v3006 = vld [vmem:[%s2894 + $0x1bc] sm:$0xf]
      %v3007 = vld [vmem:[%s2894 + $0x1c0] sm:$0xf]
      %v3008 = vld [vmem:[%s2894 + $0x1c4] sm:$0xf]
      %v3009 = vld [vmem:[%s2894 + $0x1c8] sm:$0xf]
      %v3010 = vld [vmem:[%s2894 + $0x1cc] sm:$0xf]
      %v3011 = vld [vmem:[%s2894 + $0x1d0] sm:$0xf]
      %v3012 = vld [vmem:[%s2894 + $0x1d4] sm:$0xf]
      %v3013 = vld [vmem:[%s2894 + $0x1d8] sm:$0xf]
      %v3014 = vld [vmem:[%s2894 + $0x1dc] sm:$0xf]
      %v3015 = vld [vmem:[%s2894 + $0x1e0] sm:$0xf]
      %v3016 = vld [vmem:[%s2894 + $0x1e4] sm:$0xf]
      %v3017 = vld [vmem:[%s2894 + $0x1e8] sm:$0xf]
      %v3018 = vld [vmem:[%s2894 + $0x1ec] sm:$0xf]
      %v3019 = vld [vmem:[%s2894 + $0x1f0] sm:$0xf]
      %v3020 = vld [vmem:[%s2894 + $0x1f4] sm:$0xf]
      %v3021 = vld [vmem:[%s2894 + $0x1f8] sm:$0xf]
      %v3022 = vld [vmem:[%s2894 + $0x1fc] sm:$0xf]
      %v3023 = vpack.i.b16 %v2079, %v588
      %v3024 = vpack.i.b16 %v589, %v2891
      %v3025 = vpack.i.b16 %v2892, %v2080
      %v3026 = vpack.i.b16 %v2081, %v590
      %v3028 = vcombine.low %v3023, %v3024
      %v3029 = vcombine.high %v3023, %v3024
      %v3030 = vcombine.low %v3025, %v3026
      %v3031 = vcombine.high %v3025, %v3026
      %v3032 = vcombine.high %v2893, %v2893
      %v3034 = vunpack.c.l.s4 1966171168
      %v3035 = vunpack.c.0.s8 %v3034
      %v3036 = vlaneseq
      %v3037 = vshrl.u32 %v3036, 7
      %v3038 = vsub.s32 %v3035, %v3037
      %v3039 = vrot.slane %v3028, %v3038
      %v3041 = vunpack.c.l.s4 1966171168
      %v3042 = vunpack.c.0.s8 %v3041
      %v3043 = vlaneseq
      %v3044 = vshrl.u32 %v3043, 7
      %v3045 = vsub.s32 %v3042, %v3044
      %v3046 = vrot.slane %v3029, %v3045
      %v3048 = vunpack.c.l.s4 1966171168
      %v3049 = vunpack.c.0.s8 %v3048
      %v3050 = vlaneseq
      %v3051 = vshrl.u32 %v3050, 7
      %v3052 = vsub.s32 %v3049, %v3051
      %v3053 = vrot.slane %v3030, %v3052
      %v3055 = vunpack.c.l.s4 1966171168
      %v3056 = vunpack.c.0.s8 %v3055
      %v3057 = vlaneseq
      %v3058 = vshrl.u32 %v3057, 7
      %v3059 = vsub.s32 %v3056, %v3058
      %v3060 = vrot.slane %v3031, %v3059
      %v3062 = vunpack.c.l.s4 1966171168
      %v3063 = vunpack.c.0.s8 %v3062
      %v3064 = vlaneseq
      %v3065 = vshrl.u32 %v3064, 7
      %v3066 = vsub.s32 %v3063, %v3065
      %v3067 = vrot.slane %v2893, %v3066
      %v3069 = vunpack.c.l.s4 1966171168
      %v3070 = vunpack.c.0.s8 %v3069
      %v3071 = vlaneseq
      %v3072 = vshrl.u32 %v3071, 7
      %v3073 = vsub.s32 %v3070, %v3072
      %v3074 = vrot.slane %v3032, %v3073
      %v3075 = vcombine.low %v3039, %v3053
      %v3076 = vcombine.high %v3039, %v3053
      %v3077 = vcombine.low %v3046, %v3060
      %v3078 = vcombine.high %v3046, %v3060
      %v3079 = vcombine.high %v3067, %v3067
      %v3080 = vcombine.high %v3074, %v3074
      %v3082 = vunpack.c.l.s4 1966171168
      %v3083 = vunpack.c.0.s8 %v3082
      %v3084 = vlaneseq
      %v3085 = vshrl.u32 %v3084, 7
      %v3086 = vsub.s32 %v3083, %v3085
      %v3087 = vrot.slane %v3075, %v3086
      %v3089 = vunpack.c.l.s4 1966171168
      %v3090 = vunpack.c.0.s8 %v3089
      %v3091 = vlaneseq
      %v3092 = vshrl.u32 %v3091, 7
      %v3093 = vsub.s32 %v3090, %v3092
      %v3094 = vrot.slane %v3077, %v3093
      %v3096 = vunpack.c.l.s4 1966171168
      %v3097 = vunpack.c.0.s8 %v3096
      %v3098 = vlaneseq
      %v3099 = vshrl.u32 %v3098, 7
      %v3100 = vsub.s32 %v3097, %v3099
      %v3101 = vrot.slane %v3076, %v3100
      %v3103 = vunpack.c.l.s4 1966171168
      %v3104 = vunpack.c.0.s8 %v3103
      %v3105 = vlaneseq
      %v3106 = vshrl.u32 %v3105, 7
      %v3107 = vsub.s32 %v3104, %v3106
      %v3108 = vrot.slane %v3078, %v3107
      %v3110 = vunpack.c.l.s4 1966171168
      %v3111 = vunpack.c.0.s8 %v3110
      %v3112 = vlaneseq
      %v3113 = vshrl.u32 %v3112, 7
      %v3114 = vsub.s32 %v3111, %v3113
      %v3115 = vrot.slane %v3067, %v3114
      %v3117 = vunpack.c.l.s4 1966171168
      %v3118 = vunpack.c.0.s8 %v3117
      %v3119 = vlaneseq
      %v3120 = vshrl.u32 %v3119, 7
      %v3121 = vsub.s32 %v3118, %v3120
      %v3122 = vrot.slane %v3074, %v3121
      %v3124 = vunpack.c.l.s4 1966171168
      %v3125 = vunpack.c.0.s8 %v3124
      %v3126 = vlaneseq
      %v3127 = vshrl.u32 %v3126, 7
      %v3128 = vsub.s32 %v3125, %v3127
      %v3129 = vrot.slane %v3079, %v3128
      %v3131 = vunpack.c.l.s4 1966171168
      %v3132 = vunpack.c.0.s8 %v3131
      %v3133 = vlaneseq
      %v3134 = vshrl.u32 %v3133, 7
      %v3135 = vsub.s32 %v3132, %v3134
      %v3136 = vrot.slane %v3080, %v3135
      %v3137 = vcombine.low %v3087, %v3115
      %v3138 = vcombine.high %v3087, %v3115
      %v3139 = vcombine.low %v3094, %v3122
      %v3140 = vcombine.high %v3094, %v3122
      %v3141 = vcombine.low %v3101, %v3129
      %v3142 = vcombine.high %v3101, %v3129
      %v3143 = vcombine.low %v3108, %v3136
      %v3144 = vcombine.high %v3108, %v3136
      %v3281 = vunpack.c.l.b16 %v2895
      %v3282 = vunpack.c.l.b16 %v2896
      %v3283 = vunpack.c.l.b16 %v2897
      %v3284 = vunpack.c.l.b16 %v2898
      %v3285 = vunpack.c.l.b16 %v2899
      %v3286 = vunpack.c.l.b16 %v2900
      %v3287 = vunpack.c.l.b16 %v2901
      %v3288 = vunpack.c.l.b16 %v2902
      %v3289 = vunpack.c.l.b16 %v2903
      %v3290 = vunpack.c.l.b16 %v2904
      %v3291 = vunpack.c.l.b16 %v2905
      %v3292 = vunpack.c.l.b16 %v2906
      %v3293 = vunpack.c.l.b16 %v2907
      %v3294 = vunpack.c.l.b16 %v2908
      %v3295 = vunpack.c.l.b16 %v2909
      %v3296 = vunpack.c.l.b16 %v2910
      %v3297 = vunpack.c.l.b16 %v2911
      %v3298 = vunpack.c.l.b16 %v2912
      %v3299 = vunpack.c.l.b16 %v2913
      %v3300 = vunpack.c.l.b16 %v2914
      %v3301 = vunpack.c.l.b16 %v2915
      %v3302 = vunpack.c.l.b16 %v2916
      %v3303 = vunpack.c.l.b16 %v2917
      %v3304 = vunpack.c.l.b16 %v2918
      %v3305 = vunpack.c.l.b16 %v2919
      %v3306 = vunpack.c.l.b16 %v2920
      %v3307 = vunpack.c.l.b16 %v2921
      %v3308 = vunpack.c.l.b16 %v2922
      %v3309 = vunpack.c.l.b16 %v2923
      %v3310 = vunpack.c.l.b16 %v2924
      %v3311 = vunpack.c.l.b16 %v2925
      %v3312 = vunpack.c.l.b16 %v2926
      %v3313 = vunpack.c.l.b16 %v2927
      %v3314 = vunpack.c.l.b16 %v2928
      %v3315 = vunpack.c.l.b16 %v2929
      %v3316 = vunpack.c.l.b16 %v2930
      %v3317 = vunpack.c.l.b16 %v2931
      %v3318 = vunpack.c.l.b16 %v2932
      %v3319 = vunpack.c.l.b16 %v2933
      %v3320 = vunpack.c.l.b16 %v2934
      %v3321 = vunpack.c.l.b16 %v2935
      %v3322 = vunpack.c.l.b16 %v2936
      %v3323 = vunpack.c.l.b16 %v2937
      %v3324 = vunpack.c.l.b16 %v2938
      %v3325 = vunpack.c.l.b16 %v2939
      %v3326 = vunpack.c.l.b16 %v2940
      %v3327 = vunpack.c.l.b16 %v2941
      %v3328 = vunpack.c.l.b16 %v2942
      %v3329 = vunpack.c.l.b16 %v2943
      %v3330 = vunpack.c.l.b16 %v2944
      %v3331 = vunpack.c.l.b16 %v2945
      %v3332 = vunpack.c.l.b16 %v2946
      %v3333 = vunpack.c.l.b16 %v2947
      %v3334 = vunpack.c.l.b16 %v2948
      %v3335 = vunpack.c.l.b16 %v2949
      %v3336 = vunpack.c.l.b16 %v2950
      %v3337 = vunpack.c.l.b16 %v2951
      %v3338 = vunpack.c.l.b16 %v2952
      %v3339 = vunpack.c.l.b16 %v2953
      %v3340 = vunpack.c.l.b16 %v2954
      %v3341 = vunpack.c.l.b16 %v2955
      %v3342 = vunpack.c.l.b16 %v2956
      %v3343 = vunpack.c.l.b16 %v2957
      %v3344 = vunpack.c.l.b16 %v2958
      %v3345 = vunpack.c.l.b16 %v2959
      %v3346 = vunpack.c.l.b16 %v2960
      %v3347 = vunpack.c.l.b16 %v2961
      %v3348 = vunpack.c.l.b16 %v2962
      %v3349 = vunpack.c.l.b16 %v2963
      %v3350 = vunpack.c.l.b16 %v2964
      %v3351 = vunpack.c.l.b16 %v2965
      %v3352 = vunpack.c.l.b16 %v2966
      %v3353 = vunpack.c.l.b16 %v2967
      %v3354 = vunpack.c.l.b16 %v2968
      %v3355 = vunpack.c.l.b16 %v2969
      %v3356 = vunpack.c.l.b16 %v2970
      %v3357 = vunpack.c.l.b16 %v2971
      %v3358 = vunpack.c.l.b16 %v2972
      %v3359 = vunpack.c.l.b16 %v2973
      %v3360 = vunpack.c.l.b16 %v2974
      %v3361 = vunpack.c.l.b16 %v2975
      %v3362 = vunpack.c.l.b16 %v2976
      %v3363 = vunpack.c.l.b16 %v2977
      %v3364 = vunpack.c.l.b16 %v2978
      %v3365 = vunpack.c.l.b16 %v2979
      %v3366 = vunpack.c.l.b16 %v2980
      %v3367 = vunpack.c.l.b16 %v2981
      %v3368 = vunpack.c.l.b16 %v2982
      %v3369 = vunpack.c.l.b16 %v2983
      %v3370 = vunpack.c.l.b16 %v2984
      %v3371 = vunpack.c.l.b16 %v2985
      %v3372 = vunpack.c.l.b16 %v2986
      %v3373 = vunpack.c.l.b16 %v2987
      %v3374 = vunpack.c.l.b16 %v2988
      %v3375 = vunpack.c.l.b16 %v2989
      %v3376 = vunpack.c.l.b16 %v2990
      %v3377 = vunpack.c.l.b16 %v2991
      %v3378 = vunpack.c.l.b16 %v2992
      %v3379 = vunpack.c.l.b16 %v2993
      %v3380 = vunpack.c.l.b16 %v2994
      %v3381 = vunpack.c.l.b16 %v2995
      %v3382 = vunpack.c.l.b16 %v2996
      %v3383 = vunpack.c.l.b16 %v2997
      %v3384 = vunpack.c.l.b16 %v2998
      %v3385 = vunpack.c.l.b16 %v2999
      %v3386 = vunpack.c.l.b16 %v3000
      %v3387 = vunpack.c.l.b16 %v3001
      %v3388 = vunpack.c.l.b16 %v3002
      %v3389 = vunpack.c.l.b16 %v3003
      %v3390 = vunpack.c.l.b16 %v3004
      %v3391 = vunpack.c.l.b16 %v3005
      %v3392 = vunpack.c.l.b16 %v3006
      %v3393 = vunpack.c.l.b16 %v3007
      %v3394 = vunpack.c.l.b16 %v3008
      %v3395 = vunpack.c.l.b16 %v3009
      %v3396 = vunpack.c.l.b16 %v3010
      %v3397 = vunpack.c.l.b16 %v3011
      %v3398 = vunpack.c.l.b16 %v3012
      %v3399 = vunpack.c.l.b16 %v3013
      %v3400 = vunpack.c.l.b16 %v3014
      %v3401 = vunpack.c.l.b16 %v3015
      %v3402 = vunpack.c.l.b16 %v3016
      %v3403 = vunpack.c.l.b16 %v3017
      %v3404 = vunpack.c.l.b16 %v3018
      %v3405 = vunpack.c.l.b16 %v3019
      %v3406 = vunpack.c.l.b16 %v3020
      %v3407 = vunpack.c.l.b16 %v3021
      %v3408 = vunpack.c.l.b16 %v3022
      %v3409 = vpack.c.b16 %v3282, %v3281
      %v3410 = vpack.c.b16 %v3284, %v3283
      %v3411 = vpack.c.b16 %v3286, %v3285
      %v3412 = vpack.c.b16 %v3288, %v3287
      %v3413 = vpack.c.b16 %v3290, %v3289
      %v3414 = vpack.c.b16 %v3292, %v3291
      %v3415 = vpack.c.b16 %v3294, %v3293
      %v3416 = vpack.c.b16 %v3296, %v3295
      %v3417 = vpack.c.b16 %v3298, %v3297
      %v3418 = vpack.c.b16 %v3300, %v3299
      %v3419 = vpack.c.b16 %v3302, %v3301
      %v3420 = vpack.c.b16 %v3304, %v3303
      %v3421 = vpack.c.b16 %v3306, %v3305
      %v3422 = vpack.c.b16 %v3308, %v3307
      %v3423 = vpack.c.b16 %v3310, %v3309
      %v3424 = vpack.c.b16 %v3312, %v3311
      %v3425 = vpack.c.b16 %v3314, %v3313
      %v3426 = vpack.c.b16 %v3316, %v3315
      %v3427 = vpack.c.b16 %v3318, %v3317
      %v3428 = vpack.c.b16 %v3320, %v3319
      %v3429 = vpack.c.b16 %v3322, %v3321
      %v3430 = vpack.c.b16 %v3324, %v3323
      %v3431 = vpack.c.b16 %v3326, %v3325
      %v3432 = vpack.c.b16 %v3328, %v3327
      %v3433 = vpack.c.b16 %v3330, %v3329
      %v3434 = vpack.c.b16 %v3332, %v3331
      %v3435 = vpack.c.b16 %v3334, %v3333
      %v3436 = vpack.c.b16 %v3336, %v3335
      %v3437 = vpack.c.b16 %v3338, %v3337
      %v3438 = vpack.c.b16 %v3340, %v3339
      %v3439 = vpack.c.b16 %v3342, %v3341
      %v3440 = vpack.c.b16 %v3344, %v3343
      %v3441 = vpack.c.b16 %v3346, %v3345
      %v3442 = vpack.c.b16 %v3348, %v3347
      %v3443 = vpack.c.b16 %v3350, %v3349
      %v3444 = vpack.c.b16 %v3352, %v3351
      %v3445 = vpack.c.b16 %v3354, %v3353
      %v3446 = vpack.c.b16 %v3356, %v3355
      %v3447 = vpack.c.b16 %v3358, %v3357
      %v3448 = vpack.c.b16 %v3360, %v3359
      %v3449 = vpack.c.b16 %v3362, %v3361
      %v3450 = vpack.c.b16 %v3364, %v3363
      %v3451 = vpack.c.b16 %v3366, %v3365
      %v3452 = vpack.c.b16 %v3368, %v3367
      %v3453 = vpack.c.b16 %v3370, %v3369
      %v3454 = vpack.c.b16 %v3372, %v3371
      %v3455 = vpack.c.b16 %v3374, %v3373
      %v3456 = vpack.c.b16 %v3376, %v3375
      %v3457 = vpack.c.b16 %v3378, %v3377
      %v3458 = vpack.c.b16 %v3380, %v3379
      %v3459 = vpack.c.b16 %v3382, %v3381
      %v3460 = vpack.c.b16 %v3384, %v3383
      %v3461 = vpack.c.b16 %v3386, %v3385
      %v3462 = vpack.c.b16 %v3388, %v3387
      %v3463 = vpack.c.b16 %v3390, %v3389
      %v3464 = vpack.c.b16 %v3392, %v3391
      %v3465 = vpack.c.b16 %v3394, %v3393
      %v3466 = vpack.c.b16 %v3396, %v3395
      %v3467 = vpack.c.b16 %v3398, %v3397
      %v3468 = vpack.c.b16 %v3400, %v3399
      %v3469 = vpack.c.b16 %v3402, %v3401
      %v3470 = vpack.c.b16 %v3404, %v3403
      %v3471 = vpack.c.b16 %v3406, %v3405
      %v3472 = vpack.c.b16 %v3408, %v3407
      %3537 = vmatprep.subr.bf16.mxu0 0
      %3538 = vmatpush1.bf16.msra.mxu0 %v3409
      %3539 = vmatprep.subr.bf16.mxu0 0
      %3540 = vmatpush1.bf16.msra.mxu0 %v3410
      %3541 = vmatprep.subr.bf16.mxu0 0
      %3542 = vmatpush1.bf16.msra.mxu0 %v3411
      %3543 = vmatprep.subr.bf16.mxu0 0
      %3544 = vmatpush1.bf16.msra.mxu0 %v3412
      %3545 = vmatprep.subr.bf16.mxu0 0
      %3546 = vmatpush1.bf16.msra.mxu0 %v3413
      %3547 = vmatprep.subr.bf16.mxu0 0
      %3548 = vmatpush1.bf16.msra.mxu0 %v3414
      %3549 = vmatprep.subr.bf16.mxu0 0
      %3550 = vmatpush1.bf16.msra.mxu0 %v3415
      %3551 = vmatprep.subr.bf16.mxu0 0
      %3552 = vmatpush1.bf16.msra.mxu0 %v3416
      %3553 = vmatprep.subr.bf16.mxu0 0
      %3554 = vmatpush1.bf16.msra.mxu0 %v3417
      %3555 = vmatprep.subr.bf16.mxu0 0
      %3556 = vmatpush1.bf16.msra.mxu0 %v3418
      %3557 = vmatprep.subr.bf16.mxu0 0
      %3558 = vmatpush1.bf16.msra.mxu0 %v3419
      %3559 = vmatprep.subr.bf16.mxu0 0
      %3560 = vmatpush1.bf16.msra.mxu0 %v3420
      %3561 = vmatprep.subr.bf16.mxu0 0
      %3562 = vmatpush1.bf16.msra.mxu0 %v3421
      %3563 = vmatprep.subr.bf16.mxu0 0
      %3564 = vmatpush1.bf16.msra.mxu0 %v3422
      %3565 = vmatprep.subr.bf16.mxu0 0
      %3566 = vmatpush1.bf16.msra.mxu0 %v3423
      %3567 = vmatprep.subr.bf16.mxu0 0
      %3568 = vmatpush1.bf16.msra.mxu0 %v3424
      %3569 = vmatprep.mubr.bf16.mxu0 %v3141
      %3570 = vmatmul.mubr.bf16.gmra.mrb[0].mxu0 %v3137
      %v3571 = vpop.f32.mrb[0].mxu0
      %v3572 = vadd.f32 0.0, %v3571
      %v3573 = vpop.f32.mrb[0].mxu0
      %v3574 = vpop.f32.mrb[0].mxu0
      %v3575 = vadd.f32 0.0, %v3574
      %v3576 = vpop.f32.mrb[0].mxu0
      %3577 = vdwg.mxu0
      %3578 = vmatprep.subr.bf16.mxu0 0
      %3579 = vmatpush1.bf16.msra.mxu0 %v3425
      %3580 = vmatprep.subr.bf16.mxu0 0
      %3581 = vmatpush1.bf16.msra.mxu0 %v3426
      %3582 = vmatprep.subr.bf16.mxu0 0
      %3583 = vmatpush1.bf16.msra.mxu0 %v3427
      %3584 = vmatprep.subr.bf16.mxu0 0
      %3585 = vmatpush1.bf16.msra.mxu0 %v3428
      %3586 = vmatprep.subr.bf16.mxu0 0
      %3587 = vmatpush1.bf16.msra.mxu0 %v3429
      %3588 = vmatprep.subr.bf16.mxu0 0
      %3589 = vmatpush1.bf16.msra.mxu0 %v3430
      %3590 = vmatprep.subr.bf16.mxu0 0
      %3591 = vmatpush1.bf16.msra.mxu0 %v3431
      %3592 = vmatprep.subr.bf16.mxu0 0
      %3593 = vmatpush1.bf16.msra.mxu0 %v3432
      %3594 = vmatprep.subr.bf16.mxu0 0
      %3595 = vmatpush1.bf16.msra.mxu0 %v3433
      %3596 = vmatprep.subr.bf16.mxu0 0
      %3597 = vmatpush1.bf16.msra.mxu0 %v3434
      %3598 = vmatprep.subr.bf16.mxu0 0
      %3599 = vmatpush1.bf16.msra.mxu0 %v3435
      %3600 = vmatprep.subr.bf16.mxu0 0
      %3601 = vmatpush1.bf16.msra.mxu0 %v3436
      %3602 = vmatprep.subr.bf16.mxu0 0
      %3603 = vmatpush1.bf16.msra.mxu0 %v3437
      %3604 = vmatprep.subr.bf16.mxu0 0
      %3605 = vmatpush1.bf16.msra.mxu0 %v3438
      %3606 = vmatprep.subr.bf16.mxu0 0
      %3607 = vmatpush1.bf16.msra.mxu0 %v3439
      %3608 = vmatprep.subr.bf16.mxu0 0
      %3609 = vmatpush1.bf16.msra.mxu0 %v3440
      %3610 = vmatprep.mubr.bf16.mxu0 %v3142
      %3611 = vmatmul.mubr.bf16.gmra.mrb[0].mxu0 %v3138
      %v3612 = vpop.f32.mrb[0].mxu0
      %v3613 = vadd.f32 %v3572, %v3612
      %v3614 = vpop.f32.mrb[0].mxu0
      %v3615 = vpop.f32.mrb[0].mxu0
      %v3616 = vadd.f32 %v3575, %v3615
      %v3617 = vpop.f32.mrb[0].mxu0
      %3618 = vdwg.mxu0
      %3619 = vmatprep.subr.bf16.mxu0 0
      %3620 = vmatpush1.bf16.msra.mxu0 %v3441
      %3621 = vmatprep.subr.bf16.mxu0 0
      %3622 = vmatpush1.bf16.msra.mxu0 %v3442
      %3623 = vmatprep.subr.bf16.mxu0 0
      %3624 = vmatpush1.bf16.msra.mxu0 %v3443
      %3625 = vmatprep.subr.bf16.mxu0 0
      %3626 = vmatpush1.bf16.msra.mxu0 %v3444
      %3627 = vmatprep.subr.bf16.mxu0 0
      %3628 = vmatpush1.bf16.msra.mxu0 %v3445
      %3629 = vmatprep.subr.bf16.mxu0 0
      %3630 = vmatpush1.bf16.msra.mxu0 %v3446
      %3631 = vmatprep.subr.bf16.mxu0 0
      %3632 = vmatpush1.bf16.msra.mxu0 %v3447
      %3633 = vmatprep.subr.bf16.mxu0 0
      %3634 = vmatpush1.bf16.msra.mxu0 %v3448
      %3635 = vmatprep.subr.bf16.mxu0 0
      %3636 = vmatpush1.bf16.msra.mxu0 %v3449
      %3637 = vmatprep.subr.bf16.mxu0 0
      %3638 = vmatpush1.bf16.msra.mxu0 %v3450
      %3639 = vmatprep.subr.bf16.mxu0 0
      %3640 = vmatpush1.bf16.msra.mxu0 %v3451
      %3641 = vmatprep.subr.bf16.mxu0 0
      %3642 = vmatpush1.bf16.msra.mxu0 %v3452
      %3643 = vmatprep.subr.bf16.mxu0 0
      %3644 = vmatpush1.bf16.msra.mxu0 %v3453
      %3645 = vmatprep.subr.bf16.mxu0 0
      %3646 = vmatpush1.bf16.msra.mxu0 %v3454
      %3647 = vmatprep.subr.bf16.mxu0 0
      %3648 = vmatpush1.bf16.msra.mxu0 %v3455
      %3649 = vmatprep.subr.bf16.mxu0 0
      %3650 = vmatpush1.bf16.msra.mxu0 %v3456
      %3651 = vmatprep.mubr.bf16.mxu0 %v3143
      %3652 = vmatmul.mubr.bf16.gmra.mrb[0].mxu0 %v3139
      %v3653 = vpop.f32.mrb[0].mxu0
      %v3654 = vadd.f32 %v3613, %v3653
      %v3655 = vpop.f32.mrb[0].mxu0
      %v3656 = vpop.f32.mrb[0].mxu0
      %v3657 = vadd.f32 %v3616, %v3656
      %v3658 = vpop.f32.mrb[0].mxu0
      %3659 = vdwg.mxu0
      %3660 = vmatprep.subr.bf16.mxu0 0
      %3661 = vmatpush1.bf16.msra.mxu0 %v3457
      %3662 = vmatprep.subr.bf16.mxu0 0
      %3663 = vmatpush1.bf16.msra.mxu0 %v3458
      %3664 = vmatprep.subr.bf16.mxu0 0
      %3665 = vmatpush1.bf16.msra.mxu0 %v3459
      %3666 = vmatprep.subr.bf16.mxu0 0
      %3667 = vmatpush1.bf16.msra.mxu0 %v3460
      %3668 = vmatprep.subr.bf16.mxu0 0
      %3669 = vmatpush1.bf16.msra.mxu0 %v3461
      %3670 = vmatprep.subr.bf16.mxu0 0
      %3671 = vmatpush1.bf16.msra.mxu0 %v3462
      %3672 = vmatprep.subr.bf16.mxu0 0
      %3673 = vmatpush1.bf16.msra.mxu0 %v3463
      %3674 = vmatprep.subr.bf16.mxu0 0
      %3675 = vmatpush1.bf16.msra.mxu0 %v3464
      %3676 = vmatprep.subr.bf16.mxu0 0
      %3677 = vmatpush1.bf16.msra.mxu0 %v3465
      %3678 = vmatprep.subr.bf16.mxu0 0
      %3679 = vmatpush1.bf16.msra.mxu0 %v3466
      %3680 = vmatprep.subr.bf16.mxu0 0
      %3681 = vmatpush1.bf16.msra.mxu0 %v3467
      %3682 = vmatprep.subr.bf16.mxu0 0
      %3683 = vmatpush1.bf16.msra.mxu0 %v3468
      %3684 = vmatprep.subr.bf16.mxu0 0
      %3685 = vmatpush1.bf16.msra.mxu0 %v3469
      %3686 = vmatprep.subr.bf16.mxu0 0
      %3687 = vmatpush1.bf16.msra.mxu0 %v3470
      %3688 = vmatprep.subr.bf16.mxu0 0
      %3689 = vmatpush1.bf16.msra.mxu0 %v3471
      %3690 = vmatprep.subr.bf16.mxu0 0
      %3691 = vmatpush1.bf16.msra.mxu0 %v3472
      %3692 = vmatprep.mubr.bf16.mxu0 %v3144
      %3693 = vmatmul.mubr.bf16.gmra.mrb[0].mxu0 %v3140
      %v3694 = vpop.f32.mrb[0].mxu0
      %v3695 = vadd.f32 %v3654, %v3694
      %v3696 = vpop.f32.mrb[0].mxu0
      %v3697 = vpop.f32.mrb[0].mxu0
      %v3698 = vadd.f32 %v3657, %v3697
      %v3699 = vpop.f32.mrb[0].mxu0
      %3700 = vdwg.mxu0
      %v3701 = vadd.f32 %v2889, %v3695
      %v3702 = vadd.f32 %v2890, %v3698
      %v3703 = vld [vmem:[%s2] sm:$0x1]
      %v3705 = vlaneseq
      %v3706 = vshrl.u32 %v3705, 7
      %v3707 = vsub.s32 0, %v3706
      %v3708 = vrot.slane %v3703, %v3707
      %v3710 = vmul.f32 %v3701, %v3708
      %v3711 = vmul.f32 %v3702, %v3708
      %v3712 = vld [vmem:[%s3] sm:$0x1]
      %v3714 = vlaneseq
      %v3715 = vshrl.u32 %v3714, 7
      %v3716 = vsub.s32 0, %v3715
      %v3717 = vrot.slane %v3712, %v3716
      %v3719 = vadd.f32 %v3710, %v3717
      %v3720 = vadd.f32 %v3711, %v3717
      %v3721 = vpack.c.bf16 %v3720, %v3719
      %v3723 = vunpack.c.l.b16 %v3721
      %v3724 = vunpack.c.h.b16 %v3721
      %v3725 = vpack.c.b16 %v3723, %v3723
      %v3726 = vpack.c.b16 %v3724, %v3724
      %3729 = vst [vmem:[%s238] sm:$0xf] %v3725
      %vm3730 = vcmask 1040384
      %vm3731 = vsmask.f32 256
      %vm3732 = vmand %vm3730, %vm3731
      %v3733 = vld [vmem:[%s238 + $0x4] sm:$0x1]
      %v3734 = vsel %vm3732, %v3726, %v3733
      %3735 = vst [vmem:[%s238 + $0x4] sm:$0x1] %v3734
      %s3736 = smul.u32 2, %s20
      %p3737 = scmp.lt.s32.totalorder %s19, 1
      %s3738 = scalar_select %p3737, %s19, 1
      %p3739 = scmp.lt.s32.totalorder %s3736, 1
      %s3740 = scalar_select %p3739, %s3736, 1
      %s3741 = smul.addr %s3738, 2
      %s3742 = sadd.s32 %s3740, %s3741
      %s3743 = smul.addr %s3742, 4
      %s3744 = scalar_lea.vmem %s4, %s3743
      // Predicated region
      $region37: #{patch_discriminator.7} parent=35 // pred_check
        %p3745 = pneg %p138
      $region38: #{patch_discriminator.7} parent=35 // pred_check_branch
        %3747 = sbr.rel (%p3745) target = $region40
      $region39: #{patch_discriminator.7} parent=35 // pred_region
        %s3748 = smul.u32 2, %s20
      $region40: #{patch_discriminator.7} parent=35 // pred_fallthru
        _
    $region36: #{patch_discriminator.7} parent=5 // pred_fallthru
      _
    %p3749 = scmp.le.s32.totalorder 2, %s10
    // Predicated region
    $region41: #{patch_discriminator.7} parent=5 // pred_check
      %p3750 = pneg %p3749
    $region42: #{patch_discriminator.7} parent=5 // pred_check_branch
      %3752 = sbr.rel (%p3750) target = $region44
    $region43: #{patch_discriminator.7} parent=5 // pred_region
      %s3753 = ssub.s32 %s10, 2
      // Predicated region
      $region45: #{patch_discriminator.7} parent=43 // pred_check
        %p3754 = pneg %p144
      $region46: #{patch_discriminator.7} parent=43 // pred_check_branch
        %3756 = sbr.rel (%p3754) target = $region48
      $region47: #{patch_discriminator.7} parent=43 // pred_region
        %s3757 = smul.u32 2, %s22
        %p3758 = scmp.lt.s32.totalorder %s21, 1
        %s3759 = scalar_select %p3758, %s21, 1
        %p3760 = scmp.lt.s32.totalorder %s3757, 1
        %s3761 = scalar_select %p3760, %s3757, 1
        %s3762 = smul.addr %s3759, 2
        %s3763 = sadd.s32 %s3761, %s3762
        %s3764 = smul.addr %s3763, 4
        %s3765 = scalar_lea.vmem %s4, %s3764
      $region48: #{patch_discriminator.7} parent=43 // pred_fallthru
        _
    $region44: #{patch_discriminator.7} parent=5 // pred_fallthru
      _
  $region6: #{patch_discriminator.7} parent=0 // loop_footer
    %s14 = sadd.s32 1, %s10
  $region7: #{patch_discriminator.7} parent=0 // loop_footer_branch
    %9 = sbr.rel target = $region3
  $region8: #{patch_discriminator.7} parent=0 // loop_exit
    _

</llo_original>
